<compile_context>
chip_gen: v7x
topology: tpu7x:2x2x1
jax: 0.10.0
libtpu: 0.0.40
codegen_flags: <defaults>
</compile_context>

<pallas_src>
import functools

import jax
import jax.numpy as jnp
from jax.experimental import pallas as pl
from jax.experimental.pallas import tpu as pltpu


def _cnn_fused_kernel(x_ref, w1_ref, b1_ref, wh_ref, bh_ref, wo_ref, bo_ref,
                      o_ref, pad_in, pad_hid, p_in, p_hid,
                      *, H, W, K, C_in, C_emb, n_hidden, neg_slope):
    """One batch element per grid step; the whole network runs out of VMEM.

    x_ref : (1, H, W, C_in)            f32 input tile
    w1_ref: (K*K*C_in, C_emb)          bf16 im2col weights, input layer
    b1_ref: (1, C_emb)                 f32
    wh_ref: (L, K*K*C_emb, C_emb)      bf16 im2col weights, hidden layers
    bh_ref: (L, 1, C_emb)              f32
    wo_ref: (C_emb, C_in)              bf16 1x1 output weights
    bo_ref: (1, C_in)                  f32
    o_ref : (1, H*W, C_in)             f32 output tile
    pad_in / pad_hid : zero-padded activation scratch (f32)
    p_in / p_hid     : im2col patch scratch (f32)
    """
    pad = K // 2
    HW = H * W

    def leaky(v):
        return jnp.where(v >= 0, v, neg_slope * v)

    def conv3x3(pad_ref, patches_ref, C, w, b):
        # Gather the KxK shifted taps into an im2col patch tensor (H, W, K*K*C),
        # then do one big MXU matmul in bf16 with f32 accumulation.
        for dy in range(K):
            for dx in range(K):
                t = dy * K + dx
                patches_ref[:, :, t * C:(t + 1) * C] = \
                    pad_ref[dy:dy + H, dx:dx + W, :]
            # taps are pure VMEM slice copies; shifts cost no MXU/VALU work.
        patches = patches_ref[...].reshape(HW, K * K * C).astype(jnp.bfloat16)
        acc = jnp.dot(patches, w, preferred_element_type=jnp.float32)
        return acc + b                                    # (HW, C_out) f32

    # ---- input layer: n_chan -> chan_embed, 3x3 'same', LeakyReLU ----
    pad_in[...] = jnp.zeros_like(pad_in)
    pad_in[pad:pad + H, pad:pad + W, :] = x_ref[0]
    act = leaky(conv3x3(pad_in, p_in, C_in, w1_ref[...], b1_ref[...]))

    # ---- hidden layers: chan_embed -> chan_embed, 3x3 'same', LeakyReLU ----
    for l in range(n_hidden):
        pad_hid[...] = jnp.zeros_like(pad_hid)
        pad_hid[pad:pad + H, pad:pad + W, :] = act.reshape(H, W, C_emb)
        act = leaky(conv3x3(pad_hid, p_hid, C_emb, wh_ref[l], bh_ref[l]))

    # ---- 1x1 output layer: chan_embed -> n_chan, no activation (fused) ----
    out = jnp.dot(act.astype(jnp.bfloat16), wo_ref[...],
                  preferred_element_type=jnp.float32) + bo_ref[...]
    o_ref[0] = out.astype(o_ref.dtype)   # tiny (~4 KiB) single store per step


def cnn_forward(params, x_nchw, *, neg_slope=0.2):
    """Forward pass equivalent to CNN.forward. Input/output are NCHW like PyTorch."""
    N, C, H, W = x_nchw.shape
    w1, b1 = params["input"]
    hidden = params["hidden"]
    wo, bo = params["output"]

    K = w1.shape[0]
    C_emb = w1.shape[-1]
    n_hidden = len(hidden)
    pad = K // 2
    Hp, Wp = H + 2 * pad, W + 2 * pad
    HW = H * W

    x_nhwc = jnp.transpose(x_nchw, (0, 2, 3, 1))            # NCHW -> NHWC

    # Flatten 3x3 weights to im2col layout (K*K*Cin, Cout); MXU operands in bf16.
    w1_f = w1.reshape(K * K * C, C_emb).astype(jnp.bfloat16)
    b1_f = b1.reshape(1, C_emb).astype(jnp.float32)
    wh_f = jnp.stack([w.reshape(K * K * C_emb, C_emb) for w, _ in hidden]
                     ).astype(jnp.bfloat16)                 # (L, 9*Ce, Ce)
    bh_f = jnp.stack([b for _, b in hidden]
                     ).reshape(n_hidden, 1, C_emb).astype(jnp.float32)
    wo_f = wo.reshape(C_emb, C).astype(jnp.bfloat16)        # 1x1 conv -> (Ce, C)
    bo_f = bo.reshape(1, C).astype(jnp.float32)

    kern = functools.partial(
        _cnn_fused_kernel, H=H, W=W, K=K, C_in=C, C_emb=C_emb,
        n_hidden=n_hidden, neg_slope=neg_slope)

    out_flat = pl.pallas_call(
        kern,
        out_shape=jax.ShapeDtypeStruct((N, HW, C), x_nchw.dtype),
        grid_spec=pltpu.PrefetchScalarGridSpec(
            num_scalar_prefetch=0,
            grid=(N,),
            in_specs=[
                pl.BlockSpec((1, H, W, C), lambda n: (n, 0, 0, 0)),
                pl.BlockSpec((K * K * C, C_emb), lambda n: (0, 0)),
                pl.BlockSpec((1, C_emb), lambda n: (0, 0)),
                pl.BlockSpec((n_hidden, K * K * C_emb, C_emb), lambda n: (0, 0, 0)),
                pl.BlockSpec((n_hidden, 1, C_emb), lambda n: (0, 0, 0)),
                pl.BlockSpec((C_emb, C), lambda n: (0, 0)),
                pl.BlockSpec((1, C), lambda n: (0, 0)),
            ],
            out_specs=pl.BlockSpec((1, HW, C), lambda n: (n, 0, 0)),
            scratch_shapes=[
                pltpu.VMEM((Hp, Wp, C), jnp.float32),            # padded input act
                pltpu.VMEM((Hp, Wp, C_emb), jnp.float32),        # padded hidden act
                pltpu.VMEM((H, W, K * K * C), jnp.float32),      # im2col patches (in)
                pltpu.VMEM((H, W, K * K * C_emb), jnp.float32),  # im2col patches (hid)
            ],
        ),
        compiler_params=pltpu.CompilerParams(
            dimension_semantics=("parallel",)),
    )(x_nhwc, w1_f, b1_f, wh_f, bh_f, wo_f, bo_f)

    # (N, H*W, C) -> (N, H, W, C) -> NCHW
    return jnp.transpose(out_flat.reshape(N, H, W, C), (0, 3, 1, 2))


def _conv_init(key, k, c_in, c_out):
    # Deterministic init mirroring nn.Conv2d default (uniform +- 1/sqrt(fan_in)).
    kw, kb = jax.random.split(key)
    fan_in = c_in * k * k
    bound = 1.0 / (fan_in ** 0.5)
    w = jax.random.uniform(kw, (k, k, c_in, c_out), jnp.float32, -bound, bound)
    b = jax.random.uniform(kb, (c_out,), jnp.float32, -bound, bound)
    return w, b


def init_params(key, n_chan, chan_embed=48, num_hidden_layers=2):
    keys = jax.random.split(key, num_hidden_layers + 2)
    return {
        "input": _conv_init(keys[0], 3, n_chan, chan_embed),
        "hidden": [_conv_init(keys[1 + i], 3, chan_embed, chan_embed)
                   for i in range(num_hidden_layers)],
        "output": _conv_init(keys[-1], 1, chan_embed, n_chan),
    }


def _reference_forward(params, x_nchw, *, mimic_bf16):
    # Pure-JAX reference using lax.conv. With mimic_bf16=True it reproduces the
    # kernel's precision strategy (bf16 matmul operands, f32 accumulation).
    def conv(x, w, b, act):
        lhs = x.astype(jnp.bfloat16) if mimic_bf16 else x
        rhs = w.astype(jnp.bfloat16) if mimic_bf16 else w
        y = jax.lax.conv_general_dilated(
            lhs, rhs, window_strides=(1, 1), padding="SAME",
            dimension_numbers=("NHWC", "HWIO", "NHWC"),
            preferred_element_type=jnp.float32) + b
        return jnp.where(y >= 0, y, 0.2 * y) if act else y

    x = jnp.transpose(x_nchw, (0, 2, 3, 1))
    w, b = params["input"]
    x = conv(x, w, b, True)
    for w, b in params["hidden"]:
        x = conv(x, w, b, True)
    w, b = params["output"]
    x = conv(x, w, b, False)
    return jnp.transpose(x, (0, 3, 1, 2))


if __name__ == "__main__":
    key = jax.random.PRNGKey(0)
    k_x, k_p = jax.random.split(key)

    N, C, H, W = 2, 4, 16, 16          # batch=2, n_chan=4, spatial=16
    CHAN_EMBED = 32
    NUM_HIDDEN = 2

    x = jax.random.normal(k_x, (N, C, H, W), jnp.float32)
    params = init_params(k_p, n_chan=C, chan_embed=CHAN_EMBED,
                         num_hidden_layers=NUM_HIDDEN)

    out = jax.block_until_ready(cnn_forward(params, x))
    assert out.shape == (N, C, H, W), out.shape

    # Strict check vs. a reference that mimics the kernel's bf16/f32 precision.
    ref_bf16 = jax.block_until_ready(_reference_forward(params, x, mimic_bf16=True))
    assert jnp.allclose(out, ref_bf16, atol=2e-3, rtol=2e-3), \
        float(jnp.max(jnp.abs(out - ref_bf16)))

    # Loose sanity check vs. the full-f32 reference (bf16 operand rounding only).
    ref_f32 = jax.block_until_ready(_reference_forward(params, x, mimic_bf16=False))
    assert jnp.allclose(out, ref_f32, atol=1e-1, rtol=1e-1), \
        float(jnp.max(jnp.abs(out - ref_f32)))

    print("KERNEL_OK")
</pallas_src>

<mosaic_0001>
module attributes {stable_mosaic.version = 11 : i64} {
  func.func @_cnn_fused_kernel(%arg0: i32, %arg1: memref<1x16x16x4xf32, #tpu.memory_space<vmem>>, %arg2: memref<36x32xbf16, #tpu.memory_space<vmem>>, %arg3: memref<1x32xf32, #tpu.memory_space<vmem>>, %arg4: memref<2x288x32xbf16, #tpu.memory_space<vmem>>, %arg5: memref<2x1x32xf32, #tpu.memory_space<vmem>>, %arg6: memref<32x4xbf16, #tpu.memory_space<vmem>>, %arg7: memref<1x4xf32, #tpu.memory_space<vmem>>, %arg8: memref<1x256x4xf32, #tpu.memory_space<vmem>>, %arg9: memref<18x18x4xf32, #tpu.memory_space<vmem>>, %arg10: memref<18x18x32xf32, #tpu.memory_space<vmem>>, %arg11: memref<16x16x36xf32, #tpu.memory_space<vmem>>, %arg12: memref<16x16x288xf32, #tpu.memory_space<vmem>>) attributes {dimension_semantics = [#tpu.dimension_semantics<parallel>], iteration_bounds = array<i64: 2>, scalar_prefetch = 0 : i64, scratch_operands = 4 : i64, tpu.core_type = #tpu.core_type<tc>, window_params = [{transform_indices = @transform_0, window_bounds = array<i64: 1, 16, 16, 4>}, {pipeline_mode = #tpu.pipeline_mode<synchronous>, transform_indices = @transform_1, window_bounds = array<i64: 36, 32>}, {pipeline_mode = #tpu.pipeline_mode<synchronous>, transform_indices = @transform_2, window_bounds = array<i64: 1, 32>}, {pipeline_mode = #tpu.pipeline_mode<synchronous>, transform_indices = @transform_3, window_bounds = array<i64: 2, 288, 32>}, {pipeline_mode = #tpu.pipeline_mode<synchronous>, transform_indices = @transform_4, window_bounds = array<i64: 2, 1, 32>}, {pipeline_mode = #tpu.pipeline_mode<synchronous>, transform_indices = @transform_5, window_bounds = array<i64: 32, 4>}, {pipeline_mode = #tpu.pipeline_mode<synchronous>, transform_indices = @transform_6, window_bounds = array<i64: 1, 4>}, {transform_indices = @transform_7, window_bounds = array<i64: 1, 256, 4>}]} {
    %cst = arith.constant 0.000000e+00 : f32
    %0 = vector.broadcast %cst : f32 to vector<18x18x4xf32>
    %c0 = arith.constant 0 : index
    %c0_0 = arith.constant 0 : index
    %c0_1 = arith.constant 0 : index
    %1 = vector.load %arg9[%c0, %c0_0, %c0_1] : memref<18x18x4xf32, #tpu.memory_space<vmem>>, vector<18x18x4xf32>
    tpu.vector_store %arg9[%c0, %c0_0, %c0_1], %0 {strides = array<i32>} : memref<18x18x4xf32, #tpu.memory_space<vmem>>, vector<18x18x4xf32>,
    %c0_2 = arith.constant 0 : index
    %c0_3 = arith.constant 0 : index
    %c0_4 = arith.constant 0 : index
    %c0_5 = arith.constant 0 : index
    %2 = vector.load %arg1[%c0_2, %c0_3, %c0_4, %c0_5] : memref<1x16x16x4xf32, #tpu.memory_space<vmem>>, vector<1x16x16x4xf32>
    %3 = vector.shape_cast %2 : vector<1x16x16x4xf32> to vector<16x16x4xf32>
    %c1 = arith.constant 1 : index
    %c1_6 = arith.constant 1 : index
    %c0_7 = arith.constant 0 : index
    %4 = vector.load %arg9[%c1, %c1_6, %c0_7] : memref<18x18x4xf32, #tpu.memory_space<vmem>>, vector<16x16x4xf32>
    tpu.vector_store %arg9[%c1, %c1_6, %c0_7], %3 {strides = array<i32>} : memref<18x18x4xf32, #tpu.memory_space<vmem>>, vector<16x16x4xf32>,
    %c0_8 = arith.constant 0 : index
    %c0_9 = arith.constant 0 : index
    %5 = vector.load %arg2[%c0_8, %c0_9] : memref<36x32xbf16, #tpu.memory_space<vmem>>, vector<36x32xbf16>
    %c0_10 = arith.constant 0 : index
    %c0_11 = arith.constant 0 : index
    %6 = vector.load %arg3[%c0_10, %c0_11] : memref<1x32xf32, #tpu.memory_space<vmem>>, vector<1x32xf32>
    %c0_12 = arith.constant 0 : index
    %c0_13 = arith.constant 0 : index
    %c0_14 = arith.constant 0 : index
    %7 = vector.load %arg9[%c0_12, %c0_13, %c0_14] : memref<18x18x4xf32, #tpu.memory_space<vmem>>, vector<16x16x4xf32>
    %c0_15 = arith.constant 0 : index
    %c0_16 = arith.constant 0 : index
    %c0_17 = arith.constant 0 : index
    %8 = vector.load %arg11[%c0_15, %c0_16, %c0_17] : memref<16x16x36xf32, #tpu.memory_space<vmem>>, vector<16x16x4xf32>
    tpu.vector_store %arg11[%c0_15, %c0_16, %c0_17], %7 {strides = array<i32>} : memref<16x16x36xf32, #tpu.memory_space<vmem>>, vector<16x16x4xf32>,
    %c0_18 = arith.constant 0 : index
    %c1_19 = arith.constant 1 : index
    %c0_20 = arith.constant 0 : index
    %9 = vector.load %arg9[%c0_18, %c1_19, %c0_20] : memref<18x18x4xf32, #tpu.memory_space<vmem>>, vector<16x16x4xf32>
    %c0_21 = arith.constant 0 : index
    %c0_22 = arith.constant 0 : index
    %c4 = arith.constant 4 : index
    %10 = vector.load %arg11[%c0_21, %c0_22, %c4] : memref<16x16x36xf32, #tpu.memory_space<vmem>>, vector<16x16x4xf32>
    tpu.vector_store %arg11[%c0_21, %c0_22, %c4], %9 {strides = array<i32>} : memref<16x16x36xf32, #tpu.memory_space<vmem>>, vector<16x16x4xf32>,
    %c0_23 = arith.constant 0 : index
    %c2 = arith.constant 2 : index
    %c0_24 = arith.constant 0 : index
    %11 = vector.load %arg9[%c0_23, %c2, %c0_24] : memref<18x18x4xf32, #tpu.memory_space<vmem>>, vector<16x16x4xf32>
    %c0_25 = arith.constant 0 : index
    %c0_26 = arith.constant 0 : index
    %c8 = arith.constant 8 : index
    %12 = vector.load %arg11[%c0_25, %c0_26, %c8] : memref<16x16x36xf32, #tpu.memory_space<vmem>>, vector<16x16x4xf32>
    tpu.vector_store %arg11[%c0_25, %c0_26, %c8], %11 {strides = array<i32>} : memref<16x16x36xf32, #tpu.memory_space<vmem>>, vector<16x16x4xf32>,
    %c1_27 = arith.constant 1 : index
    %c0_28 = arith.constant 0 : index
    %c0_29 = arith.constant 0 : index
    %13 = vector.load %arg9[%c1_27, %c0_28, %c0_29] : memref<18x18x4xf32, #tpu.memory_space<vmem>>, vector<16x16x4xf32>
    %c0_30 = arith.constant 0 : index
    %c0_31 = arith.constant 0 : index
    %c12 = arith.constant 12 : index
    %14 = vector.load %arg11[%c0_30, %c0_31, %c12] : memref<16x16x36xf32, #tpu.memory_space<vmem>>, vector<16x16x4xf32>
    tpu.vector_store %arg11[%c0_30, %c0_31, %c12], %13 {strides = array<i32>} : memref<16x16x36xf32, #tpu.memory_space<vmem>>, vector<16x16x4xf32>,
    %c1_32 = arith.constant 1 : index
    %c1_33 = arith.constant 1 : index
    %c0_34 = arith.constant 0 : index
    %15 = vector.load %arg9[%c1_32, %c1_33, %c0_34] : memref<18x18x4xf32, #tpu.memory_space<vmem>>, vector<16x16x4xf32>
    %c0_35 = arith.constant 0 : index
    %c0_36 = arith.constant 0 : index
    %c16 = arith.constant 16 : index
    %16 = vector.load %arg11[%c0_35, %c0_36, %c16] : memref<16x16x36xf32, #tpu.memory_space<vmem>>, vector<16x16x4xf32>
    tpu.vector_store %arg11[%c0_35, %c0_36, %c16], %15 {strides = array<i32>} : memref<16x16x36xf32, #tpu.memory_space<vmem>>, vector<16x16x4xf32>,
    %c1_37 = arith.constant 1 : index
    %c2_38 = arith.constant 2 : index
    %c0_39 = arith.constant 0 : index
    %17 = vector.load %arg9[%c1_37, %c2_38, %c0_39] : memref<18x18x4xf32, #tpu.memory_space<vmem>>, vector<16x16x4xf32>
    %c0_40 = arith.constant 0 : index
    %c0_41 = arith.constant 0 : index
    %c20 = arith.constant 20 : index
    %18 = vector.load %arg11[%c0_40, %c0_41, %c20] : memref<16x16x36xf32, #tpu.memory_space<vmem>>, vector<16x16x4xf32>
    tpu.vector_store %arg11[%c0_40, %c0_41, %c20], %17 {strides = array<i32>} : memref<16x16x36xf32, #tpu.memory_space<vmem>>, vector<16x16x4xf32>,
    %c2_42 = arith.constant 2 : index
    %c0_43 = arith.constant 0 : index
    %c0_44 = arith.constant 0 : index
    %19 = vector.load %arg9[%c2_42, %c0_43, %c0_44] : memref<18x18x4xf32, #tpu.memory_space<vmem>>, vector<16x16x4xf32>
    %c0_45 = arith.constant 0 : index
    %c0_46 = arith.constant 0 : index
    %c24 = arith.constant 24 : index
    %20 = vector.load %arg11[%c0_45, %c0_46, %c24] : memref<16x16x36xf32, #tpu.memory_space<vmem>>, vector<16x16x4xf32>
    tpu.vector_store %arg11[%c0_45, %c0_46, %c24], %19 {strides = array<i32>} : memref<16x16x36xf32, #tpu.memory_space<vmem>>, vector<16x16x4xf32>,
    %c2_47 = arith.constant 2 : index
    %c1_48 = arith.constant 1 : index
    %c0_49 = arith.constant 0 : index
    %21 = vector.load %arg9[%c2_47, %c1_48, %c0_49] : memref<18x18x4xf32, #tpu.memory_space<vmem>>, vector<16x16x4xf32>
    %c0_50 = arith.constant 0 : index
    %c0_51 = arith.constant 0 : index
    %c28 = arith.constant 28 : index
    %22 = vector.load %arg11[%c0_50, %c0_51, %c28] : memref<16x16x36xf32, #tpu.memory_space<vmem>>, vector<16x16x4xf32>
    tpu.vector_store %arg11[%c0_50, %c0_51, %c28], %21 {strides = array<i32>} : memref<16x16x36xf32, #tpu.memory_space<vmem>>, vector<16x16x4xf32>,
    %c2_52 = arith.constant 2 : index
    %c2_53 = arith.constant 2 : index
    %c0_54 = arith.constant 0 : index
    %23 = vector.load %arg9[%c2_52, %c2_53, %c0_54] : memref<18x18x4xf32, #tpu.memory_space<vmem>>, vector<16x16x4xf32>
    %c0_55 = arith.constant 0 : index
    %c0_56 = arith.constant 0 : index
    %c32 = arith.constant 32 : index
    %24 = vector.load %arg11[%c0_55, %c0_56, %c32] : memref<16x16x36xf32, #tpu.memory_space<vmem>>, vector<16x16x4xf32>
    tpu.vector_store %arg11[%c0_55, %c0_56, %c32], %23 {strides = array<i32>} : memref<16x16x36xf32, #tpu.memory_space<vmem>>, vector<16x16x4xf32>,
    %c0_57 = arith.constant 0 : index
    %c0_58 = arith.constant 0 : index
    %c0_59 = arith.constant 0 : index
    %25 = vector.load %arg11[%c0_57, %c0_58, %c0_59] : memref<16x16x36xf32, #tpu.memory_space<vmem>>, vector<16x16x36xf32>
    %26 = vector.shape_cast %25 : vector<16x16x36xf32> to vector<256x36xf32>
    %27 = arith.truncf %26 : vector<256x36xf32> to vector<256x36xbf16>
    %cst_60 = arith.constant dense<0.000000e+00> : vector<256x32xf32>
    %28 = tpu.matmul %27, %5, %cst_60 {dimension_numbers = #tpu.dot_dimension_numbers<[1], [0], [0], [1], [0, 0, 1, 1], [], []>} : vector<256x36xbf16>, vector<36x32xbf16>, vector<256x32xf32> -> vector<256x32xf32>
    %29 = vector.broadcast %6 : vector<1x32xf32> to vector<256x32xf32>
    %30 = arith.addf %28, %29 : vector<256x32xf32>
    %cst_61 = arith.constant 0.000000e+00 : f32
    %31 = vector.broadcast %cst_61 : f32 to vector<256x32xf32>
    %32 = arith.cmpf oge, %30, %31 : vector<256x32xf32>
    %cst_62 = arith.constant 2.000000e-01 : f32
    %33 = vector.broadcast %cst_62 : f32 to vector<256x32xf32>
    %34 = arith.mulf %33, %30 : vector<256x32xf32>
    %35 = arith.select %32, %30, %34 : vector<256x32xi1>, vector<256x32xf32>
    %cst_63 = arith.constant 0.000000e+00 : f32
    %36 = vector.broadcast %cst_63 : f32 to vector<18x18x32xf32>
    %c0_64 = arith.constant 0 : index
    %c0_65 = arith.constant 0 : index
    %c0_66 = arith.constant 0 : index
    %37 = vector.load %arg10[%c0_64, %c0_65, %c0_66] : memref<18x18x32xf32, #tpu.memory_space<vmem>>, vector<18x18x32xf32>
    tpu.vector_store %arg10[%c0_64, %c0_65, %c0_66], %36 {strides = array<i32>} : memref<18x18x32xf32, #tpu.memory_space<vmem>>, vector<18x18x32xf32>,
    %38 = vector.shape_cast %35 : vector<256x32xf32> to vector<16x16x32xf32>
    %c1_67 = arith.constant 1 : index
    %c1_68 = arith.constant 1 : index
    %c0_69 = arith.constant 0 : index
    %39 = vector.load %arg10[%c1_67, %c1_68, %c0_69] : memref<18x18x32xf32, #tpu.memory_space<vmem>>, vector<16x16x32xf32>
    tpu.vector_store %arg10[%c1_67, %c1_68, %c0_69], %38 {strides = array<i32>} : memref<18x18x32xf32, #tpu.memory_space<vmem>>, vector<16x16x32xf32>,
    %c0_70 = arith.constant 0 : index
    %c0_71 = arith.constant 0 : index
    %c0_72 = arith.constant 0 : index
    %40 = vector.load %arg4[%c0_70, %c0_71, %c0_72] : memref<2x288x32xbf16, #tpu.memory_space<vmem>>, vector<1x288x32xbf16>
    %41 = vector.shape_cast %40 : vector<1x288x32xbf16> to vector<288x32xbf16>
    %c0_73 = arith.constant 0 : index
    %c0_74 = arith.constant 0 : index
    %c0_75 = arith.constant 0 : index
    %42 = vector.load %arg5[%c0_73, %c0_74, %c0_75] : memref<2x1x32xf32, #tpu.memory_space<vmem>>, vector<1x1x32xf32>
    %43 = vector.shape_cast %42 : vector<1x1x32xf32> to vector<1x32xf32>
    %c0_76 = arith.constant 0 : index
    %c0_77 = arith.constant 0 : index
    %c0_78 = arith.constant 0 : index
    %44 = vector.load %arg10[%c0_76, %c0_77, %c0_78] : memref<18x18x32xf32, #tpu.memory_space<vmem>>, vector<16x16x32xf32>
    %c0_79 = arith.constant 0 : index
    %c0_80 = arith.constant 0 : index
    %c0_81 = arith.constant 0 : index
    %45 = vector.load %arg12[%c0_79, %c0_80, %c0_81] : memref<16x16x288xf32, #tpu.memory_space<vmem>>, vector<16x16x32xf32>
    tpu.vector_store %arg12[%c0_79, %c0_80, %c0_81], %44 {strides = array<i32>} : memref<16x16x288xf32, #tpu.memory_space<vmem>>, vector<16x16x32xf32>,
    %c0_82 = arith.constant 0 : index
    %c1_83 = arith.constant 1 : index
    %c0_84 = arith.constant 0 : index
    %46 = vector.load %arg10[%c0_82, %c1_83, %c0_84] : memref<18x18x32xf32, #tpu.memory_space<vmem>>, vector<16x16x32xf32>
    %c0_85 = arith.constant 0 : index
    %c0_86 = arith.constant 0 : index
    %c32_87 = arith.constant 32 : index
    %47 = vector.load %arg12[%c0_85, %c0_86, %c32_87] : memref<16x16x288xf32, #tpu.memory_space<vmem>>, vector<16x16x32xf32>
    tpu.vector_store %arg12[%c0_85, %c0_86, %c32_87], %46 {strides = array<i32>} : memref<16x16x288xf32, #tpu.memory_space<vmem>>, vector<16x16x32xf32>,
    %c0_88 = arith.constant 0 : index
    %c2_89 = arith.constant 2 : index
    %c0_90 = arith.constant 0 : index
    %48 = vector.load %arg10[%c0_88, %c2_89, %c0_90] : memref<18x18x32xf32, #tpu.memory_space<vmem>>, vector<16x16x32xf32>
    %c0_91 = arith.constant 0 : index
    %c0_92 = arith.constant 0 : index
    %c64 = arith.constant 64 : index
    %49 = vector.load %arg12[%c0_91, %c0_92, %c64] : memref<16x16x288xf32, #tpu.memory_space<vmem>>, vector<16x16x32xf32>
    tpu.vector_store %arg12[%c0_91, %c0_92, %c64], %48 {strides = array<i32>} : memref<16x16x288xf32, #tpu.memory_space<vmem>>, vector<16x16x32xf32>,
    %c1_93 = arith.constant 1 : index
    %c0_94 = arith.constant 0 : index
    %c0_95 = arith.constant 0 : index
    %50 = vector.load %arg10[%c1_93, %c0_94, %c0_95] : memref<18x18x32xf32, #tpu.memory_space<vmem>>, vector<16x16x32xf32>
    %c0_96 = arith.constant 0 : index
    %c0_97 = arith.constant 0 : index
    %c96 = arith.constant 96 : index
    %51 = vector.load %arg12[%c0_96, %c0_97, %c96] : memref<16x16x288xf32, #tpu.memory_space<vmem>>, vector<16x16x32xf32>
    tpu.vector_store %arg12[%c0_96, %c0_97, %c96], %50 {strides = array<i32>} : memref<16x16x288xf32, #tpu.memory_space<vmem>>, vector<16x16x32xf32>,
    %c1_98 = arith.constant 1 : index
    %c1_99 = arith.constant 1 : index
    %c0_100 = arith.constant 0 : index
    %52 = vector.load %arg10[%c1_98, %c1_99, %c0_100] : memref<18x18x32xf32, #tpu.memory_space<vmem>>, vector<16x16x32xf32>
    %c0_101 = arith.constant 0 : index
    %c0_102 = arith.constant 0 : index
    %c128 = arith.constant 128 : index
    %53 = vector.load %arg12[%c0_101, %c0_102, %c128] : memref<16x16x288xf32, #tpu.memory_space<vmem>>, vector<16x16x32xf32>
    tpu.vector_store %arg12[%c0_101, %c0_102, %c128], %52 {strides = array<i32>} : memref<16x16x288xf32, #tpu.memory_space<vmem>>, vector<16x16x32xf32>,
    %c1_103 = arith.constant 1 : index
    %c2_104 = arith.constant 2 : index
    %c0_105 = arith.constant 0 : index
    %54 = vector.load %arg10[%c1_103, %c2_104, %c0_105] : memref<18x18x32xf32, #tpu.memory_space<vmem>>, vector<16x16x32xf32>
    %c0_106 = arith.constant 0 : index
    %c0_107 = arith.constant 0 : index
    %c160 = arith.constant 160 : index
    %55 = vector.load %arg12[%c0_106, %c0_107, %c160] : memref<16x16x288xf32, #tpu.memory_space<vmem>>, vector<16x16x32xf32>
    tpu.vector_store %arg12[%c0_106, %c0_107, %c160], %54 {strides = array<i32>} : memref<16x16x288xf32, #tpu.memory_space<vmem>>, vector<16x16x32xf32>,
    %c2_108 = arith.constant 2 : index
    %c0_109 = arith.constant 0 : index
    %c0_110 = arith.constant 0 : index
    %56 = vector.load %arg10[%c2_108, %c0_109, %c0_110] : memref<18x18x32xf32, #tpu.memory_space<vmem>>, vector<16x16x32xf32>
    %c0_111 = arith.constant 0 : index
    %c0_112 = arith.constant 0 : index
    %c192 = arith.constant 192 : index
    %57 = vector.load %arg12[%c0_111, %c0_112, %c192] : memref<16x16x288xf32, #tpu.memory_space<vmem>>, vector<16x16x32xf32>
    tpu.vector_store %arg12[%c0_111, %c0_112, %c192], %56 {strides = array<i32>} : memref<16x16x288xf32, #tpu.memory_space<vmem>>, vector<16x16x32xf32>,
    %c2_113 = arith.constant 2 : index
    %c1_114 = arith.constant 1 : index
    %c0_115 = arith.constant 0 : index
    %58 = vector.load %arg10[%c2_113, %c1_114, %c0_115] : memref<18x18x32xf32, #tpu.memory_space<vmem>>, vector<16x16x32xf32>
    %c0_116 = arith.constant 0 : index
    %c0_117 = arith.constant 0 : index
    %c224 = arith.constant 224 : index
    %59 = vector.load %arg12[%c0_116, %c0_117, %c224] : memref<16x16x288xf32, #tpu.memory_space<vmem>>, vector<16x16x32xf32>
    tpu.vector_store %arg12[%c0_116, %c0_117, %c224], %58 {strides = array<i32>} : memref<16x16x288xf32, #tpu.memory_space<vmem>>, vector<16x16x32xf32>,
    %c2_118 = arith.constant 2 : index
    %c2_119 = arith.constant 2 : index
    %c0_120 = arith.constant 0 : index
    %60 = vector.load %arg10[%c2_118, %c2_119, %c0_120] : memref<18x18x32xf32, #tpu.memory_space<vmem>>, vector<16x16x32xf32>
    %c0_121 = arith.constant 0 : index
    %c0_122 = arith.constant 0 : index
    %c256 = arith.constant 256 : index
    %61 = vector.load %arg12[%c0_121, %c0_122, %c256] : memref<16x16x288xf32, #tpu.memory_space<vmem>>, vector<16x16x32xf32>
    tpu.vector_store %arg12[%c0_121, %c0_122, %c256], %60 {strides = array<i32>} : memref<16x16x288xf32, #tpu.memory_space<vmem>>, vector<16x16x32xf32>,
    %c0_123 = arith.constant 0 : index
    %c0_124 = arith.constant 0 : index
    %c0_125 = arith.constant 0 : index
    %62 = vector.load %arg12[%c0_123, %c0_124, %c0_125] : memref<16x16x288xf32, #tpu.memory_space<vmem>>, vector<16x16x288xf32>
    %63 = vector.shape_cast %62 : vector<16x16x288xf32> to vector<256x288xf32>
    %64 = arith.truncf %63 : vector<256x288xf32> to vector<256x288xbf16>
    %cst_126 = arith.constant dense<0.000000e+00> : vector<256x32xf32>
    %65 = tpu.matmul %64, %41, %cst_126 {dimension_numbers = #tpu.dot_dimension_numbers<[1], [0], [0], [1], [0, 0, 1, 1], [], []>} : vector<256x288xbf16>, vector<288x32xbf16>, vector<256x32xf32> -> vector<256x32xf32>
    %66 = vector.broadcast %43 : vector<1x32xf32> to vector<256x32xf32>
    %67 = arith.addf %65, %66 : vector<256x32xf32>
    %cst_127 = arith.constant 0.000000e+00 : f32
    %68 = vector.broadcast %cst_127 : f32 to vector<256x32xf32>
    %69 = arith.cmpf oge, %67, %68 : vector<256x32xf32>
    %cst_128 = arith.constant 2.000000e-01 : f32
    %70 = vector.broadcast %cst_128 : f32 to vector<256x32xf32>
    %71 = arith.mulf %70, %67 : vector<256x32xf32>
    %72 = arith.select %69, %67, %71 : vector<256x32xi1>, vector<256x32xf32>
    %cst_129 = arith.constant 0.000000e+00 : f32
    %73 = vector.broadcast %cst_129 : f32 to vector<18x18x32xf32>
    %c0_130 = arith.constant 0 : index
    %c0_131 = arith.constant 0 : index
    %c0_132 = arith.constant 0 : index
    %74 = vector.load %arg10[%c0_130, %c0_131, %c0_132] : memref<18x18x32xf32, #tpu.memory_space<vmem>>, vector<18x18x32xf32>
    tpu.vector_store %arg10[%c0_130, %c0_131, %c0_132], %73 {strides = array<i32>} : memref<18x18x32xf32, #tpu.memory_space<vmem>>, vector<18x18x32xf32>,
    %75 = vector.shape_cast %72 : vector<256x32xf32> to vector<16x16x32xf32>
    %c1_133 = arith.constant 1 : index
    %c1_134 = arith.constant 1 : index
    %c0_135 = arith.constant 0 : index
    %76 = vector.load %arg10[%c1_133, %c1_134, %c0_135] : memref<18x18x32xf32, #tpu.memory_space<vmem>>, vector<16x16x32xf32>
    tpu.vector_store %arg10[%c1_133, %c1_134, %c0_135], %75 {strides = array<i32>} : memref<18x18x32xf32, #tpu.memory_space<vmem>>, vector<16x16x32xf32>,
    %c1_136 = arith.constant 1 : index
    %c0_137 = arith.constant 0 : index
    %c0_138 = arith.constant 0 : index
    %77 = vector.load %arg4[%c1_136, %c0_137, %c0_138] : memref<2x288x32xbf16, #tpu.memory_space<vmem>>, vector<1x288x32xbf16>
    %78 = vector.shape_cast %77 : vector<1x288x32xbf16> to vector<288x32xbf16>
    %c1_139 = arith.constant 1 : index
    %c0_140 = arith.constant 0 : index
    %c0_141 = arith.constant 0 : index
    %79 = vector.load %arg5[%c1_139, %c0_140, %c0_141] : memref<2x1x32xf32, #tpu.memory_space<vmem>>, vector<1x1x32xf32>
    %80 = vector.shape_cast %79 : vector<1x1x32xf32> to vector<1x32xf32>
    %c0_142 = arith.constant 0 : index
    %c0_143 = arith.constant 0 : index
    %c0_144 = arith.constant 0 : index
    %81 = vector.load %arg10[%c0_142, %c0_143, %c0_144] : memref<18x18x32xf32, #tpu.memory_space<vmem>>, vector<16x16x32xf32>
    %c0_145 = arith.constant 0 : index
    %c0_146 = arith.constant 0 : index
    %c0_147 = arith.constant 0 : index
    %82 = vector.load %arg12[%c0_145, %c0_146, %c0_147] : memref<16x16x288xf32, #tpu.memory_space<vmem>>, vector<16x16x32xf32>
    tpu.vector_store %arg12[%c0_145, %c0_146, %c0_147], %81 {strides = array<i32>} : memref<16x16x288xf32, #tpu.memory_space<vmem>>, vector<16x16x32xf32>,
    %c0_148 = arith.constant 0 : index
    %c1_149 = arith.constant 1 : index
    %c0_150 = arith.constant 0 : index
    %83 = vector.load %arg10[%c0_148, %c1_149, %c0_150] : memref<18x18x32xf32, #tpu.memory_space<vmem>>, vector<16x16x32xf32>
    %c0_151 = arith.constant 0 : index
    %c0_152 = arith.constant 0 : index
    %c32_153 = arith.constant 32 : index
    %84 = vector.load %arg12[%c0_151, %c0_152, %c32_153] : memref<16x16x288xf32, #tpu.memory_space<vmem>>, vector<16x16x32xf32>
    tpu.vector_store %arg12[%c0_151, %c0_152, %c32_153], %83 {strides = array<i32>} : memref<16x16x288xf32, #tpu.memory_space<vmem>>, vector<16x16x32xf32>,
    %c0_154 = arith.constant 0 : index
    %c2_155 = arith.constant 2 : index
    %c0_156 = arith.constant 0 : index
    %85 = vector.load %arg10[%c0_154, %c2_155, %c0_156] : memref<18x18x32xf32, #tpu.memory_space<vmem>>, vector<16x16x32xf32>
    %c0_157 = arith.constant 0 : index
    %c0_158 = arith.constant 0 : index
    %c64_159 = arith.constant 64 : index
    %86 = vector.load %arg12[%c0_157, %c0_158, %c64_159] : memref<16x16x288xf32, #tpu.memory_space<vmem>>, vector<16x16x32xf32>
    tpu.vector_store %arg12[%c0_157, %c0_158, %c64_159], %85 {strides = array<i32>} : memref<16x16x288xf32, #tpu.memory_space<vmem>>, vector<16x16x32xf32>,
    %c1_160 = arith.constant 1 : index
    %c0_161 = arith.constant 0 : index
    %c0_162 = arith.constant 0 : index
    %87 = vector.load %arg10[%c1_160, %c0_161, %c0_162] : memref<18x18x32xf32, #tpu.memory_space<vmem>>, vector<16x16x32xf32>
    %c0_163 = arith.constant 0 : index
    %c0_164 = arith.constant 0 : index
    %c96_165 = arith.constant 96 : index
    %88 = vector.load %arg12[%c0_163, %c0_164, %c96_165] : memref<16x16x288xf32, #tpu.memory_space<vmem>>, vector<16x16x32xf32>
    tpu.vector_store %arg12[%c0_163, %c0_164, %c96_165], %87 {strides = array<i32>} : memref<16x16x288xf32, #tpu.memory_space<vmem>>, vector<16x16x32xf32>,
    %c1_166 = arith.constant 1 : index
    %c1_167 = arith.constant 1 : index
    %c0_168 = arith.constant 0 : index
    %89 = vector.load %arg10[%c1_166, %c1_167, %c0_168] : memref<18x18x32xf32, #tpu.memory_space<vmem>>, vector<16x16x32xf32>
    %c0_169 = arith.constant 0 : index
    %c0_170 = arith.constant 0 : index
    %c128_171 = arith.constant 128 : index
    %90 = vector.load %arg12[%c0_169, %c0_170, %c128_171] : memref<16x16x288xf32, #tpu.memory_space<vmem>>, vector<16x16x32xf32>
    tpu.vector_store %arg12[%c0_169, %c0_170, %c128_171], %89 {strides = array<i32>} : memref<16x16x288xf32, #tpu.memory_space<vmem>>, vector<16x16x32xf32>,
    %c1_172 = arith.constant 1 : index
    %c2_173 = arith.constant 2 : index
    %c0_174 = arith.constant 0 : index
    %91 = vector.load %arg10[%c1_172, %c2_173, %c0_174] : memref<18x18x32xf32, #tpu.memory_space<vmem>>, vector<16x16x32xf32>
    %c0_175 = arith.constant 0 : index
    %c0_176 = arith.constant 0 : index
    %c160_177 = arith.constant 160 : index
    %92 = vector.load %arg12[%c0_175, %c0_176, %c160_177] : memref<16x16x288xf32, #tpu.memory_space<vmem>>, vector<16x16x32xf32>
    tpu.vector_store %arg12[%c0_175, %c0_176, %c160_177], %91 {strides = array<i32>} : memref<16x16x288xf32, #tpu.memory_space<vmem>>, vector<16x16x32xf32>,
    %c2_178 = arith.constant 2 : index
    %c0_179 = arith.constant 0 : index
    %c0_180 = arith.constant 0 : index
    %93 = vector.load %arg10[%c2_178, %c0_179, %c0_180] : memref<18x18x32xf32, #tpu.memory_space<vmem>>, vector<16x16x32xf32>
    %c0_181 = arith.constant 0 : index
    %c0_182 = arith.constant 0 : index
    %c192_183 = arith.constant 192 : index
    %94 = vector.load %arg12[%c0_181, %c0_182, %c192_183] : memref<16x16x288xf32, #tpu.memory_space<vmem>>, vector<16x16x32xf32>
    tpu.vector_store %arg12[%c0_181, %c0_182, %c192_183], %93 {strides = array<i32>} : memref<16x16x288xf32, #tpu.memory_space<vmem>>, vector<16x16x32xf32>,
    %c2_184 = arith.constant 2 : index
    %c1_185 = arith.constant 1 : index
    %c0_186 = arith.constant 0 : index
    %95 = vector.load %arg10[%c2_184, %c1_185, %c0_186] : memref<18x18x32xf32, #tpu.memory_space<vmem>>, vector<16x16x32xf32>
    %c0_187 = arith.constant 0 : index
    %c0_188 = arith.constant 0 : index
    %c224_189 = arith.constant 224 : index
    %96 = vector.load %arg12[%c0_187, %c0_188, %c224_189] : memref<16x16x288xf32, #tpu.memory_space<vmem>>, vector<16x16x32xf32>
    tpu.vector_store %arg12[%c0_187, %c0_188, %c224_189], %95 {strides = array<i32>} : memref<16x16x288xf32, #tpu.memory_space<vmem>>, vector<16x16x32xf32>,
    %c2_190 = arith.constant 2 : index
    %c2_191 = arith.constant 2 : index
    %c0_192 = arith.constant 0 : index
    %97 = vector.load %arg10[%c2_190, %c2_191, %c0_192] : memref<18x18x32xf32, #tpu.memory_space<vmem>>, vector<16x16x32xf32>
    %c0_193 = arith.constant 0 : index
    %c0_194 = arith.constant 0 : index
    %c256_195 = arith.constant 256 : index
    %98 = vector.load %arg12[%c0_193, %c0_194, %c256_195] : memref<16x16x288xf32, #tpu.memory_space<vmem>>, vector<16x16x32xf32>
    tpu.vector_store %arg12[%c0_193, %c0_194, %c256_195], %97 {strides = array<i32>} : memref<16x16x288xf32, #tpu.memory_space<vmem>>, vector<16x16x32xf32>,
    %c0_196 = arith.constant 0 : index
    %c0_197 = arith.constant 0 : index
    %c0_198 = arith.constant 0 : index
    %99 = vector.load %arg12[%c0_196, %c0_197, %c0_198] : memref<16x16x288xf32, #tpu.memory_space<vmem>>, vector<16x16x288xf32>
    %100 = vector.shape_cast %99 : vector<16x16x288xf32> to vector<256x288xf32>
    %101 = arith.truncf %100 : vector<256x288xf32> to vector<256x288xbf16>
    %cst_199 = arith.constant dense<0.000000e+00> : vector<256x32xf32>
    %102 = tpu.matmul %101, %78, %cst_199 {dimension_numbers = #tpu.dot_dimension_numbers<[1], [0], [0], [1], [0, 0, 1, 1], [], []>} : vector<256x288xbf16>, vector<288x32xbf16>, vector<256x32xf32> -> vector<256x32xf32>
    %103 = vector.broadcast %80 : vector<1x32xf32> to vector<256x32xf32>
    %104 = arith.addf %102, %103 : vector<256x32xf32>
    %cst_200 = arith.constant 0.000000e+00 : f32
    %105 = vector.broadcast %cst_200 : f32 to vector<256x32xf32>
    %106 = arith.cmpf oge, %104, %105 : vector<256x32xf32>
    %cst_201 = arith.constant 2.000000e-01 : f32
    %107 = vector.broadcast %cst_201 : f32 to vector<256x32xf32>
    %108 = arith.mulf %107, %104 : vector<256x32xf32>
    %109 = arith.select %106, %104, %108 : vector<256x32xi1>, vector<256x32xf32>
    %110 = arith.truncf %109 : vector<256x32xf32> to vector<256x32xbf16>
    %c0_202 = arith.constant 0 : index
    %c0_203 = arith.constant 0 : index
    %111 = vector.load %arg6[%c0_202, %c0_203] : memref<32x4xbf16, #tpu.memory_space<vmem>>, vector<32x4xbf16>
    %cst_204 = arith.constant dense<0.000000e+00> : vector<256x4xf32>
    %112 = tpu.matmul %110, %111, %cst_204 {dimension_numbers = #tpu.dot_dimension_numbers<[1], [0], [0], [1], [0, 0, 1, 1], [], []>} : vector<256x32xbf16>, vector<32x4xbf16>, vector<256x4xf32> -> vector<256x4xf32>
    %c0_205 = arith.constant 0 : index
    %c0_206 = arith.constant 0 : index
    %113 = vector.load %arg7[%c0_205, %c0_206] : memref<1x4xf32, #tpu.memory_space<vmem>>, vector<1x4xf32>
    %114 = vector.broadcast %113 : vector<1x4xf32> to vector<256x4xf32>
    %115 = arith.addf %112, %114 : vector<256x4xf32>
    %c0_207 = arith.constant 0 : index
    %c0_208 = arith.constant 0 : index
    %c0_209 = arith.constant 0 : index
    %116 = vector.load %arg8[%c0_207, %c0_208, %c0_209] : memref<1x256x4xf32, #tpu.memory_space<vmem>>, vector<1x256x4xf32>
    %117 = vector.shape_cast %116 : vector<1x256x4xf32> to vector<256x4xf32>
    %118 = vector.shape_cast %115 : vector<256x4xf32> to vector<1x256x4xf32>
    tpu.vector_store %arg8[%c0_207, %c0_208, %c0_209], %118 {strides = array<i32>} : memref<1x256x4xf32, #tpu.memory_space<vmem>>, vector<1x256x4xf32>,
    return
  }
  func.func @transform_0(%arg0: i32) -> (i32, i32, i32, i32) {
    %c0_i32 = arith.constant 0 : i32
    %c0_i32_0 = arith.constant 0 : i32
    %c0_i32_1 = arith.constant 0 : i32
    %c0_i32_2 = arith.constant 0 : i32
    return %arg0, %c0_i32, %c0_i32_0, %c0_i32_1 : i32, i32, i32, i32
  }
  func.func @transform_1(%arg0: i32) -> (i32, i32) {
    %c0_i32 = arith.constant 0 : i32
    %c0_i32_0 = arith.constant 0 : i32
    %c0_i32_1 = arith.constant 0 : i32
    return %c0_i32, %c0_i32_0 : i32, i32
  }
  func.func @transform_2(%arg0: i32) -> (i32, i32) {
    %c0_i32 = arith.constant 0 : i32
    %c0_i32_0 = arith.constant 0 : i32
    %c0_i32_1 = arith.constant 0 : i32
    return %c0_i32, %c0_i32_0 : i32, i32
  }
  func.func @transform_3(%arg0: i32) -> (i32, i32, i32) {
    %c0_i32 = arith.constant 0 : i32
    %c0_i32_0 = arith.constant 0 : i32
    %c0_i32_1 = arith.constant 0 : i32
    %c0_i32_2 = arith.constant 0 : i32
    return %c0_i32, %c0_i32_0, %c0_i32_1 : i32, i32, i32
  }
  func.func @transform_4(%arg0: i32) -> (i32, i32, i32) {
    %c0_i32 = arith.constant 0 : i32
    %c0_i32_0 = arith.constant 0 : i32
    %c0_i32_1 = arith.constant 0 : i32
    %c0_i32_2 = arith.constant 0 : i32
    return %c0_i32, %c0_i32_0, %c0_i32_1 : i32, i32, i32
  }
  func.func @transform_5(%arg0: i32) -> (i32, i32) {
    %c0_i32 = arith.constant 0 : i32
    %c0_i32_0 = arith.constant 0 : i32
    %c0_i32_1 = arith.constant 0 : i32
    return %c0_i32, %c0_i32_0 : i32, i32
  }
  func.func @transform_6(%arg0: i32) -> (i32, i32) {
    %c0_i32 = arith.constant 0 : i32
    %c0_i32_0 = arith.constant 0 : i32
    %c0_i32_1 = arith.constant 0 : i32
    return %c0_i32, %c0_i32_0 : i32, i32
  }
  func.func @transform_7(%arg0: i32) -> (i32, i32, i32) {
    %c0_i32 = arith.constant 0 : i32
    %c0_i32_0 = arith.constant 0 : i32
    %c0_i32_1 = arith.constant 0 : i32
    return %arg0, %c0_i32, %c0_i32_0 : i32, i32, i32
  }
}

</mosaic_0001>

<llo_original>
// kernel: tpu_custom_call.1
$region0: #{tpu_custom_call.1}
  #allocation0 [shape = 'u32[]', space=smem, size = 0x4, offset = 0x4, fixed_abs, tag = 'smem constant byte address 0x4 - core index']
  #allocation1 [shape = 'u32[144,128]{1,0:T(1,128)}', space=vmem, size = 0x12000, scoped, tag = 'internal scratch']
  #allocation2 [shape = 'f32[18,18,4]{2,1,0:T(8,128)}', space=vmem, size = 0x36000, scoped, tag = 'scratch operand']
  #allocation3 [shape = 'f32[18,18,32]{2,1,0:T(8,128)}', space=vmem, size = 0x36000, scoped, tag = 'scratch operand']
  #allocation4 [shape = 'f32[16,16,36]{2,1,0:T(8,128)}', space=vmem, size = 0x20000, scoped, tag = 'scratch operand']
  #allocation5 [shape = 'f32[16,16,288]{2,1,0:T(8,128)}', space=vmem, size = 0x60000, scoped, tag = 'scratch operand']
  %s0 = inlined_call_operand.vmem [shape: f32[2,16,16,4], index: 0, kind: input, shape index: {}]
  %s1 = inlined_call_operand.vmem [shape: bf16[36,32], index: 1, kind: input, shape index: {}]
  %s2 = inlined_call_operand.vmem [shape: f32[1,32], index: 2, kind: input, shape index: {}]
  %s3 = inlined_call_operand.vmem [shape: bf16[2,288,32], index: 3, kind: input, shape index: {}]
  %s4 = inlined_call_operand.vmem [shape: f32[2,1,32], index: 4, kind: input, shape index: {}]
  %s5 = inlined_call_operand.vmem [shape: bf16[32,4], index: 5, kind: input, shape index: {}]
  %s6 = inlined_call_operand.vmem [shape: f32[1,4], index: 6, kind: input, shape index: {}]
  %s7 = inlined_call_operand.vmem [shape: f32[2,256,4], index: 7, kind: output, shape index: {}]
  %s8 = sld [smem:[#allocation0]]
  $region61: #{tpu_custom_call.1} parent=0
    _
  %s10 = ssub.s32 1, %s8
  %s11 = scalar_select 0, %s10, %s8
  loop: start=0, step=1, limit=4
  $region2: #{tpu_custom_call.1} parent=0 // loop_pre_header
    _
  $region3: #{tpu_custom_call.1} parent=0 // loop_header
    %s13 = sphi 0, %s17
    %p14 = scmp.ge.s32.totalorder %s13, 4
    %s23 = sphi 0, %s25
    %s26 = sphi 0, %s23
    %s27 = sphi 0, %s26
    %s43 = sphi 0, %s27
    %s47 = sphi 0, %s47
    %s49 = sphi 0, %s47
    %s50 = sphi 0, %s49
    %s64 = sphi 0, %s50
    %s68 = sphi 0, %s68
    %s70 = sphi 0, %s68
    %s71 = sphi 0, %s70
    %s85 = sphi 0, %s71
    %s89 = sphi 0, %s89
    %s91 = sphi 0, %s89
    %s92 = sphi 0, %s91
    %s106 = sphi 0, %s92
    %s110 = sphi 0, %s110
    %s112 = sphi 0, %s110
    %s113 = sphi 0, %s112
    %s127 = sphi 0, %s113
    %s131 = sphi 0, %s131
    %s133 = sphi 0, %s131
    %s134 = sphi 0, %s133
    %s148 = sphi 0, %s134
    %s152 = sphi 0, %s152
    %s154 = sphi 0, %s152
    %s155 = sphi 0, %s154
    %s169 = sphi 0, %s155
    %s175 = sphi 0, %s177
    %s178 = sphi 0, %s175
    %s179 = sphi 0, %s178
    %s195 = sphi 0, %s179
  $region4: #{tpu_custom_call.1} parent=0 // loop_header_branch
    %16 = sbr.rel (%p14) target = $region8
  $region5: #{tpu_custom_call.1} parent=0 // loop_body
    %s18 = ssub.s32 %s13, 1
    %s19 = ssub.s32 %s13, 2
    %s20 = sadd.s32 %s13, 1
    %s21 = ssub.s32 %s13, %s20
    %p22 = scmp.eq.s32.totalorder %s21, 0
    %s24 = sadd.s32 %s23, 1
    %s25 = scalar_select %p22, %s23, %s24
    %p28 = pneg %p22
    %p29 = scmp.eq.s32.totalorder %s13, 1
    %p30 = por %p28, %p29
    %p31 = scmp.ne.s32.totalorder %s23, %s26
    %p32 = scmp.eq.s32.totalorder %s13, 0
    %p33 = por %p31, %p32
    %p34 = scmp.ne.s32.totalorder %s23, %s26
    %p35 = scmp.eq.s32.totalorder %s18, 1
    %p36 = por %p34, %p35
    %p37 = scmp.ne.s32.totalorder %s26, %s27
    %p38 = scmp.eq.s32.totalorder %s18, 0
    %p39 = por %p37, %p38
    %p40 = scmp.ne.s32.totalorder %s26, %s27
    %p41 = scmp.eq.s32.totalorder %s19, 1
    %p42 = por %p40, %p41
    %p44 = scmp.ne.s32.totalorder %s27, %s43
    %p45 = scmp.eq.s32.totalorder %s19, 0
    %p46 = por %p44, %p45
    %s48 = sadd.s32 %s47, 1
    %p51 = scmp.eq.s32.totalorder %s13, 1
    %p52 = scmp.ne.s32.totalorder %s47, %s49
    %p53 = scmp.eq.s32.totalorder %s13, 0
    %p54 = por %p52, %p53
    %p55 = scmp.ne.s32.totalorder %s47, %s49
    %p56 = scmp.eq.s32.totalorder %s18, 1
    %p57 = por %p55, %p56
    %p58 = scmp.ne.s32.totalorder %s49, %s50
    %p59 = scmp.eq.s32.totalorder %s18, 0
    %p60 = por %p58, %p59
    %p61 = scmp.ne.s32.totalorder %s49, %s50
    %p62 = scmp.eq.s32.totalorder %s19, 1
    %p63 = por %p61, %p62
    %p65 = scmp.ne.s32.totalorder %s50, %s64
    %p66 = scmp.eq.s32.totalorder %s19, 0
    %p67 = por %p65, %p66
    %s69 = sadd.s32 %s68, 1
    %p72 = scmp.eq.s32.totalorder %s13, 1
    %p73 = scmp.ne.s32.totalorder %s68, %s70
    %p74 = scmp.eq.s32.totalorder %s13, 0
    %p75 = por %p73, %p74
    %p76 = scmp.ne.s32.totalorder %s68, %s70
    %p77 = scmp.eq.s32.totalorder %s18, 1
    %p78 = por %p76, %p77
    %p79 = scmp.ne.s32.totalorder %s70, %s71
    %p80 = scmp.eq.s32.totalorder %s18, 0
    %p81 = por %p79, %p80
    %p82 = scmp.ne.s32.totalorder %s70, %s71
    %p83 = scmp.eq.s32.totalorder %s19, 1
    %p84 = por %p82, %p83
    %p86 = scmp.ne.s32.totalorder %s71, %s85
    %p87 = scmp.eq.s32.totalorder %s19, 0
    %p88 = por %p86, %p87
    %s90 = sadd.s32 %s89, 1
    %p93 = scmp.eq.s32.totalorder %s13, 1
    %p94 = scmp.ne.s32.totalorder %s89, %s91
    %p95 = scmp.eq.s32.totalorder %s13, 0
    %p96 = por %p94, %p95
    %p97 = scmp.ne.s32.totalorder %s89, %s91
    %p98 = scmp.eq.s32.totalorder %s18, 1
    %p99 = por %p97, %p98
    %p100 = scmp.ne.s32.totalorder %s91, %s92
    %p101 = scmp.eq.s32.totalorder %s18, 0
    %p102 = por %p100, %p101
    %p103 = scmp.ne.s32.totalorder %s91, %s92
    %p104 = scmp.eq.s32.totalorder %s19, 1
    %p105 = por %p103, %p104
    %p107 = scmp.ne.s32.totalorder %s92, %s106
    %p108 = scmp.eq.s32.totalorder %s19, 0
    %p109 = por %p107, %p108
    %s111 = sadd.s32 %s110, 1
    %p114 = scmp.eq.s32.totalorder %s13, 1
    %p115 = scmp.ne.s32.totalorder %s110, %s112
    %p116 = scmp.eq.s32.totalorder %s13, 0
    %p117 = por %p115, %p116
    %p118 = scmp.ne.s32.totalorder %s110, %s112
    %p119 = scmp.eq.s32.totalorder %s18, 1
    %p120 = por %p118, %p119
    %p121 = scmp.ne.s32.totalorder %s112, %s113
    %p122 = scmp.eq.s32.totalorder %s18, 0
    %p123 = por %p121, %p122
    %p124 = scmp.ne.s32.totalorder %s112, %s113
    %p125 = scmp.eq.s32.totalorder %s19, 1
    %p126 = por %p124, %p125
    %p128 = scmp.ne.s32.totalorder %s113, %s127
    %p129 = scmp.eq.s32.totalorder %s19, 0
    %p130 = por %p128, %p129
    %s132 = sadd.s32 %s131, 1
    %p135 = scmp.eq.s32.totalorder %s13, 1
    %p136 = scmp.ne.s32.totalorder %s131, %s133
    %p137 = scmp.eq.s32.totalorder %s13, 0
    %p138 = por %p136, %p137
    %p139 = scmp.ne.s32.totalorder %s131, %s133
    %p140 = scmp.eq.s32.totalorder %s18, 1
    %p141 = por %p139, %p140
    %p142 = scmp.ne.s32.totalorder %s133, %s134
    %p143 = scmp.eq.s32.totalorder %s18, 0
    %p144 = por %p142, %p143
    %p145 = scmp.ne.s32.totalorder %s133, %s134
    %p146 = scmp.eq.s32.totalorder %s19, 1
    %p147 = por %p145, %p146
    %p149 = scmp.ne.s32.totalorder %s134, %s148
    %p150 = scmp.eq.s32.totalorder %s19, 0
    %p151 = por %p149, %p150
    %s153 = sadd.s32 %s152, 1
    %p156 = scmp.eq.s32.totalorder %s13, 1
    %p157 = scmp.ne.s32.totalorder %s152, %s154
    %p158 = scmp.eq.s32.totalorder %s13, 0
    %p159 = por %p157, %p158
    %p160 = scmp.ne.s32.totalorder %s152, %s154
    %p161 = scmp.eq.s32.totalorder %s18, 1
    %p162 = por %p160, %p161
    %p163 = scmp.ne.s32.totalorder %s154, %s155
    %p164 = scmp.eq.s32.totalorder %s18, 0
    %p165 = por %p163, %p164
    %p166 = scmp.ne.s32.totalorder %s154, %s155
    %p167 = scmp.eq.s32.totalorder %s19, 1
    %p168 = por %p166, %p167
    %p170 = scmp.ne.s32.totalorder %s155, %s169
    %p171 = scmp.eq.s32.totalorder %s19, 0
    %p172 = por %p170, %p171
    %s173 = ssub.s32 %s13, %s20
    %p174 = scmp.eq.s32.totalorder %s173, 0
    %s176 = sadd.s32 %s175, 1
    %s177 = scalar_select %p174, %s175, %s176
    %p180 = pneg %p174
    %p181 = scmp.eq.s32.totalorder %s13, 1
    %p182 = por %p180, %p181
    %p183 = scmp.ne.s32.totalorder %s175, %s178
    %p184 = scmp.eq.s32.totalorder %s13, 0
    %p185 = por %p183, %p184
    %p186 = scmp.ne.s32.totalorder %s175, %s178
    %p187 = scmp.eq.s32.totalorder %s18, 1
    %p188 = por %p186, %p187
    %p189 = scmp.ne.s32.totalorder %s178, %s179
    %p190 = scmp.eq.s32.totalorder %s18, 0
    %p191 = por %p189, %p190
    %p192 = scmp.ne.s32.totalorder %s178, %s179
    %p193 = scmp.eq.s32.totalorder %s19, 1
    %p194 = por %p192, %p193
    %p196 = scmp.ne.s32.totalorder %s179, %s195
    %p197 = scmp.eq.s32.totalorder %s19, 0
    %p198 = por %p196, %p197
    %p199 = scmp.le.s32.totalorder 1, %s13
    %p200 = scmp.lt.s32.totalorder %s13, 3
    %p201 = pnand %p199, %p200
    %p202 = pneg %p201
    // Predicated region
    $region9: #{tpu_custom_call.1} parent=5 // pred_check
      _
    $region10: #{tpu_custom_call.1} parent=5 // pred_check_branch
      %204 = sbr.rel (%p201) target = $region12
    $region11: #{tpu_custom_call.1} parent=5 // pred_region
      %s205 = ssub.s32 %s13, 1
      // Predicated region
      $region13: #{tpu_custom_call.1} parent=11 // pred_check
        %p206 = pneg %p60
      $region14: #{tpu_custom_call.1} parent=11 // pred_check_branch
        %208 = sbr.rel (%p206) target = $region16
      $region15: #{tpu_custom_call.1} parent=11 // pred_region
        _
      $region16: #{tpu_custom_call.1} parent=11 // pred_fallthru
        _
      // Predicated region
      $region17: #{tpu_custom_call.1} parent=11 // pred_check
        %p209 = pneg %p81
      $region18: #{tpu_custom_call.1} parent=11 // pred_check_branch
        %211 = sbr.rel (%p209) target = $region20
      $region19: #{tpu_custom_call.1} parent=11 // pred_region
        _
      $region20: #{tpu_custom_call.1} parent=11 // pred_fallthru
        _
      // Predicated region
      $region21: #{tpu_custom_call.1} parent=11 // pred_check
        %p212 = pneg %p102
      $region22: #{tpu_custom_call.1} parent=11 // pred_check_branch
        %214 = sbr.rel (%p212) target = $region24
      $region23: #{tpu_custom_call.1} parent=11 // pred_region
        _
      $region24: #{tpu_custom_call.1} parent=11 // pred_fallthru
        _
      // Predicated region
      $region25: #{tpu_custom_call.1} parent=11 // pred_check
        %p215 = pneg %p123
      $region26: #{tpu_custom_call.1} parent=11 // pred_check_branch
        %217 = sbr.rel (%p215) target = $region28
      $region27: #{tpu_custom_call.1} parent=11 // pred_region
        _
      $region28: #{tpu_custom_call.1} parent=11 // pred_fallthru
        _
      // Predicated region
      $region29: #{tpu_custom_call.1} parent=11 // pred_check
        %p218 = pneg %p144
      $region30: #{tpu_custom_call.1} parent=11 // pred_check_branch
        %220 = sbr.rel (%p218) target = $region32
      $region31: #{tpu_custom_call.1} parent=11 // pred_region
        _
      $region32: #{tpu_custom_call.1} parent=11 // pred_fallthru
        _
      // Predicated region
      $region33: #{tpu_custom_call.1} parent=11 // pred_check
        %p221 = pneg %p165
      $region34: #{tpu_custom_call.1} parent=11 // pred_check_branch
        %223 = sbr.rel (%p221) target = $region36
      $region35: #{tpu_custom_call.1} parent=11 // pred_region
        _
      $region36: #{tpu_custom_call.1} parent=11 // pred_fallthru
        _
    $region12: #{tpu_custom_call.1} parent=5 // pred_fallthru
      _
    %p224 = scmp.lt.s32.totalorder %s13, 2
    // Predicated region
    $region37: #{tpu_custom_call.1} parent=5 // pred_check
      %p225 = pneg %p224
    $region38: #{tpu_custom_call.1} parent=5 // pred_check_branch
      %227 = sbr.rel (%p225) target = $region40
    $region39: #{tpu_custom_call.1} parent=5 // pred_region
      // Predicated region
      $region41: #{tpu_custom_call.1} parent=39 // pred_check
        %p228 = pneg %p33
      $region42: #{tpu_custom_call.1} parent=39 // pred_check_branch
        %230 = sbr.rel (%p228) target = $region44
      $region43: #{tpu_custom_call.1} parent=39 // pred_region
        %p231 = scmp.lt.s32.totalorder %s13, 1
        %s232 = scalar_select %p231, %s13, 1
        %s233 = smul.addr %s232, 32
        %s234 = smul.addr %s233, 8
        %s235 = scalar_lea.vmem %s0, %s234
      $region44: #{tpu_custom_call.1} parent=39 // pred_fallthru
        _
    $region40: #{tpu_custom_call.1} parent=5 // pred_fallthru
      _
    %p236 = scmp.le.s32.totalorder 1, %s13
    %p237 = scmp.lt.s32.totalorder %s13, 3
    %p238 = pnand %p236, %p237
    %p239 = pneg %p238
    // Predicated region
    $region45: #{tpu_custom_call.1} parent=5 // pred_check
      _
    $region46: #{tpu_custom_call.1} parent=5 // pred_check_branch
      %241 = sbr.rel (%p238) target = $region48
    $region47: #{tpu_custom_call.1} parent=5 // pred_region
      %s242 = ssub.s32 %s13, 1
      %p243 = scmp.lt.s32.totalorder %s18, 1
      %s244 = scalar_select %p243, %s18, 1
      %s245 = smul.addr %s244, 32
      %s246 = smul.addr %s245, 8
      %s247 = scalar_lea.vmem %s0, %s246
      %p248 = pneg %p39
      %p249 = pneg %p36
      %p250 = pneg %p60
      %p251 = pneg %p57
      %p252 = pneg %p81
      %p253 = pneg %p78
      %p254 = pneg %p102
      %p255 = pneg %p99
      %p256 = pneg %p123
      %p257 = pneg %p120
      %p258 = pneg %p144
      %p259 = pneg %p141
      %p260 = pneg %p165
      %p261 = pneg %p162
      %p262 = pneg %p191
      %p263 = pneg %p188
      %p264 = scmp.lt.s32.totalorder %s18, 1
      %s265 = scalar_select %p264, %s18, 1
      %s266 = smul.addr %s265, 32
      %s267 = smul.addr %s266, 8
      %s268 = scalar_lea.vmem %s7, %s267
      %p269 = scmp.lt.s32.totalorder %s18, 1
      %s270 = scalar_select %p269, %s18, 1
      %s271 = smul.addr %s270, 32
      %s272 = smul.addr %s271, 8
      %s273 = scalar_lea.vmem %s0, %s272
      %p274 = scmp.lt.s32.totalorder %s18, 1
      %s275 = scalar_select %p274, %s18, 1
      %s276 = smul.addr %s275, 32
      %s277 = smul.addr %s276, 8
      %s278 = scalar_lea.vmem %s7, %s277
      %vm280 = vcmask 31744
      %281 = vst.msk [vmem:[#allocation2] sm:$0xff] %vm280, 0.0
      %282 = vst.msk [vmem:[#allocation2 + $0x8] sm:$0xff] %vm280, 0.0
      %vm283 = vcmask 25600
      %284 = vst.msk [vmem:[#allocation2 + $0x10] sm:$0x3] %vm283, 0.0
      %285 = vst.msk [vmem:[#allocation2 + $0x18] sm:$0xff] %vm280, 0.0
      %286 = vst.msk [vmem:[#allocation2 + $0x20] sm:$0xff] %vm280, 0.0
      %287 = vst.msk [vmem:[#allocation2 + $0x28] sm:$0x3] %vm283, 0.0
      %288 = vst.msk [vmem:[#allocation2 + $0x30] sm:$0xff] %vm280, 0.0
      %289 = vst.msk [vmem:[#allocation2 + $0x38] sm:$0xff] %vm280, 0.0
      %290 = vst.msk [vmem:[#allocation2 + $0x40] sm:$0x3] %vm283, 0.0
      %291 = vst.msk [vmem:[#allocation2 + $0x48] sm:$0xff] %vm280, 0.0
      %292 = vst.msk [vmem:[#allocation2 + $0x50] sm:$0xff] %vm280, 0.0
      %293 = vst.msk [vmem:[#allocation2 + $0x58] sm:$0x3] %vm283, 0.0
      %294 = vst.msk [vmem:[#allocation2 + $0x60] sm:$0xff] %vm280, 0.0
      %295 = vst.msk [vmem:[#allocation2 + $0x68] sm:$0xff] %vm280, 0.0
      %296 = vst.msk [vmem:[#allocation2 + $0x70] sm:$0x3] %vm283, 0.0
      %297 = vst.msk [vmem:[#allocation2 + $0x78] sm:$0xff] %vm280, 0.0
      %298 = vst.msk [vmem:[#allocation2 + $0x80] sm:$0xff] %vm280, 0.0
      %299 = vst.msk [vmem:[#allocation2 + $0x88] sm:$0x3] %vm283, 0.0
      %300 = vst.msk [vmem:[#allocation2 + $0x90] sm:$0xff] %vm280, 0.0
      %301 = vst.msk [vmem:[#allocation2 + $0x98] sm:$0xff] %vm280, 0.0
      %302 = vst.msk [vmem:[#allocation2 + $0xa0] sm:$0x3] %vm283, 0.0
      %303 = vst.msk [vmem:[#allocation2 + $0xa8] sm:$0xff] %vm280, 0.0
      %304 = vst.msk [vmem:[#allocation2 + $0xb0] sm:$0xff] %vm280, 0.0
      %305 = vst.msk [vmem:[#allocation2 + $0xb8] sm:$0x3] %vm283, 0.0
      %306 = vst.msk [vmem:[#allocation2 + $0xc0] sm:$0xff] %vm280, 0.0
      %307 = vst.msk [vmem:[#allocation2 + $0xc8] sm:$0xff] %vm280, 0.0
      %308 = vst.msk [vmem:[#allocation2 + $0xd0] sm:$0x3] %vm283, 0.0
      %309 = vst.msk [vmem:[#allocation2 + $0xd8] sm:$0xff] %vm280, 0.0
      %310 = vst.msk [vmem:[#allocation2 + $0xe0] sm:$0xff] %vm280, 0.0
      %311 = vst.msk [vmem:[#allocation2 + $0xe8] sm:$0x3] %vm283, 0.0
      %312 = vst.msk [vmem:[#allocation2 + $0xf0] sm:$0xff] %vm280, 0.0
      %313 = vst.msk [vmem:[#allocation2 + $0xf8] sm:$0xff] %vm280, 0.0
      %314 = vst.msk [vmem:[#allocation2 + $0x100] sm:$0x3] %vm283, 0.0
      %315 = vst.msk [vmem:[#allocation2 + $0x108] sm:$0xff] %vm280, 0.0
      %316 = vst.msk [vmem:[#allocation2 + $0x110] sm:$0xff] %vm280, 0.0
      %317 = vst.msk [vmem:[#allocation2 + $0x118] sm:$0x3] %vm283, 0.0
      %318 = vst.msk [vmem:[#allocation2 + $0x120] sm:$0xff] %vm280, 0.0
      %319 = vst.msk [vmem:[#allocation2 + $0x128] sm:$0xff] %vm280, 0.0
      %320 = vst.msk [vmem:[#allocation2 + $0x130] sm:$0x3] %vm283, 0.0
      %321 = vst.msk [vmem:[#allocation2 + $0x138] sm:$0xff] %vm280, 0.0
      %322 = vst.msk [vmem:[#allocation2 + $0x140] sm:$0xff] %vm280, 0.0
      %323 = vst.msk [vmem:[#allocation2 + $0x148] sm:$0x3] %vm283, 0.0
      %324 = vst.msk [vmem:[#allocation2 + $0x150] sm:$0xff] %vm280, 0.0
      %325 = vst.msk [vmem:[#allocation2 + $0x158] sm:$0xff] %vm280, 0.0
      %326 = vst.msk [vmem:[#allocation2 + $0x160] sm:$0x3] %vm283, 0.0
      %327 = vst.msk [vmem:[#allocation2 + $0x168] sm:$0xff] %vm280, 0.0
      %328 = vst.msk [vmem:[#allocation2 + $0x170] sm:$0xff] %vm280, 0.0
      %329 = vst.msk [vmem:[#allocation2 + $0x178] sm:$0x3] %vm283, 0.0
      %330 = vst.msk [vmem:[#allocation2 + $0x180] sm:$0xff] %vm280, 0.0
      %331 = vst.msk [vmem:[#allocation2 + $0x188] sm:$0xff] %vm280, 0.0
      %332 = vst.msk [vmem:[#allocation2 + $0x190] sm:$0x3] %vm283, 0.0
      %333 = vst.msk [vmem:[#allocation2 + $0x198] sm:$0xff] %vm280, 0.0
      %334 = vst.msk [vmem:[#allocation2 + $0x1a0] sm:$0xff] %vm280, 0.0
      %335 = vst.msk [vmem:[#allocation2 + $0x1a8] sm:$0x3] %vm283, 0.0
      %v336 = vld [vmem:[%s273] sm:$0xff]
      %v337 = vld [vmem:[%s273 + $0x8] sm:$0xff]
      %v338 = vld [vmem:[%s273 + $0x10] sm:$0xff]
      %v339 = vld [vmem:[%s273 + $0x18] sm:$0xff]
      %v340 = vld [vmem:[%s273 + $0x20] sm:$0xff]
      %v341 = vld [vmem:[%s273 + $0x28] sm:$0xff]
      %v342 = vld [vmem:[%s273 + $0x30] sm:$0xff]
      %v343 = vld [vmem:[%s273 + $0x38] sm:$0xff]
      %v344 = vld [vmem:[%s273 + $0x40] sm:$0xff]
      %v345 = vld [vmem:[%s273 + $0x48] sm:$0xff]
      %v346 = vld [vmem:[%s273 + $0x50] sm:$0xff]
      %v347 = vld [vmem:[%s273 + $0x58] sm:$0xff]
      %v348 = vld [vmem:[%s273 + $0x60] sm:$0xff]
      %v349 = vld [vmem:[%s273 + $0x68] sm:$0xff]
      %v350 = vld [vmem:[%s273 + $0x70] sm:$0xff]
      %v351 = vld [vmem:[%s273 + $0x78] sm:$0xff]
      %v352 = vld [vmem:[%s273 + $0x80] sm:$0xff]
      %v353 = vld [vmem:[%s273 + $0x88] sm:$0xff]
      %v354 = vld [vmem:[%s273 + $0x90] sm:$0xff]
      %v355 = vld [vmem:[%s273 + $0x98] sm:$0xff]
      %v356 = vld [vmem:[%s273 + $0xa0] sm:$0xff]
      %v357 = vld [vmem:[%s273 + $0xa8] sm:$0xff]
      %v358 = vld [vmem:[%s273 + $0xb0] sm:$0xff]
      %v359 = vld [vmem:[%s273 + $0xb8] sm:$0xff]
      %v360 = vld [vmem:[%s273 + $0xc0] sm:$0xff]
      %v361 = vld [vmem:[%s273 + $0xc8] sm:$0xff]
      %v362 = vld [vmem:[%s273 + $0xd0] sm:$0xff]
      %v363 = vld [vmem:[%s273 + $0xd8] sm:$0xff]
      %v364 = vld [vmem:[%s273 + $0xe0] sm:$0xff]
      %v365 = vld [vmem:[%s273 + $0xe8] sm:$0xff]
      %v366 = vld [vmem:[%s273 + $0xf0] sm:$0xff]
      %v367 = vld [vmem:[%s273 + $0xf8] sm:$0xff]
      %s368 = scalar_lea.vmem [#allocation2], 24
      %369 = vst.msk [vmem:[%s368 + $0x1] sm:$0xff] %vm280, %v336
      %370 = vst.msk [vmem:[%s368 + $0x9] sm:$0xff] %vm280, %v337
      %371 = vst.msk [vmem:[%s368 + $0x19] sm:$0xff] %vm280, %v338
      %372 = vst.msk [vmem:[%s368 + $0x21] sm:$0xff] %vm280, %v339
      %373 = vst.msk [vmem:[%s368 + $0x31] sm:$0xff] %vm280, %v340
      %374 = vst.msk [vmem:[%s368 + $0x39] sm:$0xff] %vm280, %v341
      %375 = vst.msk [vmem:[%s368 + $0x49] sm:$0xff] %vm280, %v342
      %376 = vst.msk [vmem:[%s368 + $0x51] sm:$0xff] %vm280, %v343
      %377 = vst.msk [vmem:[%s368 + $0x61] sm:$0xff] %vm280, %v344
      %378 = vst.msk [vmem:[%s368 + $0x69] sm:$0xff] %vm280, %v345
      %379 = vst.msk [vmem:[%s368 + $0x79] sm:$0xff] %vm280, %v346
      %380 = vst.msk [vmem:[%s368 + $0x81] sm:$0xff] %vm280, %v347
      %381 = vst.msk [vmem:[%s368 + $0x91] sm:$0xff] %vm280, %v348
      %382 = vst.msk [vmem:[%s368 + $0x99] sm:$0xff] %vm280, %v349
      %383 = vst.msk [vmem:[%s368 + $0xa9] sm:$0xff] %vm280, %v350
      %384 = vst.msk [vmem:[%s368 + $0xb1] sm:$0xff] %vm280, %v351
      %385 = vst.msk [vmem:[%s368 + $0xc1] sm:$0xff] %vm280, %v352
      %386 = vst.msk [vmem:[%s368 + $0xc9] sm:$0xff] %vm280, %v353
      %387 = vst.msk [vmem:[%s368 + $0xd9] sm:$0xff] %vm280, %v354
      %388 = vst.msk [vmem:[%s368 + $0xe1] sm:$0xff] %vm280, %v355
      %389 = vst.msk [vmem:[%s368 + $0xf1] sm:$0xff] %vm280, %v356
      %390 = vst.msk [vmem:[%s368 + $0xf9] sm:$0xff] %vm280, %v357
      %391 = vst.msk [vmem:[%s368 + $0x109] sm:$0xff] %vm280, %v358
      %392 = vst.msk [vmem:[%s368 + $0x111] sm:$0xff] %vm280, %v359
      %393 = vst.msk [vmem:[%s368 + $0x121] sm:$0xff] %vm280, %v360
      %394 = vst.msk [vmem:[%s368 + $0x129] sm:$0xff] %vm280, %v361
      %395 = vst.msk [vmem:[%s368 + $0x139] sm:$0xff] %vm280, %v362
      %396 = vst.msk [vmem:[%s368 + $0x141] sm:$0xff] %vm280, %v363
      %397 = vst.msk [vmem:[%s368 + $0x151] sm:$0xff] %vm280, %v364
      %398 = vst.msk [vmem:[%s368 + $0x159] sm:$0xff] %vm280, %v365
      %399 = vst.msk [vmem:[%s368 + $0x169] sm:$0xff] %vm280, %v366
      %400 = vst.msk [vmem:[%s368 + $0x171] sm:$0xff] %vm280, %v367
      %v401 = vld [vmem:[%s1] sm:$0xf]
      %v402 = vld [vmem:[%s1 + $0x4] sm:$0xf]
      %v403 = vld [vmem:[%s1 + $0x8] sm:$0xf]
      %v404 = vld [vmem:[%s1 + $0xc] sm:$0xf]
      %v405 = vld [vmem:[%s1 + $0x10] sm:$0x3]
      %v406 = vld [vmem:[%s2] sm:$0x1]
      %v407 = vld [vmem:[#allocation2] sm:$0xff]
      %v408 = vld [vmem:[#allocation2 + $0x8] sm:$0xff]
      %v409 = vld [vmem:[#allocation2 + $0x18] sm:$0xff]
      %v410 = vld [vmem:[#allocation2 + $0x20] sm:$0xff]
      %v411 = vld [vmem:[#allocation2 + $0x30] sm:$0xff]
      %v412 = vld [vmem:[#allocation2 + $0x38] sm:$0xff]
      %v413 = vld [vmem:[#allocation2 + $0x48] sm:$0xff]
      %v414 = vld [vmem:[#allocation2 + $0x50] sm:$0xff]
      %v415 = vld [vmem:[#allocation2 + $0x60] sm:$0xff]
      %v416 = vld [vmem:[#allocation2 + $0x68] sm:$0xff]
      %v417 = vld [vmem:[#allocation2 + $0x78] sm:$0xff]
      %v418 = vld [vmem:[#allocation2 + $0x80] sm:$0xff]
      %v419 = vld [vmem:[#allocation2 + $0x90] sm:$0xff]
      %v420 = vld [vmem:[#allocation2 + $0x98] sm:$0xff]
      %v421 = vld [vmem:[#allocation2 + $0xa8] sm:$0xff]
      %v422 = vld [vmem:[#allocation2 + $0xb0] sm:$0xff]
      %v423 = vld [vmem:[#allocation2 + $0xc0] sm:$0xff]
      %v424 = vld [vmem:[#allocation2 + $0xc8] sm:$0xff]
      %v425 = vld [vmem:[#allocation2 + $0xd8] sm:$0xff]
      %v426 = vld [vmem:[#allocation2 + $0xe0] sm:$0xff]
      %v427 = vld [vmem:[#allocation2 + $0xf0] sm:$0xff]
      %v428 = vld [vmem:[#allocation2 + $0xf8] sm:$0xff]
      %v429 = vld [vmem:[#allocation2 + $0x108] sm:$0xff]
      %v430 = vld [vmem:[#allocation2 + $0x110] sm:$0xff]
      %v431 = vld [vmem:[#allocation2 + $0x120] sm:$0xff]
      %v432 = vld [vmem:[#allocation2 + $0x128] sm:$0xff]
      %v433 = vld [vmem:[#allocation2 + $0x138] sm:$0xff]
      %v434 = vld [vmem:[#allocation2 + $0x140] sm:$0xff]
      %v435 = vld [vmem:[#allocation2 + $0x150] sm:$0xff]
      %v436 = vld [vmem:[#allocation2 + $0x158] sm:$0xff]
      %v437 = vld [vmem:[#allocation2 + $0x168] sm:$0xff]
      %v438 = vld [vmem:[#allocation2 + $0x170] sm:$0xff]
      %439 = vst.msk [vmem:[#allocation4] sm:$0xff] %vm280, %v407
      %440 = vst.msk [vmem:[#allocation4 + $0x8] sm:$0xff] %vm280, %v408
      %441 = vst.msk [vmem:[#allocation4 + $0x10] sm:$0xff] %vm280, %v409
      %442 = vst.msk [vmem:[#allocation4 + $0x18] sm:$0xff] %vm280, %v410
      %443 = vst.msk [vmem:[#allocation4 + $0x20] sm:$0xff] %vm280, %v411
      %444 = vst.msk [vmem:[#allocation4 + $0x28] sm:$0xff] %vm280, %v412
      %445 = vst.msk [vmem:[#allocation4 + $0x30] sm:$0xff] %vm280, %v413
      %446 = vst.msk [vmem:[#allocation4 + $0x38] sm:$0xff] %vm280, %v414
      %447 = vst.msk [vmem:[#allocation4 + $0x40] sm:$0xff] %vm280, %v415
      %448 = vst.msk [vmem:[#allocation4 + $0x48] sm:$0xff] %vm280, %v416
      %449 = vst.msk [vmem:[#allocation4 + $0x50] sm:$0xff] %vm280, %v417
      %450 = vst.msk [vmem:[#allocation4 + $0x58] sm:$0xff] %vm280, %v418
      %451 = vst.msk [vmem:[#allocation4 + $0x60] sm:$0xff] %vm280, %v419
      %452 = vst.msk [vmem:[#allocation4 + $0x68] sm:$0xff] %vm280, %v420
      %453 = vst.msk [vmem:[#allocation4 + $0x70] sm:$0xff] %vm280, %v421
      %454 = vst.msk [vmem:[#allocation4 + $0x78] sm:$0xff] %vm280, %v422
      %455 = vst.msk [vmem:[#allocation4 + $0x80] sm:$0xff] %vm280, %v423
      %456 = vst.msk [vmem:[#allocation4 + $0x88] sm:$0xff] %vm280, %v424
      %457 = vst.msk [vmem:[#allocation4 + $0x90] sm:$0xff] %vm280, %v425
      %458 = vst.msk [vmem:[#allocation4 + $0x98] sm:$0xff] %vm280, %v426
      %459 = vst.msk [vmem:[#allocation4 + $0xa0] sm:$0xff] %vm280, %v427
      %460 = vst.msk [vmem:[#allocation4 + $0xa8] sm:$0xff] %vm280, %v428
      %461 = vst.msk [vmem:[#allocation4 + $0xb0] sm:$0xff] %vm280, %v429
      %462 = vst.msk [vmem:[#allocation4 + $0xb8] sm:$0xff] %vm280, %v430
      %463 = vst.msk [vmem:[#allocation4 + $0xc0] sm:$0xff] %vm280, %v431
      %464 = vst.msk [vmem:[#allocation4 + $0xc8] sm:$0xff] %vm280, %v432
      %465 = vst.msk [vmem:[#allocation4 + $0xd0] sm:$0xff] %vm280, %v433
      %466 = vst.msk [vmem:[#allocation4 + $0xd8] sm:$0xff] %vm280, %v434
      %467 = vst.msk [vmem:[#allocation4 + $0xe0] sm:$0xff] %vm280, %v435
      %468 = vst.msk [vmem:[#allocation4 + $0xe8] sm:$0xff] %vm280, %v436
      %469 = vst.msk [vmem:[#allocation4 + $0xf0] sm:$0xff] %vm280, %v437
      %470 = vst.msk [vmem:[#allocation4 + $0xf8] sm:$0xff] %vm280, %v438
      %v471 = vld [vmem:[#allocation2 + $0x1] sm:$0xff]
      %v472 = vld [vmem:[#allocation2 + $0x9] sm:$0xff]
      %v473 = vld [vmem:[#allocation2 + $0x19] sm:$0xff]
      %v474 = vld [vmem:[#allocation2 + $0x21] sm:$0xff]
      %v475 = vld [vmem:[#allocation2 + $0x31] sm:$0xff]
      %v476 = vld [vmem:[#allocation2 + $0x39] sm:$0xff]
      %v477 = vld [vmem:[#allocation2 + $0x49] sm:$0xff]
      %v478 = vld [vmem:[#allocation2 + $0x51] sm:$0xff]
      %v479 = vld [vmem:[#allocation2 + $0x61] sm:$0xff]
      %v480 = vld [vmem:[#allocation2 + $0x69] sm:$0xff]
      %v481 = vld [vmem:[#allocation2 + $0x79] sm:$0xff]
      %v482 = vld [vmem:[#allocation2 + $0x81] sm:$0xff]
      %v483 = vld [vmem:[#allocation2 + $0x91] sm:$0xff]
      %v484 = vld [vmem:[#allocation2 + $0x99] sm:$0xff]
      %v485 = vld [vmem:[#allocation2 + $0xa9] sm:$0xff]
      %v486 = vld [vmem:[#allocation2 + $0xb1] sm:$0xff]
      %v487 = vld [vmem:[#allocation2 + $0xc1] sm:$0xff]
      %v488 = vld [vmem:[#allocation2 + $0xc9] sm:$0xff]
      %v489 = vld [vmem:[#allocation2 + $0xd9] sm:$0xff]
      %v490 = vld [vmem:[#allocation2 + $0xe1] sm:$0xff]
      %v491 = vld [vmem:[#allocation2 + $0xf1] sm:$0xff]
      %v492 = vld [vmem:[#allocation2 + $0xf9] sm:$0xff]
      %v493 = vld [vmem:[#allocation2 + $0x109] sm:$0xff]
      %v494 = vld [vmem:[#allocation2 + $0x111] sm:$0xff]
      %v495 = vld [vmem:[#allocation2 + $0x121] sm:$0xff]
      %v496 = vld [vmem:[#allocation2 + $0x129] sm:$0xff]
      %v497 = vld [vmem:[#allocation2 + $0x139] sm:$0xff]
      %v498 = vld [vmem:[#allocation2 + $0x141] sm:$0xff]
      %v499 = vld [vmem:[#allocation2 + $0x151] sm:$0xff]
      %v500 = vld [vmem:[#allocation2 + $0x159] sm:$0xff]
      %v501 = vld [vmem:[#allocation2 + $0x169] sm:$0xff]
      %v502 = vld [vmem:[#allocation2 + $0x171] sm:$0xff]
      %535 = vrot.lane.b32.xlu0 %v471, 4
      %v536 = vpop.permute.xlu0 %535
      %537 = vrot.lane.b32.xlu0 %v472, 4
      %v538 = vpop.permute.xlu0 %537
      %539 = vrot.lane.b32.xlu0 %v473, 4
      %v540 = vpop.permute.xlu0 %539
      %541 = vrot.lane.b32.xlu0 %v474, 4
      %v542 = vpop.permute.xlu0 %541
      %543 = vrot.lane.b32.xlu0 %v475, 4
      %v544 = vpop.permute.xlu0 %543
      %545 = vrot.lane.b32.xlu0 %v476, 4
      %v546 = vpop.permute.xlu0 %545
      %547 = vrot.lane.b32.xlu0 %v477, 4
      %v548 = vpop.permute.xlu0 %547
      %549 = vrot.lane.b32.xlu0 %v478, 4
      %v550 = vpop.permute.xlu0 %549
      %551 = vrot.lane.b32.xlu0 %v479, 4
      %v552 = vpop.permute.xlu0 %551
      %553 = vrot.lane.b32.xlu0 %v480, 4
      %v554 = vpop.permute.xlu0 %553
      %555 = vrot.lane.b32.xlu0 %v481, 4
      %v556 = vpop.permute.xlu0 %555
      %557 = vrot.lane.b32.xlu0 %v482, 4
      %v558 = vpop.permute.xlu0 %557
      %559 = vrot.lane.b32.xlu0 %v483, 4
      %v560 = vpop.permute.xlu0 %559
      %561 = vrot.lane.b32.xlu0 %v484, 4
      %v562 = vpop.permute.xlu0 %561
      %563 = vrot.lane.b32.xlu0 %v485, 4
      %v564 = vpop.permute.xlu0 %563
      %565 = vrot.lane.b32.xlu0 %v486, 4
      %v566 = vpop.permute.xlu0 %565
      %567 = vrot.lane.b32.xlu0 %v487, 4
      %v568 = vpop.permute.xlu0 %567
      %569 = vrot.lane.b32.xlu0 %v488, 4
      %v570 = vpop.permute.xlu0 %569
      %571 = vrot.lane.b32.xlu0 %v489, 4
      %v572 = vpop.permute.xlu0 %571
      %573 = vrot.lane.b32.xlu0 %v490, 4
      %v574 = vpop.permute.xlu0 %573
      %575 = vrot.lane.b32.xlu0 %v491, 4
      %v576 = vpop.permute.xlu0 %575
      %577 = vrot.lane.b32.xlu0 %v492, 4
      %v578 = vpop.permute.xlu0 %577
      %579 = vrot.lane.b32.xlu0 %v493, 4
      %v580 = vpop.permute.xlu0 %579
      %581 = vrot.lane.b32.xlu0 %v494, 4
      %v582 = vpop.permute.xlu0 %581
      %583 = vrot.lane.b32.xlu0 %v495, 4
      %v584 = vpop.permute.xlu0 %583
      %585 = vrot.lane.b32.xlu0 %v496, 4
      %v586 = vpop.permute.xlu0 %585
      %587 = vrot.lane.b32.xlu0 %v497, 4
      %v588 = vpop.permute.xlu0 %587
      %589 = vrot.lane.b32.xlu0 %v498, 4
      %v590 = vpop.permute.xlu0 %589
      %591 = vrot.lane.b32.xlu0 %v499, 4
      %v592 = vpop.permute.xlu0 %591
      %593 = vrot.lane.b32.xlu0 %v500, 4
      %v594 = vpop.permute.xlu0 %593
      %595 = vrot.lane.b32.xlu0 %v501, 4
      %v596 = vpop.permute.xlu0 %595
      %597 = vrot.lane.b32.xlu0 %v502, 4
      %v598 = vpop.permute.xlu0 %597
      %vm631 = vcmask 64544
      %632 = vst.msk [vmem:[#allocation4] sm:$0xff] %vm631, %v536
      %633 = vst.msk [vmem:[#allocation4 + $0x8] sm:$0xff] %vm631, %v538
      %634 = vst.msk [vmem:[#allocation4 + $0x10] sm:$0xff] %vm631, %v540
      %635 = vst.msk [vmem:[#allocation4 + $0x18] sm:$0xff] %vm631, %v542
      %636 = vst.msk [vmem:[#allocation4 + $0x20] sm:$0xff] %vm631, %v544
      %637 = vst.msk [vmem:[#allocation4 + $0x28] sm:$0xff] %vm631, %v546
      %638 = vst.msk [vmem:[#allocation4 + $0x30] sm:$0xff] %vm631, %v548
      %639 = vst.msk [vmem:[#allocation4 + $0x38] sm:$0xff] %vm631, %v550
      %640 = vst.msk [vmem:[#allocation4 + $0x40] sm:$0xff] %vm631, %v552
      %641 = vst.msk [vmem:[#allocation4 + $0x48] sm:$0xff] %vm631, %v554
      %642 = vst.msk [vmem:[#allocation4 + $0x50] sm:$0xff] %vm631, %v556
      %643 = vst.msk [vmem:[#allocation4 + $0x58] sm:$0xff] %vm631, %v558
      %644 = vst.msk [vmem:[#allocation4 + $0x60] sm:$0xff] %vm631, %v560
      %645 = vst.msk [vmem:[#allocation4 + $0x68] sm:$0xff] %vm631, %v562
      %646 = vst.msk [vmem:[#allocation4 + $0x70] sm:$0xff] %vm631, %v564
      %647 = vst.msk [vmem:[#allocation4 + $0x78] sm:$0xff] %vm631, %v566
      %648 = vst.msk [vmem:[#allocation4 + $0x80] sm:$0xff] %vm631, %v568
      %649 = vst.msk [vmem:[#allocation4 + $0x88] sm:$0xff] %vm631, %v570
      %650 = vst.msk [vmem:[#allocation4 + $0x90] sm:$0xff] %vm631, %v572
      %651 = vst.msk [vmem:[#allocation4 + $0x98] sm:$0xff] %vm631, %v574
      %652 = vst.msk [vmem:[#allocation4 + $0xa0] sm:$0xff] %vm631, %v576
      %653 = vst.msk [vmem:[#allocation4 + $0xa8] sm:$0xff] %vm631, %v578
      %654 = vst.msk [vmem:[#allocation4 + $0xb0] sm:$0xff] %vm631, %v580
      %655 = vst.msk [vmem:[#allocation4 + $0xb8] sm:$0xff] %vm631, %v582
      %656 = vst.msk [vmem:[#allocation4 + $0xc0] sm:$0xff] %vm631, %v584
      %657 = vst.msk [vmem:[#allocation4 + $0xc8] sm:$0xff] %vm631, %v586
      %658 = vst.msk [vmem:[#allocation4 + $0xd0] sm:$0xff] %vm631, %v588
      %659 = vst.msk [vmem:[#allocation4 + $0xd8] sm:$0xff] %vm631, %v590
      %660 = vst.msk [vmem:[#allocation4 + $0xe0] sm:$0xff] %vm631, %v592
      %661 = vst.msk [vmem:[#allocation4 + $0xe8] sm:$0xff] %vm631, %v594
      %662 = vst.msk [vmem:[#allocation4 + $0xf0] sm:$0xff] %vm631, %v596
      %663 = vst.msk [vmem:[#allocation4 + $0xf8] sm:$0xff] %vm631, %v598
      %v664 = vld [vmem:[#allocation2 + $0x2] sm:$0xff]
      %v665 = vld [vmem:[#allocation2 + $0xa] sm:$0xff]
      %v666 = vld [vmem:[#allocation2 + $0x1a] sm:$0xff]
      %v667 = vld [vmem:[#allocation2 + $0x22] sm:$0xff]
      %v668 = vld [vmem:[#allocation2 + $0x32] sm:$0xff]
      %v669 = vld [vmem:[#allocation2 + $0x3a] sm:$0xff]
      %v670 = vld [vmem:[#allocation2 + $0x4a] sm:$0xff]
      %v671 = vld [vmem:[#allocation2 + $0x52] sm:$0xff]
      %v672 = vld [vmem:[#allocation2 + $0x62] sm:$0xff]
      %v673 = vld [vmem:[#allocation2 + $0x6a] sm:$0xff]
      %v674 = vld [vmem:[#allocation2 + $0x7a] sm:$0xff]
      %v675 = vld [vmem:[#allocation2 + $0x82] sm:$0xff]
      %v676 = vld [vmem:[#allocation2 + $0x92] sm:$0xff]
      %v677 = vld [vmem:[#allocation2 + $0x9a] sm:$0xff]
      %v678 = vld [vmem:[#allocation2 + $0xaa] sm:$0xff]
      %v679 = vld [vmem:[#allocation2 + $0xb2] sm:$0xff]
      %v680 = vld [vmem:[#allocation2 + $0xc2] sm:$0xff]
      %v681 = vld [vmem:[#allocation2 + $0xca] sm:$0xff]
      %v682 = vld [vmem:[#allocation2 + $0xda] sm:$0xff]
      %v683 = vld [vmem:[#allocation2 + $0xe2] sm:$0xff]
      %v684 = vld [vmem:[#allocation2 + $0xf2] sm:$0xff]
      %v685 = vld [vmem:[#allocation2 + $0xfa] sm:$0xff]
      %v686 = vld [vmem:[#allocation2 + $0x10a] sm:$0xff]
      %v687 = vld [vmem:[#allocation2 + $0x112] sm:$0xff]
      %v688 = vld [vmem:[#allocation2 + $0x122] sm:$0xff]
      %v689 = vld [vmem:[#allocation2 + $0x12a] sm:$0xff]
      %v690 = vld [vmem:[#allocation2 + $0x13a] sm:$0xff]
      %v691 = vld [vmem:[#allocation2 + $0x142] sm:$0xff]
      %v692 = vld [vmem:[#allocation2 + $0x152] sm:$0xff]
      %v693 = vld [vmem:[#allocation2 + $0x15a] sm:$0xff]
      %v694 = vld [vmem:[#allocation2 + $0x16a] sm:$0xff]
      %v695 = vld [vmem:[#allocation2 + $0x172] sm:$0xff]
      %728 = vrot.lane.b32.xlu0 %v664, 8
      %v729 = vpop.permute.xlu0 %728
      %730 = vrot.lane.b32.xlu0 %v665, 8
      %v731 = vpop.permute.xlu0 %730
      %732 = vrot.lane.b32.xlu0 %v666, 8
      %v733 = vpop.permute.xlu0 %732
      %734 = vrot.lane.b32.xlu0 %v667, 8
      %v735 = vpop.permute.xlu0 %734
      %736 = vrot.lane.b32.xlu0 %v668, 8
      %v737 = vpop.permute.xlu0 %736
      %738 = vrot.lane.b32.xlu0 %v669, 8
      %v739 = vpop.permute.xlu0 %738
      %740 = vrot.lane.b32.xlu0 %v670, 8
      %v741 = vpop.permute.xlu0 %740
      %742 = vrot.lane.b32.xlu0 %v671, 8
      %v743 = vpop.permute.xlu0 %742
      %744 = vrot.lane.b32.xlu0 %v672, 8
      %v745 = vpop.permute.xlu0 %744
      %746 = vrot.lane.b32.xlu0 %v673, 8
      %v747 = vpop.permute.xlu0 %746
      %748 = vrot.lane.b32.xlu0 %v674, 8
      %v749 = vpop.permute.xlu0 %748
      %750 = vrot.lane.b32.xlu0 %v675, 8
      %v751 = vpop.permute.xlu0 %750
      %752 = vrot.lane.b32.xlu0 %v676, 8
      %v753 = vpop.permute.xlu0 %752
      %754 = vrot.lane.b32.xlu0 %v677, 8
      %v755 = vpop.permute.xlu0 %754
      %756 = vrot.lane.b32.xlu0 %v678, 8
      %v757 = vpop.permute.xlu0 %756
      %758 = vrot.lane.b32.xlu0 %v679, 8
      %v759 = vpop.permute.xlu0 %758
      %760 = vrot.lane.b32.xlu0 %v680, 8
      %v761 = vpop.permute.xlu0 %760
      %762 = vrot.lane.b32.xlu0 %v681, 8
      %v763 = vpop.permute.xlu0 %762
      %764 = vrot.lane.b32.xlu0 %v682, 8
      %v765 = vpop.permute.xlu0 %764
      %766 = vrot.lane.b32.xlu0 %v683, 8
      %v767 = vpop.permute.xlu0 %766
      %768 = vrot.lane.b32.xlu0 %v684, 8
      %v769 = vpop.permute.xlu0 %768
      %770 = vrot.lane.b32.xlu0 %v685, 8
      %v771 = vpop.permute.xlu0 %770
      %772 = vrot.lane.b32.xlu0 %v686, 8
      %v773 = vpop.permute.xlu0 %772
      %774 = vrot.lane.b32.xlu0 %v687, 8
      %v775 = vpop.permute.xlu0 %774
      %776 = vrot.lane.b32.xlu0 %v688, 8
      %v777 = vpop.permute.xlu0 %776
      %778 = vrot.lane.b32.xlu0 %v689, 8
      %v779 = vpop.permute.xlu0 %778
      %780 = vrot.lane.b32.xlu0 %v690, 8
      %v781 = vpop.permute.xlu0 %780
      %782 = vrot.lane.b32.xlu0 %v691, 8
      %v783 = vpop.permute.xlu0 %782
      %784 = vrot.lane.b32.xlu0 %v692, 8
      %v785 = vpop.permute.xlu0 %784
      %786 = vrot.lane.b32.xlu0 %v693, 8
      %v787 = vpop.permute.xlu0 %786
      %788 = vrot.lane.b32.xlu0 %v694, 8
      %v789 = vpop.permute.xlu0 %788
      %790 = vrot.lane.b32.xlu0 %v695, 8
      %v791 = vpop.permute.xlu0 %790
      %vm824 = vcmask 97344
      %825 = vst.msk [vmem:[#allocation4] sm:$0xff] %vm824, %v729
      %826 = vst.msk [vmem:[#allocation4 + $0x8] sm:$0xff] %vm824, %v731
      %827 = vst.msk [vmem:[#allocation4 + $0x10] sm:$0xff] %vm824, %v733
      %828 = vst.msk [vmem:[#allocation4 + $0x18] sm:$0xff] %vm824, %v735
      %829 = vst.msk [vmem:[#allocation4 + $0x20] sm:$0xff] %vm824, %v737
      %830 = vst.msk [vmem:[#allocation4 + $0x28] sm:$0xff] %vm824, %v739
      %831 = vst.msk [vmem:[#allocation4 + $0x30] sm:$0xff] %vm824, %v741
      %832 = vst.msk [vmem:[#allocation4 + $0x38] sm:$0xff] %vm824, %v743
      %833 = vst.msk [vmem:[#allocation4 + $0x40] sm:$0xff] %vm824, %v745
      %834 = vst.msk [vmem:[#allocation4 + $0x48] sm:$0xff] %vm824, %v747
      %835 = vst.msk [vmem:[#allocation4 + $0x50] sm:$0xff] %vm824, %v749
      %836 = vst.msk [vmem:[#allocation4 + $0x58] sm:$0xff] %vm824, %v751
      %837 = vst.msk [vmem:[#allocation4 + $0x60] sm:$0xff] %vm824, %v753
      %838 = vst.msk [vmem:[#allocation4 + $0x68] sm:$0xff] %vm824, %v755
      %839 = vst.msk [vmem:[#allocation4 + $0x70] sm:$0xff] %vm824, %v757
      %840 = vst.msk [vmem:[#allocation4 + $0x78] sm:$0xff] %vm824, %v759
      %841 = vst.msk [vmem:[#allocation4 + $0x80] sm:$0xff] %vm824, %v761
      %842 = vst.msk [vmem:[#allocation4 + $0x88] sm:$0xff] %vm824, %v763
      %843 = vst.msk [vmem:[#allocation4 + $0x90] sm:$0xff] %vm824, %v765
      %844 = vst.msk [vmem:[#allocation4 + $0x98] sm:$0xff] %vm824, %v767
      %845 = vst.msk [vmem:[#allocation4 + $0xa0] sm:$0xff] %vm824, %v769
      %846 = vst.msk [vmem:[#allocation4 + $0xa8] sm:$0xff] %vm824, %v771
      %847 = vst.msk [vmem:[#allocation4 + $0xb0] sm:$0xff] %vm824, %v773
      %848 = vst.msk [vmem:[#allocation4 + $0xb8] sm:$0xff] %vm824, %v775
      %849 = vst.msk [vmem:[#allocation4 + $0xc0] sm:$0xff] %vm824, %v777
      %850 = vst.msk [vmem:[#allocation4 + $0xc8] sm:$0xff] %vm824, %v779
      %851 = vst.msk [vmem:[#allocation4 + $0xd0] sm:$0xff] %vm824, %v781
      %852 = vst.msk [vmem:[#allocation4 + $0xd8] sm:$0xff] %vm824, %v783
      %853 = vst.msk [vmem:[#allocation4 + $0xe0] sm:$0xff] %vm824, %v785
      %854 = vst.msk [vmem:[#allocation4 + $0xe8] sm:$0xff] %vm824, %v787
      %855 = vst.msk [vmem:[#allocation4 + $0xf0] sm:$0xff] %vm824, %v789
      %856 = vst.msk [vmem:[#allocation4 + $0xf8] sm:$0xff] %vm824, %v791
      %v857 = vld [vmem:[%s368] sm:$0xff]
      %v858 = vld [vmem:[%s368 + $0x8] sm:$0xff]
      %v859 = vld [vmem:[%s368 + $0x18] sm:$0xff]
      %v860 = vld [vmem:[%s368 + $0x20] sm:$0xff]
      %v861 = vld [vmem:[%s368 + $0x30] sm:$0xff]
      %v862 = vld [vmem:[%s368 + $0x38] sm:$0xff]
      %v863 = vld [vmem:[%s368 + $0x48] sm:$0xff]
      %v864 = vld [vmem:[%s368 + $0x50] sm:$0xff]
      %v865 = vld [vmem:[%s368 + $0x60] sm:$0xff]
      %v866 = vld [vmem:[%s368 + $0x68] sm:$0xff]
      %v867 = vld [vmem:[%s368 + $0x78] sm:$0xff]
      %v868 = vld [vmem:[%s368 + $0x80] sm:$0xff]
      %v869 = vld [vmem:[%s368 + $0x90] sm:$0xff]
      %v870 = vld [vmem:[%s368 + $0x98] sm:$0xff]
      %v871 = vld [vmem:[%s368 + $0xa8] sm:$0xff]
      %v872 = vld [vmem:[%s368 + $0xb0] sm:$0xff]
      %v873 = vld [vmem:[%s368 + $0xc0] sm:$0xff]
      %v874 = vld [vmem:[%s368 + $0xc8] sm:$0xff]
      %v875 = vld [vmem:[%s368 + $0xd8] sm:$0xff]
      %v876 = vld [vmem:[%s368 + $0xe0] sm:$0xff]
      %v877 = vld [vmem:[%s368 + $0xf0] sm:$0xff]
      %v878 = vld [vmem:[%s368 + $0xf8] sm:$0xff]
      %v879 = vld [vmem:[%s368 + $0x108] sm:$0xff]
      %v880 = vld [vmem:[%s368 + $0x110] sm:$0xff]
      %v881 = vld [vmem:[%s368 + $0x120] sm:$0xff]
      %v882 = vld [vmem:[%s368 + $0x128] sm:$0xff]
      %v883 = vld [vmem:[%s368 + $0x138] sm:$0xff]
      %v884 = vld [vmem:[%s368 + $0x140] sm:$0xff]
      %v885 = vld [vmem:[%s368 + $0x150] sm:$0xff]
      %v886 = vld [vmem:[%s368 + $0x158] sm:$0xff]
      %v887 = vld [vmem:[%s368 + $0x168] sm:$0xff]
      %v888 = vld [vmem:[%s368 + $0x170] sm:$0xff]
      %921 = vrot.lane.b32.xlu0 %v857, 12
      %v922 = vpop.permute.xlu0 %921
      %923 = vrot.lane.b32.xlu0 %v858, 12
      %v924 = vpop.permute.xlu0 %923
      %925 = vrot.lane.b32.xlu0 %v859, 12
      %v926 = vpop.permute.xlu0 %925
      %927 = vrot.lane.b32.xlu0 %v860, 12
      %v928 = vpop.permute.xlu0 %927
      %929 = vrot.lane.b32.xlu0 %v861, 12
      %v930 = vpop.permute.xlu0 %929
      %931 = vrot.lane.b32.xlu0 %v862, 12
      %v932 = vpop.permute.xlu0 %931
      %933 = vrot.lane.b32.xlu0 %v863, 12
      %v934 = vpop.permute.xlu0 %933
      %935 = vrot.lane.b32.xlu0 %v864, 12
      %v936 = vpop.permute.xlu0 %935
      %937 = vrot.lane.b32.xlu0 %v865, 12
      %v938 = vpop.permute.xlu0 %937
      %939 = vrot.lane.b32.xlu0 %v866, 12
      %v940 = vpop.permute.xlu0 %939
      %941 = vrot.lane.b32.xlu0 %v867, 12
      %v942 = vpop.permute.xlu0 %941
      %943 = vrot.lane.b32.xlu0 %v868, 12
      %v944 = vpop.permute.xlu0 %943
      %945 = vrot.lane.b32.xlu0 %v869, 12
      %v946 = vpop.permute.xlu0 %945
      %947 = vrot.lane.b32.xlu0 %v870, 12
      %v948 = vpop.permute.xlu0 %947
      %949 = vrot.lane.b32.xlu0 %v871, 12
      %v950 = vpop.permute.xlu0 %949
      %951 = vrot.lane.b32.xlu0 %v872, 12
      %v952 = vpop.permute.xlu0 %951
      %953 = vrot.lane.b32.xlu0 %v873, 12
      %v954 = vpop.permute.xlu0 %953
      %955 = vrot.lane.b32.xlu0 %v874, 12
      %v956 = vpop.permute.xlu0 %955
      %957 = vrot.lane.b32.xlu0 %v875, 12
      %v958 = vpop.permute.xlu0 %957
      %959 = vrot.lane.b32.xlu0 %v876, 12
      %v960 = vpop.permute.xlu0 %959
      %961 = vrot.lane.b32.xlu0 %v877, 12
      %v962 = vpop.permute.xlu0 %961
      %963 = vrot.lane.b32.xlu0 %v878, 12
      %v964 = vpop.permute.xlu0 %963
      %965 = vrot.lane.b32.xlu0 %v879, 12
      %v966 = vpop.permute.xlu0 %965
      %967 = vrot.lane.b32.xlu0 %v880, 12
      %v968 = vpop.permute.xlu0 %967
      %969 = vrot.lane.b32.xlu0 %v881, 12
      %v970 = vpop.permute.xlu0 %969
      %971 = vrot.lane.b32.xlu0 %v882, 12
      %v972 = vpop.permute.xlu0 %971
      %973 = vrot.lane.b32.xlu0 %v883, 12
      %v974 = vpop.permute.xlu0 %973
      %975 = vrot.lane.b32.xlu0 %v884, 12
      %v976 = vpop.permute.xlu0 %975
      %977 = vrot.lane.b32.xlu0 %v885, 12
      %v978 = vpop.permute.xlu0 %977
      %979 = vrot.lane.b32.xlu0 %v886, 12
      %v980 = vpop.permute.xlu0 %979
      %981 = vrot.lane.b32.xlu0 %v887, 12
      %v982 = vpop.permute.xlu0 %981
      %983 = vrot.lane.b32.xlu0 %v888, 12
      %v984 = vpop.permute.xlu0 %983
      %vm1017 = vcmask 130144
      %1018 = vst.msk [vmem:[#allocation4] sm:$0xff] %vm1017, %v922
      %1019 = vst.msk [vmem:[#allocation4 + $0x8] sm:$0xff] %vm1017, %v924
      %1020 = vst.msk [vmem:[#allocation4 + $0x10] sm:$0xff] %vm1017, %v926
      %1021 = vst.msk [vmem:[#allocation4 + $0x18] sm:$0xff] %vm1017, %v928
      %1022 = vst.msk [vmem:[#allocation4 + $0x20] sm:$0xff] %vm1017, %v930
      %1023 = vst.msk [vmem:[#allocation4 + $0x28] sm:$0xff] %vm1017, %v932
      %1024 = vst.msk [vmem:[#allocation4 + $0x30] sm:$0xff] %vm1017, %v934
      %1025 = vst.msk [vmem:[#allocation4 + $0x38] sm:$0xff] %vm1017, %v936
      %1026 = vst.msk [vmem:[#allocation4 + $0x40] sm:$0xff] %vm1017, %v938
      %1027 = vst.msk [vmem:[#allocation4 + $0x48] sm:$0xff] %vm1017, %v940
      %1028 = vst.msk [vmem:[#allocation4 + $0x50] sm:$0xff] %vm1017, %v942
      %1029 = vst.msk [vmem:[#allocation4 + $0x58] sm:$0xff] %vm1017, %v944
      %1030 = vst.msk [vmem:[#allocation4 + $0x60] sm:$0xff] %vm1017, %v946
      %1031 = vst.msk [vmem:[#allocation4 + $0x68] sm:$0xff] %vm1017, %v948
      %1032 = vst.msk [vmem:[#allocation4 + $0x70] sm:$0xff] %vm1017, %v950
      %1033 = vst.msk [vmem:[#allocation4 + $0x78] sm:$0xff] %vm1017, %v952
      %1034 = vst.msk [vmem:[#allocation4 + $0x80] sm:$0xff] %vm1017, %v954
      %1035 = vst.msk [vmem:[#allocation4 + $0x88] sm:$0xff] %vm1017, %v956
      %1036 = vst.msk [vmem:[#allocation4 + $0x90] sm:$0xff] %vm1017, %v958
      %1037 = vst.msk [vmem:[#allocation4 + $0x98] sm:$0xff] %vm1017, %v960
      %1038 = vst.msk [vmem:[#allocation4 + $0xa0] sm:$0xff] %vm1017, %v962
      %1039 = vst.msk [vmem:[#allocation4 + $0xa8] sm:$0xff] %vm1017, %v964
      %1040 = vst.msk [vmem:[#allocation4 + $0xb0] sm:$0xff] %vm1017, %v966
      %1041 = vst.msk [vmem:[#allocation4 + $0xb8] sm:$0xff] %vm1017, %v968
      %1042 = vst.msk [vmem:[#allocation4 + $0xc0] sm:$0xff] %vm1017, %v970
      %1043 = vst.msk [vmem:[#allocation4 + $0xc8] sm:$0xff] %vm1017, %v972
      %1044 = vst.msk [vmem:[#allocation4 + $0xd0] sm:$0xff] %vm1017, %v974
      %1045 = vst.msk [vmem:[#allocation4 + $0xd8] sm:$0xff] %vm1017, %v976
      %1046 = vst.msk [vmem:[#allocation4 + $0xe0] sm:$0xff] %vm1017, %v978
      %1047 = vst.msk [vmem:[#allocation4 + $0xe8] sm:$0xff] %vm1017, %v980
      %1048 = vst.msk [vmem:[#allocation4 + $0xf0] sm:$0xff] %vm1017, %v982
      %1049 = vst.msk [vmem:[#allocation4 + $0xf8] sm:$0xff] %vm1017, %v984
      %v1050 = vld [vmem:[%s368 + $0x1] sm:$0xff]
      %v1051 = vld [vmem:[%s368 + $0x9] sm:$0xff]
      %v1052 = vld [vmem:[%s368 + $0x19] sm:$0xff]
      %v1053 = vld [vmem:[%s368 + $0x21] sm:$0xff]
      %v1054 = vld [vmem:[%s368 + $0x31] sm:$0xff]
      %v1055 = vld [vmem:[%s368 + $0x39] sm:$0xff]
      %v1056 = vld [vmem:[%s368 + $0x49] sm:$0xff]
      %v1057 = vld [vmem:[%s368 + $0x51] sm:$0xff]
      %v1058 = vld [vmem:[%s368 + $0x61] sm:$0xff]
      %v1059 = vld [vmem:[%s368 + $0x69] sm:$0xff]
      %v1060 = vld [vmem:[%s368 + $0x79] sm:$0xff]
      %v1061 = vld [vmem:[%s368 + $0x81] sm:$0xff]
      %v1062 = vld [vmem:[%s368 + $0x91] sm:$0xff]
      %v1063 = vld [vmem:[%s368 + $0x99] sm:$0xff]
      %v1064 = vld [vmem:[%s368 + $0xa9] sm:$0xff]
      %v1065 = vld [vmem:[%s368 + $0xb1] sm:$0xff]
      %v1066 = vld [vmem:[%s368 + $0xc1] sm:$0xff]
      %v1067 = vld [vmem:[%s368 + $0xc9] sm:$0xff]
      %v1068 = vld [vmem:[%s368 + $0xd9] sm:$0xff]
      %v1069 = vld [vmem:[%s368 + $0xe1] sm:$0xff]
      %v1070 = vld [vmem:[%s368 + $0xf1] sm:$0xff]
      %v1071 = vld [vmem:[%s368 + $0xf9] sm:$0xff]
      %v1072 = vld [vmem:[%s368 + $0x109] sm:$0xff]
      %v1073 = vld [vmem:[%s368 + $0x111] sm:$0xff]
      %v1074 = vld [vmem:[%s368 + $0x121] sm:$0xff]
      %v1075 = vld [vmem:[%s368 + $0x129] sm:$0xff]
      %v1076 = vld [vmem:[%s368 + $0x139] sm:$0xff]
      %v1077 = vld [vmem:[%s368 + $0x141] sm:$0xff]
      %v1078 = vld [vmem:[%s368 + $0x151] sm:$0xff]
      %v1079 = vld [vmem:[%s368 + $0x159] sm:$0xff]
      %v1080 = vld [vmem:[%s368 + $0x169] sm:$0xff]
      %v1081 = vld [vmem:[%s368 + $0x171] sm:$0xff]
      %1114 = vrot.lane.b32.xlu0 %v1050, 16
      %v1115 = vpop.permute.xlu0 %1114
      %1116 = vrot.lane.b32.xlu0 %v1051, 16
      %v1117 = vpop.permute.xlu0 %1116
      %1118 = vrot.lane.b32.xlu0 %v1052, 16
      %v1119 = vpop.permute.xlu0 %1118
      %1120 = vrot.lane.b32.xlu0 %v1053, 16
      %v1121 = vpop.permute.xlu0 %1120
      %1122 = vrot.lane.b32.xlu0 %v1054, 16
      %v1123 = vpop.permute.xlu0 %1122
      %1124 = vrot.lane.b32.xlu0 %v1055, 16
      %v1125 = vpop.permute.xlu0 %1124
      %1126 = vrot.lane.b32.xlu0 %v1056, 16
      %v1127 = vpop.permute.xlu0 %1126
      %1128 = vrot.lane.b32.xlu0 %v1057, 16
      %v1129 = vpop.permute.xlu0 %1128
      %1130 = vrot.lane.b32.xlu0 %v1058, 16
      %v1131 = vpop.permute.xlu0 %1130
      %1132 = vrot.lane.b32.xlu0 %v1059, 16
      %v1133 = vpop.permute.xlu0 %1132
      %1134 = vrot.lane.b32.xlu0 %v1060, 16
      %v1135 = vpop.permute.xlu0 %1134
      %1136 = vrot.lane.b32.xlu0 %v1061, 16
      %v1137 = vpop.permute.xlu0 %1136
      %1138 = vrot.lane.b32.xlu0 %v1062, 16
      %v1139 = vpop.permute.xlu0 %1138
      %1140 = vrot.lane.b32.xlu0 %v1063, 16
      %v1141 = vpop.permute.xlu0 %1140
      %1142 = vrot.lane.b32.xlu0 %v1064, 16
      %v1143 = vpop.permute.xlu0 %1142
      %1144 = vrot.lane.b32.xlu0 %v1065, 16
      %v1145 = vpop.permute.xlu0 %1144
      %1146 = vrot.lane.b32.xlu0 %v1066, 16
      %v1147 = vpop.permute.xlu0 %1146
      %1148 = vrot.lane.b32.xlu0 %v1067, 16
      %v1149 = vpop.permute.xlu0 %1148
      %1150 = vrot.lane.b32.xlu0 %v1068, 16
      %v1151 = vpop.permute.xlu0 %1150
      %1152 = vrot.lane.b32.xlu0 %v1069, 16
      %v1153 = vpop.permute.xlu0 %1152
      %1154 = vrot.lane.b32.xlu0 %v1070, 16
      %v1155 = vpop.permute.xlu0 %1154
      %1156 = vrot.lane.b32.xlu0 %v1071, 16
      %v1157 = vpop.permute.xlu0 %1156
      %1158 = vrot.lane.b32.xlu0 %v1072, 16
      %v1159 = vpop.permute.xlu0 %1158
      %1160 = vrot.lane.b32.xlu0 %v1073, 16
      %v1161 = vpop.permute.xlu0 %1160
      %1162 = vrot.lane.b32.xlu0 %v1074, 16
      %v1163 = vpop.permute.xlu0 %1162
      %1164 = vrot.lane.b32.xlu0 %v1075, 16
      %v1165 = vpop.permute.xlu0 %1164
      %1166 = vrot.lane.b32.xlu0 %v1076, 16
      %v1167 = vpop.permute.xlu0 %1166
      %1168 = vrot.lane.b32.xlu0 %v1077, 16
      %v1169 = vpop.permute.xlu0 %1168
      %1170 = vrot.lane.b32.xlu0 %v1078, 16
      %v1171 = vpop.permute.xlu0 %1170
      %1172 = vrot.lane.b32.xlu0 %v1079, 16
      %v1173 = vpop.permute.xlu0 %1172
      %1174 = vrot.lane.b32.xlu0 %v1080, 16
      %v1175 = vpop.permute.xlu0 %1174
      %1176 = vrot.lane.b32.xlu0 %v1081, 16
      %v1177 = vpop.permute.xlu0 %1176
      %vm1210 = vcmask 162944
      %1211 = vst.msk [vmem:[#allocation4] sm:$0xff] %vm1210, %v1115
      %1212 = vst.msk [vmem:[#allocation4 + $0x8] sm:$0xff] %vm1210, %v1117
      %1213 = vst.msk [vmem:[#allocation4 + $0x10] sm:$0xff] %vm1210, %v1119
      %1214 = vst.msk [vmem:[#allocation4 + $0x18] sm:$0xff] %vm1210, %v1121
      %1215 = vst.msk [vmem:[#allocation4 + $0x20] sm:$0xff] %vm1210, %v1123
      %1216 = vst.msk [vmem:[#allocation4 + $0x28] sm:$0xff] %vm1210, %v1125
      %1217 = vst.msk [vmem:[#allocation4 + $0x30] sm:$0xff] %vm1210, %v1127
      %1218 = vst.msk [vmem:[#allocation4 + $0x38] sm:$0xff] %vm1210, %v1129
      %1219 = vst.msk [vmem:[#allocation4 + $0x40] sm:$0xff] %vm1210, %v1131
      %1220 = vst.msk [vmem:[#allocation4 + $0x48] sm:$0xff] %vm1210, %v1133
      %1221 = vst.msk [vmem:[#allocation4 + $0x50] sm:$0xff] %vm1210, %v1135
      %1222 = vst.msk [vmem:[#allocation4 + $0x58] sm:$0xff] %vm1210, %v1137
      %1223 = vst.msk [vmem:[#allocation4 + $0x60] sm:$0xff] %vm1210, %v1139
      %1224 = vst.msk [vmem:[#allocation4 + $0x68] sm:$0xff] %vm1210, %v1141
      %1225 = vst.msk [vmem:[#allocation4 + $0x70] sm:$0xff] %vm1210, %v1143
      %1226 = vst.msk [vmem:[#allocation4 + $0x78] sm:$0xff] %vm1210, %v1145
      %1227 = vst.msk [vmem:[#allocation4 + $0x80] sm:$0xff] %vm1210, %v1147
      %1228 = vst.msk [vmem:[#allocation4 + $0x88] sm:$0xff] %vm1210, %v1149
      %1229 = vst.msk [vmem:[#allocation4 + $0x90] sm:$0xff] %vm1210, %v1151
      %1230 = vst.msk [vmem:[#allocation4 + $0x98] sm:$0xff] %vm1210, %v1153
      %1231 = vst.msk [vmem:[#allocation4 + $0xa0] sm:$0xff] %vm1210, %v1155
      %1232 = vst.msk [vmem:[#allocation4 + $0xa8] sm:$0xff] %vm1210, %v1157
      %1233 = vst.msk [vmem:[#allocation4 + $0xb0] sm:$0xff] %vm1210, %v1159
      %1234 = vst.msk [vmem:[#allocation4 + $0xb8] sm:$0xff] %vm1210, %v1161
      %1235 = vst.msk [vmem:[#allocation4 + $0xc0] sm:$0xff] %vm1210, %v1163
      %1236 = vst.msk [vmem:[#allocation4 + $0xc8] sm:$0xff] %vm1210, %v1165
      %1237 = vst.msk [vmem:[#allocation4 + $0xd0] sm:$0xff] %vm1210, %v1167
      %1238 = vst.msk [vmem:[#allocation4 + $0xd8] sm:$0xff] %vm1210, %v1169
      %1239 = vst.msk [vmem:[#allocation4 + $0xe0] sm:$0xff] %vm1210, %v1171
      %1240 = vst.msk [vmem:[#allocation4 + $0xe8] sm:$0xff] %vm1210, %v1173
      %1241 = vst.msk [vmem:[#allocation4 + $0xf0] sm:$0xff] %vm1210, %v1175
      %1242 = vst.msk [vmem:[#allocation4 + $0xf8] sm:$0xff] %vm1210, %v1177
      %v1243 = vld [vmem:[%s368 + $0x2] sm:$0xff]
      %v1244 = vld [vmem:[%s368 + $0xa] sm:$0xff]
      %v1245 = vld [vmem:[%s368 + $0x1a] sm:$0xff]
      %v1246 = vld [vmem:[%s368 + $0x22] sm:$0xff]
      %v1247 = vld [vmem:[%s368 + $0x32] sm:$0xff]
      %v1248 = vld [vmem:[%s368 + $0x3a] sm:$0xff]
      %v1249 = vld [vmem:[%s368 + $0x4a] sm:$0xff]
      %v1250 = vld [vmem:[%s368 + $0x52] sm:$0xff]
      %v1251 = vld [vmem:[%s368 + $0x62] sm:$0xff]
      %v1252 = vld [vmem:[%s368 + $0x6a] sm:$0xff]
      %v1253 = vld [vmem:[%s368 + $0x7a] sm:$0xff]
      %v1254 = vld [vmem:[%s368 + $0x82] sm:$0xff]
      %v1255 = vld [vmem:[%s368 + $0x92] sm:$0xff]
      %v1256 = vld [vmem:[%s368 + $0x9a] sm:$0xff]
      %v1257 = vld [vmem:[%s368 + $0xaa] sm:$0xff]
      %v1258 = vld [vmem:[%s368 + $0xb2] sm:$0xff]
      %v1259 = vld [vmem:[%s368 + $0xc2] sm:$0xff]
      %v1260 = vld [vmem:[%s368 + $0xca] sm:$0xff]
      %v1261 = vld [vmem:[%s368 + $0xda] sm:$0xff]
      %v1262 = vld [vmem:[%s368 + $0xe2] sm:$0xff]
      %v1263 = vld [vmem:[%s368 + $0xf2] sm:$0xff]
      %v1264 = vld [vmem:[%s368 + $0xfa] sm:$0xff]
      %v1265 = vld [vmem:[%s368 + $0x10a] sm:$0xff]
      %v1266 = vld [vmem:[%s368 + $0x112] sm:$0xff]
      %v1267 = vld [vmem:[%s368 + $0x122] sm:$0xff]
      %v1268 = vld [vmem:[%s368 + $0x12a] sm:$0xff]
      %v1269 = vld [vmem:[%s368 + $0x13a] sm:$0xff]
      %v1270 = vld [vmem:[%s368 + $0x142] sm:$0xff]
      %v1271 = vld [vmem:[%s368 + $0x152] sm:$0xff]
      %v1272 = vld [vmem:[%s368 + $0x15a] sm:$0xff]
      %v1273 = vld [vmem:[%s368 + $0x16a] sm:$0xff]
      %v1274 = vld [vmem:[%s368 + $0x172] sm:$0xff]
      %1307 = vrot.lane.b32.xlu0 %v1243, 20
      %v1308 = vpop.permute.xlu0 %1307
      %1309 = vrot.lane.b32.xlu0 %v1244, 20
      %v1310 = vpop.permute.xlu0 %1309
      %1311 = vrot.lane.b32.xlu0 %v1245, 20
      %v1312 = vpop.permute.xlu0 %1311
      %1313 = vrot.lane.b32.xlu0 %v1246, 20
      %v1314 = vpop.permute.xlu0 %1313
      %1315 = vrot.lane.b32.xlu0 %v1247, 20
      %v1316 = vpop.permute.xlu0 %1315
      %1317 = vrot.lane.b32.xlu0 %v1248, 20
      %v1318 = vpop.permute.xlu0 %1317
      %1319 = vrot.lane.b32.xlu0 %v1249, 20
      %v1320 = vpop.permute.xlu0 %1319
      %1321 = vrot.lane.b32.xlu0 %v1250, 20
      %v1322 = vpop.permute.xlu0 %1321
      %1323 = vrot.lane.b32.xlu0 %v1251, 20
      %v1324 = vpop.permute.xlu0 %1323
      %1325 = vrot.lane.b32.xlu0 %v1252, 20
      %v1326 = vpop.permute.xlu0 %1325
      %1327 = vrot.lane.b32.xlu0 %v1253, 20
      %v1328 = vpop.permute.xlu0 %1327
      %1329 = vrot.lane.b32.xlu0 %v1254, 20
      %v1330 = vpop.permute.xlu0 %1329
      %1331 = vrot.lane.b32.xlu0 %v1255, 20
      %v1332 = vpop.permute.xlu0 %1331
      %1333 = vrot.lane.b32.xlu0 %v1256, 20
      %v1334 = vpop.permute.xlu0 %1333
      %1335 = vrot.lane.b32.xlu0 %v1257, 20
      %v1336 = vpop.permute.xlu0 %1335
      %1337 = vrot.lane.b32.xlu0 %v1258, 20
      %v1338 = vpop.permute.xlu0 %1337
      %1339 = vrot.lane.b32.xlu0 %v1259, 20
      %v1340 = vpop.permute.xlu0 %1339
      %1341 = vrot.lane.b32.xlu0 %v1260, 20
      %v1342 = vpop.permute.xlu0 %1341
      %1343 = vrot.lane.b32.xlu0 %v1261, 20
      %v1344 = vpop.permute.xlu0 %1343
      %1345 = vrot.lane.b32.xlu0 %v1262, 20
      %v1346 = vpop.permute.xlu0 %1345
      %1347 = vrot.lane.b32.xlu0 %v1263, 20
      %v1348 = vpop.permute.xlu0 %1347
      %1349 = vrot.lane.b32.xlu0 %v1264, 20
      %v1350 = vpop.permute.xlu0 %1349
      %1351 = vrot.lane.b32.xlu0 %v1265, 20
      %v1352 = vpop.permute.xlu0 %1351
      %1353 = vrot.lane.b32.xlu0 %v1266, 20
      %v1354 = vpop.permute.xlu0 %1353
      %1355 = vrot.lane.b32.xlu0 %v1267, 20
      %v1356 = vpop.permute.xlu0 %1355
      %1357 = vrot.lane.b32.xlu0 %v1268, 20
      %v1358 = vpop.permute.xlu0 %1357
      %1359 = vrot.lane.b32.xlu0 %v1269, 20
      %v1360 = vpop.permute.xlu0 %1359
      %1361 = vrot.lane.b32.xlu0 %v1270, 20
      %v1362 = vpop.permute.xlu0 %1361
      %1363 = vrot.lane.b32.xlu0 %v1271, 20
      %v1364 = vpop.permute.xlu0 %1363
      %1365 = vrot.lane.b32.xlu0 %v1272, 20
      %v1366 = vpop.permute.xlu0 %1365
      %1367 = vrot.lane.b32.xlu0 %v1273, 20
      %v1368 = vpop.permute.xlu0 %1367
      %1369 = vrot.lane.b32.xlu0 %v1274, 20
      %v1370 = vpop.permute.xlu0 %1369
      %vm1403 = vcmask 195744
      %1404 = vst.msk [vmem:[#allocation4] sm:$0xff] %vm1403, %v1308
      %1405 = vst.msk [vmem:[#allocation4 + $0x8] sm:$0xff] %vm1403, %v1310
      %1406 = vst.msk [vmem:[#allocation4 + $0x10] sm:$0xff] %vm1403, %v1312
      %1407 = vst.msk [vmem:[#allocation4 + $0x18] sm:$0xff] %vm1403, %v1314
      %1408 = vst.msk [vmem:[#allocation4 + $0x20] sm:$0xff] %vm1403, %v1316
      %1409 = vst.msk [vmem:[#allocation4 + $0x28] sm:$0xff] %vm1403, %v1318
      %1410 = vst.msk [vmem:[#allocation4 + $0x30] sm:$0xff] %vm1403, %v1320
      %1411 = vst.msk [vmem:[#allocation4 + $0x38] sm:$0xff] %vm1403, %v1322
      %1412 = vst.msk [vmem:[#allocation4 + $0x40] sm:$0xff] %vm1403, %v1324
      %1413 = vst.msk [vmem:[#allocation4 + $0x48] sm:$0xff] %vm1403, %v1326
      %1414 = vst.msk [vmem:[#allocation4 + $0x50] sm:$0xff] %vm1403, %v1328
      %1415 = vst.msk [vmem:[#allocation4 + $0x58] sm:$0xff] %vm1403, %v1330
      %1416 = vst.msk [vmem:[#allocation4 + $0x60] sm:$0xff] %vm1403, %v1332
      %1417 = vst.msk [vmem:[#allocation4 + $0x68] sm:$0xff] %vm1403, %v1334
      %1418 = vst.msk [vmem:[#allocation4 + $0x70] sm:$0xff] %vm1403, %v1336
      %1419 = vst.msk [vmem:[#allocation4 + $0x78] sm:$0xff] %vm1403, %v1338
      %1420 = vst.msk [vmem:[#allocation4 + $0x80] sm:$0xff] %vm1403, %v1340
      %1421 = vst.msk [vmem:[#allocation4 + $0x88] sm:$0xff] %vm1403, %v1342
      %1422 = vst.msk [vmem:[#allocation4 + $0x90] sm:$0xff] %vm1403, %v1344
      %1423 = vst.msk [vmem:[#allocation4 + $0x98] sm:$0xff] %vm1403, %v1346
      %1424 = vst.msk [vmem:[#allocation4 + $0xa0] sm:$0xff] %vm1403, %v1348
      %1425 = vst.msk [vmem:[#allocation4 + $0xa8] sm:$0xff] %vm1403, %v1350
      %1426 = vst.msk [vmem:[#allocation4 + $0xb0] sm:$0xff] %vm1403, %v1352
      %1427 = vst.msk [vmem:[#allocation4 + $0xb8] sm:$0xff] %vm1403, %v1354
      %1428 = vst.msk [vmem:[#allocation4 + $0xc0] sm:$0xff] %vm1403, %v1356
      %1429 = vst.msk [vmem:[#allocation4 + $0xc8] sm:$0xff] %vm1403, %v1358
      %1430 = vst.msk [vmem:[#allocation4 + $0xd0] sm:$0xff] %vm1403, %v1360
      %1431 = vst.msk [vmem:[#allocation4 + $0xd8] sm:$0xff] %vm1403, %v1362
      %1432 = vst.msk [vmem:[#allocation4 + $0xe0] sm:$0xff] %vm1403, %v1364
      %1433 = vst.msk [vmem:[#allocation4 + $0xe8] sm:$0xff] %vm1403, %v1366
      %1434 = vst.msk [vmem:[#allocation4 + $0xf0] sm:$0xff] %vm1403, %v1368
      %1435 = vst.msk [vmem:[#allocation4 + $0xf8] sm:$0xff] %vm1403, %v1370
      %s1436 = scalar_lea.vmem [#allocation2], 48
      %v1437 = vld [vmem:[%s1436] sm:$0xff]
      %v1438 = vld [vmem:[%s1436 + $0x8] sm:$0xff]
      %v1439 = vld [vmem:[%s1436 + $0x18] sm:$0xff]
      %v1440 = vld [vmem:[%s1436 + $0x20] sm:$0xff]
      %v1441 = vld [vmem:[%s1436 + $0x30] sm:$0xff]
      %v1442 = vld [vmem:[%s1436 + $0x38] sm:$0xff]
      %v1443 = vld [vmem:[%s1436 + $0x48] sm:$0xff]
      %v1444 = vld [vmem:[%s1436 + $0x50] sm:$0xff]
      %v1445 = vld [vmem:[%s1436 + $0x60] sm:$0xff]
      %v1446 = vld [vmem:[%s1436 + $0x68] sm:$0xff]
      %v1447 = vld [vmem:[%s1436 + $0x78] sm:$0xff]
      %v1448 = vld [vmem:[%s1436 + $0x80] sm:$0xff]
      %v1449 = vld [vmem:[%s1436 + $0x90] sm:$0xff]
      %v1450 = vld [vmem:[%s1436 + $0x98] sm:$0xff]
      %v1451 = vld [vmem:[%s1436 + $0xa8] sm:$0xff]
      %v1452 = vld [vmem:[%s1436 + $0xb0] sm:$0xff]
      %v1453 = vld [vmem:[%s1436 + $0xc0] sm:$0xff]
      %v1454 = vld [vmem:[%s1436 + $0xc8] sm:$0xff]
      %v1455 = vld [vmem:[%s1436 + $0xd8] sm:$0xff]
      %v1456 = vld [vmem:[%s1436 + $0xe0] sm:$0xff]
      %v1457 = vld [vmem:[%s1436 + $0xf0] sm:$0xff]
      %v1458 = vld [vmem:[%s1436 + $0xf8] sm:$0xff]
      %v1459 = vld [vmem:[%s1436 + $0x108] sm:$0xff]
      %v1460 = vld [vmem:[%s1436 + $0x110] sm:$0xff]
      %v1461 = vld [vmem:[%s1436 + $0x120] sm:$0xff]
      %v1462 = vld [vmem:[%s1436 + $0x128] sm:$0xff]
      %v1463 = vld [vmem:[%s1436 + $0x138] sm:$0xff]
      %v1464 = vld [vmem:[%s1436 + $0x140] sm:$0xff]
      %v1465 = vld [vmem:[%s1436 + $0x150] sm:$0xff]
      %v1466 = vld [vmem:[%s1436 + $0x158] sm:$0xff]
      %v1467 = vld [vmem:[%s1436 + $0x168] sm:$0xff]
      %v1468 = vld [vmem:[%s1436 + $0x170] sm:$0xff]
      %1501 = vrot.lane.b32.xlu0 %v1437, 24
      %v1502 = vpop.permute.xlu0 %1501
      %1503 = vrot.lane.b32.xlu0 %v1438, 24
      %v1504 = vpop.permute.xlu0 %1503
      %1505 = vrot.lane.b32.xlu0 %v1439, 24
      %v1506 = vpop.permute.xlu0 %1505
      %1507 = vrot.lane.b32.xlu0 %v1440, 24
      %v1508 = vpop.permute.xlu0 %1507
      %1509 = vrot.lane.b32.xlu0 %v1441, 24
      %v1510 = vpop.permute.xlu0 %1509
      %1511 = vrot.lane.b32.xlu0 %v1442, 24
      %v1512 = vpop.permute.xlu0 %1511
      %1513 = vrot.lane.b32.xlu0 %v1443, 24
      %v1514 = vpop.permute.xlu0 %1513
      %1515 = vrot.lane.b32.xlu0 %v1444, 24
      %v1516 = vpop.permute.xlu0 %1515
      %1517 = vrot.lane.b32.xlu0 %v1445, 24
      %v1518 = vpop.permute.xlu0 %1517
      %1519 = vrot.lane.b32.xlu0 %v1446, 24
      %v1520 = vpop.permute.xlu0 %1519
      %1521 = vrot.lane.b32.xlu0 %v1447, 24
      %v1522 = vpop.permute.xlu0 %1521
      %1523 = vrot.lane.b32.xlu0 %v1448, 24
      %v1524 = vpop.permute.xlu0 %1523
      %1525 = vrot.lane.b32.xlu0 %v1449, 24
      %v1526 = vpop.permute.xlu0 %1525
      %1527 = vrot.lane.b32.xlu0 %v1450, 24
      %v1528 = vpop.permute.xlu0 %1527
      %1529 = vrot.lane.b32.xlu0 %v1451, 24
      %v1530 = vpop.permute.xlu0 %1529
      %1531 = vrot.lane.b32.xlu0 %v1452, 24
      %v1532 = vpop.permute.xlu0 %1531
      %1533 = vrot.lane.b32.xlu0 %v1453, 24
      %v1534 = vpop.permute.xlu0 %1533
      %1535 = vrot.lane.b32.xlu0 %v1454, 24
      %v1536 = vpop.permute.xlu0 %1535
      %1537 = vrot.lane.b32.xlu0 %v1455, 24
      %v1538 = vpop.permute.xlu0 %1537
      %1539 = vrot.lane.b32.xlu0 %v1456, 24
      %v1540 = vpop.permute.xlu0 %1539
      %1541 = vrot.lane.b32.xlu0 %v1457, 24
      %v1542 = vpop.permute.xlu0 %1541
      %1543 = vrot.lane.b32.xlu0 %v1458, 24
      %v1544 = vpop.permute.xlu0 %1543
      %1545 = vrot.lane.b32.xlu0 %v1459, 24
      %v1546 = vpop.permute.xlu0 %1545
      %1547 = vrot.lane.b32.xlu0 %v1460, 24
      %v1548 = vpop.permute.xlu0 %1547
      %1549 = vrot.lane.b32.xlu0 %v1461, 24
      %v1550 = vpop.permute.xlu0 %1549
      %1551 = vrot.lane.b32.xlu0 %v1462, 24
      %v1552 = vpop.permute.xlu0 %1551
      %1553 = vrot.lane.b32.xlu0 %v1463, 24
      %v1554 = vpop.permute.xlu0 %1553
      %1555 = vrot.lane.b32.xlu0 %v1464, 24
      %v1556 = vpop.permute.xlu0 %1555
      %1557 = vrot.lane.b32.xlu0 %v1465, 24
      %v1558 = vpop.permute.xlu0 %1557
      %1559 = vrot.lane.b32.xlu0 %v1466, 24
      %v1560 = vpop.permute.xlu0 %1559
      %1561 = vrot.lane.b32.xlu0 %v1467, 24
      %v1562 = vpop.permute.xlu0 %1561
      %1563 = vrot.lane.b32.xlu0 %v1468, 24
      %v1564 = vpop.permute.xlu0 %1563
      %vm1597 = vcmask 228544
      %1598 = vst.msk [vmem:[#allocation4] sm:$0xff] %vm1597, %v1502
      %1599 = vst.msk [vmem:[#allocation4 + $0x8] sm:$0xff] %vm1597, %v1504
      %1600 = vst.msk [vmem:[#allocation4 + $0x10] sm:$0xff] %vm1597, %v1506
      %1601 = vst.msk [vmem:[#allocation4 + $0x18] sm:$0xff] %vm1597, %v1508
      %1602 = vst.msk [vmem:[#allocation4 + $0x20] sm:$0xff] %vm1597, %v1510
      %1603 = vst.msk [vmem:[#allocation4 + $0x28] sm:$0xff] %vm1597, %v1512
      %1604 = vst.msk [vmem:[#allocation4 + $0x30] sm:$0xff] %vm1597, %v1514
      %1605 = vst.msk [vmem:[#allocation4 + $0x38] sm:$0xff] %vm1597, %v1516
      %1606 = vst.msk [vmem:[#allocation4 + $0x40] sm:$0xff] %vm1597, %v1518
      %1607 = vst.msk [vmem:[#allocation4 + $0x48] sm:$0xff] %vm1597, %v1520
      %1608 = vst.msk [vmem:[#allocation4 + $0x50] sm:$0xff] %vm1597, %v1522
      %1609 = vst.msk [vmem:[#allocation4 + $0x58] sm:$0xff] %vm1597, %v1524
      %1610 = vst.msk [vmem:[#allocation4 + $0x60] sm:$0xff] %vm1597, %v1526
      %1611 = vst.msk [vmem:[#allocation4 + $0x68] sm:$0xff] %vm1597, %v1528
      %1612 = vst.msk [vmem:[#allocation4 + $0x70] sm:$0xff] %vm1597, %v1530
      %1613 = vst.msk [vmem:[#allocation4 + $0x78] sm:$0xff] %vm1597, %v1532
      %1614 = vst.msk [vmem:[#allocation4 + $0x80] sm:$0xff] %vm1597, %v1534
      %1615 = vst.msk [vmem:[#allocation4 + $0x88] sm:$0xff] %vm1597, %v1536
      %1616 = vst.msk [vmem:[#allocation4 + $0x90] sm:$0xff] %vm1597, %v1538
      %1617 = vst.msk [vmem:[#allocation4 + $0x98] sm:$0xff] %vm1597, %v1540
      %1618 = vst.msk [vmem:[#allocation4 + $0xa0] sm:$0xff] %vm1597, %v1542
      %1619 = vst.msk [vmem:[#allocation4 + $0xa8] sm:$0xff] %vm1597, %v1544
      %1620 = vst.msk [vmem:[#allocation4 + $0xb0] sm:$0xff] %vm1597, %v1546
      %1621 = vst.msk [vmem:[#allocation4 + $0xb8] sm:$0xff] %vm1597, %v1548
      %1622 = vst.msk [vmem:[#allocation4 + $0xc0] sm:$0xff] %vm1597, %v1550
      %1623 = vst.msk [vmem:[#allocation4 + $0xc8] sm:$0xff] %vm1597, %v1552
      %1624 = vst.msk [vmem:[#allocation4 + $0xd0] sm:$0xff] %vm1597, %v1554
      %1625 = vst.msk [vmem:[#allocation4 + $0xd8] sm:$0xff] %vm1597, %v1556
      %1626 = vst.msk [vmem:[#allocation4 + $0xe0] sm:$0xff] %vm1597, %v1558
      %1627 = vst.msk [vmem:[#allocation4 + $0xe8] sm:$0xff] %vm1597, %v1560
      %1628 = vst.msk [vmem:[#allocation4 + $0xf0] sm:$0xff] %vm1597, %v1562
      %1629 = vst.msk [vmem:[#allocation4 + $0xf8] sm:$0xff] %vm1597, %v1564
      %v1630 = vld [vmem:[%s1436 + $0x1] sm:$0xff]
      %v1631 = vld [vmem:[%s1436 + $0x9] sm:$0xff]
      %v1632 = vld [vmem:[%s1436 + $0x19] sm:$0xff]
      %v1633 = vld [vmem:[%s1436 + $0x21] sm:$0xff]
      %v1634 = vld [vmem:[%s1436 + $0x31] sm:$0xff]
      %v1635 = vld [vmem:[%s1436 + $0x39] sm:$0xff]
      %v1636 = vld [vmem:[%s1436 + $0x49] sm:$0xff]
      %v1637 = vld [vmem:[%s1436 + $0x51] sm:$0xff]
      %v1638 = vld [vmem:[%s1436 + $0x61] sm:$0xff]
      %v1639 = vld [vmem:[%s1436 + $0x69] sm:$0xff]
      %v1640 = vld [vmem:[%s1436 + $0x79] sm:$0xff]
      %v1641 = vld [vmem:[%s1436 + $0x81] sm:$0xff]
      %v1642 = vld [vmem:[%s1436 + $0x91] sm:$0xff]
      %v1643 = vld [vmem:[%s1436 + $0x99] sm:$0xff]
      %v1644 = vld [vmem:[%s1436 + $0xa9] sm:$0xff]
      %v1645 = vld [vmem:[%s1436 + $0xb1] sm:$0xff]
      %v1646 = vld [vmem:[%s1436 + $0xc1] sm:$0xff]
      %v1647 = vld [vmem:[%s1436 + $0xc9] sm:$0xff]
      %v1648 = vld [vmem:[%s1436 + $0xd9] sm:$0xff]
      %v1649 = vld [vmem:[%s1436 + $0xe1] sm:$0xff]
      %v1650 = vld [vmem:[%s1436 + $0xf1] sm:$0xff]
      %v1651 = vld [vmem:[%s1436 + $0xf9] sm:$0xff]
      %v1652 = vld [vmem:[%s1436 + $0x109] sm:$0xff]
      %v1653 = vld [vmem:[%s1436 + $0x111] sm:$0xff]
      %v1654 = vld [vmem:[%s1436 + $0x121] sm:$0xff]
      %v1655 = vld [vmem:[%s1436 + $0x129] sm:$0xff]
      %v1656 = vld [vmem:[%s1436 + $0x139] sm:$0xff]
      %v1657 = vld [vmem:[%s1436 + $0x141] sm:$0xff]
      %v1658 = vld [vmem:[%s1436 + $0x151] sm:$0xff]
      %v1659 = vld [vmem:[%s1436 + $0x159] sm:$0xff]
      %v1660 = vld [vmem:[%s1436 + $0x169] sm:$0xff]
      %v1661 = vld [vmem:[%s1436 + $0x171] sm:$0xff]
      %1694 = vrot.lane.b32.xlu0 %v1630, 28
      %v1695 = vpop.permute.xlu0 %1694
      %1696 = vrot.lane.b32.xlu0 %v1631, 28
      %v1697 = vpop.permute.xlu0 %1696
      %1698 = vrot.lane.b32.xlu0 %v1632, 28
      %v1699 = vpop.permute.xlu0 %1698
      %1700 = vrot.lane.b32.xlu0 %v1633, 28
      %v1701 = vpop.permute.xlu0 %1700
      %1702 = vrot.lane.b32.xlu0 %v1634, 28
      %v1703 = vpop.permute.xlu0 %1702
      %1704 = vrot.lane.b32.xlu0 %v1635, 28
      %v1705 = vpop.permute.xlu0 %1704
      %1706 = vrot.lane.b32.xlu0 %v1636, 28
      %v1707 = vpop.permute.xlu0 %1706
      %1708 = vrot.lane.b32.xlu0 %v1637, 28
      %v1709 = vpop.permute.xlu0 %1708
      %1710 = vrot.lane.b32.xlu0 %v1638, 28
      %v1711 = vpop.permute.xlu0 %1710
      %1712 = vrot.lane.b32.xlu0 %v1639, 28
      %v1713 = vpop.permute.xlu0 %1712
      %1714 = vrot.lane.b32.xlu0 %v1640, 28
      %v1715 = vpop.permute.xlu0 %1714
      %1716 = vrot.lane.b32.xlu0 %v1641, 28
      %v1717 = vpop.permute.xlu0 %1716
      %1718 = vrot.lane.b32.xlu0 %v1642, 28
      %v1719 = vpop.permute.xlu0 %1718
      %1720 = vrot.lane.b32.xlu0 %v1643, 28
      %v1721 = vpop.permute.xlu0 %1720
      %1722 = vrot.lane.b32.xlu0 %v1644, 28
      %v1723 = vpop.permute.xlu0 %1722
      %1724 = vrot.lane.b32.xlu0 %v1645, 28
      %v1725 = vpop.permute.xlu0 %1724
      %1726 = vrot.lane.b32.xlu0 %v1646, 28
      %v1727 = vpop.permute.xlu0 %1726
      %1728 = vrot.lane.b32.xlu0 %v1647, 28
      %v1729 = vpop.permute.xlu0 %1728
      %1730 = vrot.lane.b32.xlu0 %v1648, 28
      %v1731 = vpop.permute.xlu0 %1730
      %1732 = vrot.lane.b32.xlu0 %v1649, 28
      %v1733 = vpop.permute.xlu0 %1732
      %1734 = vrot.lane.b32.xlu0 %v1650, 28
      %v1735 = vpop.permute.xlu0 %1734
      %1736 = vrot.lane.b32.xlu0 %v1651, 28
      %v1737 = vpop.permute.xlu0 %1736
      %1738 = vrot.lane.b32.xlu0 %v1652, 28
      %v1739 = vpop.permute.xlu0 %1738
      %1740 = vrot.lane.b32.xlu0 %v1653, 28
      %v1741 = vpop.permute.xlu0 %1740
      %1742 = vrot.lane.b32.xlu0 %v1654, 28
      %v1743 = vpop.permute.xlu0 %1742
      %1744 = vrot.lane.b32.xlu0 %v1655, 28
      %v1745 = vpop.permute.xlu0 %1744
      %1746 = vrot.lane.b32.xlu0 %v1656, 28
      %v1747 = vpop.permute.xlu0 %1746
      %1748 = vrot.lane.b32.xlu0 %v1657, 28
      %v1749 = vpop.permute.xlu0 %1748
      %1750 = vrot.lane.b32.xlu0 %v1658, 28
      %v1751 = vpop.permute.xlu0 %1750
      %1752 = vrot.lane.b32.xlu0 %v1659, 28
      %v1753 = vpop.permute.xlu0 %1752
      %1754 = vrot.lane.b32.xlu0 %v1660, 28
      %v1755 = vpop.permute.xlu0 %1754
      %1756 = vrot.lane.b32.xlu0 %v1661, 28
      %v1757 = vpop.permute.xlu0 %1756
      %vm1790 = vcmask 261344
      %1791 = vst.msk [vmem:[#allocation4] sm:$0xff] %vm1790, %v1695
      %1792 = vst.msk [vmem:[#allocation4 + $0x8] sm:$0xff] %vm1790, %v1697
      %1793 = vst.msk [vmem:[#allocation4 + $0x10] sm:$0xff] %vm1790, %v1699
      %1794 = vst.msk [vmem:[#allocation4 + $0x18] sm:$0xff] %vm1790, %v1701
      %1795 = vst.msk [vmem:[#allocation4 + $0x20] sm:$0xff] %vm1790, %v1703
      %1796 = vst.msk [vmem:[#allocation4 + $0x28] sm:$0xff] %vm1790, %v1705
      %1797 = vst.msk [vmem:[#allocation4 + $0x30] sm:$0xff] %vm1790, %v1707
      %1798 = vst.msk [vmem:[#allocation4 + $0x38] sm:$0xff] %vm1790, %v1709
      %1799 = vst.msk [vmem:[#allocation4 + $0x40] sm:$0xff] %vm1790, %v1711
      %1800 = vst.msk [vmem:[#allocation4 + $0x48] sm:$0xff] %vm1790, %v1713
      %1801 = vst.msk [vmem:[#allocation4 + $0x50] sm:$0xff] %vm1790, %v1715
      %1802 = vst.msk [vmem:[#allocation4 + $0x58] sm:$0xff] %vm1790, %v1717
      %1803 = vst.msk [vmem:[#allocation4 + $0x60] sm:$0xff] %vm1790, %v1719
      %1804 = vst.msk [vmem:[#allocation4 + $0x68] sm:$0xff] %vm1790, %v1721
      %1805 = vst.msk [vmem:[#allocation4 + $0x70] sm:$0xff] %vm1790, %v1723
      %1806 = vst.msk [vmem:[#allocation4 + $0x78] sm:$0xff] %vm1790, %v1725
      %1807 = vst.msk [vmem:[#allocation4 + $0x80] sm:$0xff] %vm1790, %v1727
      %1808 = vst.msk [vmem:[#allocation4 + $0x88] sm:$0xff] %vm1790, %v1729
      %1809 = vst.msk [vmem:[#allocation4 + $0x90] sm:$0xff] %vm1790, %v1731
      %1810 = vst.msk [vmem:[#allocation4 + $0x98] sm:$0xff] %vm1790, %v1733
      %1811 = vst.msk [vmem:[#allocation4 + $0xa0] sm:$0xff] %vm1790, %v1735
      %1812 = vst.msk [vmem:[#allocation4 + $0xa8] sm:$0xff] %vm1790, %v1737
      %1813 = vst.msk [vmem:[#allocation4 + $0xb0] sm:$0xff] %vm1790, %v1739
      %1814 = vst.msk [vmem:[#allocation4 + $0xb8] sm:$0xff] %vm1790, %v1741
      %1815 = vst.msk [vmem:[#allocation4 + $0xc0] sm:$0xff] %vm1790, %v1743
      %1816 = vst.msk [vmem:[#allocation4 + $0xc8] sm:$0xff] %vm1790, %v1745
      %1817 = vst.msk [vmem:[#allocation4 + $0xd0] sm:$0xff] %vm1790, %v1747
      %1818 = vst.msk [vmem:[#allocation4 + $0xd8] sm:$0xff] %vm1790, %v1749
      %1819 = vst.msk [vmem:[#allocation4 + $0xe0] sm:$0xff] %vm1790, %v1751
      %1820 = vst.msk [vmem:[#allocation4 + $0xe8] sm:$0xff] %vm1790, %v1753
      %1821 = vst.msk [vmem:[#allocation4 + $0xf0] sm:$0xff] %vm1790, %v1755
      %1822 = vst.msk [vmem:[#allocation4 + $0xf8] sm:$0xff] %vm1790, %v1757
      %v1823 = vld [vmem:[%s1436 + $0x2] sm:$0xff]
      %v1824 = vld [vmem:[%s1436 + $0xa] sm:$0xff]
      %v1825 = vld [vmem:[%s1436 + $0x1a] sm:$0xff]
      %v1826 = vld [vmem:[%s1436 + $0x22] sm:$0xff]
      %v1827 = vld [vmem:[%s1436 + $0x32] sm:$0xff]
      %v1828 = vld [vmem:[%s1436 + $0x3a] sm:$0xff]
      %v1829 = vld [vmem:[%s1436 + $0x4a] sm:$0xff]
      %v1830 = vld [vmem:[%s1436 + $0x52] sm:$0xff]
      %v1831 = vld [vmem:[%s1436 + $0x62] sm:$0xff]
      %v1832 = vld [vmem:[%s1436 + $0x6a] sm:$0xff]
      %v1833 = vld [vmem:[%s1436 + $0x7a] sm:$0xff]
      %v1834 = vld [vmem:[%s1436 + $0x82] sm:$0xff]
      %v1835 = vld [vmem:[%s1436 + $0x92] sm:$0xff]
      %v1836 = vld [vmem:[%s1436 + $0x9a] sm:$0xff]
      %v1837 = vld [vmem:[%s1436 + $0xaa] sm:$0xff]
      %v1838 = vld [vmem:[%s1436 + $0xb2] sm:$0xff]
      %v1839 = vld [vmem:[%s1436 + $0xc2] sm:$0xff]
      %v1840 = vld [vmem:[%s1436 + $0xca] sm:$0xff]
      %v1841 = vld [vmem:[%s1436 + $0xda] sm:$0xff]
      %v1842 = vld [vmem:[%s1436 + $0xe2] sm:$0xff]
      %v1843 = vld [vmem:[%s1436 + $0xf2] sm:$0xff]
      %v1844 = vld [vmem:[%s1436 + $0xfa] sm:$0xff]
      %v1845 = vld [vmem:[%s1436 + $0x10a] sm:$0xff]
      %v1846 = vld [vmem:[%s1436 + $0x112] sm:$0xff]
      %v1847 = vld [vmem:[%s1436 + $0x122] sm:$0xff]
      %v1848 = vld [vmem:[%s1436 + $0x12a] sm:$0xff]
      %v1849 = vld [vmem:[%s1436 + $0x13a] sm:$0xff]
      %v1850 = vld [vmem:[%s1436 + $0x142] sm:$0xff]
      %v1851 = vld [vmem:[%s1436 + $0x152] sm:$0xff]
      %v1852 = vld [vmem:[%s1436 + $0x15a] sm:$0xff]
      %v1853 = vld [vmem:[%s1436 + $0x16a] sm:$0xff]
      %v1854 = vld [vmem:[%s1436 + $0x172] sm:$0xff]
      %1887 = vrot.lane.b32.xlu0 %v1823, 32
      %v1888 = vpop.permute.xlu0 %1887
      %1889 = vrot.lane.b32.xlu0 %v1824, 32
      %v1890 = vpop.permute.xlu0 %1889
      %1891 = vrot.lane.b32.xlu0 %v1825, 32
      %v1892 = vpop.permute.xlu0 %1891
      %1893 = vrot.lane.b32.xlu0 %v1826, 32
      %v1894 = vpop.permute.xlu0 %1893
      %1895 = vrot.lane.b32.xlu0 %v1827, 32
      %v1896 = vpop.permute.xlu0 %1895
      %1897 = vrot.lane.b32.xlu0 %v1828, 32
      %v1898 = vpop.permute.xlu0 %1897
      %1899 = vrot.lane.b32.xlu0 %v1829, 32
      %v1900 = vpop.permute.xlu0 %1899
      %1901 = vrot.lane.b32.xlu0 %v1830, 32
      %v1902 = vpop.permute.xlu0 %1901
      %1903 = vrot.lane.b32.xlu0 %v1831, 32
      %v1904 = vpop.permute.xlu0 %1903
      %1905 = vrot.lane.b32.xlu0 %v1832, 32
      %v1906 = vpop.permute.xlu0 %1905
      %1907 = vrot.lane.b32.xlu0 %v1833, 32
      %v1908 = vpop.permute.xlu0 %1907
      %1909 = vrot.lane.b32.xlu0 %v1834, 32
      %v1910 = vpop.permute.xlu0 %1909
      %1911 = vrot.lane.b32.xlu0 %v1835, 32
      %v1912 = vpop.permute.xlu0 %1911
      %1913 = vrot.lane.b32.xlu0 %v1836, 32
      %v1914 = vpop.permute.xlu0 %1913
      %1915 = vrot.lane.b32.xlu0 %v1837, 32
      %v1916 = vpop.permute.xlu0 %1915
      %1917 = vrot.lane.b32.xlu0 %v1838, 32
      %v1918 = vpop.permute.xlu0 %1917
      %1919 = vrot.lane.b32.xlu0 %v1839, 32
      %v1920 = vpop.permute.xlu0 %1919
      %1921 = vrot.lane.b32.xlu0 %v1840, 32
      %v1922 = vpop.permute.xlu0 %1921
      %1923 = vrot.lane.b32.xlu0 %v1841, 32
      %v1924 = vpop.permute.xlu0 %1923
      %1925 = vrot.lane.b32.xlu0 %v1842, 32
      %v1926 = vpop.permute.xlu0 %1925
      %1927 = vrot.lane.b32.xlu0 %v1843, 32
      %v1928 = vpop.permute.xlu0 %1927
      %1929 = vrot.lane.b32.xlu0 %v1844, 32
      %v1930 = vpop.permute.xlu0 %1929
      %1931 = vrot.lane.b32.xlu0 %v1845, 32
      %v1932 = vpop.permute.xlu0 %1931
      %1933 = vrot.lane.b32.xlu0 %v1846, 32
      %v1934 = vpop.permute.xlu0 %1933
      %1935 = vrot.lane.b32.xlu0 %v1847, 32
      %v1936 = vpop.permute.xlu0 %1935
      %1937 = vrot.lane.b32.xlu0 %v1848, 32
      %v1938 = vpop.permute.xlu0 %1937
      %1939 = vrot.lane.b32.xlu0 %v1849, 32
      %v1940 = vpop.permute.xlu0 %1939
      %1941 = vrot.lane.b32.xlu0 %v1850, 32
      %v1942 = vpop.permute.xlu0 %1941
      %1943 = vrot.lane.b32.xlu0 %v1851, 32
      %v1944 = vpop.permute.xlu0 %1943
      %1945 = vrot.lane.b32.xlu0 %v1852, 32
      %v1946 = vpop.permute.xlu0 %1945
      %1947 = vrot.lane.b32.xlu0 %v1853, 32
      %v1948 = vpop.permute.xlu0 %1947
      %1949 = vrot.lane.b32.xlu0 %v1854, 32
      %v1950 = vpop.permute.xlu0 %1949
      %vm1983 = vcmask 294144
      %1984 = vst.msk [vmem:[#allocation4] sm:$0xff] %vm1983, %v1888
      %1985 = vst.msk [vmem:[#allocation4 + $0x8] sm:$0xff] %vm1983, %v1890
      %1986 = vst.msk [vmem:[#allocation4 + $0x10] sm:$0xff] %vm1983, %v1892
      %1987 = vst.msk [vmem:[#allocation4 + $0x18] sm:$0xff] %vm1983, %v1894
      %1988 = vst.msk [vmem:[#allocation4 + $0x20] sm:$0xff] %vm1983, %v1896
      %1989 = vst.msk [vmem:[#allocation4 + $0x28] sm:$0xff] %vm1983, %v1898
      %1990 = vst.msk [vmem:[#allocation4 + $0x30] sm:$0xff] %vm1983, %v1900
      %1991 = vst.msk [vmem:[#allocation4 + $0x38] sm:$0xff] %vm1983, %v1902
      %1992 = vst.msk [vmem:[#allocation4 + $0x40] sm:$0xff] %vm1983, %v1904
      %1993 = vst.msk [vmem:[#allocation4 + $0x48] sm:$0xff] %vm1983, %v1906
      %1994 = vst.msk [vmem:[#allocation4 + $0x50] sm:$0xff] %vm1983, %v1908
      %1995 = vst.msk [vmem:[#allocation4 + $0x58] sm:$0xff] %vm1983, %v1910
      %1996 = vst.msk [vmem:[#allocation4 + $0x60] sm:$0xff] %vm1983, %v1912
      %1997 = vst.msk [vmem:[#allocation4 + $0x68] sm:$0xff] %vm1983, %v1914
      %1998 = vst.msk [vmem:[#allocation4 + $0x70] sm:$0xff] %vm1983, %v1916
      %1999 = vst.msk [vmem:[#allocation4 + $0x78] sm:$0xff] %vm1983, %v1918
      %2000 = vst.msk [vmem:[#allocation4 + $0x80] sm:$0xff] %vm1983, %v1920
      %2001 = vst.msk [vmem:[#allocation4 + $0x88] sm:$0xff] %vm1983, %v1922
      %2002 = vst.msk [vmem:[#allocation4 + $0x90] sm:$0xff] %vm1983, %v1924
      %2003 = vst.msk [vmem:[#allocation4 + $0x98] sm:$0xff] %vm1983, %v1926
      %2004 = vst.msk [vmem:[#allocation4 + $0xa0] sm:$0xff] %vm1983, %v1928
      %2005 = vst.msk [vmem:[#allocation4 + $0xa8] sm:$0xff] %vm1983, %v1930
      %2006 = vst.msk [vmem:[#allocation4 + $0xb0] sm:$0xff] %vm1983, %v1932
      %2007 = vst.msk [vmem:[#allocation4 + $0xb8] sm:$0xff] %vm1983, %v1934
      %2008 = vst.msk [vmem:[#allocation4 + $0xc0] sm:$0xff] %vm1983, %v1936
      %2009 = vst.msk [vmem:[#allocation4 + $0xc8] sm:$0xff] %vm1983, %v1938
      %2010 = vst.msk [vmem:[#allocation4 + $0xd0] sm:$0xff] %vm1983, %v1940
      %2011 = vst.msk [vmem:[#allocation4 + $0xd8] sm:$0xff] %vm1983, %v1942
      %2012 = vst.msk [vmem:[#allocation4 + $0xe0] sm:$0xff] %vm1983, %v1944
      %2013 = vst.msk [vmem:[#allocation4 + $0xe8] sm:$0xff] %vm1983, %v1946
      %2014 = vst.msk [vmem:[#allocation4 + $0xf0] sm:$0xff] %vm1983, %v1948
      %2015 = vst.msk [vmem:[#allocation4 + $0xf8] sm:$0xff] %vm1983, %v1950
      %v2016 = vld [vmem:[#allocation4] sm:$0xff]
      %v2017 = vld [vmem:[#allocation4 + $0x8] sm:$0xff]
      %v2018 = vld [vmem:[#allocation4 + $0x10] sm:$0xff]
      %v2019 = vld [vmem:[#allocation4 + $0x18] sm:$0xff]
      %v2020 = vld [vmem:[#allocation4 + $0x20] sm:$0xff]
      %v2021 = vld [vmem:[#allocation4 + $0x28] sm:$0xff]
      %v2022 = vld [vmem:[#allocation4 + $0x30] sm:$0xff]
      %v2023 = vld [vmem:[#allocation4 + $0x38] sm:$0xff]
      %v2024 = vld [vmem:[#allocation4 + $0x40] sm:$0xff]
      %v2025 = vld [vmem:[#allocation4 + $0x48] sm:$0xff]
      %v2026 = vld [vmem:[#allocation4 + $0x50] sm:$0xff]
      %v2027 = vld [vmem:[#allocation4 + $0x58] sm:$0xff]
      %v2028 = vld [vmem:[#allocation4 + $0x60] sm:$0xff]
      %v2029 = vld [vmem:[#allocation4 + $0x68] sm:$0xff]
      %v2030 = vld [vmem:[#allocation4 + $0x70] sm:$0xff]
      %v2031 = vld [vmem:[#allocation4 + $0x78] sm:$0xff]
      %v2032 = vld [vmem:[#allocation4 + $0x80] sm:$0xff]
      %v2033 = vld [vmem:[#allocation4 + $0x88] sm:$0xff]
      %v2034 = vld [vmem:[#allocation4 + $0x90] sm:$0xff]
      %v2035 = vld [vmem:[#allocation4 + $0x98] sm:$0xff]
      %v2036 = vld [vmem:[#allocation4 + $0xa0] sm:$0xff]
      %v2037 = vld [vmem:[#allocation4 + $0xa8] sm:$0xff]
      %v2038 = vld [vmem:[#allocation4 + $0xb0] sm:$0xff]
      %v2039 = vld [vmem:[#allocation4 + $0xb8] sm:$0xff]
      %v2040 = vld [vmem:[#allocation4 + $0xc0] sm:$0xff]
      %v2041 = vld [vmem:[#allocation4 + $0xc8] sm:$0xff]
      %v2042 = vld [vmem:[#allocation4 + $0xd0] sm:$0xff]
      %v2043 = vld [vmem:[#allocation4 + $0xd8] sm:$0xff]
      %v2044 = vld [vmem:[#allocation4 + $0xe0] sm:$0xff]
      %v2045 = vld [vmem:[#allocation4 + $0xe8] sm:$0xff]
      %v2046 = vld [vmem:[#allocation4 + $0xf0] sm:$0xff]
      %v2047 = vld [vmem:[#allocation4 + $0xf8] sm:$0xff]
      %v2048 = vpack.c.bf16 %v2017, %v2016
      %v2049 = vpack.c.bf16 %v2019, %v2018
      %v2050 = vpack.c.bf16 %v2021, %v2020
      %v2051 = vpack.c.bf16 %v2023, %v2022
      %v2052 = vpack.c.bf16 %v2025, %v2024
      %v2053 = vpack.c.bf16 %v2027, %v2026
      %v2054 = vpack.c.bf16 %v2029, %v2028
      %v2055 = vpack.c.bf16 %v2031, %v2030
      %v2056 = vpack.c.bf16 %v2033, %v2032
      %v2057 = vpack.c.bf16 %v2035, %v2034
      %v2058 = vpack.c.bf16 %v2037, %v2036
      %v2059 = vpack.c.bf16 %v2039, %v2038
      %v2060 = vpack.c.bf16 %v2041, %v2040
      %v2061 = vpack.c.bf16 %v2043, %v2042
      %v2062 = vpack.c.bf16 %v2045, %v2044
      %v2063 = vpack.c.bf16 %v2047, %v2046
      %v2065 = vlaneseq
      %v2066 = vshrl.u32 %v2065, 7
      %v2067 = vsub.s32 0, %v2066
      %v2068 = vrot.slane %v406, %v2067
      %v2075 = vunpack.c.l.b16 %v401
      %v2076 = vunpack.c.l.b16 %v402
      %v2077 = vunpack.c.l.b16 %v403
      %v2078 = vunpack.c.l.b16 %v404
      %v2079 = vunpack.c.l.b16 %v405
      %v2080 = vpack.c.b16 %v2076, %v2075
      %v2081 = vpack.c.b16 %v2078, %v2077
      %v2082 = vpack.c.b16 %v2079, %v2079
      %vm2085 = vcmask 293888
      %v2087 = vsel %vm2085, %v2048, 0
      %v2090 = vsel %vm2085, %v2049, 0
      %v2093 = vsel %vm2085, %v2050, 0
      %v2096 = vsel %vm2085, %v2051, 0
      %v2099 = vsel %vm2085, %v2052, 0
      %v2102 = vsel %vm2085, %v2053, 0
      %v2105 = vsel %vm2085, %v2054, 0
      %v2108 = vsel %vm2085, %v2055, 0
      %v2111 = vsel %vm2085, %v2056, 0
      %v2114 = vsel %vm2085, %v2057, 0
      %v2117 = vsel %vm2085, %v2058, 0
      %v2120 = vsel %vm2085, %v2059, 0
      %v2123 = vsel %vm2085, %v2060, 0
      %v2126 = vsel %vm2085, %v2061, 0
      %v2129 = vsel %vm2085, %v2062, 0
      %v2132 = vsel %vm2085, %v2063, 0
      %vm2134 = vcmask 1041408
      %v2136 = vsel %vm2134, %v2082, 0
      %2138 = vmatprep.subr.bf16.mxu0 0
      %2139 = vmatpush1.bf16.msra.mxu0 %v2080
      %2140 = vmatprep.subr.bf16.mxu0 0
      %2141 = vmatpush1.bf16.msra.mxu0 %v2081
      %2142 = vmatprep.subr.bf16.mxu0 0
      %2143 = vmatpush1.bf16.msra.mxu0 %v2136
      %2144 = vmatprep.subr.bf16.mxu0 0
      %2145 = vmatpush1.bf16.msra.mxu0 0
      %2146 = vmatprep.subr.bf16.mxu0 0
      %2147 = vmatpush1.bf16.msra.mxu0 0
      %2148 = vmatprep.subr.bf16.mxu0 0
      %2149 = vmatpush1.bf16.msra.mxu0 0
      %2150 = vmatprep.subr.bf16.mxu0 0
      %2151 = vmatpush1.bf16.msra.mxu0 0
      %2152 = vmatprep.subr.bf16.mxu0 0
      %2153 = vmatpush1.bf16.msra.mxu0 0
      %2154 = vmatprep.subr.bf16.mxu0 0
      %2155 = vmatpush1.bf16.msra.mxu0 0
      %2156 = vmatprep.subr.bf16.mxu0 0
      %2157 = vmatpush1.bf16.msra.mxu0 0
      %2158 = vmatprep.subr.bf16.mxu0 0
      %2159 = vmatpush1.bf16.msra.mxu0 0
      %2160 = vmatprep.subr.bf16.mxu0 0
      %2161 = vmatpush1.bf16.msra.mxu0 0
      %2162 = vmatprep.subr.bf16.mxu0 0
      %2163 = vmatpush1.bf16.msra.mxu0 0
      %2164 = vmatprep.subr.bf16.mxu0 0
      %2165 = vmatpush1.bf16.msra.mxu0 0
      %2166 = vmatprep.subr.bf16.mxu0 0
      %2167 = vmatpush1.bf16.msra.mxu0 0
      %2168 = vmatprep.subr.bf16.mxu0 0
      %2169 = vmatpush1.bf16.msra.mxu0 0
      %2170 = vmatprep.mubr.bf16.mxu0 0
      %2171 = vmatmul.mubr.bf16.gmra.mrb[0].mxu0 %v2087
      %v2172 = vpop.f32.mrb[0].mxu0
      %v2173 = vadd.f32 %v2068, %v2172
      %v2174 = vpop.f32.mrb[0].mxu0
      %v2175 = vpop.f32.mrb[0].mxu0
      %v2176 = vadd.f32 %v2068, %v2175
      %v2177 = vpop.f32.mrb[0].mxu0
      %2178 = vmatprep.mubr.bf16.mxu0 0
      %2179 = vmatmul.mubr.bf16.gmra.mrb[0].mxu0 %v2090
      %v2180 = vpop.f32.mrb[0].mxu0
      %v2181 = vadd.f32 %v2068, %v2180
      %v2182 = vpop.f32.mrb[0].mxu0
      %v2183 = vpop.f32.mrb[0].mxu0
      %v2184 = vadd.f32 %v2068, %v2183
      %v2185 = vpop.f32.mrb[0].mxu0
      %2186 = vmatprep.mubr.bf16.mxu0 0
      %2187 = vmatmul.mubr.bf16.gmra.mrb[0].mxu0 %v2093
      %v2188 = vpop.f32.mrb[0].mxu0
      %v2189 = vadd.f32 %v2068, %v2188
      %v2190 = vpop.f32.mrb[0].mxu0
      %v2191 = vpop.f32.mrb[0].mxu0
      %v2192 = vadd.f32 %v2068, %v2191
      %v2193 = vpop.f32.mrb[0].mxu0
      %2194 = vmatprep.mubr.bf16.mxu0 0
      %2195 = vmatmul.mubr.bf16.gmra.mrb[0].mxu0 %v2096
      %v2196 = vpop.f32.mrb[0].mxu0
      %v2197 = vadd.f32 %v2068, %v2196
      %v2198 = vpop.f32.mrb[0].mxu0
      %v2199 = vpop.f32.mrb[0].mxu0
      %v2200 = vadd.f32 %v2068, %v2199
      %v2201 = vpop.f32.mrb[0].mxu0
      %2202 = vmatprep.mubr.bf16.mxu0 0
      %2203 = vmatmul.mubr.bf16.gmra.mrb[0].mxu0 %v2099
      %v2204 = vpop.f32.mrb[0].mxu0
      %v2205 = vadd.f32 %v2068, %v2204
      %v2206 = vpop.f32.mrb[0].mxu0
      %v2207 = vpop.f32.mrb[0].mxu0
      %v2208 = vadd.f32 %v2068, %v2207
      %v2209 = vpop.f32.mrb[0].mxu0
      %2210 = vmatprep.mubr.bf16.mxu0 0
      %2211 = vmatmul.mubr.bf16.gmra.mrb[0].mxu0 %v2102
      %v2212 = vpop.f32.mrb[0].mxu0
      %v2213 = vadd.f32 %v2068, %v2212
      %v2214 = vpop.f32.mrb[0].mxu0
      %v2215 = vpop.f32.mrb[0].mxu0
      %v2216 = vadd.f32 %v2068, %v2215
      %v2217 = vpop.f32.mrb[0].mxu0
      %2218 = vmatprep.mubr.bf16.mxu0 0
      %2219 = vmatmul.mubr.bf16.gmra.mrb[0].mxu0 %v2105
      %v2220 = vpop.f32.mrb[0].mxu0
      %v2221 = vadd.f32 %v2068, %v2220
      %v2222 = vpop.f32.mrb[0].mxu0
      %v2223 = vpop.f32.mrb[0].mxu0
      %v2224 = vadd.f32 %v2068, %v2223
      %v2225 = vpop.f32.mrb[0].mxu0
      %2226 = vmatprep.mubr.bf16.mxu0 0
      %2227 = vmatmul.mubr.bf16.gmra.mrb[0].mxu0 %v2108
      %v2228 = vpop.f32.mrb[0].mxu0
      %v2229 = vadd.f32 %v2068, %v2228
      %v2230 = vpop.f32.mrb[0].mxu0
      %v2231 = vpop.f32.mrb[0].mxu0
      %v2232 = vadd.f32 %v2068, %v2231
      %v2233 = vpop.f32.mrb[0].mxu0
      %2234 = vmatprep.mubr.bf16.mxu0 0
      %2235 = vmatmul.mubr.bf16.gmra.mrb[0].mxu0 %v2111
      %v2236 = vpop.f32.mrb[0].mxu0
      %v2237 = vadd.f32 %v2068, %v2236
      %v2238 = vpop.f32.mrb[0].mxu0
      %v2239 = vpop.f32.mrb[0].mxu0
      %v2240 = vadd.f32 %v2068, %v2239
      %v2241 = vpop.f32.mrb[0].mxu0
      %2242 = vmatprep.mubr.bf16.mxu0 0
      %2243 = vmatmul.mubr.bf16.gmra.mrb[0].mxu0 %v2114
      %v2244 = vpop.f32.mrb[0].mxu0
      %v2245 = vadd.f32 %v2068, %v2244
      %v2246 = vpop.f32.mrb[0].mxu0
      %v2247 = vpop.f32.mrb[0].mxu0
      %v2248 = vadd.f32 %v2068, %v2247
      %v2249 = vpop.f32.mrb[0].mxu0
      %2250 = vmatprep.mubr.bf16.mxu0 0
      %2251 = vmatmul.mubr.bf16.gmra.mrb[0].mxu0 %v2117
      %v2252 = vpop.f32.mrb[0].mxu0
      %v2253 = vadd.f32 %v2068, %v2252
      %v2254 = vpop.f32.mrb[0].mxu0
      %v2255 = vpop.f32.mrb[0].mxu0
      %v2256 = vadd.f32 %v2068, %v2255
      %v2257 = vpop.f32.mrb[0].mxu0
      %2258 = vmatprep.mubr.bf16.mxu0 0
      %2259 = vmatmul.mubr.bf16.gmra.mrb[0].mxu0 %v2120
      %v2260 = vpop.f32.mrb[0].mxu0
      %v2261 = vadd.f32 %v2068, %v2260
      %v2262 = vpop.f32.mrb[0].mxu0
      %v2263 = vpop.f32.mrb[0].mxu0
      %v2264 = vadd.f32 %v2068, %v2263
      %v2265 = vpop.f32.mrb[0].mxu0
      %2266 = vmatprep.mubr.bf16.mxu0 0
      %2267 = vmatmul.mubr.bf16.gmra.mrb[0].mxu0 %v2123
      %v2268 = vpop.f32.mrb[0].mxu0
      %v2269 = vadd.f32 %v2068, %v2268
      %v2270 = vpop.f32.mrb[0].mxu0
      %v2271 = vpop.f32.mrb[0].mxu0
      %v2272 = vadd.f32 %v2068, %v2271
      %v2273 = vpop.f32.mrb[0].mxu0
      %2274 = vmatprep.mubr.bf16.mxu0 0
      %2275 = vmatmul.mubr.bf16.gmra.mrb[0].mxu0 %v2126
      %v2276 = vpop.f32.mrb[0].mxu0
      %v2277 = vadd.f32 %v2068, %v2276
      %v2278 = vpop.f32.mrb[0].mxu0
      %v2279 = vpop.f32.mrb[0].mxu0
      %v2280 = vadd.f32 %v2068, %v2279
      %v2281 = vpop.f32.mrb[0].mxu0
      %2282 = vmatprep.mubr.bf16.mxu0 0
      %2283 = vmatmul.mubr.bf16.gmra.mrb[0].mxu0 %v2129
      %v2284 = vpop.f32.mrb[0].mxu0
      %v2285 = vadd.f32 %v2068, %v2284
      %v2286 = vpop.f32.mrb[0].mxu0
      %v2287 = vpop.f32.mrb[0].mxu0
      %v2288 = vadd.f32 %v2068, %v2287
      %v2289 = vpop.f32.mrb[0].mxu0
      %2290 = vmatprep.mubr.bf16.mxu0 0
      %2291 = vmatmul.mubr.bf16.gmra.mrb[0].mxu0 %v2132
      %v2292 = vpop.f32.mrb[0].mxu0
      %v2293 = vadd.f32 %v2068, %v2292
      %v2294 = vpop.f32.mrb[0].mxu0
      %v2295 = vpop.f32.mrb[0].mxu0
      %v2296 = vadd.f32 %v2068, %v2295
      %v2297 = vpop.f32.mrb[0].mxu0
      %2298 = vdwg.mxu0
      %vm2299 = vcmp.ge.f32.partialorder %v2173, 0.0
      %vm2300 = vcmp.ge.f32.partialorder %v2176, 0.0
      %vm2301 = vcmp.ge.f32.partialorder %v2181, 0.0
      %vm2302 = vcmp.ge.f32.partialorder %v2184, 0.0
      %vm2303 = vcmp.ge.f32.partialorder %v2189, 0.0
      %vm2304 = vcmp.ge.f32.partialorder %v2192, 0.0
      %vm2305 = vcmp.ge.f32.partialorder %v2197, 0.0
      %vm2306 = vcmp.ge.f32.partialorder %v2200, 0.0
      %vm2307 = vcmp.ge.f32.partialorder %v2205, 0.0
      %vm2308 = vcmp.ge.f32.partialorder %v2208, 0.0
      %vm2309 = vcmp.ge.f32.partialorder %v2213, 0.0
      %vm2310 = vcmp.ge.f32.partialorder %v2216, 0.0
      %vm2311 = vcmp.ge.f32.partialorder %v2221, 0.0
      %vm2312 = vcmp.ge.f32.partialorder %v2224, 0.0
      %vm2313 = vcmp.ge.f32.partialorder %v2229, 0.0
      %vm2314 = vcmp.ge.f32.partialorder %v2232, 0.0
      %vm2315 = vcmp.ge.f32.partialorder %v2237, 0.0
      %vm2316 = vcmp.ge.f32.partialorder %v2240, 0.0
      %vm2317 = vcmp.ge.f32.partialorder %v2245, 0.0
      %vm2318 = vcmp.ge.f32.partialorder %v2248, 0.0
      %vm2319 = vcmp.ge.f32.partialorder %v2253, 0.0
      %vm2320 = vcmp.ge.f32.partialorder %v2256, 0.0
      %vm2321 = vcmp.ge.f32.partialorder %v2261, 0.0
      %vm2322 = vcmp.ge.f32.partialorder %v2264, 0.0
      %vm2323 = vcmp.ge.f32.partialorder %v2269, 0.0
      %vm2324 = vcmp.ge.f32.partialorder %v2272, 0.0
      %vm2325 = vcmp.ge.f32.partialorder %v2277, 0.0
      %vm2326 = vcmp.ge.f32.partialorder %v2280, 0.0
      %vm2327 = vcmp.ge.f32.partialorder %v2285, 0.0
      %vm2328 = vcmp.ge.f32.partialorder %v2288, 0.0
      %vm2329 = vcmp.ge.f32.partialorder %v2293, 0.0
      %vm2330 = vcmp.ge.f32.partialorder %v2296, 0.0
      %v2331 = vmul.f32 %v2173, 0.2
      %v2332 = vmul.f32 %v2176, 0.2
      %v2333 = vmul.f32 %v2181, 0.2
      %v2334 = vmul.f32 %v2184, 0.2
      %v2335 = vmul.f32 %v2189, 0.2
      %v2336 = vmul.f32 %v2192, 0.2
      %v2337 = vmul.f32 %v2197, 0.2
      %v2338 = vmul.f32 %v2200, 0.2
      %v2339 = vmul.f32 %v2205, 0.2
      %v2340 = vmul.f32 %v2208, 0.2
      %v2341 = vmul.f32 %v2213, 0.2
      %v2342 = vmul.f32 %v2216, 0.2
      %v2343 = vmul.f32 %v2221, 0.2
      %v2344 = vmul.f32 %v2224, 0.2
      %v2345 = vmul.f32 %v2229, 0.2
      %v2346 = vmul.f32 %v2232, 0.2
      %v2347 = vmul.f32 %v2237, 0.2
      %v2348 = vmul.f32 %v2240, 0.2
      %v2349 = vmul.f32 %v2245, 0.2
      %v2350 = vmul.f32 %v2248, 0.2
      %v2351 = vmul.f32 %v2253, 0.2
      %v2352 = vmul.f32 %v2256, 0.2
      %v2353 = vmul.f32 %v2261, 0.2
      %v2354 = vmul.f32 %v2264, 0.2
      %v2355 = vmul.f32 %v2269, 0.2
      %v2356 = vmul.f32 %v2272, 0.2
      %v2357 = vmul.f32 %v2277, 0.2
      %v2358 = vmul.f32 %v2280, 0.2
      %v2359 = vmul.f32 %v2285, 0.2
      %v2360 = vmul.f32 %v2288, 0.2
      %v2361 = vmul.f32 %v2293, 0.2
      %v2362 = vmul.f32 %v2296, 0.2
      %v2363 = vsel %vm2299, %v2173, %v2331
      %v2364 = vsel %vm2300, %v2176, %v2332
      %v2365 = vsel %vm2301, %v2181, %v2333
      %v2366 = vsel %vm2302, %v2184, %v2334
      %v2367 = vsel %vm2303, %v2189, %v2335
      %v2368 = vsel %vm2304, %v2192, %v2336
      %v2369 = vsel %vm2305, %v2197, %v2337
      %v2370 = vsel %vm2306, %v2200, %v2338
      %v2371 = vsel %vm2307, %v2205, %v2339
      %v2372 = vsel %vm2308, %v2208, %v2340
      %v2373 = vsel %vm2309, %v2213, %v2341
      %v2374 = vsel %vm2310, %v2216, %v2342
      %v2375 = vsel %vm2311, %v2221, %v2343
      %v2376 = vsel %vm2312, %v2224, %v2344
      %v2377 = vsel %vm2313, %v2229, %v2345
      %v2378 = vsel %vm2314, %v2232, %v2346
      %v2379 = vsel %vm2315, %v2237, %v2347
      %v2380 = vsel %vm2316, %v2240, %v2348
      %v2381 = vsel %vm2317, %v2245, %v2349
      %v2382 = vsel %vm2318, %v2248, %v2350
      %v2383 = vsel %vm2319, %v2253, %v2351
      %v2384 = vsel %vm2320, %v2256, %v2352
      %v2385 = vsel %vm2321, %v2261, %v2353
      %v2386 = vsel %vm2322, %v2264, %v2354
      %v2387 = vsel %vm2323, %v2269, %v2355
      %v2388 = vsel %vm2324, %v2272, %v2356
      %v2389 = vsel %vm2325, %v2277, %v2357
      %v2390 = vsel %vm2326, %v2280, %v2358
      %v2391 = vsel %vm2327, %v2285, %v2359
      %v2392 = vsel %vm2328, %v2288, %v2360
      %v2393 = vsel %vm2329, %v2293, %v2361
      %v2394 = vsel %vm2330, %v2296, %v2362
      %vm2395 = vcmask 261120
      %2396 = vst.msk [vmem:[#allocation3] sm:$0xff] %vm2395, 0.0
      %2397 = vst.msk [vmem:[#allocation3 + $0x8] sm:$0xff] %vm2395, 0.0
      %vm2398 = vcmask 254976
      %2399 = vst.msk [vmem:[#allocation3 + $0x10] sm:$0x3] %vm2398, 0.0
      %2400 = vst.msk [vmem:[#allocation3 + $0x18] sm:$0xff] %vm2395, 0.0
      %2401 = vst.msk [vmem:[#allocation3 + $0x20] sm:$0xff] %vm2395, 0.0
      %2402 = vst.msk [vmem:[#allocation3 + $0x28] sm:$0x3] %vm2398, 0.0
      %2403 = vst.msk [vmem:[#allocation3 + $0x30] sm:$0xff] %vm2395, 0.0
      %2404 = vst.msk [vmem:[#allocation3 + $0x38] sm:$0xff] %vm2395, 0.0
      %2405 = vst.msk [vmem:[#allocation3 + $0x40] sm:$0x3] %vm2398, 0.0
      %2406 = vst.msk [vmem:[#allocation3 + $0x48] sm:$0xff] %vm2395, 0.0
      %2407 = vst.msk [vmem:[#allocation3 + $0x50] sm:$0xff] %vm2395, 0.0
      %2408 = vst.msk [vmem:[#allocation3 + $0x58] sm:$0x3] %vm2398, 0.0
      %2409 = vst.msk [vmem:[#allocation3 + $0x60] sm:$0xff] %vm2395, 0.0
      %2410 = vst.msk [vmem:[#allocation3 + $0x68] sm:$0xff] %vm2395, 0.0
      %2411 = vst.msk [vmem:[#allocation3 + $0x70] sm:$0x3] %vm2398, 0.0
      %2412 = vst.msk [vmem:[#allocation3 + $0x78] sm:$0xff] %vm2395, 0.0
      %2413 = vst.msk [vmem:[#allocation3 + $0x80] sm:$0xff] %vm2395, 0.0
      %2414 = vst.msk [vmem:[#allocation3 + $0x88] sm:$0x3] %vm2398, 0.0
      %2415 = vst.msk [vmem:[#allocation3 + $0x90] sm:$0xff] %vm2395, 0.0
      %2416 = vst.msk [vmem:[#allocation3 + $0x98] sm:$0xff] %vm2395, 0.0
      %2417 = vst.msk [vmem:[#allocation3 + $0xa0] sm:$0x3] %vm2398, 0.0
      %2418 = vst.msk [vmem:[#allocation3 + $0xa8] sm:$0xff] %vm2395, 0.0
      %2419 = vst.msk [vmem:[#allocation3 + $0xb0] sm:$0xff] %vm2395, 0.0
      %2420 = vst.msk [vmem:[#allocation3 + $0xb8] sm:$0x3] %vm2398, 0.0
      %2421 = vst.msk [vmem:[#allocation3 + $0xc0] sm:$0xff] %vm2395, 0.0
      %2422 = vst.msk [vmem:[#allocation3 + $0xc8] sm:$0xff] %vm2395, 0.0
      %2423 = vst.msk [vmem:[#allocation3 + $0xd0] sm:$0x3] %vm2398, 0.0
      %2424 = vst.msk [vmem:[#allocation3 + $0xd8] sm:$0xff] %vm2395, 0.0
      %2425 = vst.msk [vmem:[#allocation3 + $0xe0] sm:$0xff] %vm2395, 0.0
      %2426 = vst.msk [vmem:[#allocation3 + $0xe8] sm:$0x3] %vm2398, 0.0
      %2427 = vst.msk [vmem:[#allocation3 + $0xf0] sm:$0xff] %vm2395, 0.0
      %2428 = vst.msk [vmem:[#allocation3 + $0xf8] sm:$0xff] %vm2395, 0.0
      %2429 = vst.msk [vmem:[#allocation3 + $0x100] sm:$0x3] %vm2398, 0.0
      %2430 = vst.msk [vmem:[#allocation3 + $0x108] sm:$0xff] %vm2395, 0.0
      %2431 = vst.msk [vmem:[#allocation3 + $0x110] sm:$0xff] %vm2395, 0.0
      %2432 = vst.msk [vmem:[#allocation3 + $0x118] sm:$0x3] %vm2398, 0.0
      %2433 = vst.msk [vmem:[#allocation3 + $0x120] sm:$0xff] %vm2395, 0.0
      %2434 = vst.msk [vmem:[#allocation3 + $0x128] sm:$0xff] %vm2395, 0.0
      %2435 = vst.msk [vmem:[#allocation3 + $0x130] sm:$0x3] %vm2398, 0.0
      %2436 = vst.msk [vmem:[#allocation3 + $0x138] sm:$0xff] %vm2395, 0.0
      %2437 = vst.msk [vmem:[#allocation3 + $0x140] sm:$0xff] %vm2395, 0.0
      %2438 = vst.msk [vmem:[#allocation3 + $0x148] sm:$0x3] %vm2398, 0.0
      %2439 = vst.msk [vmem:[#allocation3 + $0x150] sm:$0xff] %vm2395, 0.0
      %2440 = vst.msk [vmem:[#allocation3 + $0x158] sm:$0xff] %vm2395, 0.0
      %2441 = vst.msk [vmem:[#allocation3 + $0x160] sm:$0x3] %vm2398, 0.0
      %2442 = vst.msk [vmem:[#allocation3 + $0x168] sm:$0xff] %vm2395, 0.0
      %2443 = vst.msk [vmem:[#allocation3 + $0x170] sm:$0xff] %vm2395, 0.0
      %2444 = vst.msk [vmem:[#allocation3 + $0x178] sm:$0x3] %vm2398, 0.0
      %2445 = vst.msk [vmem:[#allocation3 + $0x180] sm:$0xff] %vm2395, 0.0
      %2446 = vst.msk [vmem:[#allocation3 + $0x188] sm:$0xff] %vm2395, 0.0
      %2447 = vst.msk [vmem:[#allocation3 + $0x190] sm:$0x3] %vm2398, 0.0
      %2448 = vst.msk [vmem:[#allocation3 + $0x198] sm:$0xff] %vm2395, 0.0
      %2449 = vst.msk [vmem:[#allocation3 + $0x1a0] sm:$0xff] %vm2395, 0.0
      %2450 = vst.msk [vmem:[#allocation3 + $0x1a8] sm:$0x3] %vm2398, 0.0
      %s2451 = scalar_lea.vmem [#allocation3], 24
      %2452 = vst.msk [vmem:[%s2451 + $0x1] sm:$0xff] %vm2395, %v2363
      %2453 = vst.msk [vmem:[%s2451 + $0x9] sm:$0xff] %vm2395, %v2364
      %2454 = vst.msk [vmem:[%s2451 + $0x19] sm:$0xff] %vm2395, %v2365
      %2455 = vst.msk [vmem:[%s2451 + $0x21] sm:$0xff] %vm2395, %v2366
      %2456 = vst.msk [vmem:[%s2451 + $0x31] sm:$0xff] %vm2395, %v2367
      %2457 = vst.msk [vmem:[%s2451 + $0x39] sm:$0xff] %vm2395, %v2368
      %2458 = vst.msk [vmem:[%s2451 + $0x49] sm:$0xff] %vm2395, %v2369
      %2459 = vst.msk [vmem:[%s2451 + $0x51] sm:$0xff] %vm2395, %v2370
      %2460 = vst.msk [vmem:[%s2451 + $0x61] sm:$0xff] %vm2395, %v2371
      %2461 = vst.msk [vmem:[%s2451 + $0x69] sm:$0xff] %vm2395, %v2372
      %2462 = vst.msk [vmem:[%s2451 + $0x79] sm:$0xff] %vm2395, %v2373
      %2463 = vst.msk [vmem:[%s2451 + $0x81] sm:$0xff] %vm2395, %v2374
      %2464 = vst.msk [vmem:[%s2451 + $0x91] sm:$0xff] %vm2395, %v2375
      %2465 = vst.msk [vmem:[%s2451 + $0x99] sm:$0xff] %vm2395, %v2376
      %2466 = vst.msk [vmem:[%s2451 + $0xa9] sm:$0xff] %vm2395, %v2377
      %2467 = vst.msk [vmem:[%s2451 + $0xb1] sm:$0xff] %vm2395, %v2378
      %2468 = vst.msk [vmem:[%s2451 + $0xc1] sm:$0xff] %vm2395, %v2379
      %2469 = vst.msk [vmem:[%s2451 + $0xc9] sm:$0xff] %vm2395, %v2380
      %2470 = vst.msk [vmem:[%s2451 + $0xd9] sm:$0xff] %vm2395, %v2381
      %2471 = vst.msk [vmem:[%s2451 + $0xe1] sm:$0xff] %vm2395, %v2382
      %2472 = vst.msk [vmem:[%s2451 + $0xf1] sm:$0xff] %vm2395, %v2383
      %2473 = vst.msk [vmem:[%s2451 + $0xf9] sm:$0xff] %vm2395, %v2384
      %2474 = vst.msk [vmem:[%s2451 + $0x109] sm:$0xff] %vm2395, %v2385
      %2475 = vst.msk [vmem:[%s2451 + $0x111] sm:$0xff] %vm2395, %v2386
      %2476 = vst.msk [vmem:[%s2451 + $0x121] sm:$0xff] %vm2395, %v2387
      %2477 = vst.msk [vmem:[%s2451 + $0x129] sm:$0xff] %vm2395, %v2388
      %2478 = vst.msk [vmem:[%s2451 + $0x139] sm:$0xff] %vm2395, %v2389
      %2479 = vst.msk [vmem:[%s2451 + $0x141] sm:$0xff] %vm2395, %v2390
      %2480 = vst.msk [vmem:[%s2451 + $0x151] sm:$0xff] %vm2395, %v2391
      %2481 = vst.msk [vmem:[%s2451 + $0x159] sm:$0xff] %vm2395, %v2392
      %2482 = vst.msk [vmem:[%s2451 + $0x169] sm:$0xff] %vm2395, %v2393
      %2483 = vst.msk [vmem:[%s2451 + $0x171] sm:$0xff] %vm2395, %v2394
      %v2484 = vld [vmem:[%s3] sm:$0xf]
      %v2485 = vld [vmem:[%s3 + $0x4] sm:$0xf]
      %v2486 = vld [vmem:[%s3 + $0x8] sm:$0xf]
      %v2487 = vld [vmem:[%s3 + $0xc] sm:$0xf]
      %v2488 = vld [vmem:[%s3 + $0x10] sm:$0xf]
      %v2489 = vld [vmem:[%s3 + $0x14] sm:$0xf]
      %v2490 = vld [vmem:[%s3 + $0x18] sm:$0xf]
      %v2491 = vld [vmem:[%s3 + $0x1c] sm:$0xf]
      %v2492 = vld [vmem:[%s3 + $0x20] sm:$0xf]
      %v2493 = vld [vmem:[%s3 + $0x24] sm:$0xf]
      %v2494 = vld [vmem:[%s3 + $0x28] sm:$0xf]
      %v2495 = vld [vmem:[%s3 + $0x2c] sm:$0xf]
      %v2496 = vld [vmem:[%s3 + $0x30] sm:$0xf]
      %v2497 = vld [vmem:[%s3 + $0x34] sm:$0xf]
      %v2498 = vld [vmem:[%s3 + $0x38] sm:$0xf]
      %v2499 = vld [vmem:[%s3 + $0x3c] sm:$0xf]
      %v2500 = vld [vmem:[%s3 + $0x40] sm:$0xf]
      %v2501 = vld [vmem:[%s3 + $0x44] sm:$0xf]
      %v2502 = vld [vmem:[%s3 + $0x48] sm:$0xf]
      %v2503 = vld [vmem:[%s3 + $0x4c] sm:$0xf]
      %v2504 = vld [vmem:[%s3 + $0x50] sm:$0xf]
      %v2505 = vld [vmem:[%s3 + $0x54] sm:$0xf]
      %v2506 = vld [vmem:[%s3 + $0x58] sm:$0xf]
      %v2507 = vld [vmem:[%s3 + $0x5c] sm:$0xf]
      %v2508 = vld [vmem:[%s3 + $0x60] sm:$0xf]
      %v2509 = vld [vmem:[%s3 + $0x64] sm:$0xf]
      %v2510 = vld [vmem:[%s3 + $0x68] sm:$0xf]
      %v2511 = vld [vmem:[%s3 + $0x6c] sm:$0xf]
      %v2512 = vld [vmem:[%s3 + $0x70] sm:$0xf]
      %v2513 = vld [vmem:[%s3 + $0x74] sm:$0xf]
      %v2514 = vld [vmem:[%s3 + $0x78] sm:$0xf]
      %v2515 = vld [vmem:[%s3 + $0x7c] sm:$0xf]
      %v2516 = vld [vmem:[%s3 + $0x80] sm:$0xf]
      %v2517 = vld [vmem:[%s3 + $0x84] sm:$0xf]
      %v2518 = vld [vmem:[%s3 + $0x88] sm:$0xf]
      %v2519 = vld [vmem:[%s3 + $0x8c] sm:$0xf]
      %v2520 = vld [vmem:[%s4] sm:$0x1]
      %v2521 = vld [vmem:[#allocation3] sm:$0xff]
      %v2522 = vld [vmem:[#allocation3 + $0x8] sm:$0xff]
      %v2523 = vld [vmem:[#allocation3 + $0x18] sm:$0xff]
      %v2524 = vld [vmem:[#allocation3 + $0x20] sm:$0xff]
      %v2525 = vld [vmem:[#allocation3 + $0x30] sm:$0xff]
      %v2526 = vld [vmem:[#allocation3 + $0x38] sm:$0xff]
      %v2527 = vld [vmem:[#allocation3 + $0x48] sm:$0xff]
      %v2528 = vld [vmem:[#allocation3 + $0x50] sm:$0xff]
      %v2529 = vld [vmem:[#allocation3 + $0x60] sm:$0xff]
      %v2530 = vld [vmem:[#allocation3 + $0x68] sm:$0xff]
      %v2531 = vld [vmem:[#allocation3 + $0x78] sm:$0xff]
      %v2532 = vld [vmem:[#allocation3 + $0x80] sm:$0xff]
      %v2533 = vld [vmem:[#allocation3 + $0x90] sm:$0xff]
      %v2534 = vld [vmem:[#allocation3 + $0x98] sm:$0xff]
      %v2535 = vld [vmem:[#allocation3 + $0xa8] sm:$0xff]
      %v2536 = vld [vmem:[#allocation3 + $0xb0] sm:$0xff]
      %v2537 = vld [vmem:[#allocation3 + $0xc0] sm:$0xff]
      %v2538 = vld [vmem:[#allocation3 + $0xc8] sm:$0xff]
      %v2539 = vld [vmem:[#allocation3 + $0xd8] sm:$0xff]
      %v2540 = vld [vmem:[#allocation3 + $0xe0] sm:$0xff]
      %v2541 = vld [vmem:[#allocation3 + $0xf0] sm:$0xff]
      %v2542 = vld [vmem:[#allocation3 + $0xf8] sm:$0xff]
      %v2543 = vld [vmem:[#allocation3 + $0x108] sm:$0xff]
      %v2544 = vld [vmem:[#allocation3 + $0x110] sm:$0xff]
      %v2545 = vld [vmem:[#allocation3 + $0x120] sm:$0xff]
      %v2546 = vld [vmem:[#allocation3 + $0x128] sm:$0xff]
      %v2547 = vld [vmem:[#allocation3 + $0x138] sm:$0xff]
      %v2548 = vld [vmem:[#allocation3 + $0x140] sm:$0xff]
      %v2549 = vld [vmem:[#allocation3 + $0x150] sm:$0xff]
      %v2550 = vld [vmem:[#allocation3 + $0x158] sm:$0xff]
      %v2551 = vld [vmem:[#allocation3 + $0x168] sm:$0xff]
      %v2552 = vld [vmem:[#allocation3 + $0x170] sm:$0xff]
      %2553 = vst.msk [vmem:[#allocation5] sm:$0xff] %vm2395, %v2521
      %2554 = vst.msk [vmem:[#allocation5 + $0x18] sm:$0xff] %vm2395, %v2522
      %2555 = vst.msk [vmem:[#allocation5 + $0x30] sm:$0xff] %vm2395, %v2523
      %2556 = vst.msk [vmem:[#allocation5 + $0x48] sm:$0xff] %vm2395, %v2524
      %2557 = vst.msk [vmem:[#allocation5 + $0x60] sm:$0xff] %vm2395, %v2525
      %2558 = vst.msk [vmem:[#allocation5 + $0x78] sm:$0xff] %vm2395, %v2526
      %2559 = vst.msk [vmem:[#allocation5 + $0x90] sm:$0xff] %vm2395, %v2527
      %2560 = vst.msk [vmem:[#allocation5 + $0xa8] sm:$0xff] %vm2395, %v2528
      %2561 = vst.msk [vmem:[#allocation5 + $0xc0] sm:$0xff] %vm2395, %v2529
      %2562 = vst.msk [vmem:[#allocation5 + $0xd8] sm:$0xff] %vm2395, %v2530
      %2563 = vst.msk [vmem:[#allocation5 + $0xf0] sm:$0xff] %vm2395, %v2531
      %2564 = vst.msk [vmem:[#allocation5 + $0x108] sm:$0xff] %vm2395, %v2532
      %2565 = vst.msk [vmem:[#allocation5 + $0x120] sm:$0xff] %vm2395, %v2533
      %2566 = vst.msk [vmem:[#allocation5 + $0x138] sm:$0xff] %vm2395, %v2534
      %2567 = vst.msk [vmem:[#allocation5 + $0x150] sm:$0xff] %vm2395, %v2535
      %2568 = vst.msk [vmem:[#allocation5 + $0x168] sm:$0xff] %vm2395, %v2536
      %2569 = vst.msk [vmem:[#allocation5 + $0x180] sm:$0xff] %vm2395, %v2537
      %2570 = vst.msk [vmem:[#allocation5 + $0x198] sm:$0xff] %vm2395, %v2538
      %2571 = vst.msk [vmem:[#allocation5 + $0x1b0] sm:$0xff] %vm2395, %v2539
      %2572 = vst.msk [vmem:[#allocation5 + $0x1c8] sm:$0xff] %vm2395, %v2540
      %2573 = vst.msk [vmem:[#allocation5 + $0x1e0] sm:$0xff] %vm2395, %v2541
      %2574 = vst.msk [vmem:[#allocation5 + $0x1f8] sm:$0xff] %vm2395, %v2542
      %2575 = vst.msk [vmem:[#allocation5 + $0x210] sm:$0xff] %vm2395, %v2543
      %2576 = vst.msk [vmem:[#allocation5 + $0x228] sm:$0xff] %vm2395, %v2544
      %2577 = vst.msk [vmem:[#allocation5 + $0x240] sm:$0xff] %vm2395, %v2545
      %2578 = vst.msk [vmem:[#allocation5 + $0x258] sm:$0xff] %vm2395, %v2546
      %2579 = vst.msk [vmem:[#allocation5 + $0x270] sm:$0xff] %vm2395, %v2547
      %2580 = vst.msk [vmem:[#allocation5 + $0x288] sm:$0xff] %vm2395, %v2548
      %2581 = vst.msk [vmem:[#allocation5 + $0x2a0] sm:$0xff] %vm2395, %v2549
      %2582 = vst.msk [vmem:[#allocation5 + $0x2b8] sm:$0xff] %vm2395, %v2550
      %2583 = vst.msk [vmem:[#allocation5 + $0x2d0] sm:$0xff] %vm2395, %v2551
      %2584 = vst.msk [vmem:[#allocation5 + $0x2e8] sm:$0xff] %vm2395, %v2552
      %v2585 = vld [vmem:[#allocation3 + $0x1] sm:$0xff]
      %v2586 = vld [vmem:[#allocation3 + $0x9] sm:$0xff]
      %v2587 = vld [vmem:[#allocation3 + $0x19] sm:$0xff]
      %v2588 = vld [vmem:[#allocation3 + $0x21] sm:$0xff]
      %v2589 = vld [vmem:[#allocation3 + $0x31] sm:$0xff]
      %v2590 = vld [vmem:[#allocation3 + $0x39] sm:$0xff]
      %v2591 = vld [vmem:[#allocation3 + $0x49] sm:$0xff]
      %v2592 = vld [vmem:[#allocation3 + $0x51] sm:$0xff]
      %v2593 = vld [vmem:[#allocation3 + $0x61] sm:$0xff]
      %v2594 = vld [vmem:[#allocation3 + $0x69] sm:$0xff]
      %v2595 = vld [vmem:[#allocation3 + $0x79] sm:$0xff]
      %v2596 = vld [vmem:[#allocation3 + $0x81] sm:$0xff]
      %v2597 = vld [vmem:[#allocation3 + $0x91] sm:$0xff]
      %v2598 = vld [vmem:[#allocation3 + $0x99] sm:$0xff]
      %v2599 = vld [vmem:[#allocation3 + $0xa9] sm:$0xff]
      %v2600 = vld [vmem:[#allocation3 + $0xb1] sm:$0xff]
      %v2601 = vld [vmem:[#allocation3 + $0xc1] sm:$0xff]
      %v2602 = vld [vmem:[#allocation3 + $0xc9] sm:$0xff]
      %v2603 = vld [vmem:[#allocation3 + $0xd9] sm:$0xff]
      %v2604 = vld [vmem:[#allocation3 + $0xe1] sm:$0xff]
      %v2605 = vld [vmem:[#allocation3 + $0xf1] sm:$0xff]
      %v2606 = vld [vmem:[#allocation3 + $0xf9] sm:$0xff]
      %v2607 = vld [vmem:[#allocation3 + $0x109] sm:$0xff]
      %v2608 = vld [vmem:[#allocation3 + $0x111] sm:$0xff]
      %v2609 = vld [vmem:[#allocation3 + $0x121] sm:$0xff]
      %v2610 = vld [vmem:[#allocation3 + $0x129] sm:$0xff]
      %v2611 = vld [vmem:[#allocation3 + $0x139] sm:$0xff]
      %v2612 = vld [vmem:[#allocation3 + $0x141] sm:$0xff]
      %v2613 = vld [vmem:[#allocation3 + $0x151] sm:$0xff]
      %v2614 = vld [vmem:[#allocation3 + $0x159] sm:$0xff]
      %v2615 = vld [vmem:[#allocation3 + $0x169] sm:$0xff]
      %v2616 = vld [vmem:[#allocation3 + $0x171] sm:$0xff]
      %2649 = vrot.lane.b32.xlu0 %v2585, 32
      %v2650 = vpop.permute.xlu0 %2649
      %2651 = vrot.lane.b32.xlu0 %v2586, 32
      %v2652 = vpop.permute.xlu0 %2651
      %2653 = vrot.lane.b32.xlu0 %v2587, 32
      %v2654 = vpop.permute.xlu0 %2653
      %2655 = vrot.lane.b32.xlu0 %v2588, 32
      %v2656 = vpop.permute.xlu0 %2655
      %2657 = vrot.lane.b32.xlu0 %v2589, 32
      %v2658 = vpop.permute.xlu0 %2657
      %2659 = vrot.lane.b32.xlu0 %v2590, 32
      %v2660 = vpop.permute.xlu0 %2659
      %2661 = vrot.lane.b32.xlu0 %v2591, 32
      %v2662 = vpop.permute.xlu0 %2661
      %2663 = vrot.lane.b32.xlu0 %v2592, 32
      %v2664 = vpop.permute.xlu0 %2663
      %2665 = vrot.lane.b32.xlu0 %v2593, 32
      %v2666 = vpop.permute.xlu0 %2665
      %2667 = vrot.lane.b32.xlu0 %v2594, 32
      %v2668 = vpop.permute.xlu0 %2667
      %2669 = vrot.lane.b32.xlu0 %v2595, 32
      %v2670 = vpop.permute.xlu0 %2669
      %2671 = vrot.lane.b32.xlu0 %v2596, 32
      %v2672 = vpop.permute.xlu0 %2671
      %2673 = vrot.lane.b32.xlu0 %v2597, 32
      %v2674 = vpop.permute.xlu0 %2673
      %2675 = vrot.lane.b32.xlu0 %v2598, 32
      %v2676 = vpop.permute.xlu0 %2675
      %2677 = vrot.lane.b32.xlu0 %v2599, 32
      %v2678 = vpop.permute.xlu0 %2677
      %2679 = vrot.lane.b32.xlu0 %v2600, 32
      %v2680 = vpop.permute.xlu0 %2679
      %2681 = vrot.lane.b32.xlu0 %v2601, 32
      %v2682 = vpop.permute.xlu0 %2681
      %2683 = vrot.lane.b32.xlu0 %v2602, 32
      %v2684 = vpop.permute.xlu0 %2683
      %2685 = vrot.lane.b32.xlu0 %v2603, 32
      %v2686 = vpop.permute.xlu0 %2685
      %2687 = vrot.lane.b32.xlu0 %v2604, 32
      %v2688 = vpop.permute.xlu0 %2687
      %2689 = vrot.lane.b32.xlu0 %v2605, 32
      %v2690 = vpop.permute.xlu0 %2689
      %2691 = vrot.lane.b32.xlu0 %v2606, 32
      %v2692 = vpop.permute.xlu0 %2691
      %2693 = vrot.lane.b32.xlu0 %v2607, 32
      %v2694 = vpop.permute.xlu0 %2693
      %2695 = vrot.lane.b32.xlu0 %v2608, 32
      %v2696 = vpop.permute.xlu0 %2695
      %2697 = vrot.lane.b32.xlu0 %v2609, 32
      %v2698 = vpop.permute.xlu0 %2697
      %2699 = vrot.lane.b32.xlu0 %v2610, 32
      %v2700 = vpop.permute.xlu0 %2699
      %2701 = vrot.lane.b32.xlu0 %v2611, 32
      %v2702 = vpop.permute.xlu0 %2701
      %2703 = vrot.lane.b32.xlu0 %v2612, 32
      %v2704 = vpop.permute.xlu0 %2703
      %2705 = vrot.lane.b32.xlu0 %v2613, 32
      %v2706 = vpop.permute.xlu0 %2705
      %2707 = vrot.lane.b32.xlu0 %v2614, 32
      %v2708 = vpop.permute.xlu0 %2707
      %2709 = vrot.lane.b32.xlu0 %v2615, 32
      %v2710 = vpop.permute.xlu0 %2709
      %2711 = vrot.lane.b32.xlu0 %v2616, 32
      %v2712 = vpop.permute.xlu0 %2711
      %vm2745 = vcmask 523520
      %2746 = vst.msk [vmem:[#allocation5] sm:$0xff] %vm2745, %v2650
      %2747 = vst.msk [vmem:[#allocation5 + $0x18] sm:$0xff] %vm2745, %v2652
      %2748 = vst.msk [vmem:[#allocation5 + $0x30] sm:$0xff] %vm2745, %v2654
      %2749 = vst.msk [vmem:[#allocation5 + $0x48] sm:$0xff] %vm2745, %v2656
      %2750 = vst.msk [vmem:[#allocation5 + $0x60] sm:$0xff] %vm2745, %v2658
      %2751 = vst.msk [vmem:[#allocation5 + $0x78] sm:$0xff] %vm2745, %v2660
      %2752 = vst.msk [vmem:[#allocation5 + $0x90] sm:$0xff] %vm2745, %v2662
      %2753 = vst.msk [vmem:[#allocation5 + $0xa8] sm:$0xff] %vm2745, %v2664
      %2754 = vst.msk [vmem:[#allocation5 + $0xc0] sm:$0xff] %vm2745, %v2666
      %2755 = vst.msk [vmem:[#allocation5 + $0xd8] sm:$0xff] %vm2745, %v2668
      %2756 = vst.msk [vmem:[#allocation5 + $0xf0] sm:$0xff] %vm2745, %v2670
      %2757 = vst.msk [vmem:[#allocation5 + $0x108] sm:$0xff] %vm2745, %v2672
      %2758 = vst.msk [vmem:[#allocation5 + $0x120] sm:$0xff] %vm2745, %v2674
      %2759 = vst.msk [vmem:[#allocation5 + $0x138] sm:$0xff] %vm2745, %v2676
      %2760 = vst.msk [vmem:[#allocation5 + $0x150] sm:$0xff] %vm2745, %v2678
      %2761 = vst.msk [vmem:[#allocation5 + $0x168] sm:$0xff] %vm2745, %v2680
      %2762 = vst.msk [vmem:[#allocation5 + $0x180] sm:$0xff] %vm2745, %v2682
      %2763 = vst.msk [vmem:[#allocation5 + $0x198] sm:$0xff] %vm2745, %v2684
      %2764 = vst.msk [vmem:[#allocation5 + $0x1b0] sm:$0xff] %vm2745, %v2686
      %2765 = vst.msk [vmem:[#allocation5 + $0x1c8] sm:$0xff] %vm2745, %v2688
      %2766 = vst.msk [vmem:[#allocation5 + $0x1e0] sm:$0xff] %vm2745, %v2690
      %2767 = vst.msk [vmem:[#allocation5 + $0x1f8] sm:$0xff] %vm2745, %v2692
      %2768 = vst.msk [vmem:[#allocation5 + $0x210] sm:$0xff] %vm2745, %v2694
      %2769 = vst.msk [vmem:[#allocation5 + $0x228] sm:$0xff] %vm2745, %v2696
      %2770 = vst.msk [vmem:[#allocation5 + $0x240] sm:$0xff] %vm2745, %v2698
      %2771 = vst.msk [vmem:[#allocation5 + $0x258] sm:$0xff] %vm2745, %v2700
      %2772 = vst.msk [vmem:[#allocation5 + $0x270] sm:$0xff] %vm2745, %v2702
      %2773 = vst.msk [vmem:[#allocation5 + $0x288] sm:$0xff] %vm2745, %v2704
      %2774 = vst.msk [vmem:[#allocation5 + $0x2a0] sm:$0xff] %vm2745, %v2706
      %2775 = vst.msk [vmem:[#allocation5 + $0x2b8] sm:$0xff] %vm2745, %v2708
      %2776 = vst.msk [vmem:[#allocation5 + $0x2d0] sm:$0xff] %vm2745, %v2710
      %2777 = vst.msk [vmem:[#allocation5 + $0x2e8] sm:$0xff] %vm2745, %v2712
      %v2778 = vld [vmem:[#allocation3 + $0x2] sm:$0xff]
      %v2779 = vld [vmem:[#allocation3 + $0xa] sm:$0xff]
      %v2780 = vld [vmem:[#allocation3 + $0x1a] sm:$0xff]
      %v2781 = vld [vmem:[#allocation3 + $0x22] sm:$0xff]
      %v2782 = vld [vmem:[#allocation3 + $0x32] sm:$0xff]
      %v2783 = vld [vmem:[#allocation3 + $0x3a] sm:$0xff]
      %v2784 = vld [vmem:[#allocation3 + $0x4a] sm:$0xff]
      %v2785 = vld [vmem:[#allocation3 + $0x52] sm:$0xff]
      %v2786 = vld [vmem:[#allocation3 + $0x62] sm:$0xff]
      %v2787 = vld [vmem:[#allocation3 + $0x6a] sm:$0xff]
      %v2788 = vld [vmem:[#allocation3 + $0x7a] sm:$0xff]
      %v2789 = vld [vmem:[#allocation3 + $0x82] sm:$0xff]
      %v2790 = vld [vmem:[#allocation3 + $0x92] sm:$0xff]
      %v2791 = vld [vmem:[#allocation3 + $0x9a] sm:$0xff]
      %v2792 = vld [vmem:[#allocation3 + $0xaa] sm:$0xff]
      %v2793 = vld [vmem:[#allocation3 + $0xb2] sm:$0xff]
      %v2794 = vld [vmem:[#allocation3 + $0xc2] sm:$0xff]
      %v2795 = vld [vmem:[#allocation3 + $0xca] sm:$0xff]
      %v2796 = vld [vmem:[#allocation3 + $0xda] sm:$0xff]
      %v2797 = vld [vmem:[#allocation3 + $0xe2] sm:$0xff]
      %v2798 = vld [vmem:[#allocation3 + $0xf2] sm:$0xff]
      %v2799 = vld [vmem:[#allocation3 + $0xfa] sm:$0xff]
      %v2800 = vld [vmem:[#allocation3 + $0x10a] sm:$0xff]
      %v2801 = vld [vmem:[#allocation3 + $0x112] sm:$0xff]
      %v2802 = vld [vmem:[#allocation3 + $0x122] sm:$0xff]
      %v2803 = vld [vmem:[#allocation3 + $0x12a] sm:$0xff]
      %v2804 = vld [vmem:[#allocation3 + $0x13a] sm:$0xff]
      %v2805 = vld [vmem:[#allocation3 + $0x142] sm:$0xff]
      %v2806 = vld [vmem:[#allocation3 + $0x152] sm:$0xff]
      %v2807 = vld [vmem:[#allocation3 + $0x15a] sm:$0xff]
      %v2808 = vld [vmem:[#allocation3 + $0x16a] sm:$0xff]
      %v2809 = vld [vmem:[#allocation3 + $0x172] sm:$0xff]
      %2842 = vrot.lane.b32.xlu0 %v2778, 64
      %v2843 = vpop.permute.xlu0 %2842
      %2844 = vrot.lane.b32.xlu0 %v2779, 64
      %v2845 = vpop.permute.xlu0 %2844
      %2846 = vrot.lane.b32.xlu0 %v2780, 64
      %v2847 = vpop.permute.xlu0 %2846
      %2848 = vrot.lane.b32.xlu0 %v2781, 64
      %v2849 = vpop.permute.xlu0 %2848
      %2850 = vrot.lane.b32.xlu0 %v2782, 64
      %v2851 = vpop.permute.xlu0 %2850
      %2852 = vrot.lane.b32.xlu0 %v2783, 64
      %v2853 = vpop.permute.xlu0 %2852
      %2854 = vrot.lane.b32.xlu0 %v2784, 64
      %v2855 = vpop.permute.xlu0 %2854
      %2856 = vrot.lane.b32.xlu0 %v2785, 64
      %v2857 = vpop.permute.xlu0 %2856
      %2858 = vrot.lane.b32.xlu0 %v2786, 64
      %v2859 = vpop.permute.xlu0 %2858
      %2860 = vrot.lane.b32.xlu0 %v2787, 64
      %v2861 = vpop.permute.xlu0 %2860
      %2862 = vrot.lane.b32.xlu0 %v2788, 64
      %v2863 = vpop.permute.xlu0 %2862
      %2864 = vrot.lane.b32.xlu0 %v2789, 64
      %v2865 = vpop.permute.xlu0 %2864
      %2866 = vrot.lane.b32.xlu0 %v2790, 64
      %v2867 = vpop.permute.xlu0 %2866
      %2868 = vrot.lane.b32.xlu0 %v2791, 64
      %v2869 = vpop.permute.xlu0 %2868
      %2870 = vrot.lane.b32.xlu0 %v2792, 64
      %v2871 = vpop.permute.xlu0 %2870
      %2872 = vrot.lane.b32.xlu0 %v2793, 64
      %v2873 = vpop.permute.xlu0 %2872
      %2874 = vrot.lane.b32.xlu0 %v2794, 64
      %v2875 = vpop.permute.xlu0 %2874
      %2876 = vrot.lane.b32.xlu0 %v2795, 64
      %v2877 = vpop.permute.xlu0 %2876
      %2878 = vrot.lane.b32.xlu0 %v2796, 64
      %v2879 = vpop.permute.xlu0 %2878
      %2880 = vrot.lane.b32.xlu0 %v2797, 64
      %v2881 = vpop.permute.xlu0 %2880
      %2882 = vrot.lane.b32.xlu0 %v2798, 64
      %v2883 = vpop.permute.xlu0 %2882
      %2884 = vrot.lane.b32.xlu0 %v2799, 64
      %v2885 = vpop.permute.xlu0 %2884
      %2886 = vrot.lane.b32.xlu0 %v2800, 64
      %v2887 = vpop.permute.xlu0 %2886
      %2888 = vrot.lane.b32.xlu0 %v2801, 64
      %v2889 = vpop.permute.xlu0 %2888
      %2890 = vrot.lane.b32.xlu0 %v2802, 64
      %v2891 = vpop.permute.xlu0 %2890
      %2892 = vrot.lane.b32.xlu0 %v2803, 64
      %v2893 = vpop.permute.xlu0 %2892
      %2894 = vrot.lane.b32.xlu0 %v2804, 64
      %v2895 = vpop.permute.xlu0 %2894
      %2896 = vrot.lane.b32.xlu0 %v2805, 64
      %v2897 = vpop.permute.xlu0 %2896
      %2898 = vrot.lane.b32.xlu0 %v2806, 64
      %v2899 = vpop.permute.xlu0 %2898
      %2900 = vrot.lane.b32.xlu0 %v2807, 64
      %v2901 = vpop.permute.xlu0 %2900
      %2902 = vrot.lane.b32.xlu0 %v2808, 64
      %v2903 = vpop.permute.xlu0 %2902
      %2904 = vrot.lane.b32.xlu0 %v2809, 64
      %v2905 = vpop.permute.xlu0 %2904
      %vm2938 = vcmask 785920
      %2939 = vst.msk [vmem:[#allocation5] sm:$0xff] %vm2938, %v2843
      %2940 = vst.msk [vmem:[#allocation5 + $0x18] sm:$0xff] %vm2938, %v2845
      %2941 = vst.msk [vmem:[#allocation5 + $0x30] sm:$0xff] %vm2938, %v2847
      %2942 = vst.msk [vmem:[#allocation5 + $0x48] sm:$0xff] %vm2938, %v2849
      %2943 = vst.msk [vmem:[#allocation5 + $0x60] sm:$0xff] %vm2938, %v2851
      %2944 = vst.msk [vmem:[#allocation5 + $0x78] sm:$0xff] %vm2938, %v2853
      %2945 = vst.msk [vmem:[#allocation5 + $0x90] sm:$0xff] %vm2938, %v2855
      %2946 = vst.msk [vmem:[#allocation5 + $0xa8] sm:$0xff] %vm2938, %v2857
      %2947 = vst.msk [vmem:[#allocation5 + $0xc0] sm:$0xff] %vm2938, %v2859
      %2948 = vst.msk [vmem:[#allocation5 + $0xd8] sm:$0xff] %vm2938, %v2861
      %2949 = vst.msk [vmem:[#allocation5 + $0xf0] sm:$0xff] %vm2938, %v2863
      %2950 = vst.msk [vmem:[#allocation5 + $0x108] sm:$0xff] %vm2938, %v2865
      %2951 = vst.msk [vmem:[#allocation5 + $0x120] sm:$0xff] %vm2938, %v2867
      %2952 = vst.msk [vmem:[#allocation5 + $0x138] sm:$0xff] %vm2938, %v2869
      %2953 = vst.msk [vmem:[#allocation5 + $0x150] sm:$0xff] %vm2938, %v2871
      %2954 = vst.msk [vmem:[#allocation5 + $0x168] sm:$0xff] %vm2938, %v2873
      %2955 = vst.msk [vmem:[#allocation5 + $0x180] sm:$0xff] %vm2938, %v2875
      %2956 = vst.msk [vmem:[#allocation5 + $0x198] sm:$0xff] %vm2938, %v2877
      %2957 = vst.msk [vmem:[#allocation5 + $0x1b0] sm:$0xff] %vm2938, %v2879
      %2958 = vst.msk [vmem:[#allocation5 + $0x1c8] sm:$0xff] %vm2938, %v2881
      %2959 = vst.msk [vmem:[#allocation5 + $0x1e0] sm:$0xff] %vm2938, %v2883
      %2960 = vst.msk [vmem:[#allocation5 + $0x1f8] sm:$0xff] %vm2938, %v2885
      %2961 = vst.msk [vmem:[#allocation5 + $0x210] sm:$0xff] %vm2938, %v2887
      %2962 = vst.msk [vmem:[#allocation5 + $0x228] sm:$0xff] %vm2938, %v2889
      %2963 = vst.msk [vmem:[#allocation5 + $0x240] sm:$0xff] %vm2938, %v2891
      %2964 = vst.msk [vmem:[#allocation5 + $0x258] sm:$0xff] %vm2938, %v2893
      %2965 = vst.msk [vmem:[#allocation5 + $0x270] sm:$0xff] %vm2938, %v2895
      %2966 = vst.msk [vmem:[#allocation5 + $0x288] sm:$0xff] %vm2938, %v2897
      %2967 = vst.msk [vmem:[#allocation5 + $0x2a0] sm:$0xff] %vm2938, %v2899
      %2968 = vst.msk [vmem:[#allocation5 + $0x2b8] sm:$0xff] %vm2938, %v2901
      %2969 = vst.msk [vmem:[#allocation5 + $0x2d0] sm:$0xff] %vm2938, %v2903
      %2970 = vst.msk [vmem:[#allocation5 + $0x2e8] sm:$0xff] %vm2938, %v2905
      %v2971 = vld [vmem:[%s2451] sm:$0xff]
      %v2972 = vld [vmem:[%s2451 + $0x8] sm:$0xff]
      %v2973 = vld [vmem:[%s2451 + $0x18] sm:$0xff]
      %v2974 = vld [vmem:[%s2451 + $0x20] sm:$0xff]
      %v2975 = vld [vmem:[%s2451 + $0x30] sm:$0xff]
      %v2976 = vld [vmem:[%s2451 + $0x38] sm:$0xff]
      %v2977 = vld [vmem:[%s2451 + $0x48] sm:$0xff]
      %v2978 = vld [vmem:[%s2451 + $0x50] sm:$0xff]
      %v2979 = vld [vmem:[%s2451 + $0x60] sm:$0xff]
      %v2980 = vld [vmem:[%s2451 + $0x68] sm:$0xff]
      %v2981 = vld [vmem:[%s2451 + $0x78] sm:$0xff]
      %v2982 = vld [vmem:[%s2451 + $0x80] sm:$0xff]
      %v2983 = vld [vmem:[%s2451 + $0x90] sm:$0xff]
      %v2984 = vld [vmem:[%s2451 + $0x98] sm:$0xff]
      %v2985 = vld [vmem:[%s2451 + $0xa8] sm:$0xff]
      %v2986 = vld [vmem:[%s2451 + $0xb0] sm:$0xff]
      %v2987 = vld [vmem:[%s2451 + $0xc0] sm:$0xff]
      %v2988 = vld [vmem:[%s2451 + $0xc8] sm:$0xff]
      %v2989 = vld [vmem:[%s2451 + $0xd8] sm:$0xff]
      %v2990 = vld [vmem:[%s2451 + $0xe0] sm:$0xff]
      %v2991 = vld [vmem:[%s2451 + $0xf0] sm:$0xff]
      %v2992 = vld [vmem:[%s2451 + $0xf8] sm:$0xff]
      %v2993 = vld [vmem:[%s2451 + $0x108] sm:$0xff]
      %v2994 = vld [vmem:[%s2451 + $0x110] sm:$0xff]
      %v2995 = vld [vmem:[%s2451 + $0x120] sm:$0xff]
      %v2996 = vld [vmem:[%s2451 + $0x128] sm:$0xff]
      %v2997 = vld [vmem:[%s2451 + $0x138] sm:$0xff]
      %v2998 = vld [vmem:[%s2451 + $0x140] sm:$0xff]
      %v2999 = vld [vmem:[%s2451 + $0x150] sm:$0xff]
      %v3000 = vld [vmem:[%s2451 + $0x158] sm:$0xff]
      %v3001 = vld [vmem:[%s2451 + $0x168] sm:$0xff]
      %v3002 = vld [vmem:[%s2451 + $0x170] sm:$0xff]
      %3035 = vrot.lane.b32.xlu0 %v2971, 96
      %v3036 = vpop.permute.xlu0 %3035
      %3037 = vrot.lane.b32.xlu0 %v2972, 96
      %v3038 = vpop.permute.xlu0 %3037
      %3039 = vrot.lane.b32.xlu0 %v2973, 96
      %v3040 = vpop.permute.xlu0 %3039
      %3041 = vrot.lane.b32.xlu0 %v2974, 96
      %v3042 = vpop.permute.xlu0 %3041
      %3043 = vrot.lane.b32.xlu0 %v2975, 96
      %v3044 = vpop.permute.xlu0 %3043
      %3045 = vrot.lane.b32.xlu0 %v2976, 96
      %v3046 = vpop.permute.xlu0 %3045
      %3047 = vrot.lane.b32.xlu0 %v2977, 96
      %v3048 = vpop.permute.xlu0 %3047
      %3049 = vrot.lane.b32.xlu0 %v2978, 96
      %v3050 = vpop.permute.xlu0 %3049
      %3051 = vrot.lane.b32.xlu0 %v2979, 96
      %v3052 = vpop.permute.xlu0 %3051
      %3053 = vrot.lane.b32.xlu0 %v2980, 96
      %v3054 = vpop.permute.xlu0 %3053
      %3055 = vrot.lane.b32.xlu0 %v2981, 96
      %v3056 = vpop.permute.xlu0 %3055
      %3057 = vrot.lane.b32.xlu0 %v2982, 96
      %v3058 = vpop.permute.xlu0 %3057
      %3059 = vrot.lane.b32.xlu0 %v2983, 96
      %v3060 = vpop.permute.xlu0 %3059
      %3061 = vrot.lane.b32.xlu0 %v2984, 96
      %v3062 = vpop.permute.xlu0 %3061
      %3063 = vrot.lane.b32.xlu0 %v2985, 96
      %v3064 = vpop.permute.xlu0 %3063
      %3065 = vrot.lane.b32.xlu0 %v2986, 96
      %v3066 = vpop.permute.xlu0 %3065
      %3067 = vrot.lane.b32.xlu0 %v2987, 96
      %v3068 = vpop.permute.xlu0 %3067
      %3069 = vrot.lane.b32.xlu0 %v2988, 96
      %v3070 = vpop.permute.xlu0 %3069
      %3071 = vrot.lane.b32.xlu0 %v2989, 96
      %v3072 = vpop.permute.xlu0 %3071
      %3073 = vrot.lane.b32.xlu0 %v2990, 96
      %v3074 = vpop.permute.xlu0 %3073
      %3075 = vrot.lane.b32.xlu0 %v2991, 96
      %v3076 = vpop.permute.xlu0 %3075
      %3077 = vrot.lane.b32.xlu0 %v2992, 96
      %v3078 = vpop.permute.xlu0 %3077
      %3079 = vrot.lane.b32.xlu0 %v2993, 96
      %v3080 = vpop.permute.xlu0 %3079
      %3081 = vrot.lane.b32.xlu0 %v2994, 96
      %v3082 = vpop.permute.xlu0 %3081
      %3083 = vrot.lane.b32.xlu0 %v2995, 96
      %v3084 = vpop.permute.xlu0 %3083
      %3085 = vrot.lane.b32.xlu0 %v2996, 96
      %v3086 = vpop.permute.xlu0 %3085
      %3087 = vrot.lane.b32.xlu0 %v2997, 96
      %v3088 = vpop.permute.xlu0 %3087
      %3089 = vrot.lane.b32.xlu0 %v2998, 96
      %v3090 = vpop.permute.xlu0 %3089
      %3091 = vrot.lane.b32.xlu0 %v2999, 96
      %v3092 = vpop.permute.xlu0 %3091
      %3093 = vrot.lane.b32.xlu0 %v3000, 96
      %v3094 = vpop.permute.xlu0 %3093
      %3095 = vrot.lane.b32.xlu0 %v3001, 96
      %v3096 = vpop.permute.xlu0 %3095
      %3097 = vrot.lane.b32.xlu0 %v3002, 96
      %v3098 = vpop.permute.xlu0 %3097
      %vm3131 = vcmask 1048320
      %3132 = vst.msk [vmem:[#allocation5] sm:$0xff] %vm3131, %v3036
      %3133 = vst.msk [vmem:[#allocation5 + $0x18] sm:$0xff] %vm3131, %v3038
      %3134 = vst.msk [vmem:[#allocation5 + $0x30] sm:$0xff] %vm3131, %v3040
      %3135 = vst.msk [vmem:[#allocation5 + $0x48] sm:$0xff] %vm3131, %v3042
      %3136 = vst.msk [vmem:[#allocation5 + $0x60] sm:$0xff] %vm3131, %v3044
      %3137 = vst.msk [vmem:[#allocation5 + $0x78] sm:$0xff] %vm3131, %v3046
      %3138 = vst.msk [vmem:[#allocation5 + $0x90] sm:$0xff] %vm3131, %v3048
      %3139 = vst.msk [vmem:[#allocation5 + $0xa8] sm:$0xff] %vm3131, %v3050
      %3140 = vst.msk [vmem:[#allocation5 + $0xc0] sm:$0xff] %vm3131, %v3052
      %3141 = vst.msk [vmem:[#allocation5 + $0xd8] sm:$0xff] %vm3131, %v3054
      %3142 = vst.msk [vmem:[#allocation5 + $0xf0] sm:$0xff] %vm3131, %v3056
      %3143 = vst.msk [vmem:[#allocation5 + $0x108] sm:$0xff] %vm3131, %v3058
      %3144 = vst.msk [vmem:[#allocation5 + $0x120] sm:$0xff] %vm3131, %v3060
      %3145 = vst.msk [vmem:[#allocation5 + $0x138] sm:$0xff] %vm3131, %v3062
      %3146 = vst.msk [vmem:[#allocation5 + $0x150] sm:$0xff] %vm3131, %v3064
      %3147 = vst.msk [vmem:[#allocation5 + $0x168] sm:$0xff] %vm3131, %v3066
      %3148 = vst.msk [vmem:[#allocation5 + $0x180] sm:$0xff] %vm3131, %v3068
      %3149 = vst.msk [vmem:[#allocation5 + $0x198] sm:$0xff] %vm3131, %v3070
      %3150 = vst.msk [vmem:[#allocation5 + $0x1b0] sm:$0xff] %vm3131, %v3072
      %3151 = vst.msk [vmem:[#allocation5 + $0x1c8] sm:$0xff] %vm3131, %v3074
      %3152 = vst.msk [vmem:[#allocation5 + $0x1e0] sm:$0xff] %vm3131, %v3076
      %3153 = vst.msk [vmem:[#allocation5 + $0x1f8] sm:$0xff] %vm3131, %v3078
      %3154 = vst.msk [vmem:[#allocation5 + $0x210] sm:$0xff] %vm3131, %v3080
      %3155 = vst.msk [vmem:[#allocation5 + $0x228] sm:$0xff] %vm3131, %v3082
      %3156 = vst.msk [vmem:[#allocation5 + $0x240] sm:$0xff] %vm3131, %v3084
      %3157 = vst.msk [vmem:[#allocation5 + $0x258] sm:$0xff] %vm3131, %v3086
      %3158 = vst.msk [vmem:[#allocation5 + $0x270] sm:$0xff] %vm3131, %v3088
      %3159 = vst.msk [vmem:[#allocation5 + $0x288] sm:$0xff] %vm3131, %v3090
      %3160 = vst.msk [vmem:[#allocation5 + $0x2a0] sm:$0xff] %vm3131, %v3092
      %3161 = vst.msk [vmem:[#allocation5 + $0x2b8] sm:$0xff] %vm3131, %v3094
      %3162 = vst.msk [vmem:[#allocation5 + $0x2d0] sm:$0xff] %vm3131, %v3096
      %3163 = vst.msk [vmem:[#allocation5 + $0x2e8] sm:$0xff] %vm3131, %v3098
      %v3164 = vld [vmem:[%s2451 + $0x1] sm:$0xff]
      %v3165 = vld [vmem:[%s2451 + $0x9] sm:$0xff]
      %v3166 = vld [vmem:[%s2451 + $0x19] sm:$0xff]
      %v3167 = vld [vmem:[%s2451 + $0x21] sm:$0xff]
      %v3168 = vld [vmem:[%s2451 + $0x31] sm:$0xff]
      %v3169 = vld [vmem:[%s2451 + $0x39] sm:$0xff]
      %v3170 = vld [vmem:[%s2451 + $0x49] sm:$0xff]
      %v3171 = vld [vmem:[%s2451 + $0x51] sm:$0xff]
      %v3172 = vld [vmem:[%s2451 + $0x61] sm:$0xff]
      %v3173 = vld [vmem:[%s2451 + $0x69] sm:$0xff]
      %v3174 = vld [vmem:[%s2451 + $0x79] sm:$0xff]
      %v3175 = vld [vmem:[%s2451 + $0x81] sm:$0xff]
      %v3176 = vld [vmem:[%s2451 + $0x91] sm:$0xff]
      %v3177 = vld [vmem:[%s2451 + $0x99] sm:$0xff]
      %v3178 = vld [vmem:[%s2451 + $0xa9] sm:$0xff]
      %v3179 = vld [vmem:[%s2451 + $0xb1] sm:$0xff]
      %v3180 = vld [vmem:[%s2451 + $0xc1] sm:$0xff]
      %v3181 = vld [vmem:[%s2451 + $0xc9] sm:$0xff]
      %v3182 = vld [vmem:[%s2451 + $0xd9] sm:$0xff]
      %v3183 = vld [vmem:[%s2451 + $0xe1] sm:$0xff]
      %v3184 = vld [vmem:[%s2451 + $0xf1] sm:$0xff]
      %v3185 = vld [vmem:[%s2451 + $0xf9] sm:$0xff]
      %v3186 = vld [vmem:[%s2451 + $0x109] sm:$0xff]
      %v3187 = vld [vmem:[%s2451 + $0x111] sm:$0xff]
      %v3188 = vld [vmem:[%s2451 + $0x121] sm:$0xff]
      %v3189 = vld [vmem:[%s2451 + $0x129] sm:$0xff]
      %v3190 = vld [vmem:[%s2451 + $0x139] sm:$0xff]
      %v3191 = vld [vmem:[%s2451 + $0x141] sm:$0xff]
      %v3192 = vld [vmem:[%s2451 + $0x151] sm:$0xff]
      %v3193 = vld [vmem:[%s2451 + $0x159] sm:$0xff]
      %v3194 = vld [vmem:[%s2451 + $0x169] sm:$0xff]
      %v3195 = vld [vmem:[%s2451 + $0x171] sm:$0xff]
      %3196 = vst.msk [vmem:[#allocation5 + $0x8] sm:$0xff] %vm2395, %v3164
      %3197 = vst.msk [vmem:[#allocation5 + $0x20] sm:$0xff] %vm2395, %v3165
      %3198 = vst.msk [vmem:[#allocation5 + $0x38] sm:$0xff] %vm2395, %v3166
      %3199 = vst.msk [vmem:[#allocation5 + $0x50] sm:$0xff] %vm2395, %v3167
      %3200 = vst.msk [vmem:[#allocation5 + $0x68] sm:$0xff] %vm2395, %v3168
      %3201 = vst.msk [vmem:[#allocation5 + $0x80] sm:$0xff] %vm2395, %v3169
      %3202 = vst.msk [vmem:[#allocation5 + $0x98] sm:$0xff] %vm2395, %v3170
      %3203 = vst.msk [vmem:[#allocation5 + $0xb0] sm:$0xff] %vm2395, %v3171
      %3204 = vst.msk [vmem:[#allocation5 + $0xc8] sm:$0xff] %vm2395, %v3172
      %3205 = vst.msk [vmem:[#allocation5 + $0xe0] sm:$0xff] %vm2395, %v3173
      %3206 = vst.msk [vmem:[#allocation5 + $0xf8] sm:$0xff] %vm2395, %v3174
      %3207 = vst.msk [vmem:[#allocation5 + $0x110] sm:$0xff] %vm2395, %v3175
      %3208 = vst.msk [vmem:[#allocation5 + $0x128] sm:$0xff] %vm2395, %v3176
      %3209 = vst.msk [vmem:[#allocation5 + $0x140] sm:$0xff] %vm2395, %v3177
      %3210 = vst.msk [vmem:[#allocation5 + $0x158] sm:$0xff] %vm2395, %v3178
      %3211 = vst.msk [vmem:[#allocation5 + $0x170] sm:$0xff] %vm2395, %v3179
      %3212 = vst.msk [vmem:[#allocation5 + $0x188] sm:$0xff] %vm2395, %v3180
      %3213 = vst.msk [vmem:[#allocation5 + $0x1a0] sm:$0xff] %vm2395, %v3181
      %3214 = vst.msk [vmem:[#allocation5 + $0x1b8] sm:$0xff] %vm2395, %v3182
      %3215 = vst.msk [vmem:[#allocation5 + $0x1d0] sm:$0xff] %vm2395, %v3183
      %3216 = vst.msk [vmem:[#allocation5 + $0x1e8] sm:$0xff] %vm2395, %v3184
      %3217 = vst.msk [vmem:[#allocation5 + $0x200] sm:$0xff] %vm2395, %v3185
      %3218 = vst.msk [vmem:[#allocation5 + $0x218] sm:$0xff] %vm2395, %v3186
      %3219 = vst.msk [vmem:[#allocation5 + $0x230] sm:$0xff] %vm2395, %v3187
      %3220 = vst.msk [vmem:[#allocation5 + $0x248] sm:$0xff] %vm2395, %v3188
      %3221 = vst.msk [vmem:[#allocation5 + $0x260] sm:$0xff] %vm2395, %v3189
      %3222 = vst.msk [vmem:[#allocation5 + $0x278] sm:$0xff] %vm2395, %v3190
      %3223 = vst.msk [vmem:[#allocation5 + $0x290] sm:$0xff] %vm2395, %v3191
      %3224 = vst.msk [vmem:[#allocation5 + $0x2a8] sm:$0xff] %vm2395, %v3192
      %3225 = vst.msk [vmem:[#allocation5 + $0x2c0] sm:$0xff] %vm2395, %v3193
      %3226 = vst.msk [vmem:[#allocation5 + $0x2d8] sm:$0xff] %vm2395, %v3194
      %3227 = vst.msk [vmem:[#allocation5 + $0x2f0] sm:$0xff] %vm2395, %v3195
      %v3228 = vld [vmem:[%s2451 + $0x2] sm:$0xff]
      %v3229 = vld [vmem:[%s2451 + $0xa] sm:$0xff]
      %v3230 = vld [vmem:[%s2451 + $0x1a] sm:$0xff]
      %v3231 = vld [vmem:[%s2451 + $0x22] sm:$0xff]
      %v3232 = vld [vmem:[%s2451 + $0x32] sm:$0xff]
      %v3233 = vld [vmem:[%s2451 + $0x3a] sm:$0xff]
      %v3234 = vld [vmem:[%s2451 + $0x4a] sm:$0xff]
      %v3235 = vld [vmem:[%s2451 + $0x52] sm:$0xff]
      %v3236 = vld [vmem:[%s2451 + $0x62] sm:$0xff]
      %v3237 = vld [vmem:[%s2451 + $0x6a] sm:$0xff]
      %v3238 = vld [vmem:[%s2451 + $0x7a] sm:$0xff]
      %v3239 = vld [vmem:[%s2451 + $0x82] sm:$0xff]
      %v3240 = vld [vmem:[%s2451 + $0x92] sm:$0xff]
      %v3241 = vld [vmem:[%s2451 + $0x9a] sm:$0xff]
      %v3242 = vld [vmem:[%s2451 + $0xaa] sm:$0xff]
      %v3243 = vld [vmem:[%s2451 + $0xb2] sm:$0xff]
      %v3244 = vld [vmem:[%s2451 + $0xc2] sm:$0xff]
      %v3245 = vld [vmem:[%s2451 + $0xca] sm:$0xff]
      %v3246 = vld [vmem:[%s2451 + $0xda] sm:$0xff]
      %v3247 = vld [vmem:[%s2451 + $0xe2] sm:$0xff]
      %v3248 = vld [vmem:[%s2451 + $0xf2] sm:$0xff]
      %v3249 = vld [vmem:[%s2451 + $0xfa] sm:$0xff]
      %v3250 = vld [vmem:[%s2451 + $0x10a] sm:$0xff]
      %v3251 = vld [vmem:[%s2451 + $0x112] sm:$0xff]
      %v3252 = vld [vmem:[%s2451 + $0x122] sm:$0xff]
      %v3253 = vld [vmem:[%s2451 + $0x12a] sm:$0xff]
      %v3254 = vld [vmem:[%s2451 + $0x13a] sm:$0xff]
      %v3255 = vld [vmem:[%s2451 + $0x142] sm:$0xff]
      %v3256 = vld [vmem:[%s2451 + $0x152] sm:$0xff]
      %v3257 = vld [vmem:[%s2451 + $0x15a] sm:$0xff]
      %v3258 = vld [vmem:[%s2451 + $0x16a] sm:$0xff]
      %v3259 = vld [vmem:[%s2451 + $0x172] sm:$0xff]
      %3292 = vrot.lane.b32.xlu0 %v3228, 32
      %v3293 = vpop.permute.xlu0 %3292
      %3294 = vrot.lane.b32.xlu0 %v3229, 32
      %v3295 = vpop.permute.xlu0 %3294
      %3296 = vrot.lane.b32.xlu0 %v3230, 32
      %v3297 = vpop.permute.xlu0 %3296
      %3298 = vrot.lane.b32.xlu0 %v3231, 32
      %v3299 = vpop.permute.xlu0 %3298
      %3300 = vrot.lane.b32.xlu0 %v3232, 32
      %v3301 = vpop.permute.xlu0 %3300
      %3302 = vrot.lane.b32.xlu0 %v3233, 32
      %v3303 = vpop.permute.xlu0 %3302
      %3304 = vrot.lane.b32.xlu0 %v3234, 32
      %v3305 = vpop.permute.xlu0 %3304
      %3306 = vrot.lane.b32.xlu0 %v3235, 32
      %v3307 = vpop.permute.xlu0 %3306
      %3308 = vrot.lane.b32.xlu0 %v3236, 32
      %v3309 = vpop.permute.xlu0 %3308
      %3310 = vrot.lane.b32.xlu0 %v3237, 32
      %v3311 = vpop.permute.xlu0 %3310
      %3312 = vrot.lane.b32.xlu0 %v3238, 32
      %v3313 = vpop.permute.xlu0 %3312
      %3314 = vrot.lane.b32.xlu0 %v3239, 32
      %v3315 = vpop.permute.xlu0 %3314
      %3316 = vrot.lane.b32.xlu0 %v3240, 32
      %v3317 = vpop.permute.xlu0 %3316
      %3318 = vrot.lane.b32.xlu0 %v3241, 32
      %v3319 = vpop.permute.xlu0 %3318
      %3320 = vrot.lane.b32.xlu0 %v3242, 32
      %v3321 = vpop.permute.xlu0 %3320
      %3322 = vrot.lane.b32.xlu0 %v3243, 32
      %v3323 = vpop.permute.xlu0 %3322
      %3324 = vrot.lane.b32.xlu0 %v3244, 32
      %v3325 = vpop.permute.xlu0 %3324
      %3326 = vrot.lane.b32.xlu0 %v3245, 32
      %v3327 = vpop.permute.xlu0 %3326
      %3328 = vrot.lane.b32.xlu0 %v3246, 32
      %v3329 = vpop.permute.xlu0 %3328
      %3330 = vrot.lane.b32.xlu0 %v3247, 32
      %v3331 = vpop.permute.xlu0 %3330
      %3332 = vrot.lane.b32.xlu0 %v3248, 32
      %v3333 = vpop.permute.xlu0 %3332
      %3334 = vrot.lane.b32.xlu0 %v3249, 32
      %v3335 = vpop.permute.xlu0 %3334
      %3336 = vrot.lane.b32.xlu0 %v3250, 32
      %v3337 = vpop.permute.xlu0 %3336
      %3338 = vrot.lane.b32.xlu0 %v3251, 32
      %v3339 = vpop.permute.xlu0 %3338
      %3340 = vrot.lane.b32.xlu0 %v3252, 32
      %v3341 = vpop.permute.xlu0 %3340
      %3342 = vrot.lane.b32.xlu0 %v3253, 32
      %v3343 = vpop.permute.xlu0 %3342
      %3344 = vrot.lane.b32.xlu0 %v3254, 32
      %v3345 = vpop.permute.xlu0 %3344
      %3346 = vrot.lane.b32.xlu0 %v3255, 32
      %v3347 = vpop.permute.xlu0 %3346
      %3348 = vrot.lane.b32.xlu0 %v3256, 32
      %v3349 = vpop.permute.xlu0 %3348
      %3350 = vrot.lane.b32.xlu0 %v3257, 32
      %v3351 = vpop.permute.xlu0 %3350
      %3352 = vrot.lane.b32.xlu0 %v3258, 32
      %v3353 = vpop.permute.xlu0 %3352
      %3354 = vrot.lane.b32.xlu0 %v3259, 32
      %v3355 = vpop.permute.xlu0 %3354
      %3388 = vst.msk [vmem:[#allocation5 + $0x8] sm:$0xff] %vm2745, %v3293
      %3389 = vst.msk [vmem:[#allocation5 + $0x20] sm:$0xff] %vm2745, %v3295
      %3390 = vst.msk [vmem:[#allocation5 + $0x38] sm:$0xff] %vm2745, %v3297
      %3391 = vst.msk [vmem:[#allocation5 + $0x50] sm:$0xff] %vm2745, %v3299
      %3392 = vst.msk [vmem:[#allocation5 + $0x68] sm:$0xff] %vm2745, %v3301
      %3393 = vst.msk [vmem:[#allocation5 + $0x80] sm:$0xff] %vm2745, %v3303
      %3394 = vst.msk [vmem:[#allocation5 + $0x98] sm:$0xff] %vm2745, %v3305
      %3395 = vst.msk [vmem:[#allocation5 + $0xb0] sm:$0xff] %vm2745, %v3307
      %3396 = vst.msk [vmem:[#allocation5 + $0xc8] sm:$0xff] %vm2745, %v3309
      %3397 = vst.msk [vmem:[#allocation5 + $0xe0] sm:$0xff] %vm2745, %v3311
      %3398 = vst.msk [vmem:[#allocation5 + $0xf8] sm:$0xff] %vm2745, %v3313
      %3399 = vst.msk [vmem:[#allocation5 + $0x110] sm:$0xff] %vm2745, %v3315
      %3400 = vst.msk [vmem:[#allocation5 + $0x128] sm:$0xff] %vm2745, %v3317
      %3401 = vst.msk [vmem:[#allocation5 + $0x140] sm:$0xff] %vm2745, %v3319
      %3402 = vst.msk [vmem:[#allocation5 + $0x158] sm:$0xff] %vm2745, %v3321
      %3403 = vst.msk [vmem:[#allocation5 + $0x170] sm:$0xff] %vm2745, %v3323
      %3404 = vst.msk [vmem:[#allocation5 + $0x188] sm:$0xff] %vm2745, %v3325
      %3405 = vst.msk [vmem:[#allocation5 + $0x1a0] sm:$0xff] %vm2745, %v3327
      %3406 = vst.msk [vmem:[#allocation5 + $0x1b8] sm:$0xff] %vm2745, %v3329
      %3407 = vst.msk [vmem:[#allocation5 + $0x1d0] sm:$0xff] %vm2745, %v3331
      %3408 = vst.msk [vmem:[#allocation5 + $0x1e8] sm:$0xff] %vm2745, %v3333
      %3409 = vst.msk [vmem:[#allocation5 + $0x200] sm:$0xff] %vm2745, %v3335
      %3410 = vst.msk [vmem:[#allocation5 + $0x218] sm:$0xff] %vm2745, %v3337
      %3411 = vst.msk [vmem:[#allocation5 + $0x230] sm:$0xff] %vm2745, %v3339
      %3412 = vst.msk [vmem:[#allocation5 + $0x248] sm:$0xff] %vm2745, %v3341
      %3413 = vst.msk [vmem:[#allocation5 + $0x260] sm:$0xff] %vm2745, %v3343
      %3414 = vst.msk [vmem:[#allocation5 + $0x278] sm:$0xff] %vm2745, %v3345
      %3415 = vst.msk [vmem:[#allocation5 + $0x290] sm:$0xff] %vm2745, %v3347
      %3416 = vst.msk [vmem:[#allocation5 + $0x2a8] sm:$0xff] %vm2745, %v3349
      %3417 = vst.msk [vmem:[#allocation5 + $0x2c0] sm:$0xff] %vm2745, %v3351
      %3418 = vst.msk [vmem:[#allocation5 + $0x2d8] sm:$0xff] %vm2745, %v3353
      %3419 = vst.msk [vmem:[#allocation5 + $0x2f0] sm:$0xff] %vm2745, %v3355
      %s3420 = scalar_lea.vmem [#allocation3], 48
      %v3421 = vld [vmem:[%s3420] sm:$0xff]
      %v3422 = vld [vmem:[%s3420 + $0x8] sm:$0xff]
      %v3423 = vld [vmem:[%s3420 + $0x18] sm:$0xff]
      %v3424 = vld [vmem:[%s3420 + $0x20] sm:$0xff]
      %v3425 = vld [vmem:[%s3420 + $0x30] sm:$0xff]
      %v3426 = vld [vmem:[%s3420 + $0x38] sm:$0xff]
      %v3427 = vld [vmem:[%s3420 + $0x48] sm:$0xff]
      %v3428 = vld [vmem:[%s3420 + $0x50] sm:$0xff]
      %v3429 = vld [vmem:[%s3420 + $0x60] sm:$0xff]
      %v3430 = vld [vmem:[%s3420 + $0x68] sm:$0xff]
      %v3431 = vld [vmem:[%s3420 + $0x78] sm:$0xff]
      %v3432 = vld [vmem:[%s3420 + $0x80] sm:$0xff]
      %v3433 = vld [vmem:[%s3420 + $0x90] sm:$0xff]
      %v3434 = vld [vmem:[%s3420 + $0x98] sm:$0xff]
      %v3435 = vld [vmem:[%s3420 + $0xa8] sm:$0xff]
      %v3436 = vld [vmem:[%s3420 + $0xb0] sm:$0xff]
      %v3437 = vld [vmem:[%s3420 + $0xc0] sm:$0xff]
      %v3438 = vld [vmem:[%s3420 + $0xc8] sm:$0xff]
      %v3439 = vld [vmem:[%s3420 + $0xd8] sm:$0xff]
      %v3440 = vld [vmem:[%s3420 + $0xe0] sm:$0xff]
      %v3441 = vld [vmem:[%s3420 + $0xf0] sm:$0xff]
      %v3442 = vld [vmem:[%s3420 + $0xf8] sm:$0xff]
      %v3443 = vld [vmem:[%s3420 + $0x108] sm:$0xff]
      %v3444 = vld [vmem:[%s3420 + $0x110] sm:$0xff]
      %v3445 = vld [vmem:[%s3420 + $0x120] sm:$0xff]
      %v3446 = vld [vmem:[%s3420 + $0x128] sm:$0xff]
      %v3447 = vld [vmem:[%s3420 + $0x138] sm:$0xff]
      %v3448 = vld [vmem:[%s3420 + $0x140] sm:$0xff]
      %v3449 = vld [vmem:[%s3420 + $0x150] sm:$0xff]
      %v3450 = vld [vmem:[%s3420 + $0x158] sm:$0xff]
      %v3451 = vld [vmem:[%s3420 + $0x168] sm:$0xff]
      %v3452 = vld [vmem:[%s3420 + $0x170] sm:$0xff]
      %3485 = vrot.lane.b32.xlu0 %v3421, 64
      %v3486 = vpop.permute.xlu0 %3485
      %3487 = vrot.lane.b32.xlu0 %v3422, 64
      %v3488 = vpop.permute.xlu0 %3487
      %3489 = vrot.lane.b32.xlu0 %v3423, 64
      %v3490 = vpop.permute.xlu0 %3489
      %3491 = vrot.lane.b32.xlu0 %v3424, 64
      %v3492 = vpop.permute.xlu0 %3491
      %3493 = vrot.lane.b32.xlu0 %v3425, 64
      %v3494 = vpop.permute.xlu0 %3493
      %3495 = vrot.lane.b32.xlu0 %v3426, 64
      %v3496 = vpop.permute.xlu0 %3495
      %3497 = vrot.lane.b32.xlu0 %v3427, 64
      %v3498 = vpop.permute.xlu0 %3497
      %3499 = vrot.lane.b32.xlu0 %v3428, 64
      %v3500 = vpop.permute.xlu0 %3499
      %3501 = vrot.lane.b32.xlu0 %v3429, 64
      %v3502 = vpop.permute.xlu0 %3501
      %3503 = vrot.lane.b32.xlu0 %v3430, 64
      %v3504 = vpop.permute.xlu0 %3503
      %3505 = vrot.lane.b32.xlu0 %v3431, 64
      %v3506 = vpop.permute.xlu0 %3505
      %3507 = vrot.lane.b32.xlu0 %v3432, 64
      %v3508 = vpop.permute.xlu0 %3507
      %3509 = vrot.lane.b32.xlu0 %v3433, 64
      %v3510 = vpop.permute.xlu0 %3509
      %3511 = vrot.lane.b32.xlu0 %v3434, 64
      %v3512 = vpop.permute.xlu0 %3511
      %3513 = vrot.lane.b32.xlu0 %v3435, 64
      %v3514 = vpop.permute.xlu0 %3513
      %3515 = vrot.lane.b32.xlu0 %v3436, 64
      %v3516 = vpop.permute.xlu0 %3515
      %3517 = vrot.lane.b32.xlu0 %v3437, 64
      %v3518 = vpop.permute.xlu0 %3517
      %3519 = vrot.lane.b32.xlu0 %v3438, 64
      %v3520 = vpop.permute.xlu0 %3519
      %3521 = vrot.lane.b32.xlu0 %v3439, 64
      %v3522 = vpop.permute.xlu0 %3521
      %3523 = vrot.lane.b32.xlu0 %v3440, 64
      %v3524 = vpop.permute.xlu0 %3523
      %3525 = vrot.lane.b32.xlu0 %v3441, 64
      %v3526 = vpop.permute.xlu0 %3525
      %3527 = vrot.lane.b32.xlu0 %v3442, 64
      %v3528 = vpop.permute.xlu0 %3527
      %3529 = vrot.lane.b32.xlu0 %v3443, 64
      %v3530 = vpop.permute.xlu0 %3529
      %3531 = vrot.lane.b32.xlu0 %v3444, 64
      %v3532 = vpop.permute.xlu0 %3531
      %3533 = vrot.lane.b32.xlu0 %v3445, 64
      %v3534 = vpop.permute.xlu0 %3533
      %3535 = vrot.lane.b32.xlu0 %v3446, 64
      %v3536 = vpop.permute.xlu0 %3535
      %3537 = vrot.lane.b32.xlu0 %v3447, 64
      %v3538 = vpop.permute.xlu0 %3537
      %3539 = vrot.lane.b32.xlu0 %v3448, 64
      %v3540 = vpop.permute.xlu0 %3539
      %3541 = vrot.lane.b32.xlu0 %v3449, 64
      %v3542 = vpop.permute.xlu0 %3541
      %3543 = vrot.lane.b32.xlu0 %v3450, 64
      %v3544 = vpop.permute.xlu0 %3543
      %3545 = vrot.lane.b32.xlu0 %v3451, 64
      %v3546 = vpop.permute.xlu0 %3545
      %3547 = vrot.lane.b32.xlu0 %v3452, 64
      %v3548 = vpop.permute.xlu0 %3547
      %3581 = vst.msk [vmem:[#allocation5 + $0x8] sm:$0xff] %vm2938, %v3486
      %3582 = vst.msk [vmem:[#allocation5 + $0x20] sm:$0xff] %vm2938, %v3488
      %3583 = vst.msk [vmem:[#allocation5 + $0x38] sm:$0xff] %vm2938, %v3490
      %3584 = vst.msk [vmem:[#allocation5 + $0x50] sm:$0xff] %vm2938, %v3492
      %3585 = vst.msk [vmem:[#allocation5 + $0x68] sm:$0xff] %vm2938, %v3494
      %3586 = vst.msk [vmem:[#allocation5 + $0x80] sm:$0xff] %vm2938, %v3496
      %3587 = vst.msk [vmem:[#allocation5 + $0x98] sm:$0xff] %vm2938, %v3498
      %3588 = vst.msk [vmem:[#allocation5 + $0xb0] sm:$0xff] %vm2938, %v3500
      %3589 = vst.msk [vmem:[#allocation5 + $0xc8] sm:$0xff] %vm2938, %v3502
      %3590 = vst.msk [vmem:[#allocation5 + $0xe0] sm:$0xff] %vm2938, %v3504
      %3591 = vst.msk [vmem:[#allocation5 + $0xf8] sm:$0xff] %vm2938, %v3506
      %3592 = vst.msk [vmem:[#allocation5 + $0x110] sm:$0xff] %vm2938, %v3508
      %3593 = vst.msk [vmem:[#allocation5 + $0x128] sm:$0xff] %vm2938, %v3510
      %3594 = vst.msk [vmem:[#allocation5 + $0x140] sm:$0xff] %vm2938, %v3512
      %3595 = vst.msk [vmem:[#allocation5 + $0x158] sm:$0xff] %vm2938, %v3514
      %3596 = vst.msk [vmem:[#allocation5 + $0x170] sm:$0xff] %vm2938, %v3516
      %3597 = vst.msk [vmem:[#allocation5 + $0x188] sm:$0xff] %vm2938, %v3518
      %3598 = vst.msk [vmem:[#allocation5 + $0x1a0] sm:$0xff] %vm2938, %v3520
      %3599 = vst.msk [vmem:[#allocation5 + $0x1b8] sm:$0xff] %vm2938, %v3522
      %3600 = vst.msk [vmem:[#allocation5 + $0x1d0] sm:$0xff] %vm2938, %v3524
      %3601 = vst.msk [vmem:[#allocation5 + $0x1e8] sm:$0xff] %vm2938, %v3526
      %3602 = vst.msk [vmem:[#allocation5 + $0x200] sm:$0xff] %vm2938, %v3528
      %3603 = vst.msk [vmem:[#allocation5 + $0x218] sm:$0xff] %vm2938, %v3530
      %3604 = vst.msk [vmem:[#allocation5 + $0x230] sm:$0xff] %vm2938, %v3532
      %3605 = vst.msk [vmem:[#allocation5 + $0x248] sm:$0xff] %vm2938, %v3534
      %3606 = vst.msk [vmem:[#allocation5 + $0x260] sm:$0xff] %vm2938, %v3536
      %3607 = vst.msk [vmem:[#allocation5 + $0x278] sm:$0xff] %vm2938, %v3538
      %3608 = vst.msk [vmem:[#allocation5 + $0x290] sm:$0xff] %vm2938, %v3540
      %3609 = vst.msk [vmem:[#allocation5 + $0x2a8] sm:$0xff] %vm2938, %v3542
      %3610 = vst.msk [vmem:[#allocation5 + $0x2c0] sm:$0xff] %vm2938, %v3544
      %3611 = vst.msk [vmem:[#allocation5 + $0x2d8] sm:$0xff] %vm2938, %v3546
      %3612 = vst.msk [vmem:[#allocation5 + $0x2f0] sm:$0xff] %vm2938, %v3548
      %v3613 = vld [vmem:[%s3420 + $0x1] sm:$0xff]
      %v3614 = vld [vmem:[%s3420 + $0x9] sm:$0xff]
      %v3615 = vld [vmem:[%s3420 + $0x19] sm:$0xff]
      %v3616 = vld [vmem:[%s3420 + $0x21] sm:$0xff]
      %v3617 = vld [vmem:[%s3420 + $0x31] sm:$0xff]
      %v3618 = vld [vmem:[%s3420 + $0x39] sm:$0xff]
      %v3619 = vld [vmem:[%s3420 + $0x49] sm:$0xff]
      %v3620 = vld [vmem:[%s3420 + $0x51] sm:$0xff]
      %v3621 = vld [vmem:[%s3420 + $0x61] sm:$0xff]
      %v3622 = vld [vmem:[%s3420 + $0x69] sm:$0xff]
      %v3623 = vld [vmem:[%s3420 + $0x79] sm:$0xff]
      %v3624 = vld [vmem:[%s3420 + $0x81] sm:$0xff]
      %v3625 = vld [vmem:[%s3420 + $0x91] sm:$0xff]
      %v3626 = vld [vmem:[%s3420 + $0x99] sm:$0xff]
      %v3627 = vld [vmem:[%s3420 + $0xa9] sm:$0xff]
      %v3628 = vld [vmem:[%s3420 + $0xb1] sm:$0xff]
      %v3629 = vld [vmem:[%s3420 + $0xc1] sm:$0xff]
      %v3630 = vld [vmem:[%s3420 + $0xc9] sm:$0xff]
      %v3631 = vld [vmem:[%s3420 + $0xd9] sm:$0xff]
      %v3632 = vld [vmem:[%s3420 + $0xe1] sm:$0xff]
      %v3633 = vld [vmem:[%s3420 + $0xf1] sm:$0xff]
      %v3634 = vld [vmem:[%s3420 + $0xf9] sm:$0xff]
      %v3635 = vld [vmem:[%s3420 + $0x109] sm:$0xff]
      %v3636 = vld [vmem:[%s3420 + $0x111] sm:$0xff]
      %v3637 = vld [vmem:[%s3420 + $0x121] sm:$0xff]
      %v3638 = vld [vmem:[%s3420 + $0x129] sm:$0xff]
      %v3639 = vld [vmem:[%s3420 + $0x139] sm:$0xff]
      %v3640 = vld [vmem:[%s3420 + $0x141] sm:$0xff]
      %v3641 = vld [vmem:[%s3420 + $0x151] sm:$0xff]
      %v3642 = vld [vmem:[%s3420 + $0x159] sm:$0xff]
      %v3643 = vld [vmem:[%s3420 + $0x169] sm:$0xff]
      %v3644 = vld [vmem:[%s3420 + $0x171] sm:$0xff]
      %3677 = vrot.lane.b32.xlu0 %v3613, 96
      %v3678 = vpop.permute.xlu0 %3677
      %3679 = vrot.lane.b32.xlu0 %v3614, 96
      %v3680 = vpop.permute.xlu0 %3679
      %3681 = vrot.lane.b32.xlu0 %v3615, 96
      %v3682 = vpop.permute.xlu0 %3681
      %3683 = vrot.lane.b32.xlu0 %v3616, 96
      %v3684 = vpop.permute.xlu0 %3683
      %3685 = vrot.lane.b32.xlu0 %v3617, 96
      %v3686 = vpop.permute.xlu0 %3685
      %3687 = vrot.lane.b32.xlu0 %v3618, 96
      %v3688 = vpop.permute.xlu0 %3687
      %3689 = vrot.lane.b32.xlu0 %v3619, 96
      %v3690 = vpop.permute.xlu0 %3689
      %3691 = vrot.lane.b32.xlu0 %v3620, 96
      %v3692 = vpop.permute.xlu0 %3691
      %3693 = vrot.lane.b32.xlu0 %v3621, 96
      %v3694 = vpop.permute.xlu0 %3693
      %3695 = vrot.lane.b32.xlu0 %v3622, 96
      %v3696 = vpop.permute.xlu0 %3695
      %3697 = vrot.lane.b32.xlu0 %v3623, 96
      %v3698 = vpop.permute.xlu0 %3697
      %3699 = vrot.lane.b32.xlu0 %v3624, 96
      %v3700 = vpop.permute.xlu0 %3699
      %3701 = vrot.lane.b32.xlu0 %v3625, 96
      %v3702 = vpop.permute.xlu0 %3701
      %3703 = vrot.lane.b32.xlu0 %v3626, 96
      %v3704 = vpop.permute.xlu0 %3703
      %3705 = vrot.lane.b32.xlu0 %v3627, 96
      %v3706 = vpop.permute.xlu0 %3705
      %3707 = vrot.lane.b32.xlu0 %v3628, 96
      %v3708 = vpop.permute.xlu0 %3707
      %3709 = vrot.lane.b32.xlu0 %v3629, 96
      %v3710 = vpop.permute.xlu0 %3709
      %3711 = vrot.lane.b32.xlu0 %v3630, 96
      %v3712 = vpop.permute.xlu0 %3711
      %3713 = vrot.lane.b32.xlu0 %v3631, 96
      %v3714 = vpop.permute.xlu0 %3713
      %3715 = vrot.lane.b32.xlu0 %v3632, 96
      %v3716 = vpop.permute.xlu0 %3715
      %3717 = vrot.lane.b32.xlu0 %v3633, 96
      %v3718 = vpop.permute.xlu0 %3717
      %3719 = vrot.lane.b32.xlu0 %v3634, 96
      %v3720 = vpop.permute.xlu0 %3719
      %3721 = vrot.lane.b32.xlu0 %v3635, 96
      %v3722 = vpop.permute.xlu0 %3721
      %3723 = vrot.lane.b32.xlu0 %v3636, 96
      %v3724 = vpop.permute.xlu0 %3723
      %3725 = vrot.lane.b32.xlu0 %v3637, 96
      %v3726 = vpop.permute.xlu0 %3725
      %3727 = vrot.lane.b32.xlu0 %v3638, 96
      %v3728 = vpop.permute.xlu0 %3727
      %3729 = vrot.lane.b32.xlu0 %v3639, 96
      %v3730 = vpop.permute.xlu0 %3729
      %3731 = vrot.lane.b32.xlu0 %v3640, 96
      %v3732 = vpop.permute.xlu0 %3731
      %3733 = vrot.lane.b32.xlu0 %v3641, 96
      %v3734 = vpop.permute.xlu0 %3733
      %3735 = vrot.lane.b32.xlu0 %v3642, 96
      %v3736 = vpop.permute.xlu0 %3735
      %3737 = vrot.lane.b32.xlu0 %v3643, 96
      %v3738 = vpop.permute.xlu0 %3737
      %3739 = vrot.lane.b32.xlu0 %v3644, 96
      %v3740 = vpop.permute.xlu0 %3739
      %3773 = vst.msk [vmem:[#allocation5 + $0x8] sm:$0xff] %vm3131, %v3678
      %3774 = vst.msk [vmem:[#allocation5 + $0x20] sm:$0xff] %vm3131, %v3680
      %3775 = vst.msk [vmem:[#allocation5 + $0x38] sm:$0xff] %vm3131, %v3682
      %3776 = vst.msk [vmem:[#allocation5 + $0x50] sm:$0xff] %vm3131, %v3684
      %3777 = vst.msk [vmem:[#allocation5 + $0x68] sm:$0xff] %vm3131, %v3686
      %3778 = vst.msk [vmem:[#allocation5 + $0x80] sm:$0xff] %vm3131, %v3688
      %3779 = vst.msk [vmem:[#allocation5 + $0x98] sm:$0xff] %vm3131, %v3690
      %3780 = vst.msk [vmem:[#allocation5 + $0xb0] sm:$0xff] %vm3131, %v3692
      %3781 = vst.msk [vmem:[#allocation5 + $0xc8] sm:$0xff] %vm3131, %v3694
      %3782 = vst.msk [vmem:[#allocation5 + $0xe0] sm:$0xff] %vm3131, %v3696
      %3783 = vst.msk [vmem:[#allocation5 + $0xf8] sm:$0xff] %vm3131, %v3698
      %3784 = vst.msk [vmem:[#allocation5 + $0x110] sm:$0xff] %vm3131, %v3700
      %3785 = vst.msk [vmem:[#allocation5 + $0x128] sm:$0xff] %vm3131, %v3702
      %3786 = vst.msk [vmem:[#allocation5 + $0x140] sm:$0xff] %vm3131, %v3704
      %3787 = vst.msk [vmem:[#allocation5 + $0x158] sm:$0xff] %vm3131, %v3706
      %3788 = vst.msk [vmem:[#allocation5 + $0x170] sm:$0xff] %vm3131, %v3708
      %3789 = vst.msk [vmem:[#allocation5 + $0x188] sm:$0xff] %vm3131, %v3710
      %3790 = vst.msk [vmem:[#allocation5 + $0x1a0] sm:$0xff] %vm3131, %v3712
      %3791 = vst.msk [vmem:[#allocation5 + $0x1b8] sm:$0xff] %vm3131, %v3714
      %3792 = vst.msk [vmem:[#allocation5 + $0x1d0] sm:$0xff] %vm3131, %v3716
      %3793 = vst.msk [vmem:[#allocation5 + $0x1e8] sm:$0xff] %vm3131, %v3718
      %3794 = vst.msk [vmem:[#allocation5 + $0x200] sm:$0xff] %vm3131, %v3720
      %3795 = vst.msk [vmem:[#allocation5 + $0x218] sm:$0xff] %vm3131, %v3722
      %3796 = vst.msk [vmem:[#allocation5 + $0x230] sm:$0xff] %vm3131, %v3724
      %3797 = vst.msk [vmem:[#allocation5 + $0x248] sm:$0xff] %vm3131, %v3726
      %3798 = vst.msk [vmem:[#allocation5 + $0x260] sm:$0xff] %vm3131, %v3728
      %3799 = vst.msk [vmem:[#allocation5 + $0x278] sm:$0xff] %vm3131, %v3730
      %3800 = vst.msk [vmem:[#allocation5 + $0x290] sm:$0xff] %vm3131, %v3732
      %3801 = vst.msk [vmem:[#allocation5 + $0x2a8] sm:$0xff] %vm3131, %v3734
      %3802 = vst.msk [vmem:[#allocation5 + $0x2c0] sm:$0xff] %vm3131, %v3736
      %3803 = vst.msk [vmem:[#allocation5 + $0x2d8] sm:$0xff] %vm3131, %v3738
      %3804 = vst.msk [vmem:[#allocation5 + $0x2f0] sm:$0xff] %vm3131, %v3740
      %v3805 = vld [vmem:[%s3420 + $0x2] sm:$0xff]
      %v3806 = vld [vmem:[%s3420 + $0xa] sm:$0xff]
      %v3807 = vld [vmem:[%s3420 + $0x1a] sm:$0xff]
      %v3808 = vld [vmem:[%s3420 + $0x22] sm:$0xff]
      %v3809 = vld [vmem:[%s3420 + $0x32] sm:$0xff]
      %v3810 = vld [vmem:[%s3420 + $0x3a] sm:$0xff]
      %v3811 = vld [vmem:[%s3420 + $0x4a] sm:$0xff]
      %v3812 = vld [vmem:[%s3420 + $0x52] sm:$0xff]
      %v3813 = vld [vmem:[%s3420 + $0x62] sm:$0xff]
      %v3814 = vld [vmem:[%s3420 + $0x6a] sm:$0xff]
      %v3815 = vld [vmem:[%s3420 + $0x7a] sm:$0xff]
      %v3816 = vld [vmem:[%s3420 + $0x82] sm:$0xff]
      %v3817 = vld [vmem:[%s3420 + $0x92] sm:$0xff]
      %v3818 = vld [vmem:[%s3420 + $0x9a] sm:$0xff]
      %v3819 = vld [vmem:[%s3420 + $0xaa] sm:$0xff]
      %v3820 = vld [vmem:[%s3420 + $0xb2] sm:$0xff]
      %v3821 = vld [vmem:[%s3420 + $0xc2] sm:$0xff]
      %v3822 = vld [vmem:[%s3420 + $0xca] sm:$0xff]
      %v3823 = vld [vmem:[%s3420 + $0xda] sm:$0xff]
      %v3824 = vld [vmem:[%s3420 + $0xe2] sm:$0xff]
      %v3825 = vld [vmem:[%s3420 + $0xf2] sm:$0xff]
      %v3826 = vld [vmem:[%s3420 + $0xfa] sm:$0xff]
      %v3827 = vld [vmem:[%s3420 + $0x10a] sm:$0xff]
      %v3828 = vld [vmem:[%s3420 + $0x112] sm:$0xff]
      %v3829 = vld [vmem:[%s3420 + $0x122] sm:$0xff]
      %v3830 = vld [vmem:[%s3420 + $0x12a] sm:$0xff]
      %v3831 = vld [vmem:[%s3420 + $0x13a] sm:$0xff]
      %v3832 = vld [vmem:[%s3420 + $0x142] sm:$0xff]
      %v3833 = vld [vmem:[%s3420 + $0x152] sm:$0xff]
      %v3834 = vld [vmem:[%s3420 + $0x15a] sm:$0xff]
      %v3835 = vld [vmem:[%s3420 + $0x16a] sm:$0xff]
      %v3836 = vld [vmem:[%s3420 + $0x172] sm:$0xff]
      %3837 = vst.msk [vmem:[#allocation5 + $0x10] sm:$0xff] %vm2395, %v3805
      %3838 = vst.msk [vmem:[#allocation5 + $0x28] sm:$0xff] %vm2395, %v3806
      %3839 = vst.msk [vmem:[#allocation5 + $0x40] sm:$0xff] %vm2395, %v3807
      %3840 = vst.msk [vmem:[#allocation5 + $0x58] sm:$0xff] %vm2395, %v3808
      %3841 = vst.msk [vmem:[#allocation5 + $0x70] sm:$0xff] %vm2395, %v3809
      %3842 = vst.msk [vmem:[#allocation5 + $0x88] sm:$0xff] %vm2395, %v3810
      %3843 = vst.msk [vmem:[#allocation5 + $0xa0] sm:$0xff] %vm2395, %v3811
      %3844 = vst.msk [vmem:[#allocation5 + $0xb8] sm:$0xff] %vm2395, %v3812
      %3845 = vst.msk [vmem:[#allocation5 + $0xd0] sm:$0xff] %vm2395, %v3813
      %3846 = vst.msk [vmem:[#allocation5 + $0xe8] sm:$0xff] %vm2395, %v3814
      %3847 = vst.msk [vmem:[#allocation5 + $0x100] sm:$0xff] %vm2395, %v3815
      %3848 = vst.msk [vmem:[#allocation5 + $0x118] sm:$0xff] %vm2395, %v3816
      %3849 = vst.msk [vmem:[#allocation5 + $0x130] sm:$0xff] %vm2395, %v3817
      %3850 = vst.msk [vmem:[#allocation5 + $0x148] sm:$0xff] %vm2395, %v3818
      %3851 = vst.msk [vmem:[#allocation5 + $0x160] sm:$0xff] %vm2395, %v3819
      %3852 = vst.msk [vmem:[#allocation5 + $0x178] sm:$0xff] %vm2395, %v3820
      %3853 = vst.msk [vmem:[#allocation5 + $0x190] sm:$0xff] %vm2395, %v3821
      %3854 = vst.msk [vmem:[#allocation5 + $0x1a8] sm:$0xff] %vm2395, %v3822
      %3855 = vst.msk [vmem:[#allocation5 + $0x1c0] sm:$0xff] %vm2395, %v3823
      %3856 = vst.msk [vmem:[#allocation5 + $0x1d8] sm:$0xff] %vm2395, %v3824
      %3857 = vst.msk [vmem:[#allocation5 + $0x1f0] sm:$0xff] %vm2395, %v3825
      %3858 = vst.msk [vmem:[#allocation5 + $0x208] sm:$0xff] %vm2395, %v3826
      %3859 = vst.msk [vmem:[#allocation5 + $0x220] sm:$0xff] %vm2395, %v3827
      %3860 = vst.msk [vmem:[#allocation5 + $0x238] sm:$0xff] %vm2395, %v3828
      %3861 = vst.msk [vmem:[#allocation5 + $0x250] sm:$0xff] %vm2395, %v3829
      %3862 = vst.msk [vmem:[#allocation5 + $0x268] sm:$0xff] %vm2395, %v3830
      %3863 = vst.msk [vmem:[#allocation5 + $0x280] sm:$0xff] %vm2395, %v3831
      %3864 = vst.msk [vmem:[#allocation5 + $0x298] sm:$0xff] %vm2395, %v3832
      %3865 = vst.msk [vmem:[#allocation5 + $0x2b0] sm:$0xff] %vm2395, %v3833
      %3866 = vst.msk [vmem:[#allocation5 + $0x2c8] sm:$0xff] %vm2395, %v3834
      %3867 = vst.msk [vmem:[#allocation5 + $0x2e0] sm:$0xff] %vm2395, %v3835
      %3868 = vst.msk [vmem:[#allocation5 + $0x2f8] sm:$0xff] %vm2395, %v3836
      %v3869 = vld [vmem:[#allocation5] sm:$0xff]
      %v3870 = vld [vmem:[#allocation5 + $0x8] sm:$0xff]
      %v3871 = vld [vmem:[#allocation5 + $0x10] sm:$0xff]
      %v3872 = vld [vmem:[#allocation5 + $0x18] sm:$0xff]
      %v3873 = vld [vmem:[#allocation5 + $0x20] sm:$0xff]
      %v3874 = vld [vmem:[#allocation5 + $0x28] sm:$0xff]
      %v3875 = vld [vmem:[#allocation5 + $0x30] sm:$0xff]
      %v3876 = vld [vmem:[#allocation5 + $0x38] sm:$0xff]
      %v3877 = vld [vmem:[#allocation5 + $0x40] sm:$0xff]
      %v3878 = vld [vmem:[#allocation5 + $0x48] sm:$0xff]
      %v3879 = vld [vmem:[#allocation5 + $0x50] sm:$0xff]
      %v3880 = vld [vmem:[#allocation5 + $0x58] sm:$0xff]
      %v3881 = vld [vmem:[#allocation5 + $0x60] sm:$0xff]
      %v3882 = vld [vmem:[#allocation5 + $0x68] sm:$0xff]
      %v3883 = vld [vmem:[#allocation5 + $0x70] sm:$0xff]
      %v3884 = vld [vmem:[#allocation5 + $0x78] sm:$0xff]
      %v3885 = vld [vmem:[#allocation5 + $0x80] sm:$0xff]
      %v3886 = vld [vmem:[#allocation5 + $0x88] sm:$0xff]
      %v3887 = vld [vmem:[#allocation5 + $0x90] sm:$0xff]
      %v3888 = vld [vmem:[#allocation5 + $0x98] sm:$0xff]
      %v3889 = vld [vmem:[#allocation5 + $0xa0] sm:$0xff]
      %v3890 = vld [vmem:[#allocation5 + $0xa8] sm:$0xff]
      %v3891 = vld [vmem:[#allocation5 + $0xb0] sm:$0xff]
      %v3892 = vld [vmem:[#allocation5 + $0xb8] sm:$0xff]
      %v3893 = vld [vmem:[#allocation5 + $0xc0] sm:$0xff]
      %v3894 = vld [vmem:[#allocation5 + $0xc8] sm:$0xff]
      %v3895 = vld [vmem:[#allocation5 + $0xd0] sm:$0xff]
      %v3896 = vld [vmem:[#allocation5 + $0xd8] sm:$0xff]
      %v3897 = vld [vmem:[#allocation5 + $0xe0] sm:$0xff]
      %v3898 = vld [vmem:[#allocation5 + $0xe8] sm:$0xff]
      %v3899 = vld [vmem:[#allocation5 + $0xf0] sm:$0xff]
      %v3900 = vld [vmem:[#allocation5 + $0xf8] sm:$0xff]
      %v3901 = vld [vmem:[#allocation5 + $0x100] sm:$0xff]
      %v3902 = vld [vmem:[#allocation5 + $0x108] sm:$0xff]
      %v3903 = vld [vmem:[#allocation5 + $0x110] sm:$0xff]
      %v3904 = vld [vmem:[#allocation5 + $0x118] sm:$0xff]
      %v3905 = vld [vmem:[#allocation5 + $0x120] sm:$0xff]
      %v3906 = vld [vmem:[#allocation5 + $0x128] sm:$0xff]
      %v3907 = vld [vmem:[#allocation5 + $0x130] sm:$0xff]
      %v3908 = vld [vmem:[#allocation5 + $0x138] sm:$0xff]
      %v3909 = vld [vmem:[#allocation5 + $0x140] sm:$0xff]
      %v3910 = vld [vmem:[#allocation5 + $0x148] sm:$0xff]
      %v3911 = vld [vmem:[#allocation5 + $0x150] sm:$0xff]
      %v3912 = vld [vmem:[#allocation5 + $0x158] sm:$0xff]
      %v3913 = vld [vmem:[#allocation5 + $0x160] sm:$0xff]
      %v3914 = vld [vmem:[#allocation5 + $0x168] sm:$0xff]
      %v3915 = vld [vmem:[#allocation5 + $0x170] sm:$0xff]
      %v3916 = vld [vmem:[#allocation5 + $0x178] sm:$0xff]
      %v3917 = vld [vmem:[#allocation5 + $0x180] sm:$0xff]
      %v3918 = vld [vmem:[#allocation5 + $0x188] sm:$0xff]
      %v3919 = vld [vmem:[#allocation5 + $0x190] sm:$0xff]
      %v3920 = vld [vmem:[#allocation5 + $0x198] sm:$0xff]
      %v3921 = vld [vmem:[#allocation5 + $0x1a0] sm:$0xff]
      %v3922 = vld [vmem:[#allocation5 + $0x1a8] sm:$0xff]
      %v3923 = vld [vmem:[#allocation5 + $0x1b0] sm:$0xff]
      %v3924 = vld [vmem:[#allocation5 + $0x1b8] sm:$0xff]
      %v3925 = vld [vmem:[#allocation5 + $0x1c0] sm:$0xff]
      %v3926 = vld [vmem:[#allocation5 + $0x1c8] sm:$0xff]
      %v3927 = vld [vmem:[#allocation5 + $0x1d0] sm:$0xff]
      %v3928 = vld [vmem:[#allocation5 + $0x1d8] sm:$0xff]
      %v3929 = vld [vmem:[#allocation5 + $0x1e0] sm:$0xff]
      %v3930 = vld [vmem:[#allocation5 + $0x1e8] sm:$0xff]
      %v3931 = vld [vmem:[#allocation5 + $0x1f0] sm:$0xff]
      %v3932 = vld [vmem:[#allocation5 + $0x1f8] sm:$0xff]
      %v3933 = vld [vmem:[#allocation5 + $0x200] sm:$0xff]
      %v3934 = vld [vmem:[#allocation5 + $0x208] sm:$0xff]
      %v3935 = vld [vmem:[#allocation5 + $0x210] sm:$0xff]
      %v3936 = vld [vmem:[#allocation5 + $0x218] sm:$0xff]
      %v3937 = vld [vmem:[#allocation5 + $0x220] sm:$0xff]
      %v3938 = vld [vmem:[#allocation5 + $0x228] sm:$0xff]
      %v3939 = vld [vmem:[#allocation5 + $0x230] sm:$0xff]
      %v3940 = vld [vmem:[#allocation5 + $0x238] sm:$0xff]
      %v3941 = vld [vmem:[#allocation5 + $0x240] sm:$0xff]
      %v3942 = vld [vmem:[#allocation5 + $0x248] sm:$0xff]
      %v3943 = vld [vmem:[#allocation5 + $0x250] sm:$0xff]
      %v3944 = vld [vmem:[#allocation5 + $0x258] sm:$0xff]
      %v3945 = vld [vmem:[#allocation5 + $0x260] sm:$0xff]
      %v3946 = vld [vmem:[#allocation5 + $0x268] sm:$0xff]
      %v3947 = vld [vmem:[#allocation5 + $0x270] sm:$0xff]
      %v3948 = vld [vmem:[#allocation5 + $0x278] sm:$0xff]
      %v3949 = vld [vmem:[#allocation5 + $0x280] sm:$0xff]
      %v3950 = vld [vmem:[#allocation5 + $0x288] sm:$0xff]
      %v3951 = vld [vmem:[#allocation5 + $0x290] sm:$0xff]
      %v3952 = vld [vmem:[#allocation5 + $0x298] sm:$0xff]
      %v3953 = vld [vmem:[#allocation5 + $0x2a0] sm:$0xff]
      %v3954 = vld [vmem:[#allocation5 + $0x2a8] sm:$0xff]
      %v3955 = vld [vmem:[#allocation5 + $0x2b0] sm:$0xff]
      %v3956 = vld [vmem:[#allocation5 + $0x2b8] sm:$0xff]
      %v3957 = vld [vmem:[#allocation5 + $0x2c0] sm:$0xff]
      %v3958 = vld [vmem:[#allocation5 + $0x2c8] sm:$0xff]
      %v3959 = vld [vmem:[#allocation5 + $0x2d0] sm:$0xff]
      %v3960 = vld [vmem:[#allocation5 + $0x2d8] sm:$0xff]
      %v3961 = vld [vmem:[#allocation5 + $0x2e0] sm:$0xff]
      %v3962 = vld [vmem:[#allocation5 + $0x2e8] sm:$0xff]
      %v3963 = vld [vmem:[#allocation5 + $0x2f0] sm:$0xff]
      %v3964 = vld [vmem:[#allocation5 + $0x2f8] sm:$0xff]
      %v3965 = vpack.c.bf16 %v3872, %v3869
      %v3966 = vpack.c.bf16 %v3873, %v3870
      %v3967 = vpack.c.bf16 %v3874, %v3871
      %v3968 = vpack.c.bf16 %v3878, %v3875
      %v3969 = vpack.c.bf16 %v3879, %v3876
      %v3970 = vpack.c.bf16 %v3880, %v3877
      %v3971 = vpack.c.bf16 %v3884, %v3881
      %v3972 = vpack.c.bf16 %v3885, %v3882
      %v3973 = vpack.c.bf16 %v3886, %v3883
      %v3974 = vpack.c.bf16 %v3890, %v3887
      %v3975 = vpack.c.bf16 %v3891, %v3888
      %v3976 = vpack.c.bf16 %v3892, %v3889
      %v3977 = vpack.c.bf16 %v3896, %v3893
      %v3978 = vpack.c.bf16 %v3897, %v3894
      %v3979 = vpack.c.bf16 %v3898, %v3895
      %v3980 = vpack.c.bf16 %v3902, %v3899
      %v3981 = vpack.c.bf16 %v3903, %v3900
      %v3982 = vpack.c.bf16 %v3904, %v3901
      %v3983 = vpack.c.bf16 %v3908, %v3905
      %v3984 = vpack.c.bf16 %v3909, %v3906
      %v3985 = vpack.c.bf16 %v3910, %v3907
      %v3986 = vpack.c.bf16 %v3914, %v3911
      %v3987 = vpack.c.bf16 %v3915, %v3912
      %v3988 = vpack.c.bf16 %v3916, %v3913
      %v3989 = vpack.c.bf16 %v3920, %v3917
      %v3990 = vpack.c.bf16 %v3921, %v3918
      %v3991 = vpack.c.bf16 %v3922, %v3919
      %v3992 = vpack.c.bf16 %v3926, %v3923
      %v3993 = vpack.c.bf16 %v3927, %v3924
      %v3994 = vpack.c.bf16 %v3928, %v3925
      %v3995 = vpack.c.bf16 %v3932, %v3929
      %v3996 = vpack.c.bf16 %v3933, %v3930
      %v3997 = vpack.c.bf16 %v3934, %v3931
      %v3998 = vpack.c.bf16 %v3938, %v3935
      %v3999 = vpack.c.bf16 %v3939, %v3936
      %v4000 = vpack.c.bf16 %v3940, %v3937
      %v4001 = vpack.c.bf16 %v3944, %v3941
      %v4002 = vpack.c.bf16 %v3945, %v3942
      %v4003 = vpack.c.bf16 %v3946, %v3943
      %v4004 = vpack.c.bf16 %v3950, %v3947
      %v4005 = vpack.c.bf16 %v3951, %v3948
      %v4006 = vpack.c.bf16 %v3952, %v3949
      %v4007 = vpack.c.bf16 %v3956, %v3953
      %v4008 = vpack.c.bf16 %v3957, %v3954
      %v4009 = vpack.c.bf16 %v3958, %v3955
      %v4010 = vpack.c.bf16 %v3962, %v3959
      %v4011 = vpack.c.bf16 %v3963, %v3960
      %v4012 = vpack.c.bf16 %v3964, %v3961
      %v4014 = vlaneseq
      %v4015 = vshrl.u32 %v4014, 7
      %v4016 = vsub.s32 0, %v4015
      %v4017 = vrot.slane %v2520, %v4016
      %v4055 = vunpack.c.l.b16 %v2484
      %v4056 = vunpack.c.l.b16 %v2485
      %v4057 = vunpack.c.l.b16 %v2486
      %v4058 = vunpack.c.l.b16 %v2487
      %v4059 = vunpack.c.l.b16 %v2488
      %v4060 = vunpack.c.l.b16 %v2489
      %v4061 = vunpack.c.l.b16 %v2490
      %v4062 = vunpack.c.l.b16 %v2491
      %v4063 = vunpack.c.l.b16 %v2492
      %v4064 = vunpack.c.l.b16 %v2493
      %v4065 = vunpack.c.l.b16 %v2494
      %v4066 = vunpack.c.l.b16 %v2495
      %v4067 = vunpack.c.l.b16 %v2496
      %v4068 = vunpack.c.l.b16 %v2497
      %v4069 = vunpack.c.l.b16 %v2498
      %v4070 = vunpack.c.l.b16 %v2499
      %v4071 = vunpack.c.l.b16 %v2500
      %v4072 = vunpack.c.l.b16 %v2501
      %v4073 = vunpack.c.l.b16 %v2502
      %v4074 = vunpack.c.l.b16 %v2503
      %v4075 = vunpack.c.l.b16 %v2504
      %v4076 = vunpack.c.l.b16 %v2505
      %v4077 = vunpack.c.l.b16 %v2506
      %v4078 = vunpack.c.l.b16 %v2507
      %v4079 = vunpack.c.l.b16 %v2508
      %v4080 = vunpack.c.l.b16 %v2509
      %v4081 = vunpack.c.l.b16 %v2510
      %v4082 = vunpack.c.l.b16 %v2511
      %v4083 = vunpack.c.l.b16 %v2512
      %v4084 = vunpack.c.l.b16 %v2513
      %v4085 = vunpack.c.l.b16 %v2514
      %v4086 = vunpack.c.l.b16 %v2515
      %v4087 = vunpack.c.l.b16 %v2516
      %v4088 = vunpack.c.l.b16 %v2517
      %v4089 = vunpack.c.l.b16 %v2518
      %v4090 = vunpack.c.l.b16 %v2519
      %v4091 = vpack.c.b16 %v4056, %v4055
      %v4092 = vpack.c.b16 %v4058, %v4057
      %v4093 = vpack.c.b16 %v4060, %v4059
      %v4094 = vpack.c.b16 %v4062, %v4061
      %v4095 = vpack.c.b16 %v4064, %v4063
      %v4096 = vpack.c.b16 %v4066, %v4065
      %v4097 = vpack.c.b16 %v4068, %v4067
      %v4098 = vpack.c.b16 %v4070, %v4069
      %v4099 = vpack.c.b16 %v4072, %v4071
      %v4100 = vpack.c.b16 %v4074, %v4073
      %v4101 = vpack.c.b16 %v4076, %v4075
      %v4102 = vpack.c.b16 %v4078, %v4077
      %v4103 = vpack.c.b16 %v4080, %v4079
      %v4104 = vpack.c.b16 %v4082, %v4081
      %v4105 = vpack.c.b16 %v4084, %v4083
      %v4106 = vpack.c.b16 %v4086, %v4085
      %v4107 = vpack.c.b16 %v4088, %v4087
      %v4108 = vpack.c.b16 %v4090, %v4089
      %v4128 = vsel %vm2395, %v3967, 0
      %v4131 = vsel %vm2395, %v3970, 0
      %v4134 = vsel %vm2395, %v3973, 0
      %v4137 = vsel %vm2395, %v3976, 0
      %v4140 = vsel %vm2395, %v3979, 0
      %v4143 = vsel %vm2395, %v3982, 0
      %v4146 = vsel %vm2395, %v3985, 0
      %v4149 = vsel %vm2395, %v3988, 0
      %v4152 = vsel %vm2395, %v3991, 0
      %v4155 = vsel %vm2395, %v3994, 0
      %v4158 = vsel %vm2395, %v3997, 0
      %v4161 = vsel %vm2395, %v4000, 0
      %v4164 = vsel %vm2395, %v4003, 0
      %v4167 = vsel %vm2395, %v4006, 0
      %v4170 = vsel %vm2395, %v4009, 0
      %v4173 = vsel %vm2395, %v4012, 0
      %4175 = vmatprep.subr.bf16.mxu0 0
      %4176 = vmatpush1.bf16.msra.mxu0 %v4091
      %4177 = vmatprep.subr.bf16.mxu0 0
      %4178 = vmatpush1.bf16.msra.mxu0 %v4092
      %4179 = vmatprep.subr.bf16.mxu0 0
      %4180 = vmatpush1.bf16.msra.mxu0 %v4093
      %4181 = vmatprep.subr.bf16.mxu0 0
      %4182 = vmatpush1.bf16.msra.mxu0 %v4094
      %4183 = vmatprep.subr.bf16.mxu0 0
      %4184 = vmatpush1.bf16.msra.mxu0 %v4095
      %4185 = vmatprep.subr.bf16.mxu0 0
      %4186 = vmatpush1.bf16.msra.mxu0 %v4096
      %4187 = vmatprep.subr.bf16.mxu0 0
      %4188 = vmatpush1.bf16.msra.mxu0 %v4097
      %4189 = vmatprep.subr.bf16.mxu0 0
      %4190 = vmatpush1.bf16.msra.mxu0 %v4098
      %4191 = vmatprep.subr.bf16.mxu0 0
      %4192 = vmatpush1.bf16.msra.mxu0 %v4099
      %4193 = vmatprep.subr.bf16.mxu0 0
      %4194 = vmatpush1.bf16.msra.mxu0 %v4100
      %4195 = vmatprep.subr.bf16.mxu0 0
      %4196 = vmatpush1.bf16.msra.mxu0 %v4101
      %4197 = vmatprep.subr.bf16.mxu0 0
      %4198 = vmatpush1.bf16.msra.mxu0 %v4102
      %4199 = vmatprep.subr.bf16.mxu0 0
      %4200 = vmatpush1.bf16.msra.mxu0 %v4103
      %4201 = vmatprep.subr.bf16.mxu0 0
      %4202 = vmatpush1.bf16.msra.mxu0 %v4104
      %4203 = vmatprep.subr.bf16.mxu0 0
      %4204 = vmatpush1.bf16.msra.mxu0 %v4105
      %4205 = vmatprep.subr.bf16.mxu0 0
      %4206 = vmatpush1.bf16.msra.mxu0 %v4106
      %4207 = vmatprep.mubr.bf16.mxu0 %v3966
      %4208 = vmatmul.mubr.bf16.gmra.mrb[0].mxu0 %v3965
      %v4209 = vpop.f32.mrb[0].mxu0
      %v4210 = vadd.f32 %v4017, %v4209
      %v4211 = vpop.f32.mrb[0].mxu0
      %v4212 = vpop.f32.mrb[0].mxu0
      %v4213 = vadd.f32 %v4017, %v4212
      %v4214 = vpop.f32.mrb[0].mxu0
      %4215 = vmatprep.mubr.bf16.mxu0 %v3969
      %4216 = vmatmul.mubr.bf16.gmra.mrb[0].mxu0 %v3968
      %v4217 = vpop.f32.mrb[0].mxu0
      %v4218 = vadd.f32 %v4017, %v4217
      %v4219 = vpop.f32.mrb[0].mxu0
      %v4220 = vpop.f32.mrb[0].mxu0
      %v4221 = vadd.f32 %v4017, %v4220
      %v4222 = vpop.f32.mrb[0].mxu0
      %4223 = vmatprep.mubr.bf16.mxu0 %v3972
      %4224 = vmatmul.mubr.bf16.gmra.mrb[0].mxu0 %v3971
      %v4225 = vpop.f32.mrb[0].mxu0
      %v4226 = vadd.f32 %v4017, %v4225
      %v4227 = vpop.f32.mrb[0].mxu0
      %v4228 = vpop.f32.mrb[0].mxu0
      %v4229 = vadd.f32 %v4017, %v4228
      %v4230 = vpop.f32.mrb[0].mxu0
      %4231 = vmatprep.mubr.bf16.mxu0 %v3975
      %4232 = vmatmul.mubr.bf16.gmra.mrb[0].mxu0 %v3974
      %v4233 = vpop.f32.mrb[0].mxu0
      %v4234 = vadd.f32 %v4017, %v4233
      %v4235 = vpop.f32.mrb[0].mxu0
      %v4236 = vpop.f32.mrb[0].mxu0
      %v4237 = vadd.f32 %v4017, %v4236
      %v4238 = vpop.f32.mrb[0].mxu0
      %4239 = vmatprep.mubr.bf16.mxu0 %v3978
      %4240 = vmatmul.mubr.bf16.gmra.mrb[0].mxu0 %v3977
      %v4241 = vpop.f32.mrb[0].mxu0
      %v4242 = vadd.f32 %v4017, %v4241
      %v4243 = vpop.f32.mrb[0].mxu0
      %v4244 = vpop.f32.mrb[0].mxu0
      %v4245 = vadd.f32 %v4017, %v4244
      %v4246 = vpop.f32.mrb[0].mxu0
      %4247 = vmatprep.mubr.bf16.mxu0 %v3981
      %4248 = vmatmul.mubr.bf16.gmra.mrb[0].mxu0 %v3980
      %v4249 = vpop.f32.mrb[0].mxu0
      %v4250 = vadd.f32 %v4017, %v4249
      %v4251 = vpop.f32.mrb[0].mxu0
      %v4252 = vpop.f32.mrb[0].mxu0
      %v4253 = vadd.f32 %v4017, %v4252
      %v4254 = vpop.f32.mrb[0].mxu0
      %4255 = vmatprep.mubr.bf16.mxu0 %v3984
      %4256 = vmatmul.mubr.bf16.gmra.mrb[0].mxu0 %v3983
      %v4257 = vpop.f32.mrb[0].mxu0
      %v4258 = vadd.f32 %v4017, %v4257
      %v4259 = vpop.f32.mrb[0].mxu0
      %v4260 = vpop.f32.mrb[0].mxu0
      %v4261 = vadd.f32 %v4017, %v4260
      %v4262 = vpop.f32.mrb[0].mxu0
      %4263 = vmatprep.mubr.bf16.mxu0 %v3987
      %4264 = vmatmul.mubr.bf16.gmra.mrb[0].mxu0 %v3986
      %v4265 = vpop.f32.mrb[0].mxu0
      %v4266 = vadd.f32 %v4017, %v4265
      %v4267 = vpop.f32.mrb[0].mxu0
      %v4268 = vpop.f32.mrb[0].mxu0
      %v4269 = vadd.f32 %v4017, %v4268
      %v4270 = vpop.f32.mrb[0].mxu0
      %4271 = vmatprep.mubr.bf16.mxu0 %v3990
      %4272 = vmatmul.mubr.bf16.gmra.mrb[0].mxu0 %v3989
      %v4273 = vpop.f32.mrb[0].mxu0
      %v4274 = vadd.f32 %v4017, %v4273
      %v4275 = vpop.f32.mrb[0].mxu0
      %v4276 = vpop.f32.mrb[0].mxu0
      %v4277 = vadd.f32 %v4017, %v4276
      %v4278 = vpop.f32.mrb[0].mxu0
      %4279 = vmatprep.mubr.bf16.mxu0 %v3993
      %4280 = vmatmul.mubr.bf16.gmra.mrb[0].mxu0 %v3992
      %v4281 = vpop.f32.mrb[0].mxu0
      %v4282 = vadd.f32 %v4017, %v4281
      %v4283 = vpop.f32.mrb[0].mxu0
      %v4284 = vpop.f32.mrb[0].mxu0
      %v4285 = vadd.f32 %v4017, %v4284
      %v4286 = vpop.f32.mrb[0].mxu0
      %4287 = vmatprep.mubr.bf16.mxu0 %v3996
      %4288 = vmatmul.mubr.bf16.gmra.mrb[0].mxu0 %v3995
      %v4289 = vpop.f32.mrb[0].mxu0
      %v4290 = vadd.f32 %v4017, %v4289
      %v4291 = vpop.f32.mrb[0].mxu0
      %v4292 = vpop.f32.mrb[0].mxu0
      %v4293 = vadd.f32 %v4017, %v4292
      %v4294 = vpop.f32.mrb[0].mxu0
      %4295 = vmatprep.mubr.bf16.mxu0 %v3999
      %4296 = vmatmul.mubr.bf16.gmra.mrb[0].mxu0 %v3998
      %v4297 = vpop.f32.mrb[0].mxu0
      %v4298 = vadd.f32 %v4017, %v4297
      %v4299 = vpop.f32.mrb[0].mxu0
      %v4300 = vpop.f32.mrb[0].mxu0
      %v4301 = vadd.f32 %v4017, %v4300
      %v4302 = vpop.f32.mrb[0].mxu0
      %4303 = vmatprep.mubr.bf16.mxu0 %v4002
      %4304 = vmatmul.mubr.bf16.gmra.mrb[0].mxu0 %v4001
      %v4305 = vpop.f32.mrb[0].mxu0
      %v4306 = vadd.f32 %v4017, %v4305
      %v4307 = vpop.f32.mrb[0].mxu0
      %v4308 = vpop.f32.mrb[0].mxu0
      %v4309 = vadd.f32 %v4017, %v4308
      %v4310 = vpop.f32.mrb[0].mxu0
      %4311 = vmatprep.mubr.bf16.mxu0 %v4005
      %4312 = vmatmul.mubr.bf16.gmra.mrb[0].mxu0 %v4004
      %v4313 = vpop.f32.mrb[0].mxu0
      %v4314 = vadd.f32 %v4017, %v4313
      %v4315 = vpop.f32.mrb[0].mxu0
      %v4316 = vpop.f32.mrb[0].mxu0
      %v4317 = vadd.f32 %v4017, %v4316
      %v4318 = vpop.f32.mrb[0].mxu0
      %4319 = vmatprep.mubr.bf16.mxu0 %v4008
      %4320 = vmatmul.mubr.bf16.gmra.mrb[0].mxu0 %v4007
      %v4321 = vpop.f32.mrb[0].mxu0
      %v4322 = vadd.f32 %v4017, %v4321
      %v4323 = vpop.f32.mrb[0].mxu0
      %v4324 = vpop.f32.mrb[0].mxu0
      %v4325 = vadd.f32 %v4017, %v4324
      %v4326 = vpop.f32.mrb[0].mxu0
      %4327 = vmatprep.mubr.bf16.mxu0 %v4011
      %4328 = vmatmul.mubr.bf16.gmra.mrb[0].mxu0 %v4010
      %v4329 = vpop.f32.mrb[0].mxu0
      %v4330 = vadd.f32 %v4017, %v4329
      %v4331 = vpop.f32.mrb[0].mxu0
      %v4332 = vpop.f32.mrb[0].mxu0
      %v4333 = vadd.f32 %v4017, %v4332
      %v4334 = vpop.f32.mrb[0].mxu0
      %4335 = vdwg.mxu0
      %4336 = vmatprep.subr.bf16.mxu0 0
      %4337 = vmatpush1.bf16.msra.mxu0 %v4107
      %4338 = vmatprep.subr.bf16.mxu0 0
      %4339 = vmatpush1.bf16.msra.mxu0 %v4108
      %4340 = vmatprep.subr.bf16.mxu0 0
      %4341 = vmatpush1.bf16.msra.mxu0 0
      %4342 = vmatprep.subr.bf16.mxu0 0
      %4343 = vmatpush1.bf16.msra.mxu0 0
      %4344 = vmatprep.subr.bf16.mxu0 0
      %4345 = vmatpush1.bf16.msra.mxu0 0
      %4346 = vmatprep.subr.bf16.mxu0 0
      %4347 = vmatpush1.bf16.msra.mxu0 0
      %4348 = vmatprep.subr.bf16.mxu0 0
      %4349 = vmatpush1.bf16.msra.mxu0 0
      %4350 = vmatprep.subr.bf16.mxu0 0
      %4351 = vmatpush1.bf16.msra.mxu0 0
      %4352 = vmatprep.subr.bf16.mxu0 0
      %4353 = vmatpush1.bf16.msra.mxu0 0
      %4354 = vmatprep.subr.bf16.mxu0 0
      %4355 = vmatpush1.bf16.msra.mxu0 0
      %4356 = vmatprep.subr.bf16.mxu0 0
      %4357 = vmatpush1.bf16.msra.mxu0 0
      %4358 = vmatprep.subr.bf16.mxu0 0
      %4359 = vmatpush1.bf16.msra.mxu0 0
      %4360 = vmatprep.subr.bf16.mxu0 0
      %4361 = vmatpush1.bf16.msra.mxu0 0
      %4362 = vmatprep.subr.bf16.mxu0 0
      %4363 = vmatpush1.bf16.msra.mxu0 0
      %4364 = vmatprep.subr.bf16.mxu0 0
      %4365 = vmatpush1.bf16.msra.mxu0 0
      %4366 = vmatprep.subr.bf16.mxu0 0
      %4367 = vmatpush1.bf16.msra.mxu0 0
      %4368 = vmatprep.mubr.bf16.mxu0 0
      %4369 = vmatmul.mubr.bf16.gmra.mrb[0].mxu0 %v4128
      %v4370 = vpop.f32.mrb[0].mxu0
      %v4371 = vadd.f32 %v4210, %v4370
      %v4372 = vpop.f32.mrb[0].mxu0
      %v4373 = vpop.f32.mrb[0].mxu0
      %v4374 = vadd.f32 %v4213, %v4373
      %v4375 = vpop.f32.mrb[0].mxu0
      %4376 = vmatprep.mubr.bf16.mxu0 0
      %4377 = vmatmul.mubr.bf16.gmra.mrb[0].mxu0 %v4131
      %v4378 = vpop.f32.mrb[0].mxu0
      %v4379 = vadd.f32 %v4218, %v4378
      %v4380 = vpop.f32.mrb[0].mxu0
      %v4381 = vpop.f32.mrb[0].mxu0
      %v4382 = vadd.f32 %v4221, %v4381
      %v4383 = vpop.f32.mrb[0].mxu0
      %4384 = vmatprep.mubr.bf16.mxu0 0
      %4385 = vmatmul.mubr.bf16.gmra.mrb[0].mxu0 %v4134
      %v4386 = vpop.f32.mrb[0].mxu0
      %v4387 = vadd.f32 %v4226, %v4386
      %v4388 = vpop.f32.mrb[0].mxu0
      %v4389 = vpop.f32.mrb[0].mxu0
      %v4390 = vadd.f32 %v4229, %v4389
      %v4391 = vpop.f32.mrb[0].mxu0
      %4392 = vmatprep.mubr.bf16.mxu0 0
      %4393 = vmatmul.mubr.bf16.gmra.mrb[0].mxu0 %v4137
      %v4394 = vpop.f32.mrb[0].mxu0
      %v4395 = vadd.f32 %v4234, %v4394
      %v4396 = vpop.f32.mrb[0].mxu0
      %v4397 = vpop.f32.mrb[0].mxu0
      %v4398 = vadd.f32 %v4237, %v4397
      %v4399 = vpop.f32.mrb[0].mxu0
      %4400 = vmatprep.mubr.bf16.mxu0 0
      %4401 = vmatmul.mubr.bf16.gmra.mrb[0].mxu0 %v4140
      %v4402 = vpop.f32.mrb[0].mxu0
      %v4403 = vadd.f32 %v4242, %v4402
      %v4404 = vpop.f32.mrb[0].mxu0
      %v4405 = vpop.f32.mrb[0].mxu0
      %v4406 = vadd.f32 %v4245, %v4405
      %v4407 = vpop.f32.mrb[0].mxu0
      %4408 = vmatprep.mubr.bf16.mxu0 0
      %4409 = vmatmul.mubr.bf16.gmra.mrb[0].mxu0 %v4143
      %v4410 = vpop.f32.mrb[0].mxu0
      %v4411 = vadd.f32 %v4250, %v4410
      %v4412 = vpop.f32.mrb[0].mxu0
      %v4413 = vpop.f32.mrb[0].mxu0
      %v4414 = vadd.f32 %v4253, %v4413
      %v4415 = vpop.f32.mrb[0].mxu0
      %4416 = vmatprep.mubr.bf16.mxu0 0
      %4417 = vmatmul.mubr.bf16.gmra.mrb[0].mxu0 %v4146
      %v4418 = vpop.f32.mrb[0].mxu0
      %v4419 = vadd.f32 %v4258, %v4418
      %v4420 = vpop.f32.mrb[0].mxu0
      %v4421 = vpop.f32.mrb[0].mxu0
      %v4422 = vadd.f32 %v4261, %v4421
      %v4423 = vpop.f32.mrb[0].mxu0
      %4424 = vmatprep.mubr.bf16.mxu0 0
      %4425 = vmatmul.mubr.bf16.gmra.mrb[0].mxu0 %v4149
      %v4426 = vpop.f32.mrb[0].mxu0
      %v4427 = vadd.f32 %v4266, %v4426
      %v4428 = vpop.f32.mrb[0].mxu0
      %v4429 = vpop.f32.mrb[0].mxu0
      %v4430 = vadd.f32 %v4269, %v4429
      %v4431 = vpop.f32.mrb[0].mxu0
      %4432 = vmatprep.mubr.bf16.mxu0 0
      %4433 = vmatmul.mubr.bf16.gmra.mrb[0].mxu0 %v4152
      %v4434 = vpop.f32.mrb[0].mxu0
      %v4435 = vadd.f32 %v4274, %v4434
      %v4436 = vpop.f32.mrb[0].mxu0
      %v4437 = vpop.f32.mrb[0].mxu0
      %v4438 = vadd.f32 %v4277, %v4437
      %v4439 = vpop.f32.mrb[0].mxu0
      %4440 = vmatprep.mubr.bf16.mxu0 0
      %4441 = vmatmul.mubr.bf16.gmra.mrb[0].mxu0 %v4155
      %v4442 = vpop.f32.mrb[0].mxu0
      %v4443 = vadd.f32 %v4282, %v4442
      %v4444 = vpop.f32.mrb[0].mxu0
      %v4445 = vpop.f32.mrb[0].mxu0
      %v4446 = vadd.f32 %v4285, %v4445
      %v4447 = vpop.f32.mrb[0].mxu0
      %4448 = vmatprep.mubr.bf16.mxu0 0
      %4449 = vmatmul.mubr.bf16.gmra.mrb[0].mxu0 %v4158
      %v4450 = vpop.f32.mrb[0].mxu0
      %v4451 = vadd.f32 %v4290, %v4450
      %v4452 = vpop.f32.mrb[0].mxu0
      %v4453 = vpop.f32.mrb[0].mxu0
      %v4454 = vadd.f32 %v4293, %v4453
      %v4455 = vpop.f32.mrb[0].mxu0
      %4456 = vmatprep.mubr.bf16.mxu0 0
      %4457 = vmatmul.mubr.bf16.gmra.mrb[0].mxu0 %v4161
      %v4458 = vpop.f32.mrb[0].mxu0
      %v4459 = vadd.f32 %v4298, %v4458
      %v4460 = vpop.f32.mrb[0].mxu0
      %v4461 = vpop.f32.mrb[0].mxu0
      %v4462 = vadd.f32 %v4301, %v4461
      %v4463 = vpop.f32.mrb[0].mxu0
      %4464 = vmatprep.mubr.bf16.mxu0 0
      %4465 = vmatmul.mubr.bf16.gmra.mrb[0].mxu0 %v4164
      %v4466 = vpop.f32.mrb[0].mxu0
      %v4467 = vadd.f32 %v4306, %v4466
      %v4468 = vpop.f32.mrb[0].mxu0
      %v4469 = vpop.f32.mrb[0].mxu0
      %v4470 = vadd.f32 %v4309, %v4469
      %v4471 = vpop.f32.mrb[0].mxu0
      %4472 = vmatprep.mubr.bf16.mxu0 0
      %4473 = vmatmul.mubr.bf16.gmra.mrb[0].mxu0 %v4167
      %v4474 = vpop.f32.mrb[0].mxu0
      %v4475 = vadd.f32 %v4314, %v4474
      %v4476 = vpop.f32.mrb[0].mxu0
      %v4477 = vpop.f32.mrb[0].mxu0
      %v4478 = vadd.f32 %v4317, %v4477
      %v4479 = vpop.f32.mrb[0].mxu0
      %4480 = vmatprep.mubr.bf16.mxu0 0
      %4481 = vmatmul.mubr.bf16.gmra.mrb[0].mxu0 %v4170
      %v4482 = vpop.f32.mrb[0].mxu0
      %v4483 = vadd.f32 %v4322, %v4482
      %v4484 = vpop.f32.mrb[0].mxu0
      %v4485 = vpop.f32.mrb[0].mxu0
      %v4486 = vadd.f32 %v4325, %v4485
      %v4487 = vpop.f32.mrb[0].mxu0
      %4488 = vmatprep.mubr.bf16.mxu0 0
      %4489 = vmatmul.mubr.bf16.gmra.mrb[0].mxu0 %v4173
      %v4490 = vpop.f32.mrb[0].mxu0
      %v4491 = vadd.f32 %v4330, %v4490
      %v4492 = vpop.f32.mrb[0].mxu0
      %v4493 = vpop.f32.mrb[0].mxu0
      %v4494 = vadd.f32 %v4333, %v4493
      %v4495 = vpop.f32.mrb[0].mxu0
      %4496 = vdwg.mxu0
      %vm4497 = vcmp.ge.f32.partialorder %v4371, 0.0
      %vm4498 = vcmp.ge.f32.partialorder %v4374, 0.0
      %vm4499 = vcmp.ge.f32.partialorder %v4379, 0.0
      %vm4500 = vcmp.ge.f32.partialorder %v4382, 0.0
      %vm4501 = vcmp.ge.f32.partialorder %v4387, 0.0
      %vm4502 = vcmp.ge.f32.partialorder %v4390, 0.0
      %vm4503 = vcmp.ge.f32.partialorder %v4395, 0.0
      %vm4504 = vcmp.ge.f32.partialorder %v4398, 0.0
      %vm4505 = vcmp.ge.f32.partialorder %v4403, 0.0
      %vm4506 = vcmp.ge.f32.partialorder %v4406, 0.0
      %vm4507 = vcmp.ge.f32.partialorder %v4411, 0.0
      %vm4508 = vcmp.ge.f32.partialorder %v4414, 0.0
      %vm4509 = vcmp.ge.f32.partialorder %v4419, 0.0
      %vm4510 = vcmp.ge.f32.partialorder %v4422, 0.0
      %vm4511 = vcmp.ge.f32.partialorder %v4427, 0.0
      %vm4512 = vcmp.ge.f32.partialorder %v4430, 0.0
      %vm4513 = vcmp.ge.f32.partialorder %v4435, 0.0
      %vm4514 = vcmp.ge.f32.partialorder %v4438, 0.0
      %vm4515 = vcmp.ge.f32.partialorder %v4443, 0.0
      %vm4516 = vcmp.ge.f32.partialorder %v4446, 0.0
      %vm4517 = vcmp.ge.f32.partialorder %v4451, 0.0
      %vm4518 = vcmp.ge.f32.partialorder %v4454, 0.0
      %vm4519 = vcmp.ge.f32.partialorder %v4459, 0.0
      %vm4520 = vcmp.ge.f32.partialorder %v4462, 0.0
      %vm4521 = vcmp.ge.f32.partialorder %v4467, 0.0
      %vm4522 = vcmp.ge.f32.partialorder %v4470, 0.0
      %vm4523 = vcmp.ge.f32.partialorder %v4475, 0.0
      %vm4524 = vcmp.ge.f32.partialorder %v4478, 0.0
      %vm4525 = vcmp.ge.f32.partialorder %v4483, 0.0
      %vm4526 = vcmp.ge.f32.partialorder %v4486, 0.0
      %vm4527 = vcmp.ge.f32.partialorder %v4491, 0.0
      %vm4528 = vcmp.ge.f32.partialorder %v4494, 0.0
      %v4529 = vmul.f32 %v4371, 0.2
      %v4530 = vmul.f32 %v4374, 0.2
      %v4531 = vmul.f32 %v4379, 0.2
      %v4532 = vmul.f32 %v4382, 0.2
      %v4533 = vmul.f32 %v4387, 0.2
      %v4534 = vmul.f32 %v4390, 0.2
      %v4535 = vmul.f32 %v4395, 0.2
      %v4536 = vmul.f32 %v4398, 0.2
      %v4537 = vmul.f32 %v4403, 0.2
      %v4538 = vmul.f32 %v4406, 0.2
      %v4539 = vmul.f32 %v4411, 0.2
      %v4540 = vmul.f32 %v4414, 0.2
      %v4541 = vmul.f32 %v4419, 0.2
      %v4542 = vmul.f32 %v4422, 0.2
      %v4543 = vmul.f32 %v4427, 0.2
      %v4544 = vmul.f32 %v4430, 0.2
      %v4545 = vmul.f32 %v4435, 0.2
      %v4546 = vmul.f32 %v4438, 0.2
      %v4547 = vmul.f32 %v4443, 0.2
      %v4548 = vmul.f32 %v4446, 0.2
      %v4549 = vmul.f32 %v4451, 0.2
      %v4550 = vmul.f32 %v4454, 0.2
      %v4551 = vmul.f32 %v4459, 0.2
      %v4552 = vmul.f32 %v4462, 0.2
      %v4553 = vmul.f32 %v4467, 0.2
      %v4554 = vmul.f32 %v4470, 0.2
      %v4555 = vmul.f32 %v4475, 0.2
      %v4556 = vmul.f32 %v4478, 0.2
      %v4557 = vmul.f32 %v4483, 0.2
      %v4558 = vmul.f32 %v4486, 0.2
      %v4559 = vmul.f32 %v4491, 0.2
      %v4560 = vmul.f32 %v4494, 0.2
      %v4561 = vsel %vm4497, %v4371, %v4529
      %v4562 = vsel %vm4498, %v4374, %v4530
      %v4563 = vsel %vm4499, %v4379, %v4531
      %v4564 = vsel %vm4500, %v4382, %v4532
      %v4565 = vsel %vm4501, %v4387, %v4533
      %v4566 = vsel %vm4502, %v4390, %v4534
      %v4567 = vsel %vm4503, %v4395, %v4535
      %v4568 = vsel %vm4504, %v4398, %v4536
      %v4569 = vsel %vm4505, %v4403, %v4537
      %v4570 = vsel %vm4506, %v4406, %v4538
      %v4571 = vsel %vm4507, %v4411, %v4539
      %v4572 = vsel %vm4508, %v4414, %v4540
      %v4573 = vsel %vm4509, %v4419, %v4541
      %v4574 = vsel %vm4510, %v4422, %v4542
      %v4575 = vsel %vm4511, %v4427, %v4543
      %v4576 = vsel %vm4512, %v4430, %v4544
      %v4577 = vsel %vm4513, %v4435, %v4545
      %v4578 = vsel %vm4514, %v4438, %v4546
      %v4579 = vsel %vm4515, %v4443, %v4547
      %v4580 = vsel %vm4516, %v4446, %v4548
      %v4581 = vsel %vm4517, %v4451, %v4549
      %v4582 = vsel %vm4518, %v4454, %v4550
      %v4583 = vsel %vm4519, %v4459, %v4551
      %v4584 = vsel %vm4520, %v4462, %v4552
      %v4585 = vsel %vm4521, %v4467, %v4553
      %v4586 = vsel %vm4522, %v4470, %v4554
      %v4587 = vsel %vm4523, %v4475, %v4555
      %v4588 = vsel %vm4524, %v4478, %v4556
      %v4589 = vsel %vm4525, %v4483, %v4557
      %v4590 = vsel %vm4526, %v4486, %v4558
      %v4591 = vsel %vm4527, %v4491, %v4559
      %v4592 = vsel %vm4528, %v4494, %v4560
      %4593 = vst.msk [vmem:[#allocation3] sm:$0xff] %vm2395, 0.0
      %4594 = vst.msk [vmem:[#allocation3 + $0x8] sm:$0xff] %vm2395, 0.0
      %4595 = vst.msk [vmem:[#allocation3 + $0x10] sm:$0x3] %vm2398, 0.0
      %4596 = vst.msk [vmem:[#allocation3 + $0x18] sm:$0xff] %vm2395, 0.0
      %4597 = vst.msk [vmem:[#allocation3 + $0x20] sm:$0xff] %vm2395, 0.0
      %4598 = vst.msk [vmem:[#allocation3 + $0x28] sm:$0x3] %vm2398, 0.0
      %4599 = vst.msk [vmem:[#allocation3 + $0x30] sm:$0xff] %vm2395, 0.0
      %4600 = vst.msk [vmem:[#allocation3 + $0x38] sm:$0xff] %vm2395, 0.0
      %4601 = vst.msk [vmem:[#allocation3 + $0x40] sm:$0x3] %vm2398, 0.0
      %4602 = vst.msk [vmem:[#allocation3 + $0x48] sm:$0xff] %vm2395, 0.0
      %4603 = vst.msk [vmem:[#allocation3 + $0x50] sm:$0xff] %vm2395, 0.0
      %4604 = vst.msk [vmem:[#allocation3 + $0x58] sm:$0x3] %vm2398, 0.0
      %4605 = vst.msk [vmem:[#allocation3 + $0x60] sm:$0xff] %vm2395, 0.0
      %4606 = vst.msk [vmem:[#allocation3 + $0x68] sm:$0xff] %vm2395, 0.0
      %4607 = vst.msk [vmem:[#allocation3 + $0x70] sm:$0x3] %vm2398, 0.0
      %4608 = vst.msk [vmem:[#allocation3 + $0x78] sm:$0xff] %vm2395, 0.0
      %4609 = vst.msk [vmem:[#allocation3 + $0x80] sm:$0xff] %vm2395, 0.0
      %4610 = vst.msk [vmem:[#allocation3 + $0x88] sm:$0x3] %vm2398, 0.0
      %4611 = vst.msk [vmem:[#allocation3 + $0x90] sm:$0xff] %vm2395, 0.0
      %4612 = vst.msk [vmem:[#allocation3 + $0x98] sm:$0xff] %vm2395, 0.0
      %4613 = vst.msk [vmem:[#allocation3 + $0xa0] sm:$0x3] %vm2398, 0.0
      %4614 = vst.msk [vmem:[#allocation3 + $0xa8] sm:$0xff] %vm2395, 0.0
      %4615 = vst.msk [vmem:[#allocation3 + $0xb0] sm:$0xff] %vm2395, 0.0
      %4616 = vst.msk [vmem:[#allocation3 + $0xb8] sm:$0x3] %vm2398, 0.0
      %4617 = vst.msk [vmem:[#allocation3 + $0xc0] sm:$0xff] %vm2395, 0.0
      %4618 = vst.msk [vmem:[#allocation3 + $0xc8] sm:$0xff] %vm2395, 0.0
      %4619 = vst.msk [vmem:[#allocation3 + $0xd0] sm:$0x3] %vm2398, 0.0
      %4620 = vst.msk [vmem:[#allocation3 + $0xd8] sm:$0xff] %vm2395, 0.0
      %4621 = vst.msk [vmem:[#allocation3 + $0xe0] sm:$0xff] %vm2395, 0.0
      %4622 = vst.msk [vmem:[#allocation3 + $0xe8] sm:$0x3] %vm2398, 0.0
      %4623 = vst.msk [vmem:[#allocation3 + $0xf0] sm:$0xff] %vm2395, 0.0
      %4624 = vst.msk [vmem:[#allocation3 + $0xf8] sm:$0xff] %vm2395, 0.0
      %4625 = vst.msk [vmem:[#allocation3 + $0x100] sm:$0x3] %vm2398, 0.0
      %4626 = vst.msk [vmem:[#allocation3 + $0x108] sm:$0xff] %vm2395, 0.0
      %4627 = vst.msk [vmem:[#allocation3 + $0x110] sm:$0xff] %vm2395, 0.0
      %4628 = vst.msk [vmem:[#allocation3 + $0x118] sm:$0x3] %vm2398, 0.0
      %4629 = vst.msk [vmem:[#allocation3 + $0x120] sm:$0xff] %vm2395, 0.0
      %4630 = vst.msk [vmem:[#allocation3 + $0x128] sm:$0xff] %vm2395, 0.0
      %4631 = vst.msk [vmem:[#allocation3 + $0x130] sm:$0x3] %vm2398, 0.0
      %4632 = vst.msk [vmem:[#allocation3 + $0x138] sm:$0xff] %vm2395, 0.0
      %4633 = vst.msk [vmem:[#allocation3 + $0x140] sm:$0xff] %vm2395, 0.0
      %4634 = vst.msk [vmem:[#allocation3 + $0x148] sm:$0x3] %vm2398, 0.0
      %4635 = vst.msk [vmem:[#allocation3 + $0x150] sm:$0xff] %vm2395, 0.0
      %4636 = vst.msk [vmem:[#allocation3 + $0x158] sm:$0xff] %vm2395, 0.0
      %4637 = vst.msk [vmem:[#allocation3 + $0x160] sm:$0x3] %vm2398, 0.0
      %4638 = vst.msk [vmem:[#allocation3 + $0x168] sm:$0xff] %vm2395, 0.0
      %4639 = vst.msk [vmem:[#allocation3 + $0x170] sm:$0xff] %vm2395, 0.0
      %4640 = vst.msk [vmem:[#allocation3 + $0x178] sm:$0x3] %vm2398, 0.0
      %4641 = vst.msk [vmem:[#allocation3 + $0x180] sm:$0xff] %vm2395, 0.0
      %4642 = vst.msk [vmem:[#allocation3 + $0x188] sm:$0xff] %vm2395, 0.0
      %4643 = vst.msk [vmem:[#allocation3 + $0x190] sm:$0x3] %vm2398, 0.0
      %4644 = vst.msk [vmem:[#allocation3 + $0x198] sm:$0xff] %vm2395, 0.0
      %4645 = vst.msk [vmem:[#allocation3 + $0x1a0] sm:$0xff] %vm2395, 0.0
      %4646 = vst.msk [vmem:[#allocation3 + $0x1a8] sm:$0x3] %vm2398, 0.0
      %4647 = vst.msk [vmem:[%s2451 + $0x1] sm:$0xff] %vm2395, %v4561
      %4648 = vst.msk [vmem:[%s2451 + $0x9] sm:$0xff] %vm2395, %v4562
      %4649 = vst.msk [vmem:[%s2451 + $0x19] sm:$0xff] %vm2395, %v4563
      %4650 = vst.msk [vmem:[%s2451 + $0x21] sm:$0xff] %vm2395, %v4564
      %4651 = vst.msk [vmem:[%s2451 + $0x31] sm:$0xff] %vm2395, %v4565
      %4652 = vst.msk [vmem:[%s2451 + $0x39] sm:$0xff] %vm2395, %v4566
      %4653 = vst.msk [vmem:[%s2451 + $0x49] sm:$0xff] %vm2395, %v4567
      %4654 = vst.msk [vmem:[%s2451 + $0x51] sm:$0xff] %vm2395, %v4568
      %4655 = vst.msk [vmem:[%s2451 + $0x61] sm:$0xff] %vm2395, %v4569
      %4656 = vst.msk [vmem:[%s2451 + $0x69] sm:$0xff] %vm2395, %v4570
      %4657 = vst.msk [vmem:[%s2451 + $0x79] sm:$0xff] %vm2395, %v4571
      %4658 = vst.msk [vmem:[%s2451 + $0x81] sm:$0xff] %vm2395, %v4572
      %4659 = vst.msk [vmem:[%s2451 + $0x91] sm:$0xff] %vm2395, %v4573
      %4660 = vst.msk [vmem:[%s2451 + $0x99] sm:$0xff] %vm2395, %v4574
      %4661 = vst.msk [vmem:[%s2451 + $0xa9] sm:$0xff] %vm2395, %v4575
      %4662 = vst.msk [vmem:[%s2451 + $0xb1] sm:$0xff] %vm2395, %v4576
      %4663 = vst.msk [vmem:[%s2451 + $0xc1] sm:$0xff] %vm2395, %v4577
      %4664 = vst.msk [vmem:[%s2451 + $0xc9] sm:$0xff] %vm2395, %v4578
      %4665 = vst.msk [vmem:[%s2451 + $0xd9] sm:$0xff] %vm2395, %v4579
      %4666 = vst.msk [vmem:[%s2451 + $0xe1] sm:$0xff] %vm2395, %v4580
      %4667 = vst.msk [vmem:[%s2451 + $0xf1] sm:$0xff] %vm2395, %v4581
      %4668 = vst.msk [vmem:[%s2451 + $0xf9] sm:$0xff] %vm2395, %v4582
      %4669 = vst.msk [vmem:[%s2451 + $0x109] sm:$0xff] %vm2395, %v4583
      %4670 = vst.msk [vmem:[%s2451 + $0x111] sm:$0xff] %vm2395, %v4584
      %4671 = vst.msk [vmem:[%s2451 + $0x121] sm:$0xff] %vm2395, %v4585
      %4672 = vst.msk [vmem:[%s2451 + $0x129] sm:$0xff] %vm2395, %v4586
      %4673 = vst.msk [vmem:[%s2451 + $0x139] sm:$0xff] %vm2395, %v4587
      %4674 = vst.msk [vmem:[%s2451 + $0x141] sm:$0xff] %vm2395, %v4588
      %4675 = vst.msk [vmem:[%s2451 + $0x151] sm:$0xff] %vm2395, %v4589
      %4676 = vst.msk [vmem:[%s2451 + $0x159] sm:$0xff] %vm2395, %v4590
      %4677 = vst.msk [vmem:[%s2451 + $0x169] sm:$0xff] %vm2395, %v4591
      %4678 = vst.msk [vmem:[%s2451 + $0x171] sm:$0xff] %vm2395, %v4592
      %s4679 = scalar_lea.vmem %s3, 144
      %v4680 = vld [vmem:[%s4679] sm:$0xf]
      %v4681 = vld [vmem:[%s4679 + $0x4] sm:$0xf]
      %v4682 = vld [vmem:[%s4679 + $0x8] sm:$0xf]
      %v4683 = vld [vmem:[%s4679 + $0xc] sm:$0xf]
      %v4684 = vld [vmem:[%s4679 + $0x10] sm:$0xf]
      %v4685 = vld [vmem:[%s4679 + $0x14] sm:$0xf]
      %v4686 = vld [vmem:[%s4679 + $0x18] sm:$0xf]
      %v4687 = vld [vmem:[%s4679 + $0x1c] sm:$0xf]
      %v4688 = vld [vmem:[%s4679 + $0x20] sm:$0xf]
      %v4689 = vld [vmem:[%s4679 + $0x24] sm:$0xf]
      %v4690 = vld [vmem:[%s4679 + $0x28] sm:$0xf]
      %v4691 = vld [vmem:[%s4679 + $0x2c] sm:$0xf]
      %v4692 = vld [vmem:[%s4679 + $0x30] sm:$0xf]
      %v4693 = vld [vmem:[%s4679 + $0x34] sm:$0xf]
      %v4694 = vld [vmem:[%s4679 + $0x38] sm:$0xf]
      %v4695 = vld [vmem:[%s4679 + $0x3c] sm:$0xf]
      %v4696 = vld [vmem:[%s4679 + $0x40] sm:$0xf]
      %v4697 = vld [vmem:[%s4679 + $0x44] sm:$0xf]
      %v4698 = vld [vmem:[%s4679 + $0x48] sm:$0xf]
      %v4699 = vld [vmem:[%s4679 + $0x4c] sm:$0xf]
      %v4700 = vld [vmem:[%s4679 + $0x50] sm:$0xf]
      %v4701 = vld [vmem:[%s4679 + $0x54] sm:$0xf]
      %v4702 = vld [vmem:[%s4679 + $0x58] sm:$0xf]
      %v4703 = vld [vmem:[%s4679 + $0x5c] sm:$0xf]
      %v4704 = vld [vmem:[%s4679 + $0x60] sm:$0xf]
      %v4705 = vld [vmem:[%s4679 + $0x64] sm:$0xf]
      %v4706 = vld [vmem:[%s4679 + $0x68] sm:$0xf]
      %v4707 = vld [vmem:[%s4679 + $0x6c] sm:$0xf]
      %v4708 = vld [vmem:[%s4679 + $0x70] sm:$0xf]
      %v4709 = vld [vmem:[%s4679 + $0x74] sm:$0xf]
      %v4710 = vld [vmem:[%s4679 + $0x78] sm:$0xf]
      %v4711 = vld [vmem:[%s4679 + $0x7c] sm:$0xf]
      %v4712 = vld [vmem:[%s4679 + $0x80] sm:$0xf]
      %v4713 = vld [vmem:[%s4679 + $0x84] sm:$0xf]
      %v4714 = vld [vmem:[%s4679 + $0x88] sm:$0xf]
      %v4715 = vld [vmem:[%s4679 + $0x8c] sm:$0xf]
      %s4716 = scalar_lea.vmem %s4, 1
      %v4717 = vld [vmem:[%s4716] sm:$0x1]
      %v4718 = vld [vmem:[#allocation3] sm:$0xff]
      %v4719 = vld [vmem:[#allocation3 + $0x8] sm:$0xff]
      %v4720 = vld [vmem:[#allocation3 + $0x18] sm:$0xff]
      %v4721 = vld [vmem:[#allocation3 + $0x20] sm:$0xff]
      %v4722 = vld [vmem:[#allocation3 + $0x30] sm:$0xff]
      %v4723 = vld [vmem:[#allocation3 + $0x38] sm:$0xff]
      %v4724 = vld [vmem:[#allocation3 + $0x48] sm:$0xff]
      %v4725 = vld [vmem:[#allocation3 + $0x50] sm:$0xff]
      %v4726 = vld [vmem:[#allocation3 + $0x60] sm:$0xff]
      %v4727 = vld [vmem:[#allocation3 + $0x68] sm:$0xff]
      %v4728 = vld [vmem:[#allocation3 + $0x78] sm:$0xff]
      %v4729 = vld [vmem:[#allocation3 + $0x80] sm:$0xff]
      %v4730 = vld [vmem:[#allocation3 + $0x90] sm:$0xff]
      %v4731 = vld [vmem:[#allocation3 + $0x98] sm:$0xff]
      %v4732 = vld [vmem:[#allocation3 + $0xa8] sm:$0xff]
      %v4733 = vld [vmem:[#allocation3 + $0xb0] sm:$0xff]
      %v4734 = vld [vmem:[#allocation3 + $0xc0] sm:$0xff]
      %v4735 = vld [vmem:[#allocation3 + $0xc8] sm:$0xff]
      %v4736 = vld [vmem:[#allocation3 + $0xd8] sm:$0xff]
      %v4737 = vld [vmem:[#allocation3 + $0xe0] sm:$0xff]
      %v4738 = vld [vmem:[#allocation3 + $0xf0] sm:$0xff]
      %v4739 = vld [vmem:[#allocation3 + $0xf8] sm:$0xff]
      %v4740 = vld [vmem:[#allocation3 + $0x108] sm:$0xff]
      %v4741 = vld [vmem:[#allocation3 + $0x110] sm:$0xff]
      %v4742 = vld [vmem:[#allocation3 + $0x120] sm:$0xff]
      %v4743 = vld [vmem:[#allocation3 + $0x128] sm:$0xff]
      %v4744 = vld [vmem:[#allocation3 + $0x138] sm:$0xff]
      %v4745 = vld [vmem:[#allocation3 + $0x140] sm:$0xff]
      %v4746 = vld [vmem:[#allocation3 + $0x150] sm:$0xff]
      %v4747 = vld [vmem:[#allocation3 + $0x158] sm:$0xff]
      %v4748 = vld [vmem:[#allocation3 + $0x168] sm:$0xff]
      %v4749 = vld [vmem:[#allocation3 + $0x170] sm:$0xff]
      %4750 = vst.msk [vmem:[#allocation5] sm:$0xff] %vm2395, %v4718
      %4751 = vst.msk [vmem:[#allocation5 + $0x18] sm:$0xff] %vm2395, %v4719
      %4752 = vst.msk [vmem:[#allocation5 + $0x30] sm:$0xff] %vm2395, %v4720
      %4753 = vst.msk [vmem:[#allocation5 + $0x48] sm:$0xff] %vm2395, %v4721
      %4754 = vst.msk [vmem:[#allocation5 + $0x60] sm:$0xff] %vm2395, %v4722
      %4755 = vst.msk [vmem:[#allocation5 + $0x78] sm:$0xff] %vm2395, %v4723
      %4756 = vst.msk [vmem:[#allocation5 + $0x90] sm:$0xff] %vm2395, %v4724
      %4757 = vst.msk [vmem:[#allocation5 + $0xa8] sm:$0xff] %vm2395, %v4725
      %4758 = vst.msk [vmem:[#allocation5 + $0xc0] sm:$0xff] %vm2395, %v4726
      %4759 = vst.msk [vmem:[#allocation5 + $0xd8] sm:$0xff] %vm2395, %v4727
      %4760 = vst.msk [vmem:[#allocation5 + $0xf0] sm:$0xff] %vm2395, %v4728
      %4761 = vst.msk [vmem:[#allocation5 + $0x108] sm:$0xff] %vm2395, %v4729
      %4762 = vst.msk [vmem:[#allocation5 + $0x120] sm:$0xff] %vm2395, %v4730
      %4763 = vst.msk [vmem:[#allocation5 + $0x138] sm:$0xff] %vm2395, %v4731
      %4764 = vst.msk [vmem:[#allocation5 + $0x150] sm:$0xff] %vm2395, %v4732
      %4765 = vst.msk [vmem:[#allocation5 + $0x168] sm:$0xff] %vm2395, %v4733
      %4766 = vst.msk [vmem:[#allocation5 + $0x180] sm:$0xff] %vm2395, %v4734
      %4767 = vst.msk [vmem:[#allocation5 + $0x198] sm:$0xff] %vm2395, %v4735
      %4768 = vst.msk [vmem:[#allocation5 + $0x1b0] sm:$0xff] %vm2395, %v4736
      %4769 = vst.msk [vmem:[#allocation5 + $0x1c8] sm:$0xff] %vm2395, %v4737
      %4770 = vst.msk [vmem:[#allocation5 + $0x1e0] sm:$0xff] %vm2395, %v4738
      %4771 = vst.msk [vmem:[#allocation5 + $0x1f8] sm:$0xff] %vm2395, %v4739
      %4772 = vst.msk [vmem:[#allocation5 + $0x210] sm:$0xff] %vm2395, %v4740
      %4773 = vst.msk [vmem:[#allocation5 + $0x228] sm:$0xff] %vm2395, %v4741
      %4774 = vst.msk [vmem:[#allocation5 + $0x240] sm:$0xff] %vm2395, %v4742
      %4775 = vst.msk [vmem:[#allocation5 + $0x258] sm:$0xff] %vm2395, %v4743
      %4776 = vst.msk [vmem:[#allocation5 + $0x270] sm:$0xff] %vm2395, %v4744
      %4777 = vst.msk [vmem:[#allocation5 + $0x288] sm:$0xff] %vm2395, %v4745
      %4778 = vst.msk [vmem:[#allocation5 + $0x2a0] sm:$0xff] %vm2395, %v4746
      %4779 = vst.msk [vmem:[#allocation5 + $0x2b8] sm:$0xff] %vm2395, %v4747
      %4780 = vst.msk [vmem:[#allocation5 + $0x2d0] sm:$0xff] %vm2395, %v4748
      %4781 = vst.msk [vmem:[#allocation5 + $0x2e8] sm:$0xff] %vm2395, %v4749
      %v4782 = vld [vmem:[#allocation3 + $0x1] sm:$0xff]
      %v4783 = vld [vmem:[#allocation3 + $0x9] sm:$0xff]
      %v4784 = vld [vmem:[#allocation3 + $0x19] sm:$0xff]
      %v4785 = vld [vmem:[#allocation3 + $0x21] sm:$0xff]
      %v4786 = vld [vmem:[#allocation3 + $0x31] sm:$0xff]
      %v4787 = vld [vmem:[#allocation3 + $0x39] sm:$0xff]
      %v4788 = vld [vmem:[#allocation3 + $0x49] sm:$0xff]
      %v4789 = vld [vmem:[#allocation3 + $0x51] sm:$0xff]
      %v4790 = vld [vmem:[#allocation3 + $0x61] sm:$0xff]
      %v4791 = vld [vmem:[#allocation3 + $0x69] sm:$0xff]
      %v4792 = vld [vmem:[#allocation3 + $0x79] sm:$0xff]
      %v4793 = vld [vmem:[#allocation3 + $0x81] sm:$0xff]
      %v4794 = vld [vmem:[#allocation3 + $0x91] sm:$0xff]
      %v4795 = vld [vmem:[#allocation3 + $0x99] sm:$0xff]
      %v4796 = vld [vmem:[#allocation3 + $0xa9] sm:$0xff]
      %v4797 = vld [vmem:[#allocation3 + $0xb1] sm:$0xff]
      %v4798 = vld [vmem:[#allocation3 + $0xc1] sm:$0xff]
      %v4799 = vld [vmem:[#allocation3 + $0xc9] sm:$0xff]
      %v4800 = vld [vmem:[#allocation3 + $0xd9] sm:$0xff]
      %v4801 = vld [vmem:[#allocation3 + $0xe1] sm:$0xff]
      %v4802 = vld [vmem:[#allocation3 + $0xf1] sm:$0xff]
      %v4803 = vld [vmem:[#allocation3 + $0xf9] sm:$0xff]
      %v4804 = vld [vmem:[#allocation3 + $0x109] sm:$0xff]
      %v4805 = vld [vmem:[#allocation3 + $0x111] sm:$0xff]
      %v4806 = vld [vmem:[#allocation3 + $0x121] sm:$0xff]
      %v4807 = vld [vmem:[#allocation3 + $0x129] sm:$0xff]
      %v4808 = vld [vmem:[#allocation3 + $0x139] sm:$0xff]
      %v4809 = vld [vmem:[#allocation3 + $0x141] sm:$0xff]
      %v4810 = vld [vmem:[#allocation3 + $0x151] sm:$0xff]
      %v4811 = vld [vmem:[#allocation3 + $0x159] sm:$0xff]
      %v4812 = vld [vmem:[#allocation3 + $0x169] sm:$0xff]
      %v4813 = vld [vmem:[#allocation3 + $0x171] sm:$0xff]
      %4846 = vrot.lane.b32.xlu0 %v4782, 32
      %v4847 = vpop.permute.xlu0 %4846
      %4848 = vrot.lane.b32.xlu0 %v4783, 32
      %v4849 = vpop.permute.xlu0 %4848
      %4850 = vrot.lane.b32.xlu0 %v4784, 32
      %v4851 = vpop.permute.xlu0 %4850
      %4852 = vrot.lane.b32.xlu0 %v4785, 32
      %v4853 = vpop.permute.xlu0 %4852
      %4854 = vrot.lane.b32.xlu0 %v4786, 32
      %v4855 = vpop.permute.xlu0 %4854
      %4856 = vrot.lane.b32.xlu0 %v4787, 32
      %v4857 = vpop.permute.xlu0 %4856
      %4858 = vrot.lane.b32.xlu0 %v4788, 32
      %v4859 = vpop.permute.xlu0 %4858
      %4860 = vrot.lane.b32.xlu0 %v4789, 32
      %v4861 = vpop.permute.xlu0 %4860
      %4862 = vrot.lane.b32.xlu0 %v4790, 32
      %v4863 = vpop.permute.xlu0 %4862
      %4864 = vrot.lane.b32.xlu0 %v4791, 32
      %v4865 = vpop.permute.xlu0 %4864
      %4866 = vrot.lane.b32.xlu0 %v4792, 32
      %v4867 = vpop.permute.xlu0 %4866
      %4868 = vrot.lane.b32.xlu0 %v4793, 32
      %v4869 = vpop.permute.xlu0 %4868
      %4870 = vrot.lane.b32.xlu0 %v4794, 32
      %v4871 = vpop.permute.xlu0 %4870
      %4872 = vrot.lane.b32.xlu0 %v4795, 32
      %v4873 = vpop.permute.xlu0 %4872
      %4874 = vrot.lane.b32.xlu0 %v4796, 32
      %v4875 = vpop.permute.xlu0 %4874
      %4876 = vrot.lane.b32.xlu0 %v4797, 32
      %v4877 = vpop.permute.xlu0 %4876
      %4878 = vrot.lane.b32.xlu0 %v4798, 32
      %v4879 = vpop.permute.xlu0 %4878
      %4880 = vrot.lane.b32.xlu0 %v4799, 32
      %v4881 = vpop.permute.xlu0 %4880
      %4882 = vrot.lane.b32.xlu0 %v4800, 32
      %v4883 = vpop.permute.xlu0 %4882
      %4884 = vrot.lane.b32.xlu0 %v4801, 32
      %v4885 = vpop.permute.xlu0 %4884
      %4886 = vrot.lane.b32.xlu0 %v4802, 32
      %v4887 = vpop.permute.xlu0 %4886
      %4888 = vrot.lane.b32.xlu0 %v4803, 32
      %v4889 = vpop.permute.xlu0 %4888
      %4890 = vrot.lane.b32.xlu0 %v4804, 32
      %v4891 = vpop.permute.xlu0 %4890
      %4892 = vrot.lane.b32.xlu0 %v4805, 32
      %v4893 = vpop.permute.xlu0 %4892
      %4894 = vrot.lane.b32.xlu0 %v4806, 32
      %v4895 = vpop.permute.xlu0 %4894
      %4896 = vrot.lane.b32.xlu0 %v4807, 32
      %v4897 = vpop.permute.xlu0 %4896
      %4898 = vrot.lane.b32.xlu0 %v4808, 32
      %v4899 = vpop.permute.xlu0 %4898
      %4900 = vrot.lane.b32.xlu0 %v4809, 32
      %v4901 = vpop.permute.xlu0 %4900
      %4902 = vrot.lane.b32.xlu0 %v4810, 32
      %v4903 = vpop.permute.xlu0 %4902
      %4904 = vrot.lane.b32.xlu0 %v4811, 32
      %v4905 = vpop.permute.xlu0 %4904
      %4906 = vrot.lane.b32.xlu0 %v4812, 32
      %v4907 = vpop.permute.xlu0 %4906
      %4908 = vrot.lane.b32.xlu0 %v4813, 32
      %v4909 = vpop.permute.xlu0 %4908
      %4942 = vst.msk [vmem:[#allocation5] sm:$0xff] %vm2745, %v4847
      %4943 = vst.msk [vmem:[#allocation5 + $0x18] sm:$0xff] %vm2745, %v4849
      %4944 = vst.msk [vmem:[#allocation5 + $0x30] sm:$0xff] %vm2745, %v4851
      %4945 = vst.msk [vmem:[#allocation5 + $0x48] sm:$0xff] %vm2745, %v4853
      %4946 = vst.msk [vmem:[#allocation5 + $0x60] sm:$0xff] %vm2745, %v4855
      %4947 = vst.msk [vmem:[#allocation5 + $0x78] sm:$0xff] %vm2745, %v4857
      %4948 = vst.msk [vmem:[#allocation5 + $0x90] sm:$0xff] %vm2745, %v4859
      %4949 = vst.msk [vmem:[#allocation5 + $0xa8] sm:$0xff] %vm2745, %v4861
      %4950 = vst.msk [vmem:[#allocation5 + $0xc0] sm:$0xff] %vm2745, %v4863
      %4951 = vst.msk [vmem:[#allocation5 + $0xd8] sm:$0xff] %vm2745, %v4865
      %4952 = vst.msk [vmem:[#allocation5 + $0xf0] sm:$0xff] %vm2745, %v4867
      %4953 = vst.msk [vmem:[#allocation5 + $0x108] sm:$0xff] %vm2745, %v4869
      %4954 = vst.msk [vmem:[#allocation5 + $0x120] sm:$0xff] %vm2745, %v4871
      %4955 = vst.msk [vmem:[#allocation5 + $0x138] sm:$0xff] %vm2745, %v4873
      %4956 = vst.msk [vmem:[#allocation5 + $0x150] sm:$0xff] %vm2745, %v4875
      %4957 = vst.msk [vmem:[#allocation5 + $0x168] sm:$0xff] %vm2745, %v4877
      %4958 = vst.msk [vmem:[#allocation5 + $0x180] sm:$0xff] %vm2745, %v4879
      %4959 = vst.msk [vmem:[#allocation5 + $0x198] sm:$0xff] %vm2745, %v4881
      %4960 = vst.msk [vmem:[#allocation5 + $0x1b0] sm:$0xff] %vm2745, %v4883
      %4961 = vst.msk [vmem:[#allocation5 + $0x1c8] sm:$0xff] %vm2745, %v4885
      %4962 = vst.msk [vmem:[#allocation5 + $0x1e0] sm:$0xff] %vm2745, %v4887
      %4963 = vst.msk [vmem:[#allocation5 + $0x1f8] sm:$0xff] %vm2745, %v4889
      %4964 = vst.msk [vmem:[#allocation5 + $0x210] sm:$0xff] %vm2745, %v4891
      %4965 = vst.msk [vmem:[#allocation5 + $0x228] sm:$0xff] %vm2745, %v4893
      %4966 = vst.msk [vmem:[#allocation5 + $0x240] sm:$0xff] %vm2745, %v4895
      %4967 = vst.msk [vmem:[#allocation5 + $0x258] sm:$0xff] %vm2745, %v4897
      %4968 = vst.msk [vmem:[#allocation5 + $0x270] sm:$0xff] %vm2745, %v4899
      %4969 = vst.msk [vmem:[#allocation5 + $0x288] sm:$0xff] %vm2745, %v4901
      %4970 = vst.msk [vmem:[#allocation5 + $0x2a0] sm:$0xff] %vm2745, %v4903
      %4971 = vst.msk [vmem:[#allocation5 + $0x2b8] sm:$0xff] %vm2745, %v4905
      %4972 = vst.msk [vmem:[#allocation5 + $0x2d0] sm:$0xff] %vm2745, %v4907
      %4973 = vst.msk [vmem:[#allocation5 + $0x2e8] sm:$0xff] %vm2745, %v4909
      %v4974 = vld [vmem:[#allocation3 + $0x2] sm:$0xff]
      %v4975 = vld [vmem:[#allocation3 + $0xa] sm:$0xff]
      %v4976 = vld [vmem:[#allocation3 + $0x1a] sm:$0xff]
      %v4977 = vld [vmem:[#allocation3 + $0x22] sm:$0xff]
      %v4978 = vld [vmem:[#allocation3 + $0x32] sm:$0xff]
      %v4979 = vld [vmem:[#allocation3 + $0x3a] sm:$0xff]
      %v4980 = vld [vmem:[#allocation3 + $0x4a] sm:$0xff]
      %v4981 = vld [vmem:[#allocation3 + $0x52] sm:$0xff]
      %v4982 = vld [vmem:[#allocation3 + $0x62] sm:$0xff]
      %v4983 = vld [vmem:[#allocation3 + $0x6a] sm:$0xff]
      %v4984 = vld [vmem:[#allocation3 + $0x7a] sm:$0xff]
      %v4985 = vld [vmem:[#allocation3 + $0x82] sm:$0xff]
      %v4986 = vld [vmem:[#allocation3 + $0x92] sm:$0xff]
      %v4987 = vld [vmem:[#allocation3 + $0x9a] sm:$0xff]
      %v4988 = vld [vmem:[#allocation3 + $0xaa] sm:$0xff]
      %v4989 = vld [vmem:[#allocation3 + $0xb2] sm:$0xff]
      %v4990 = vld [vmem:[#allocation3 + $0xc2] sm:$0xff]
      %v4991 = vld [vmem:[#allocation3 + $0xca] sm:$0xff]
      %v4992 = vld [vmem:[#allocation3 + $0xda] sm:$0xff]
      %v4993 = vld [vmem:[#allocation3 + $0xe2] sm:$0xff]
      %v4994 = vld [vmem:[#allocation3 + $0xf2] sm:$0xff]
      %v4995 = vld [vmem:[#allocation3 + $0xfa] sm:$0xff]
      %v4996 = vld [vmem:[#allocation3 + $0x10a] sm:$0xff]
      %v4997 = vld [vmem:[#allocation3 + $0x112] sm:$0xff]
      %v4998 = vld [vmem:[#allocation3 + $0x122] sm:$0xff]
      %v4999 = vld [vmem:[#allocation3 + $0x12a] sm:$0xff]
      %v5000 = vld [vmem:[#allocation3 + $0x13a] sm:$0xff]
      %v5001 = vld [vmem:[#allocation3 + $0x142] sm:$0xff]
      %v5002 = vld [vmem:[#allocation3 + $0x152] sm:$0xff]
      %v5003 = vld [vmem:[#allocation3 + $0x15a] sm:$0xff]
      %v5004 = vld [vmem:[#allocation3 + $0x16a] sm:$0xff]
      %v5005 = vld [vmem:[#allocation3 + $0x172] sm:$0xff]
      %5038 = vrot.lane.b32.xlu0 %v4974, 64
      %v5039 = vpop.permute.xlu0 %5038
      %5040 = vrot.lane.b32.xlu0 %v4975, 64
      %v5041 = vpop.permute.xlu0 %5040
      %5042 = vrot.lane.b32.xlu0 %v4976, 64
      %v5043 = vpop.permute.xlu0 %5042
      %5044 = vrot.lane.b32.xlu0 %v4977, 64
      %v5045 = vpop.permute.xlu0 %5044
      %5046 = vrot.lane.b32.xlu0 %v4978, 64
      %v5047 = vpop.permute.xlu0 %5046
      %5048 = vrot.lane.b32.xlu0 %v4979, 64
      %v5049 = vpop.permute.xlu0 %5048
      %5050 = vrot.lane.b32.xlu0 %v4980, 64
      %v5051 = vpop.permute.xlu0 %5050
      %5052 = vrot.lane.b32.xlu0 %v4981, 64
      %v5053 = vpop.permute.xlu0 %5052
      %5054 = vrot.lane.b32.xlu0 %v4982, 64
      %v5055 = vpop.permute.xlu0 %5054
      %5056 = vrot.lane.b32.xlu0 %v4983, 64
      %v5057 = vpop.permute.xlu0 %5056
      %5058 = vrot.lane.b32.xlu0 %v4984, 64
      %v5059 = vpop.permute.xlu0 %5058
      %5060 = vrot.lane.b32.xlu0 %v4985, 64
      %v5061 = vpop.permute.xlu0 %5060
      %5062 = vrot.lane.b32.xlu0 %v4986, 64
      %v5063 = vpop.permute.xlu0 %5062
      %5064 = vrot.lane.b32.xlu0 %v4987, 64
      %v5065 = vpop.permute.xlu0 %5064
      %5066 = vrot.lane.b32.xlu0 %v4988, 64
      %v5067 = vpop.permute.xlu0 %5066
      %5068 = vrot.lane.b32.xlu0 %v4989, 64
      %v5069 = vpop.permute.xlu0 %5068
      %5070 = vrot.lane.b32.xlu0 %v4990, 64
      %v5071 = vpop.permute.xlu0 %5070
      %5072 = vrot.lane.b32.xlu0 %v4991, 64
      %v5073 = vpop.permute.xlu0 %5072
      %5074 = vrot.lane.b32.xlu0 %v4992, 64
      %v5075 = vpop.permute.xlu0 %5074
      %5076 = vrot.lane.b32.xlu0 %v4993, 64
      %v5077 = vpop.permute.xlu0 %5076
      %5078 = vrot.lane.b32.xlu0 %v4994, 64
      %v5079 = vpop.permute.xlu0 %5078
      %5080 = vrot.lane.b32.xlu0 %v4995, 64
      %v5081 = vpop.permute.xlu0 %5080
      %5082 = vrot.lane.b32.xlu0 %v4996, 64
      %v5083 = vpop.permute.xlu0 %5082
      %5084 = vrot.lane.b32.xlu0 %v4997, 64
      %v5085 = vpop.permute.xlu0 %5084
      %5086 = vrot.lane.b32.xlu0 %v4998, 64
      %v5087 = vpop.permute.xlu0 %5086
      %5088 = vrot.lane.b32.xlu0 %v4999, 64
      %v5089 = vpop.permute.xlu0 %5088
      %5090 = vrot.lane.b32.xlu0 %v5000, 64
      %v5091 = vpop.permute.xlu0 %5090
      %5092 = vrot.lane.b32.xlu0 %v5001, 64
      %v5093 = vpop.permute.xlu0 %5092
      %5094 = vrot.lane.b32.xlu0 %v5002, 64
      %v5095 = vpop.permute.xlu0 %5094
      %5096 = vrot.lane.b32.xlu0 %v5003, 64
      %v5097 = vpop.permute.xlu0 %5096
      %5098 = vrot.lane.b32.xlu0 %v5004, 64
      %v5099 = vpop.permute.xlu0 %5098
      %5100 = vrot.lane.b32.xlu0 %v5005, 64
      %v5101 = vpop.permute.xlu0 %5100
      %5134 = vst.msk [vmem:[#allocation5] sm:$0xff] %vm2938, %v5039
      %5135 = vst.msk [vmem:[#allocation5 + $0x18] sm:$0xff] %vm2938, %v5041
      %5136 = vst.msk [vmem:[#allocation5 + $0x30] sm:$0xff] %vm2938, %v5043
      %5137 = vst.msk [vmem:[#allocation5 + $0x48] sm:$0xff] %vm2938, %v5045
      %5138 = vst.msk [vmem:[#allocation5 + $0x60] sm:$0xff] %vm2938, %v5047
      %5139 = vst.msk [vmem:[#allocation5 + $0x78] sm:$0xff] %vm2938, %v5049
      %5140 = vst.msk [vmem:[#allocation5 + $0x90] sm:$0xff] %vm2938, %v5051
      %5141 = vst.msk [vmem:[#allocation5 + $0xa8] sm:$0xff] %vm2938, %v5053
      %5142 = vst.msk [vmem:[#allocation5 + $0xc0] sm:$0xff] %vm2938, %v5055
      %5143 = vst.msk [vmem:[#allocation5 + $0xd8] sm:$0xff] %vm2938, %v5057
      %5144 = vst.msk [vmem:[#allocation5 + $0xf0] sm:$0xff] %vm2938, %v5059
      %5145 = vst.msk [vmem:[#allocation5 + $0x108] sm:$0xff] %vm2938, %v5061
      %5146 = vst.msk [vmem:[#allocation5 + $0x120] sm:$0xff] %vm2938, %v5063
      %5147 = vst.msk [vmem:[#allocation5 + $0x138] sm:$0xff] %vm2938, %v5065
      %5148 = vst.msk [vmem:[#allocation5 + $0x150] sm:$0xff] %vm2938, %v5067
      %5149 = vst.msk [vmem:[#allocation5 + $0x168] sm:$0xff] %vm2938, %v5069
      %5150 = vst.msk [vmem:[#allocation5 + $0x180] sm:$0xff] %vm2938, %v5071
      %5151 = vst.msk [vmem:[#allocation5 + $0x198] sm:$0xff] %vm2938, %v5073
      %5152 = vst.msk [vmem:[#allocation5 + $0x1b0] sm:$0xff] %vm2938, %v5075
      %5153 = vst.msk [vmem:[#allocation5 + $0x1c8] sm:$0xff] %vm2938, %v5077
      %5154 = vst.msk [vmem:[#allocation5 + $0x1e0] sm:$0xff] %vm2938, %v5079
      %5155 = vst.msk [vmem:[#allocation5 + $0x1f8] sm:$0xff] %vm2938, %v5081
      %5156 = vst.msk [vmem:[#allocation5 + $0x210] sm:$0xff] %vm2938, %v5083
      %5157 = vst.msk [vmem:[#allocation5 + $0x228] sm:$0xff] %vm2938, %v5085
      %5158 = vst.msk [vmem:[#allocation5 + $0x240] sm:$0xff] %vm2938, %v5087
      %5159 = vst.msk [vmem:[#allocation5 + $0x258] sm:$0xff] %vm2938, %v5089
      %5160 = vst.msk [vmem:[#allocation5 + $0x270] sm:$0xff] %vm2938, %v5091
      %5161 = vst.msk [vmem:[#allocation5 + $0x288] sm:$0xff] %vm2938, %v5093
      %5162 = vst.msk [vmem:[#allocation5 + $0x2a0] sm:$0xff] %vm2938, %v5095
      %5163 = vst.msk [vmem:[#allocation5 + $0x2b8] sm:$0xff] %vm2938, %v5097
      %5164 = vst.msk [vmem:[#allocation5 + $0x2d0] sm:$0xff] %vm2938, %v5099
      %5165 = vst.msk [vmem:[#allocation5 + $0x2e8] sm:$0xff] %vm2938, %v5101
      %v5166 = vld [vmem:[%s2451] sm:$0xff]
      %v5167 = vld [vmem:[%s2451 + $0x8] sm:$0xff]
      %v5168 = vld [vmem:[%s2451 + $0x18] sm:$0xff]
      %v5169 = vld [vmem:[%s2451 + $0x20] sm:$0xff]
      %v5170 = vld [vmem:[%s2451 + $0x30] sm:$0xff]
      %v5171 = vld [vmem:[%s2451 + $0x38] sm:$0xff]
      %v5172 = vld [vmem:[%s2451 + $0x48] sm:$0xff]
      %v5173 = vld [vmem:[%s2451 + $0x50] sm:$0xff]
      %v5174 = vld [vmem:[%s2451 + $0x60] sm:$0xff]
      %v5175 = vld [vmem:[%s2451 + $0x68] sm:$0xff]
      %v5176 = vld [vmem:[%s2451 + $0x78] sm:$0xff]
      %v5177 = vld [vmem:[%s2451 + $0x80] sm:$0xff]
      %v5178 = vld [vmem:[%s2451 + $0x90] sm:$0xff]
      %v5179 = vld [vmem:[%s2451 + $0x98] sm:$0xff]
      %v5180 = vld [vmem:[%s2451 + $0xa8] sm:$0xff]
      %v5181 = vld [vmem:[%s2451 + $0xb0] sm:$0xff]
      %v5182 = vld [vmem:[%s2451 + $0xc0] sm:$0xff]
      %v5183 = vld [vmem:[%s2451 + $0xc8] sm:$0xff]
      %v5184 = vld [vmem:[%s2451 + $0xd8] sm:$0xff]
      %v5185 = vld [vmem:[%s2451 + $0xe0] sm:$0xff]
      %v5186 = vld [vmem:[%s2451 + $0xf0] sm:$0xff]
      %v5187 = vld [vmem:[%s2451 + $0xf8] sm:$0xff]
      %v5188 = vld [vmem:[%s2451 + $0x108] sm:$0xff]
      %v5189 = vld [vmem:[%s2451 + $0x110] sm:$0xff]
      %v5190 = vld [vmem:[%s2451 + $0x120] sm:$0xff]
      %v5191 = vld [vmem:[%s2451 + $0x128] sm:$0xff]
      %v5192 = vld [vmem:[%s2451 + $0x138] sm:$0xff]
      %v5193 = vld [vmem:[%s2451 + $0x140] sm:$0xff]
      %v5194 = vld [vmem:[%s2451 + $0x150] sm:$0xff]
      %v5195 = vld [vmem:[%s2451 + $0x158] sm:$0xff]
      %v5196 = vld [vmem:[%s2451 + $0x168] sm:$0xff]
      %v5197 = vld [vmem:[%s2451 + $0x170] sm:$0xff]
      %5230 = vrot.lane.b32.xlu0 %v5166, 96
      %v5231 = vpop.permute.xlu0 %5230
      %5232 = vrot.lane.b32.xlu0 %v5167, 96
      %v5233 = vpop.permute.xlu0 %5232
      %5234 = vrot.lane.b32.xlu0 %v5168, 96
      %v5235 = vpop.permute.xlu0 %5234
      %5236 = vrot.lane.b32.xlu0 %v5169, 96
      %v5237 = vpop.permute.xlu0 %5236
      %5238 = vrot.lane.b32.xlu0 %v5170, 96
      %v5239 = vpop.permute.xlu0 %5238
      %5240 = vrot.lane.b32.xlu0 %v5171, 96
      %v5241 = vpop.permute.xlu0 %5240
      %5242 = vrot.lane.b32.xlu0 %v5172, 96
      %v5243 = vpop.permute.xlu0 %5242
      %5244 = vrot.lane.b32.xlu0 %v5173, 96
      %v5245 = vpop.permute.xlu0 %5244
      %5246 = vrot.lane.b32.xlu0 %v5174, 96
      %v5247 = vpop.permute.xlu0 %5246
      %5248 = vrot.lane.b32.xlu0 %v5175, 96
      %v5249 = vpop.permute.xlu0 %5248
      %5250 = vrot.lane.b32.xlu0 %v5176, 96
      %v5251 = vpop.permute.xlu0 %5250
      %5252 = vrot.lane.b32.xlu0 %v5177, 96
      %v5253 = vpop.permute.xlu0 %5252
      %5254 = vrot.lane.b32.xlu0 %v5178, 96
      %v5255 = vpop.permute.xlu0 %5254
      %5256 = vrot.lane.b32.xlu0 %v5179, 96
      %v5257 = vpop.permute.xlu0 %5256
      %5258 = vrot.lane.b32.xlu0 %v5180, 96
      %v5259 = vpop.permute.xlu0 %5258
      %5260 = vrot.lane.b32.xlu0 %v5181, 96
      %v5261 = vpop.permute.xlu0 %5260
      %5262 = vrot.lane.b32.xlu0 %v5182, 96
      %v5263 = vpop.permute.xlu0 %5262
      %5264 = vrot.lane.b32.xlu0 %v5183, 96
      %v5265 = vpop.permute.xlu0 %5264
      %5266 = vrot.lane.b32.xlu0 %v5184, 96
      %v5267 = vpop.permute.xlu0 %5266
      %5268 = vrot.lane.b32.xlu0 %v5185, 96
      %v5269 = vpop.permute.xlu0 %5268
      %5270 = vrot.lane.b32.xlu0 %v5186, 96
      %v5271 = vpop.permute.xlu0 %5270
      %5272 = vrot.lane.b32.xlu0 %v5187, 96
      %v5273 = vpop.permute.xlu0 %5272
      %5274 = vrot.lane.b32.xlu0 %v5188, 96
      %v5275 = vpop.permute.xlu0 %5274
      %5276 = vrot.lane.b32.xlu0 %v5189, 96
      %v5277 = vpop.permute.xlu0 %5276
      %5278 = vrot.lane.b32.xlu0 %v5190, 96
      %v5279 = vpop.permute.xlu0 %5278
      %5280 = vrot.lane.b32.xlu0 %v5191, 96
      %v5281 = vpop.permute.xlu0 %5280
      %5282 = vrot.lane.b32.xlu0 %v5192, 96
      %v5283 = vpop.permute.xlu0 %5282
      %5284 = vrot.lane.b32.xlu0 %v5193, 96
      %v5285 = vpop.permute.xlu0 %5284
      %5286 = vrot.lane.b32.xlu0 %v5194, 96
      %v5287 = vpop.permute.xlu0 %5286
      %5288 = vrot.lane.b32.xlu0 %v5195, 96
      %v5289 = vpop.permute.xlu0 %5288
      %5290 = vrot.lane.b32.xlu0 %v5196, 96
      %v5291 = vpop.permute.xlu0 %5290
      %5292 = vrot.lane.b32.xlu0 %v5197, 96
      %v5293 = vpop.permute.xlu0 %5292
      %5326 = vst.msk [vmem:[#allocation5] sm:$0xff] %vm3131, %v5231
      %5327 = vst.msk [vmem:[#allocation5 + $0x18] sm:$0xff] %vm3131, %v5233
      %5328 = vst.msk [vmem:[#allocation5 + $0x30] sm:$0xff] %vm3131, %v5235
      %5329 = vst.msk [vmem:[#allocation5 + $0x48] sm:$0xff] %vm3131, %v5237
      %5330 = vst.msk [vmem:[#allocation5 + $0x60] sm:$0xff] %vm3131, %v5239
      %5331 = vst.msk [vmem:[#allocation5 + $0x78] sm:$0xff] %vm3131, %v5241
      %5332 = vst.msk [vmem:[#allocation5 + $0x90] sm:$0xff] %vm3131, %v5243
      %5333 = vst.msk [vmem:[#allocation5 + $0xa8] sm:$0xff] %vm3131, %v5245
      %5334 = vst.msk [vmem:[#allocation5 + $0xc0] sm:$0xff] %vm3131, %v5247
      %5335 = vst.msk [vmem:[#allocation5 + $0xd8] sm:$0xff] %vm3131, %v5249
      %5336 = vst.msk [vmem:[#allocation5 + $0xf0] sm:$0xff] %vm3131, %v5251
      %5337 = vst.msk [vmem:[#allocation5 + $0x108] sm:$0xff] %vm3131, %v5253
      %5338 = vst.msk [vmem:[#allocation5 + $0x120] sm:$0xff] %vm3131, %v5255
      %5339 = vst.msk [vmem:[#allocation5 + $0x138] sm:$0xff] %vm3131, %v5257
      %5340 = vst.msk [vmem:[#allocation5 + $0x150] sm:$0xff] %vm3131, %v5259
      %5341 = vst.msk [vmem:[#allocation5 + $0x168] sm:$0xff] %vm3131, %v5261
      %5342 = vst.msk [vmem:[#allocation5 + $0x180] sm:$0xff] %vm3131, %v5263
      %5343 = vst.msk [vmem:[#allocation5 + $0x198] sm:$0xff] %vm3131, %v5265
      %5344 = vst.msk [vmem:[#allocation5 + $0x1b0] sm:$0xff] %vm3131, %v5267
      %5345 = vst.msk [vmem:[#allocation5 + $0x1c8] sm:$0xff] %vm3131, %v5269
      %5346 = vst.msk [vmem:[#allocation5 + $0x1e0] sm:$0xff] %vm3131, %v5271
      %5347 = vst.msk [vmem:[#allocation5 + $0x1f8] sm:$0xff] %vm3131, %v5273
      %5348 = vst.msk [vmem:[#allocation5 + $0x210] sm:$0xff] %vm3131, %v5275
      %5349 = vst.msk [vmem:[#allocation5 + $0x228] sm:$0xff] %vm3131, %v5277
      %5350 = vst.msk [vmem:[#allocation5 + $0x240] sm:$0xff] %vm3131, %v5279
      %5351 = vst.msk [vmem:[#allocation5 + $0x258] sm:$0xff] %vm3131, %v5281
      %5352 = vst.msk [vmem:[#allocation5 + $0x270] sm:$0xff] %vm3131, %v5283
      %5353 = vst.msk [vmem:[#allocation5 + $0x288] sm:$0xff] %vm3131, %v5285
      %5354 = vst.msk [vmem:[#allocation5 + $0x2a0] sm:$0xff] %vm3131, %v5287
      %5355 = vst.msk [vmem:[#allocation5 + $0x2b8] sm:$0xff] %vm3131, %v5289
      %5356 = vst.msk [vmem:[#allocation5 + $0x2d0] sm:$0xff] %vm3131, %v5291
      %5357 = vst.msk [vmem:[#allocation5 + $0x2e8] sm:$0xff] %vm3131, %v5293
      %v5358 = vld [vmem:[%s2451 + $0x1] sm:$0xff]
      %v5359 = vld [vmem:[%s2451 + $0x9] sm:$0xff]
      %v5360 = vld [vmem:[%s2451 + $0x19] sm:$0xff]
      %v5361 = vld [vmem:[%s2451 + $0x21] sm:$0xff]
      %v5362 = vld [vmem:[%s2451 + $0x31] sm:$0xff]
      %v5363 = vld [vmem:[%s2451 + $0x39] sm:$0xff]
      %v5364 = vld [vmem:[%s2451 + $0x49] sm:$0xff]
      %v5365 = vld [vmem:[%s2451 + $0x51] sm:$0xff]
      %v5366 = vld [vmem:[%s2451 + $0x61] sm:$0xff]
      %v5367 = vld [vmem:[%s2451 + $0x69] sm:$0xff]
      %v5368 = vld [vmem:[%s2451 + $0x79] sm:$0xff]
      %v5369 = vld [vmem:[%s2451 + $0x81] sm:$0xff]
      %v5370 = vld [vmem:[%s2451 + $0x91] sm:$0xff]
      %v5371 = vld [vmem:[%s2451 + $0x99] sm:$0xff]
      %v5372 = vld [vmem:[%s2451 + $0xa9] sm:$0xff]
      %v5373 = vld [vmem:[%s2451 + $0xb1] sm:$0xff]
      %v5374 = vld [vmem:[%s2451 + $0xc1] sm:$0xff]
      %v5375 = vld [vmem:[%s2451 + $0xc9] sm:$0xff]
      %v5376 = vld [vmem:[%s2451 + $0xd9] sm:$0xff]
      %v5377 = vld [vmem:[%s2451 + $0xe1] sm:$0xff]
      %v5378 = vld [vmem:[%s2451 + $0xf1] sm:$0xff]
      %v5379 = vld [vmem:[%s2451 + $0xf9] sm:$0xff]
      %v5380 = vld [vmem:[%s2451 + $0x109] sm:$0xff]
      %v5381 = vld [vmem:[%s2451 + $0x111] sm:$0xff]
      %v5382 = vld [vmem:[%s2451 + $0x121] sm:$0xff]
      %v5383 = vld [vmem:[%s2451 + $0x129] sm:$0xff]
      %v5384 = vld [vmem:[%s2451 + $0x139] sm:$0xff]
      %v5385 = vld [vmem:[%s2451 + $0x141] sm:$0xff]
      %v5386 = vld [vmem:[%s2451 + $0x151] sm:$0xff]
      %v5387 = vld [vmem:[%s2451 + $0x159] sm:$0xff]
      %v5388 = vld [vmem:[%s2451 + $0x169] sm:$0xff]
      %v5389 = vld [vmem:[%s2451 + $0x171] sm:$0xff]
      %5390 = vst.msk [vmem:[#allocation5 + $0x8] sm:$0xff] %vm2395, %v5358
      %5391 = vst.msk [vmem:[#allocation5 + $0x20] sm:$0xff] %vm2395, %v5359
      %5392 = vst.msk [vmem:[#allocation5 + $0x38] sm:$0xff] %vm2395, %v5360
      %5393 = vst.msk [vmem:[#allocation5 + $0x50] sm:$0xff] %vm2395, %v5361
      %5394 = vst.msk [vmem:[#allocation5 + $0x68] sm:$0xff] %vm2395, %v5362
      %5395 = vst.msk [vmem:[#allocation5 + $0x80] sm:$0xff] %vm2395, %v5363
      %5396 = vst.msk [vmem:[#allocation5 + $0x98] sm:$0xff] %vm2395, %v5364
      %5397 = vst.msk [vmem:[#allocation5 + $0xb0] sm:$0xff] %vm2395, %v5365
      %5398 = vst.msk [vmem:[#allocation5 + $0xc8] sm:$0xff] %vm2395, %v5366
      %5399 = vst.msk [vmem:[#allocation5 + $0xe0] sm:$0xff] %vm2395, %v5367
      %5400 = vst.msk [vmem:[#allocation5 + $0xf8] sm:$0xff] %vm2395, %v5368
      %5401 = vst.msk [vmem:[#allocation5 + $0x110] sm:$0xff] %vm2395, %v5369
      %5402 = vst.msk [vmem:[#allocation5 + $0x128] sm:$0xff] %vm2395, %v5370
      %5403 = vst.msk [vmem:[#allocation5 + $0x140] sm:$0xff] %vm2395, %v5371
      %5404 = vst.msk [vmem:[#allocation5 + $0x158] sm:$0xff] %vm2395, %v5372
      %5405 = vst.msk [vmem:[#allocation5 + $0x170] sm:$0xff] %vm2395, %v5373
      %5406 = vst.msk [vmem:[#allocation5 + $0x188] sm:$0xff] %vm2395, %v5374
      %5407 = vst.msk [vmem:[#allocation5 + $0x1a0] sm:$0xff] %vm2395, %v5375
      %5408 = vst.msk [vmem:[#allocation5 + $0x1b8] sm:$0xff] %vm2395, %v5376
      %5409 = vst.msk [vmem:[#allocation5 + $0x1d0] sm:$0xff] %vm2395, %v5377
      %5410 = vst.msk [vmem:[#allocation5 + $0x1e8] sm:$0xff] %vm2395, %v5378
      %5411 = vst.msk [vmem:[#allocation5 + $0x200] sm:$0xff] %vm2395, %v5379
      %5412 = vst.msk [vmem:[#allocation5 + $0x218] sm:$0xff] %vm2395, %v5380
      %5413 = vst.msk [vmem:[#allocation5 + $0x230] sm:$0xff] %vm2395, %v5381
      %5414 = vst.msk [vmem:[#allocation5 + $0x248] sm:$0xff] %vm2395, %v5382
      %5415 = vst.msk [vmem:[#allocation5 + $0x260] sm:$0xff] %vm2395, %v5383
      %5416 = vst.msk [vmem:[#allocation5 + $0x278] sm:$0xff] %vm2395, %v5384
      %5417 = vst.msk [vmem:[#allocation5 + $0x290] sm:$0xff] %vm2395, %v5385
      %5418 = vst.msk [vmem:[#allocation5 + $0x2a8] sm:$0xff] %vm2395, %v5386
      %5419 = vst.msk [vmem:[#allocation5 + $0x2c0] sm:$0xff] %vm2395, %v5387
      %5420 = vst.msk [vmem:[#allocation5 + $0x2d8] sm:$0xff] %vm2395, %v5388
      %5421 = vst.msk [vmem:[#allocation5 + $0x2f0] sm:$0xff] %vm2395, %v5389
      %v5422 = vld [vmem:[%s2451 + $0x2] sm:$0xff]
      %v5423 = vld [vmem:[%s2451 + $0xa] sm:$0xff]
      %v5424 = vld [vmem:[%s2451 + $0x1a] sm:$0xff]
      %v5425 = vld [vmem:[%s2451 + $0x22] sm:$0xff]
      %v5426 = vld [vmem:[%s2451 + $0x32] sm:$0xff]
      %v5427 = vld [vmem:[%s2451 + $0x3a] sm:$0xff]
      %v5428 = vld [vmem:[%s2451 + $0x4a] sm:$0xff]
      %v5429 = vld [vmem:[%s2451 + $0x52] sm:$0xff]
      %v5430 = vld [vmem:[%s2451 + $0x62] sm:$0xff]
      %v5431 = vld [vmem:[%s2451 + $0x6a] sm:$0xff]
      %v5432 = vld [vmem:[%s2451 + $0x7a] sm:$0xff]
      %v5433 = vld [vmem:[%s2451 + $0x82] sm:$0xff]
      %v5434 = vld [vmem:[%s2451 + $0x92] sm:$0xff]
      %v5435 = vld [vmem:[%s2451 + $0x9a] sm:$0xff]
      %v5436 = vld [vmem:[%s2451 + $0xaa] sm:$0xff]
      %v5437 = vld [vmem:[%s2451 + $0xb2] sm:$0xff]
      %v5438 = vld [vmem:[%s2451 + $0xc2] sm:$0xff]
      %v5439 = vld [vmem:[%s2451 + $0xca] sm:$0xff]
      %v5440 = vld [vmem:[%s2451 + $0xda] sm:$0xff]
      %v5441 = vld [vmem:[%s2451 + $0xe2] sm:$0xff]
      %v5442 = vld [vmem:[%s2451 + $0xf2] sm:$0xff]
      %v5443 = vld [vmem:[%s2451 + $0xfa] sm:$0xff]
      %v5444 = vld [vmem:[%s2451 + $0x10a] sm:$0xff]
      %v5445 = vld [vmem:[%s2451 + $0x112] sm:$0xff]
      %v5446 = vld [vmem:[%s2451 + $0x122] sm:$0xff]
      %v5447 = vld [vmem:[%s2451 + $0x12a] sm:$0xff]
      %v5448 = vld [vmem:[%s2451 + $0x13a] sm:$0xff]
      %v5449 = vld [vmem:[%s2451 + $0x142] sm:$0xff]
      %v5450 = vld [vmem:[%s2451 + $0x152] sm:$0xff]
      %v5451 = vld [vmem:[%s2451 + $0x15a] sm:$0xff]
      %v5452 = vld [vmem:[%s2451 + $0x16a] sm:$0xff]
      %v5453 = vld [vmem:[%s2451 + $0x172] sm:$0xff]
      %5486 = vrot.lane.b32.xlu0 %v5422, 32
      %v5487 = vpop.permute.xlu0 %5486
      %5488 = vrot.lane.b32.xlu0 %v5423, 32
      %v5489 = vpop.permute.xlu0 %5488
      %5490 = vrot.lane.b32.xlu0 %v5424, 32
      %v5491 = vpop.permute.xlu0 %5490
      %5492 = vrot.lane.b32.xlu0 %v5425, 32
      %v5493 = vpop.permute.xlu0 %5492
      %5494 = vrot.lane.b32.xlu0 %v5426, 32
      %v5495 = vpop.permute.xlu0 %5494
      %5496 = vrot.lane.b32.xlu0 %v5427, 32
      %v5497 = vpop.permute.xlu0 %5496
      %5498 = vrot.lane.b32.xlu0 %v5428, 32
      %v5499 = vpop.permute.xlu0 %5498
      %5500 = vrot.lane.b32.xlu0 %v5429, 32
      %v5501 = vpop.permute.xlu0 %5500
      %5502 = vrot.lane.b32.xlu0 %v5430, 32
      %v5503 = vpop.permute.xlu0 %5502
      %5504 = vrot.lane.b32.xlu0 %v5431, 32
      %v5505 = vpop.permute.xlu0 %5504
      %5506 = vrot.lane.b32.xlu0 %v5432, 32
      %v5507 = vpop.permute.xlu0 %5506
      %5508 = vrot.lane.b32.xlu0 %v5433, 32
      %v5509 = vpop.permute.xlu0 %5508
      %5510 = vrot.lane.b32.xlu0 %v5434, 32
      %v5511 = vpop.permute.xlu0 %5510
      %5512 = vrot.lane.b32.xlu0 %v5435, 32
      %v5513 = vpop.permute.xlu0 %5512
      %5514 = vrot.lane.b32.xlu0 %v5436, 32
      %v5515 = vpop.permute.xlu0 %5514
      %5516 = vrot.lane.b32.xlu0 %v5437, 32
      %v5517 = vpop.permute.xlu0 %5516
      %5518 = vrot.lane.b32.xlu0 %v5438, 32
      %v5519 = vpop.permute.xlu0 %5518
      %5520 = vrot.lane.b32.xlu0 %v5439, 32
      %v5521 = vpop.permute.xlu0 %5520
      %5522 = vrot.lane.b32.xlu0 %v5440, 32
      %v5523 = vpop.permute.xlu0 %5522
      %5524 = vrot.lane.b32.xlu0 %v5441, 32
      %v5525 = vpop.permute.xlu0 %5524
      %5526 = vrot.lane.b32.xlu0 %v5442, 32
      %v5527 = vpop.permute.xlu0 %5526
      %5528 = vrot.lane.b32.xlu0 %v5443, 32
      %v5529 = vpop.permute.xlu0 %5528
      %5530 = vrot.lane.b32.xlu0 %v5444, 32
      %v5531 = vpop.permute.xlu0 %5530
      %5532 = vrot.lane.b32.xlu0 %v5445, 32
      %v5533 = vpop.permute.xlu0 %5532
      %5534 = vrot.lane.b32.xlu0 %v5446, 32
      %v5535 = vpop.permute.xlu0 %5534
      %5536 = vrot.lane.b32.xlu0 %v5447, 32
      %v5537 = vpop.permute.xlu0 %5536
      %5538 = vrot.lane.b32.xlu0 %v5448, 32
      %v5539 = vpop.permute.xlu0 %5538
      %5540 = vrot.lane.b32.xlu0 %v5449, 32
      %v5541 = vpop.permute.xlu0 %5540
      %5542 = vrot.lane.b32.xlu0 %v5450, 32
      %v5543 = vpop.permute.xlu0 %5542
      %5544 = vrot.lane.b32.xlu0 %v5451, 32
      %v5545 = vpop.permute.xlu0 %5544
      %5546 = vrot.lane.b32.xlu0 %v5452, 32
      %v5547 = vpop.permute.xlu0 %5546
      %5548 = vrot.lane.b32.xlu0 %v5453, 32
      %v5549 = vpop.permute.xlu0 %5548
      %5582 = vst.msk [vmem:[#allocation5 + $0x8] sm:$0xff] %vm2745, %v5487
      %5583 = vst.msk [vmem:[#allocation5 + $0x20] sm:$0xff] %vm2745, %v5489
      %5584 = vst.msk [vmem:[#allocation5 + $0x38] sm:$0xff] %vm2745, %v5491
      %5585 = vst.msk [vmem:[#allocation5 + $0x50] sm:$0xff] %vm2745, %v5493
      %5586 = vst.msk [vmem:[#allocation5 + $0x68] sm:$0xff] %vm2745, %v5495
      %5587 = vst.msk [vmem:[#allocation5 + $0x80] sm:$0xff] %vm2745, %v5497
      %5588 = vst.msk [vmem:[#allocation5 + $0x98] sm:$0xff] %vm2745, %v5499
      %5589 = vst.msk [vmem:[#allocation5 + $0xb0] sm:$0xff] %vm2745, %v5501
      %5590 = vst.msk [vmem:[#allocation5 + $0xc8] sm:$0xff] %vm2745, %v5503
      %5591 = vst.msk [vmem:[#allocation5 + $0xe0] sm:$0xff] %vm2745, %v5505
      %5592 = vst.msk [vmem:[#allocation5 + $0xf8] sm:$0xff] %vm2745, %v5507
      %5593 = vst.msk [vmem:[#allocation5 + $0x110] sm:$0xff] %vm2745, %v5509
      %5594 = vst.msk [vmem:[#allocation5 + $0x128] sm:$0xff] %vm2745, %v5511
      %5595 = vst.msk [vmem:[#allocation5 + $0x140] sm:$0xff] %vm2745, %v5513
      %5596 = vst.msk [vmem:[#allocation5 + $0x158] sm:$0xff] %vm2745, %v5515
      %5597 = vst.msk [vmem:[#allocation5 + $0x170] sm:$0xff] %vm2745, %v5517
      %5598 = vst.msk [vmem:[#allocation5 + $0x188] sm:$0xff] %vm2745, %v5519
      %5599 = vst.msk [vmem:[#allocation5 + $0x1a0] sm:$0xff] %vm2745, %v5521
      %5600 = vst.msk [vmem:[#allocation5 + $0x1b8] sm:$0xff] %vm2745, %v5523
      %5601 = vst.msk [vmem:[#allocation5 + $0x1d0] sm:$0xff] %vm2745, %v5525
      %5602 = vst.msk [vmem:[#allocation5 + $0x1e8] sm:$0xff] %vm2745, %v5527
      %5603 = vst.msk [vmem:[#allocation5 + $0x200] sm:$0xff] %vm2745, %v5529
      %5604 = vst.msk [vmem:[#allocation5 + $0x218] sm:$0xff] %vm2745, %v5531
      %5605 = vst.msk [vmem:[#allocation5 + $0x230] sm:$0xff] %vm2745, %v5533
      %5606 = vst.msk [vmem:[#allocation5 + $0x248] sm:$0xff] %vm2745, %v5535
      %5607 = vst.msk [vmem:[#allocation5 + $0x260] sm:$0xff] %vm2745, %v5537
      %5608 = vst.msk [vmem:[#allocation5 + $0x278] sm:$0xff] %vm2745, %v5539
      %5609 = vst.msk [vmem:[#allocation5 + $0x290] sm:$0xff] %vm2745, %v5541
      %5610 = vst.msk [vmem:[#allocation5 + $0x2a8] sm:$0xff] %vm2745, %v5543
      %5611 = vst.msk [vmem:[#allocation5 + $0x2c0] sm:$0xff] %vm2745, %v5545
      %5612 = vst.msk [vmem:[#allocation5 + $0x2d8] sm:$0xff] %vm2745, %v5547
      %5613 = vst.msk [vmem:[#allocation5 + $0x2f0] sm:$0xff] %vm2745, %v5549
      %v5614 = vld [vmem:[%s3420] sm:$0xff]
      %v5615 = vld [vmem:[%s3420 + $0x8] sm:$0xff]
      %v5616 = vld [vmem:[%s3420 + $0x18] sm:$0xff]
      %v5617 = vld [vmem:[%s3420 + $0x20] sm:$0xff]
      %v5618 = vld [vmem:[%s3420 + $0x30] sm:$0xff]
      %v5619 = vld [vmem:[%s3420 + $0x38] sm:$0xff]
      %v5620 = vld [vmem:[%s3420 + $0x48] sm:$0xff]
      %v5621 = vld [vmem:[%s3420 + $0x50] sm:$0xff]
      %v5622 = vld [vmem:[%s3420 + $0x60] sm:$0xff]
      %v5623 = vld [vmem:[%s3420 + $0x68] sm:$0xff]
      %v5624 = vld [vmem:[%s3420 + $0x78] sm:$0xff]
      %v5625 = vld [vmem:[%s3420 + $0x80] sm:$0xff]
      %v5626 = vld [vmem:[%s3420 + $0x90] sm:$0xff]
      %v5627 = vld [vmem:[%s3420 + $0x98] sm:$0xff]
      %v5628 = vld [vmem:[%s3420 + $0xa8] sm:$0xff]
      %v5629 = vld [vmem:[%s3420 + $0xb0] sm:$0xff]
      %v5630 = vld [vmem:[%s3420 + $0xc0] sm:$0xff]
      %v5631 = vld [vmem:[%s3420 + $0xc8] sm:$0xff]
      %v5632 = vld [vmem:[%s3420 + $0xd8] sm:$0xff]
      %v5633 = vld [vmem:[%s3420 + $0xe0] sm:$0xff]
      %v5634 = vld [vmem:[%s3420 + $0xf0] sm:$0xff]
      %v5635 = vld [vmem:[%s3420 + $0xf8] sm:$0xff]
      %v5636 = vld [vmem:[%s3420 + $0x108] sm:$0xff]
      %v5637 = vld [vmem:[%s3420 + $0x110] sm:$0xff]
      %v5638 = vld [vmem:[%s3420 + $0x120] sm:$0xff]
      %v5639 = vld [vmem:[%s3420 + $0x128] sm:$0xff]
      %v5640 = vld [vmem:[%s3420 + $0x138] sm:$0xff]
      %v5641 = vld [vmem:[%s3420 + $0x140] sm:$0xff]
      %v5642 = vld [vmem:[%s3420 + $0x150] sm:$0xff]
      %v5643 = vld [vmem:[%s3420 + $0x158] sm:$0xff]
      %v5644 = vld [vmem:[%s3420 + $0x168] sm:$0xff]
      %v5645 = vld [vmem:[%s3420 + $0x170] sm:$0xff]
      %5678 = vrot.lane.b32.xlu0 %v5614, 64
      %v5679 = vpop.permute.xlu0 %5678
      %5680 = vrot.lane.b32.xlu0 %v5615, 64
      %v5681 = vpop.permute.xlu0 %5680
      %5682 = vrot.lane.b32.xlu0 %v5616, 64
      %v5683 = vpop.permute.xlu0 %5682
      %5684 = vrot.lane.b32.xlu0 %v5617, 64
      %v5685 = vpop.permute.xlu0 %5684
      %5686 = vrot.lane.b32.xlu0 %v5618, 64
      %v5687 = vpop.permute.xlu0 %5686
      %5688 = vrot.lane.b32.xlu0 %v5619, 64
      %v5689 = vpop.permute.xlu0 %5688
      %5690 = vrot.lane.b32.xlu0 %v5620, 64
      %v5691 = vpop.permute.xlu0 %5690
      %5692 = vrot.lane.b32.xlu0 %v5621, 64
      %v5693 = vpop.permute.xlu0 %5692
      %5694 = vrot.lane.b32.xlu0 %v5622, 64
      %v5695 = vpop.permute.xlu0 %5694
      %5696 = vrot.lane.b32.xlu0 %v5623, 64
      %v5697 = vpop.permute.xlu0 %5696
      %5698 = vrot.lane.b32.xlu0 %v5624, 64
      %v5699 = vpop.permute.xlu0 %5698
      %5700 = vrot.lane.b32.xlu0 %v5625, 64
      %v5701 = vpop.permute.xlu0 %5700
      %5702 = vrot.lane.b32.xlu0 %v5626, 64
      %v5703 = vpop.permute.xlu0 %5702
      %5704 = vrot.lane.b32.xlu0 %v5627, 64
      %v5705 = vpop.permute.xlu0 %5704
      %5706 = vrot.lane.b32.xlu0 %v5628, 64
      %v5707 = vpop.permute.xlu0 %5706
      %5708 = vrot.lane.b32.xlu0 %v5629, 64
      %v5709 = vpop.permute.xlu0 %5708
      %5710 = vrot.lane.b32.xlu0 %v5630, 64
      %v5711 = vpop.permute.xlu0 %5710
      %5712 = vrot.lane.b32.xlu0 %v5631, 64
      %v5713 = vpop.permute.xlu0 %5712
      %5714 = vrot.lane.b32.xlu0 %v5632, 64
      %v5715 = vpop.permute.xlu0 %5714
      %5716 = vrot.lane.b32.xlu0 %v5633, 64
      %v5717 = vpop.permute.xlu0 %5716
      %5718 = vrot.lane.b32.xlu0 %v5634, 64
      %v5719 = vpop.permute.xlu0 %5718
      %5720 = vrot.lane.b32.xlu0 %v5635, 64
      %v5721 = vpop.permute.xlu0 %5720
      %5722 = vrot.lane.b32.xlu0 %v5636, 64
      %v5723 = vpop.permute.xlu0 %5722
      %5724 = vrot.lane.b32.xlu0 %v5637, 64
      %v5725 = vpop.permute.xlu0 %5724
      %5726 = vrot.lane.b32.xlu0 %v5638, 64
      %v5727 = vpop.permute.xlu0 %5726
      %5728 = vrot.lane.b32.xlu0 %v5639, 64
      %v5729 = vpop.permute.xlu0 %5728
      %5730 = vrot.lane.b32.xlu0 %v5640, 64
      %v5731 = vpop.permute.xlu0 %5730
      %5732 = vrot.lane.b32.xlu0 %v5641, 64
      %v5733 = vpop.permute.xlu0 %5732
      %5734 = vrot.lane.b32.xlu0 %v5642, 64
      %v5735 = vpop.permute.xlu0 %5734
      %5736 = vrot.lane.b32.xlu0 %v5643, 64
      %v5737 = vpop.permute.xlu0 %5736
      %5738 = vrot.lane.b32.xlu0 %v5644, 64
      %v5739 = vpop.permute.xlu0 %5738
      %5740 = vrot.lane.b32.xlu0 %v5645, 64
      %v5741 = vpop.permute.xlu0 %5740
      %5774 = vst.msk [vmem:[#allocation5 + $0x8] sm:$0xff] %vm2938, %v5679
      %5775 = vst.msk [vmem:[#allocation5 + $0x20] sm:$0xff] %vm2938, %v5681
      %5776 = vst.msk [vmem:[#allocation5 + $0x38] sm:$0xff] %vm2938, %v5683
      %5777 = vst.msk [vmem:[#allocation5 + $0x50] sm:$0xff] %vm2938, %v5685
      %5778 = vst.msk [vmem:[#allocation5 + $0x68] sm:$0xff] %vm2938, %v5687
      %5779 = vst.msk [vmem:[#allocation5 + $0x80] sm:$0xff] %vm2938, %v5689
      %5780 = vst.msk [vmem:[#allocation5 + $0x98] sm:$0xff] %vm2938, %v5691
      %5781 = vst.msk [vmem:[#allocation5 + $0xb0] sm:$0xff] %vm2938, %v5693
      %5782 = vst.msk [vmem:[#allocation5 + $0xc8] sm:$0xff] %vm2938, %v5695
      %5783 = vst.msk [vmem:[#allocation5 + $0xe0] sm:$0xff] %vm2938, %v5697
      %5784 = vst.msk [vmem:[#allocation5 + $0xf8] sm:$0xff] %vm2938, %v5699
      %5785 = vst.msk [vmem:[#allocation5 + $0x110] sm:$0xff] %vm2938, %v5701
      %5786 = vst.msk [vmem:[#allocation5 + $0x128] sm:$0xff] %vm2938, %v5703
      %5787 = vst.msk [vmem:[#allocation5 + $0x140] sm:$0xff] %vm2938, %v5705
      %5788 = vst.msk [vmem:[#allocation5 + $0x158] sm:$0xff] %vm2938, %v5707
      %5789 = vst.msk [vmem:[#allocation5 + $0x170] sm:$0xff] %vm2938, %v5709
      %5790 = vst.msk [vmem:[#allocation5 + $0x188] sm:$0xff] %vm2938, %v5711
      %5791 = vst.msk [vmem:[#allocation5 + $0x1a0] sm:$0xff] %vm2938, %v5713
      %5792 = vst.msk [vmem:[#allocation5 + $0x1b8] sm:$0xff] %vm2938, %v5715
      %5793 = vst.msk [vmem:[#allocation5 + $0x1d0] sm:$0xff] %vm2938, %v5717
      %5794 = vst.msk [vmem:[#allocation5 + $0x1e8] sm:$0xff] %vm2938, %v5719
      %5795 = vst.msk [vmem:[#allocation5 + $0x200] sm:$0xff] %vm2938, %v5721
      %5796 = vst.msk [vmem:[#allocation5 + $0x218] sm:$0xff] %vm2938, %v5723
      %5797 = vst.msk [vmem:[#allocation5 + $0x230] sm:$0xff] %vm2938, %v5725
      %5798 = vst.msk [vmem:[#allocation5 + $0x248] sm:$0xff] %vm2938, %v5727
      %5799 = vst.msk [vmem:[#allocation5 + $0x260] sm:$0xff] %vm2938, %v5729
      %5800 = vst.msk [vmem:[#allocation5 + $0x278] sm:$0xff] %vm2938, %v5731
      %5801 = vst.msk [vmem:[#allocation5 + $0x290] sm:$0xff] %vm2938, %v5733
      %5802 = vst.msk [vmem:[#allocation5 + $0x2a8] sm:$0xff] %vm2938, %v5735
      %5803 = vst.msk [vmem:[#allocation5 + $0x2c0] sm:$0xff] %vm2938, %v5737
      %5804 = vst.msk [vmem:[#allocation5 + $0x2d8] sm:$0xff] %vm2938, %v5739
      %5805 = vst.msk [vmem:[#allocation5 + $0x2f0] sm:$0xff] %vm2938, %v5741
      %v5806 = vld [vmem:[%s3420 + $0x1] sm:$0xff]
      %v5807 = vld [vmem:[%s3420 + $0x9] sm:$0xff]
      %v5808 = vld [vmem:[%s3420 + $0x19] sm:$0xff]
      %v5809 = vld [vmem:[%s3420 + $0x21] sm:$0xff]
      %v5810 = vld [vmem:[%s3420 + $0x31] sm:$0xff]
      %v5811 = vld [vmem:[%s3420 + $0x39] sm:$0xff]
      %v5812 = vld [vmem:[%s3420 + $0x49] sm:$0xff]
      %v5813 = vld [vmem:[%s3420 + $0x51] sm:$0xff]
      %v5814 = vld [vmem:[%s3420 + $0x61] sm:$0xff]
      %v5815 = vld [vmem:[%s3420 + $0x69] sm:$0xff]
      %v5816 = vld [vmem:[%s3420 + $0x79] sm:$0xff]
      %v5817 = vld [vmem:[%s3420 + $0x81] sm:$0xff]
      %v5818 = vld [vmem:[%s3420 + $0x91] sm:$0xff]
      %v5819 = vld [vmem:[%s3420 + $0x99] sm:$0xff]
      %v5820 = vld [vmem:[%s3420 + $0xa9] sm:$0xff]
      %v5821 = vld [vmem:[%s3420 + $0xb1] sm:$0xff]
      %v5822 = vld [vmem:[%s3420 + $0xc1] sm:$0xff]
      %v5823 = vld [vmem:[%s3420 + $0xc9] sm:$0xff]
      %v5824 = vld [vmem:[%s3420 + $0xd9] sm:$0xff]
      %v5825 = vld [vmem:[%s3420 + $0xe1] sm:$0xff]
      %v5826 = vld [vmem:[%s3420 + $0xf1] sm:$0xff]
      %v5827 = vld [vmem:[%s3420 + $0xf9] sm:$0xff]
      %v5828 = vld [vmem:[%s3420 + $0x109] sm:$0xff]
      %v5829 = vld [vmem:[%s3420 + $0x111] sm:$0xff]
      %v5830 = vld [vmem:[%s3420 + $0x121] sm:$0xff]
      %v5831 = vld [vmem:[%s3420 + $0x129] sm:$0xff]
      %v5832 = vld [vmem:[%s3420 + $0x139] sm:$0xff]
      %v5833 = vld [vmem:[%s3420 + $0x141] sm:$0xff]
      %v5834 = vld [vmem:[%s3420 + $0x151] sm:$0xff]
      %v5835 = vld [vmem:[%s3420 + $0x159] sm:$0xff]
      %v5836 = vld [vmem:[%s3420 + $0x169] sm:$0xff]
      %v5837 = vld [vmem:[%s3420 + $0x171] sm:$0xff]
      %5870 = vrot.lane.b32.xlu0 %v5806, 96
      %v5871 = vpop.permute.xlu0 %5870
      %5872 = vrot.lane.b32.xlu0 %v5807, 96
      %v5873 = vpop.permute.xlu0 %5872
      %5874 = vrot.lane.b32.xlu0 %v5808, 96
      %v5875 = vpop.permute.xlu0 %5874
      %5876 = vrot.lane.b32.xlu0 %v5809, 96
      %v5877 = vpop.permute.xlu0 %5876
      %5878 = vrot.lane.b32.xlu0 %v5810, 96
      %v5879 = vpop.permute.xlu0 %5878
      %5880 = vrot.lane.b32.xlu0 %v5811, 96
      %v5881 = vpop.permute.xlu0 %5880
      %5882 = vrot.lane.b32.xlu0 %v5812, 96
      %v5883 = vpop.permute.xlu0 %5882
      %5884 = vrot.lane.b32.xlu0 %v5813, 96
      %v5885 = vpop.permute.xlu0 %5884
      %5886 = vrot.lane.b32.xlu0 %v5814, 96
      %v5887 = vpop.permute.xlu0 %5886
      %5888 = vrot.lane.b32.xlu0 %v5815, 96
      %v5889 = vpop.permute.xlu0 %5888
      %5890 = vrot.lane.b32.xlu0 %v5816, 96
      %v5891 = vpop.permute.xlu0 %5890
      %5892 = vrot.lane.b32.xlu0 %v5817, 96
      %v5893 = vpop.permute.xlu0 %5892
      %5894 = vrot.lane.b32.xlu0 %v5818, 96
      %v5895 = vpop.permute.xlu0 %5894
      %5896 = vrot.lane.b32.xlu0 %v5819, 96
      %v5897 = vpop.permute.xlu0 %5896
      %5898 = vrot.lane.b32.xlu0 %v5820, 96
      %v5899 = vpop.permute.xlu0 %5898
      %5900 = vrot.lane.b32.xlu0 %v5821, 96
      %v5901 = vpop.permute.xlu0 %5900
      %5902 = vrot.lane.b32.xlu0 %v5822, 96
      %v5903 = vpop.permute.xlu0 %5902
      %5904 = vrot.lane.b32.xlu0 %v5823, 96
      %v5905 = vpop.permute.xlu0 %5904
      %5906 = vrot.lane.b32.xlu0 %v5824, 96
      %v5907 = vpop.permute.xlu0 %5906
      %5908 = vrot.lane.b32.xlu0 %v5825, 96
      %v5909 = vpop.permute.xlu0 %5908
      %5910 = vrot.lane.b32.xlu0 %v5826, 96
      %v5911 = vpop.permute.xlu0 %5910
      %5912 = vrot.lane.b32.xlu0 %v5827, 96
      %v5913 = vpop.permute.xlu0 %5912
      %5914 = vrot.lane.b32.xlu0 %v5828, 96
      %v5915 = vpop.permute.xlu0 %5914
      %5916 = vrot.lane.b32.xlu0 %v5829, 96
      %v5917 = vpop.permute.xlu0 %5916
      %5918 = vrot.lane.b32.xlu0 %v5830, 96
      %v5919 = vpop.permute.xlu0 %5918
      %5920 = vrot.lane.b32.xlu0 %v5831, 96
      %v5921 = vpop.permute.xlu0 %5920
      %5922 = vrot.lane.b32.xlu0 %v5832, 96
      %v5923 = vpop.permute.xlu0 %5922
      %5924 = vrot.lane.b32.xlu0 %v5833, 96
      %v5925 = vpop.permute.xlu0 %5924
      %5926 = vrot.lane.b32.xlu0 %v5834, 96
      %v5927 = vpop.permute.xlu0 %5926
      %5928 = vrot.lane.b32.xlu0 %v5835, 96
      %v5929 = vpop.permute.xlu0 %5928
      %5930 = vrot.lane.b32.xlu0 %v5836, 96
      %v5931 = vpop.permute.xlu0 %5930
      %5932 = vrot.lane.b32.xlu0 %v5837, 96
      %v5933 = vpop.permute.xlu0 %5932
      %5966 = vst.msk [vmem:[#allocation5 + $0x8] sm:$0xff] %vm3131, %v5871
      %5967 = vst.msk [vmem:[#allocation5 + $0x20] sm:$0xff] %vm3131, %v5873
      %5968 = vst.msk [vmem:[#allocation5 + $0x38] sm:$0xff] %vm3131, %v5875
      %5969 = vst.msk [vmem:[#allocation5 + $0x50] sm:$0xff] %vm3131, %v5877
      %5970 = vst.msk [vmem:[#allocation5 + $0x68] sm:$0xff] %vm3131, %v5879
      %5971 = vst.msk [vmem:[#allocation5 + $0x80] sm:$0xff] %vm3131, %v5881
      %5972 = vst.msk [vmem:[#allocation5 + $0x98] sm:$0xff] %vm3131, %v5883
      %5973 = vst.msk [vmem:[#allocation5 + $0xb0] sm:$0xff] %vm3131, %v5885
      %5974 = vst.msk [vmem:[#allocation5 + $0xc8] sm:$0xff] %vm3131, %v5887
      %5975 = vst.msk [vmem:[#allocation5 + $0xe0] sm:$0xff] %vm3131, %v5889
      %5976 = vst.msk [vmem:[#allocation5 + $0xf8] sm:$0xff] %vm3131, %v5891
      %5977 = vst.msk [vmem:[#allocation5 + $0x110] sm:$0xff] %vm3131, %v5893
      %5978 = vst.msk [vmem:[#allocation5 + $0x128] sm:$0xff] %vm3131, %v5895
      %5979 = vst.msk [vmem:[#allocation5 + $0x140] sm:$0xff] %vm3131, %v5897
      %5980 = vst.msk [vmem:[#allocation5 + $0x158] sm:$0xff] %vm3131, %v5899
      %5981 = vst.msk [vmem:[#allocation5 + $0x170] sm:$0xff] %vm3131, %v5901
      %5982 = vst.msk [vmem:[#allocation5 + $0x188] sm:$0xff] %vm3131, %v5903
      %5983 = vst.msk [vmem:[#allocation5 + $0x1a0] sm:$0xff] %vm3131, %v5905
      %5984 = vst.msk [vmem:[#allocation5 + $0x1b8] sm:$0xff] %vm3131, %v5907
      %5985 = vst.msk [vmem:[#allocation5 + $0x1d0] sm:$0xff] %vm3131, %v5909
      %5986 = vst.msk [vmem:[#allocation5 + $0x1e8] sm:$0xff] %vm3131, %v5911
      %5987 = vst.msk [vmem:[#allocation5 + $0x200] sm:$0xff] %vm3131, %v5913
      %5988 = vst.msk [vmem:[#allocation5 + $0x218] sm:$0xff] %vm3131, %v5915
      %5989 = vst.msk [vmem:[#allocation5 + $0x230] sm:$0xff] %vm3131, %v5917
      %5990 = vst.msk [vmem:[#allocation5 + $0x248] sm:$0xff] %vm3131, %v5919
      %5991 = vst.msk [vmem:[#allocation5 + $0x260] sm:$0xff] %vm3131, %v5921
      %5992 = vst.msk [vmem:[#allocation5 + $0x278] sm:$0xff] %vm3131, %v5923
      %5993 = vst.msk [vmem:[#allocation5 + $0x290] sm:$0xff] %vm3131, %v5925
      %5994 = vst.msk [vmem:[#allocation5 + $0x2a8] sm:$0xff] %vm3131, %v5927
      %5995 = vst.msk [vmem:[#allocation5 + $0x2c0] sm:$0xff] %vm3131, %v5929
      %5996 = vst.msk [vmem:[#allocation5 + $0x2d8] sm:$0xff] %vm3131, %v5931
      %5997 = vst.msk [vmem:[#allocation5 + $0x2f0] sm:$0xff] %vm3131, %v5933
      %v5998 = vld [vmem:[%s3420 + $0x2] sm:$0xff]
      %v5999 = vld [vmem:[%s3420 + $0xa] sm:$0xff]
      %v6000 = vld [vmem:[%s3420 + $0x1a] sm:$0xff]
      %v6001 = vld [vmem:[%s3420 + $0x22] sm:$0xff]
      %v6002 = vld [vmem:[%s3420 + $0x32] sm:$0xff]
      %v6003 = vld [vmem:[%s3420 + $0x3a] sm:$0xff]
      %v6004 = vld [vmem:[%s3420 + $0x4a] sm:$0xff]
      %v6005 = vld [vmem:[%s3420 + $0x52] sm:$0xff]
      %v6006 = vld [vmem:[%s3420 + $0x62] sm:$0xff]
      %v6007 = vld [vmem:[%s3420 + $0x6a] sm:$0xff]
      %v6008 = vld [vmem:[%s3420 + $0x7a] sm:$0xff]
      %v6009 = vld [vmem:[%s3420 + $0x82] sm:$0xff]
      %v6010 = vld [vmem:[%s3420 + $0x92] sm:$0xff]
      %v6011 = vld [vmem:[%s3420 + $0x9a] sm:$0xff]
      %v6012 = vld [vmem:[%s3420 + $0xaa] sm:$0xff]
      %v6013 = vld [vmem:[%s3420 + $0xb2] sm:$0xff]
      %v6014 = vld [vmem:[%s3420 + $0xc2] sm:$0xff]
      %v6015 = vld [vmem:[%s3420 + $0xca] sm:$0xff]
      %v6016 = vld [vmem:[%s3420 + $0xda] sm:$0xff]
      %v6017 = vld [vmem:[%s3420 + $0xe2] sm:$0xff]
      %v6018 = vld [vmem:[%s3420 + $0xf2] sm:$0xff]
      %v6019 = vld [vmem:[%s3420 + $0xfa] sm:$0xff]
      %v6020 = vld [vmem:[%s3420 + $0x10a] sm:$0xff]
      %v6021 = vld [vmem:[%s3420 + $0x112] sm:$0xff]
      %v6022 = vld [vmem:[%s3420 + $0x122] sm:$0xff]
      %v6023 = vld [vmem:[%s3420 + $0x12a] sm:$0xff]
      %v6024 = vld [vmem:[%s3420 + $0x13a] sm:$0xff]
      %v6025 = vld [vmem:[%s3420 + $0x142] sm:$0xff]
      %v6026 = vld [vmem:[%s3420 + $0x152] sm:$0xff]
      %v6027 = vld [vmem:[%s3420 + $0x15a] sm:$0xff]
      %v6028 = vld [vmem:[%s3420 + $0x16a] sm:$0xff]
      %v6029 = vld [vmem:[%s3420 + $0x172] sm:$0xff]
      %6030 = vst.msk [vmem:[#allocation5 + $0x10] sm:$0xff] %vm2395, %v5998
      %6031 = vst.msk [vmem:[#allocation5 + $0x28] sm:$0xff] %vm2395, %v5999
      %6032 = vst.msk [vmem:[#allocation5 + $0x40] sm:$0xff] %vm2395, %v6000
      %6033 = vst.msk [vmem:[#allocation5 + $0x58] sm:$0xff] %vm2395, %v6001
      %6034 = vst.msk [vmem:[#allocation5 + $0x70] sm:$0xff] %vm2395, %v6002
      %6035 = vst.msk [vmem:[#allocation5 + $0x88] sm:$0xff] %vm2395, %v6003
      %6036 = vst.msk [vmem:[#allocation5 + $0xa0] sm:$0xff] %vm2395, %v6004
      %6037 = vst.msk [vmem:[#allocation5 + $0xb8] sm:$0xff] %vm2395, %v6005
      %6038 = vst.msk [vmem:[#allocation5 + $0xd0] sm:$0xff] %vm2395, %v6006
      %6039 = vst.msk [vmem:[#allocation5 + $0xe8] sm:$0xff] %vm2395, %v6007
      %6040 = vst.msk [vmem:[#allocation5 + $0x100] sm:$0xff] %vm2395, %v6008
      %6041 = vst.msk [vmem:[#allocation5 + $0x118] sm:$0xff] %vm2395, %v6009
      %6042 = vst.msk [vmem:[#allocation5 + $0x130] sm:$0xff] %vm2395, %v6010
      %6043 = vst.msk [vmem:[#allocation5 + $0x148] sm:$0xff] %vm2395, %v6011
      %6044 = vst.msk [vmem:[#allocation5 + $0x160] sm:$0xff] %vm2395, %v6012
      %6045 = vst.msk [vmem:[#allocation5 + $0x178] sm:$0xff] %vm2395, %v6013
      %6046 = vst.msk [vmem:[#allocation5 + $0x190] sm:$0xff] %vm2395, %v6014
      %6047 = vst.msk [vmem:[#allocation5 + $0x1a8] sm:$0xff] %vm2395, %v6015
      %6048 = vst.msk [vmem:[#allocation5 + $0x1c0] sm:$0xff] %vm2395, %v6016
      %6049 = vst.msk [vmem:[#allocation5 + $0x1d8] sm:$0xff] %vm2395, %v6017
      %6050 = vst.msk [vmem:[#allocation5 + $0x1f0] sm:$0xff] %vm2395, %v6018
      %6051 = vst.msk [vmem:[#allocation5 + $0x208] sm:$0xff] %vm2395, %v6019
      %6052 = vst.msk [vmem:[#allocation5 + $0x220] sm:$0xff] %vm2395, %v6020
      %6053 = vst.msk [vmem:[#allocation5 + $0x238] sm:$0xff] %vm2395, %v6021
      %6054 = vst.msk [vmem:[#allocation5 + $0x250] sm:$0xff] %vm2395, %v6022
      %6055 = vst.msk [vmem:[#allocation5 + $0x268] sm:$0xff] %vm2395, %v6023
      %6056 = vst.msk [vmem:[#allocation5 + $0x280] sm:$0xff] %vm2395, %v6024
      %6057 = vst.msk [vmem:[#allocation5 + $0x298] sm:$0xff] %vm2395, %v6025
      %6058 = vst.msk [vmem:[#allocation5 + $0x2b0] sm:$0xff] %vm2395, %v6026
      %6059 = vst.msk [vmem:[#allocation5 + $0x2c8] sm:$0xff] %vm2395, %v6027
      %6060 = vst.msk [vmem:[#allocation5 + $0x2e0] sm:$0xff] %vm2395, %v6028
      %6061 = vst.msk [vmem:[#allocation5 + $0x2f8] sm:$0xff] %vm2395, %v6029
      %v6062 = vld [vmem:[#allocation5] sm:$0xff]
      %v6063 = vld [vmem:[#allocation5 + $0x8] sm:$0xff]
      %v6064 = vld [vmem:[#allocation5 + $0x10] sm:$0xff]
      %v6065 = vld [vmem:[#allocation5 + $0x18] sm:$0xff]
      %v6066 = vld [vmem:[#allocation5 + $0x20] sm:$0xff]
      %v6067 = vld [vmem:[#allocation5 + $0x28] sm:$0xff]
      %v6068 = vld [vmem:[#allocation5 + $0x30] sm:$0xff]
      %v6069 = vld [vmem:[#allocation5 + $0x38] sm:$0xff]
      %v6070 = vld [vmem:[#allocation5 + $0x40] sm:$0xff]
      %v6071 = vld [vmem:[#allocation5 + $0x48] sm:$0xff]
      %v6072 = vld [vmem:[#allocation5 + $0x50] sm:$0xff]
      %v6073 = vld [vmem:[#allocation5 + $0x58] sm:$0xff]
      %v6074 = vld [vmem:[#allocation5 + $0x60] sm:$0xff]
      %v6075 = vld [vmem:[#allocation5 + $0x68] sm:$0xff]
      %v6076 = vld [vmem:[#allocation5 + $0x70] sm:$0xff]
      %v6077 = vld [vmem:[#allocation5 + $0x78] sm:$0xff]
      %v6078 = vld [vmem:[#allocation5 + $0x80] sm:$0xff]
      %v6079 = vld [vmem:[#allocation5 + $0x88] sm:$0xff]
      %v6080 = vld [vmem:[#allocation5 + $0x90] sm:$0xff]
      %v6081 = vld [vmem:[#allocation5 + $0x98] sm:$0xff]
      %v6082 = vld [vmem:[#allocation5 + $0xa0] sm:$0xff]
      %v6083 = vld [vmem:[#allocation5 + $0xa8] sm:$0xff]
      %v6084 = vld [vmem:[#allocation5 + $0xb0] sm:$0xff]
      %v6085 = vld [vmem:[#allocation5 + $0xb8] sm:$0xff]
      %v6086 = vld [vmem:[#allocation5 + $0xc0] sm:$0xff]
      %v6087 = vld [vmem:[#allocation5 + $0xc8] sm:$0xff]
      %v6088 = vld [vmem:[#allocation5 + $0xd0] sm:$0xff]
      %v6089 = vld [vmem:[#allocation5 + $0xd8] sm:$0xff]
      %v6090 = vld [vmem:[#allocation5 + $0xe0] sm:$0xff]
      %v6091 = vld [vmem:[#allocation5 + $0xe8] sm:$0xff]
      %v6092 = vld [vmem:[#allocation5 + $0xf0] sm:$0xff]
      %v6093 = vld [vmem:[#allocation5 + $0xf8] sm:$0xff]
      %v6094 = vld [vmem:[#allocation5 + $0x100] sm:$0xff]
      %v6095 = vld [vmem:[#allocation5 + $0x108] sm:$0xff]
      %v6096 = vld [vmem:[#allocation5 + $0x110] sm:$0xff]
      %v6097 = vld [vmem:[#allocation5 + $0x118] sm:$0xff]
      %v6098 = vld [vmem:[#allocation5 + $0x120] sm:$0xff]
      %v6099 = vld [vmem:[#allocation5 + $0x128] sm:$0xff]
      %v6100 = vld [vmem:[#allocation5 + $0x130] sm:$0xff]
      %v6101 = vld [vmem:[#allocation5 + $0x138] sm:$0xff]
      %v6102 = vld [vmem:[#allocation5 + $0x140] sm:$0xff]
      %v6103 = vld [vmem:[#allocation5 + $0x148] sm:$0xff]
      %v6104 = vld [vmem:[#allocation5 + $0x150] sm:$0xff]
      %v6105 = vld [vmem:[#allocation5 + $0x158] sm:$0xff]
      %v6106 = vld [vmem:[#allocation5 + $0x160] sm:$0xff]
      %v6107 = vld [vmem:[#allocation5 + $0x168] sm:$0xff]
      %v6108 = vld [vmem:[#allocation5 + $0x170] sm:$0xff]
      %v6109 = vld [vmem:[#allocation5 + $0x178] sm:$0xff]
      %v6110 = vld [vmem:[#allocation5 + $0x180] sm:$0xff]
      %v6111 = vld [vmem:[#allocation5 + $0x188] sm:$0xff]
      %v6112 = vld [vmem:[#allocation5 + $0x190] sm:$0xff]
      %v6113 = vld [vmem:[#allocation5 + $0x198] sm:$0xff]
      %v6114 = vld [vmem:[#allocation5 + $0x1a0] sm:$0xff]
      %v6115 = vld [vmem:[#allocation5 + $0x1a8] sm:$0xff]
      %v6116 = vld [vmem:[#allocation5 + $0x1b0] sm:$0xff]
      %v6117 = vld [vmem:[#allocation5 + $0x1b8] sm:$0xff]
      %v6118 = vld [vmem:[#allocation5 + $0x1c0] sm:$0xff]
      %v6119 = vld [vmem:[#allocation5 + $0x1c8] sm:$0xff]
      %v6120 = vld [vmem:[#allocation5 + $0x1d0] sm:$0xff]
      %v6121 = vld [vmem:[#allocation5 + $0x1d8] sm:$0xff]
      %v6122 = vld [vmem:[#allocation5 + $0x1e0] sm:$0xff]
      %v6123 = vld [vmem:[#allocation5 + $0x1e8] sm:$0xff]
      %v6124 = vld [vmem:[#allocation5 + $0x1f0] sm:$0xff]
      %v6125 = vld [vmem:[#allocation5 + $0x1f8] sm:$0xff]
      %v6126 = vld [vmem:[#allocation5 + $0x200] sm:$0xff]
      %v6127 = vld [vmem:[#allocation5 + $0x208] sm:$0xff]
      %v6128 = vld [vmem:[#allocation5 + $0x210] sm:$0xff]
      %v6129 = vld [vmem:[#allocation5 + $0x218] sm:$0xff]
      %v6130 = vld [vmem:[#allocation5 + $0x220] sm:$0xff]
      %v6131 = vld [vmem:[#allocation5 + $0x228] sm:$0xff]
      %v6132 = vld [vmem:[#allocation5 + $0x230] sm:$0xff]
      %v6133 = vld [vmem:[#allocation5 + $0x238] sm:$0xff]
      %v6134 = vld [vmem:[#allocation5 + $0x240] sm:$0xff]
      %v6135 = vld [vmem:[#allocation5 + $0x248] sm:$0xff]
      %v6136 = vld [vmem:[#allocation5 + $0x250] sm:$0xff]
      %v6137 = vld [vmem:[#allocation5 + $0x258] sm:$0xff]
      %v6138 = vld [vmem:[#allocation5 + $0x260] sm:$0xff]
      %v6139 = vld [vmem:[#allocation5 + $0x268] sm:$0xff]
      %v6140 = vld [vmem:[#allocation5 + $0x270] sm:$0xff]
      %v6141 = vld [vmem:[#allocation5 + $0x278] sm:$0xff]
      %v6142 = vld [vmem:[#allocation5 + $0x280] sm:$0xff]
      %v6143 = vld [vmem:[#allocation5 + $0x288] sm:$0xff]
      %v6144 = vld [vmem:[#allocation5 + $0x290] sm:$0xff]
      %v6145 = vld [vmem:[#allocation5 + $0x298] sm:$0xff]
      %v6146 = vld [vmem:[#allocation5 + $0x2a0] sm:$0xff]
      %v6147 = vld [vmem:[#allocation5 + $0x2a8] sm:$0xff]
      %v6148 = vld [vmem:[#allocation5 + $0x2b0] sm:$0xff]
      %v6149 = vld [vmem:[#allocation5 + $0x2b8] sm:$0xff]
      %v6150 = vld [vmem:[#allocation5 + $0x2c0] sm:$0xff]
      %v6151 = vld [vmem:[#allocation5 + $0x2c8] sm:$0xff]
      %v6152 = vld [vmem:[#allocation5 + $0x2d0] sm:$0xff]
      %v6153 = vld [vmem:[#allocation5 + $0x2d8] sm:$0xff]
      %v6154 = vld [vmem:[#allocation5 + $0x2e0] sm:$0xff]
      %v6155 = vld [vmem:[#allocation5 + $0x2e8] sm:$0xff]
      %v6156 = vld [vmem:[#allocation5 + $0x2f0] sm:$0xff]
      %v6157 = vld [vmem:[#allocation5 + $0x2f8] sm:$0xff]
      %v6158 = vpack.c.bf16 %v6065, %v6062
      %v6159 = vpack.c.bf16 %v6066, %v6063
      %v6160 = vpack.c.bf16 %v6067, %v6064
      %v6161 = vpack.c.bf16 %v6071, %v6068
      %v6162 = vpack.c.bf16 %v6072, %v6069
      %v6163 = vpack.c.bf16 %v6073, %v6070
      %v6164 = vpack.c.bf16 %v6077, %v6074
      %v6165 = vpack.c.bf16 %v6078, %v6075
      %v6166 = vpack.c.bf16 %v6079, %v6076
      %v6167 = vpack.c.bf16 %v6083, %v6080
      %v6168 = vpack.c.bf16 %v6084, %v6081
      %v6169 = vpack.c.bf16 %v6085, %v6082
      %v6170 = vpack.c.bf16 %v6089, %v6086
      %v6171 = vpack.c.bf16 %v6090, %v6087
      %v6172 = vpack.c.bf16 %v6091, %v6088
      %v6173 = vpack.c.bf16 %v6095, %v6092
      %v6174 = vpack.c.bf16 %v6096, %v6093
      %v6175 = vpack.c.bf16 %v6097, %v6094
      %v6176 = vpack.c.bf16 %v6101, %v6098
      %v6177 = vpack.c.bf16 %v6102, %v6099
      %v6178 = vpack.c.bf16 %v6103, %v6100
      %v6179 = vpack.c.bf16 %v6107, %v6104
      %v6180 = vpack.c.bf16 %v6108, %v6105
      %v6181 = vpack.c.bf16 %v6109, %v6106
      %v6182 = vpack.c.bf16 %v6113, %v6110
      %v6183 = vpack.c.bf16 %v6114, %v6111
      %v6184 = vpack.c.bf16 %v6115, %v6112
      %v6185 = vpack.c.bf16 %v6119, %v6116
      %v6186 = vpack.c.bf16 %v6120, %v6117
      %v6187 = vpack.c.bf16 %v6121, %v6118
      %v6188 = vpack.c.bf16 %v6125, %v6122
      %v6189 = vpack.c.bf16 %v6126, %v6123
      %v6190 = vpack.c.bf16 %v6127, %v6124
      %v6191 = vpack.c.bf16 %v6131, %v6128
      %v6192 = vpack.c.bf16 %v6132, %v6129
      %v6193 = vpack.c.bf16 %v6133, %v6130
      %v6194 = vpack.c.bf16 %v6137, %v6134
      %v6195 = vpack.c.bf16 %v6138, %v6135
      %v6196 = vpack.c.bf16 %v6139, %v6136
      %v6197 = vpack.c.bf16 %v6143, %v6140
      %v6198 = vpack.c.bf16 %v6144, %v6141
      %v6199 = vpack.c.bf16 %v6145, %v6142
      %v6200 = vpack.c.bf16 %v6149, %v6146
      %v6201 = vpack.c.bf16 %v6150, %v6147
      %v6202 = vpack.c.bf16 %v6151, %v6148
      %v6203 = vpack.c.bf16 %v6155, %v6152
      %v6204 = vpack.c.bf16 %v6156, %v6153
      %v6205 = vpack.c.bf16 %v6157, %v6154
      %v6207 = vlaneseq
      %v6208 = vshrl.u32 %v6207, 7
      %v6209 = vsub.s32 0, %v6208
      %v6210 = vrot.slane %v4717, %v6209
      %v6248 = vunpack.c.l.b16 %v4680
      %v6249 = vunpack.c.l.b16 %v4681
      %v6250 = vunpack.c.l.b16 %v4682
      %v6251 = vunpack.c.l.b16 %v4683
      %v6252 = vunpack.c.l.b16 %v4684
      %v6253 = vunpack.c.l.b16 %v4685
      %v6254 = vunpack.c.l.b16 %v4686
      %v6255 = vunpack.c.l.b16 %v4687
      %v6256 = vunpack.c.l.b16 %v4688
      %v6257 = vunpack.c.l.b16 %v4689
      %v6258 = vunpack.c.l.b16 %v4690
      %v6259 = vunpack.c.l.b16 %v4691
      %v6260 = vunpack.c.l.b16 %v4692
      %v6261 = vunpack.c.l.b16 %v4693
      %v6262 = vunpack.c.l.b16 %v4694
      %v6263 = vunpack.c.l.b16 %v4695
      %v6264 = vunpack.c.l.b16 %v4696
      %v6265 = vunpack.c.l.b16 %v4697
      %v6266 = vunpack.c.l.b16 %v4698
      %v6267 = vunpack.c.l.b16 %v4699
      %v6268 = vunpack.c.l.b16 %v4700
      %v6269 = vunpack.c.l.b16 %v4701
      %v6270 = vunpack.c.l.b16 %v4702
      %v6271 = vunpack.c.l.b16 %v4703
      %v6272 = vunpack.c.l.b16 %v4704
      %v6273 = vunpack.c.l.b16 %v4705
      %v6274 = vunpack.c.l.b16 %v4706
      %v6275 = vunpack.c.l.b16 %v4707
      %v6276 = vunpack.c.l.b16 %v4708
      %v6277 = vunpack.c.l.b16 %v4709
      %v6278 = vunpack.c.l.b16 %v4710
      %v6279 = vunpack.c.l.b16 %v4711
      %v6280 = vunpack.c.l.b16 %v4712
      %v6281 = vunpack.c.l.b16 %v4713
      %v6282 = vunpack.c.l.b16 %v4714
      %v6283 = vunpack.c.l.b16 %v4715
      %v6284 = vpack.c.b16 %v6249, %v6248
      %v6285 = vpack.c.b16 %v6251, %v6250
      %v6286 = vpack.c.b16 %v6253, %v6252
      %v6287 = vpack.c.b16 %v6255, %v6254
      %v6288 = vpack.c.b16 %v6257, %v6256
      %v6289 = vpack.c.b16 %v6259, %v6258
      %v6290 = vpack.c.b16 %v6261, %v6260
      %v6291 = vpack.c.b16 %v6263, %v6262
      %v6292 = vpack.c.b16 %v6265, %v6264
      %v6293 = vpack.c.b16 %v6267, %v6266
      %v6294 = vpack.c.b16 %v6269, %v6268
      %v6295 = vpack.c.b16 %v6271, %v6270
      %v6296 = vpack.c.b16 %v6273, %v6272
      %v6297 = vpack.c.b16 %v6275, %v6274
      %v6298 = vpack.c.b16 %v6277, %v6276
      %v6299 = vpack.c.b16 %v6279, %v6278
      %v6300 = vpack.c.b16 %v6281, %v6280
      %v6301 = vpack.c.b16 %v6283, %v6282
      %v6321 = vsel %vm2395, %v6160, 0
      %v6324 = vsel %vm2395, %v6163, 0
      %v6327 = vsel %vm2395, %v6166, 0
      %v6330 = vsel %vm2395, %v6169, 0
      %v6333 = vsel %vm2395, %v6172, 0
      %v6336 = vsel %vm2395, %v6175, 0
      %v6339 = vsel %vm2395, %v6178, 0
      %v6342 = vsel %vm2395, %v6181, 0
      %v6345 = vsel %vm2395, %v6184, 0
      %v6348 = vsel %vm2395, %v6187, 0
      %v6351 = vsel %vm2395, %v6190, 0
      %v6354 = vsel %vm2395, %v6193, 0
      %v6357 = vsel %vm2395, %v6196, 0
      %v6360 = vsel %vm2395, %v6199, 0
      %v6363 = vsel %vm2395, %v6202, 0
      %v6366 = vsel %vm2395, %v6205, 0
      %6368 = vmatprep.subr.bf16.mxu0 0
      %6369 = vmatpush1.bf16.msra.mxu0 %v6284
      %6370 = vmatprep.subr.bf16.mxu0 0
      %6371 = vmatpush1.bf16.msra.mxu0 %v6285
      %6372 = vmatprep.subr.bf16.mxu0 0
      %6373 = vmatpush1.bf16.msra.mxu0 %v6286
      %6374 = vmatprep.subr.bf16.mxu0 0
      %6375 = vmatpush1.bf16.msra.mxu0 %v6287
      %6376 = vmatprep.subr.bf16.mxu0 0
      %6377 = vmatpush1.bf16.msra.mxu0 %v6288
      %6378 = vmatprep.subr.bf16.mxu0 0
      %6379 = vmatpush1.bf16.msra.mxu0 %v6289
      %6380 = vmatprep.subr.bf16.mxu0 0
      %6381 = vmatpush1.bf16.msra.mxu0 %v6290
      %6382 = vmatprep.subr.bf16.mxu0 0
      %6383 = vmatpush1.bf16.msra.mxu0 %v6291
      %6384 = vmatprep.subr.bf16.mxu0 0
      %6385 = vmatpush1.bf16.msra.mxu0 %v6292
      %6386 = vmatprep.subr.bf16.mxu0 0
      %6387 = vmatpush1.bf16.msra.mxu0 %v6293
      %6388 = vmatprep.subr.bf16.mxu0 0
      %6389 = vmatpush1.bf16.msra.mxu0 %v6294
      %6390 = vmatprep.subr.bf16.mxu0 0
      %6391 = vmatpush1.bf16.msra.mxu0 %v6295
      %6392 = vmatprep.subr.bf16.mxu0 0
      %6393 = vmatpush1.bf16.msra.mxu0 %v6296
      %6394 = vmatprep.subr.bf16.mxu0 0
      %6395 = vmatpush1.bf16.msra.mxu0 %v6297
      %6396 = vmatprep.subr.bf16.mxu0 0
      %6397 = vmatpush1.bf16.msra.mxu0 %v6298
      %6398 = vmatprep.subr.bf16.mxu0 0
      %6399 = vmatpush1.bf16.msra.mxu0 %v6299
      %6400 = vmatprep.mubr.bf16.mxu0 %v6159
      %6401 = vmatmul.mubr.bf16.gmra.mrb[0].mxu0 %v6158
      %v6402 = vpop.f32.mrb[0].mxu0
      %v6403 = vadd.f32 %v6210, %v6402
      %v6404 = vpop.f32.mrb[0].mxu0
      %v6405 = vpop.f32.mrb[0].mxu0
      %v6406 = vadd.f32 %v6210, %v6405
      %v6407 = vpop.f32.mrb[0].mxu0
      %6408 = vmatprep.mubr.bf16.mxu0 %v6162
      %6409 = vmatmul.mubr.bf16.gmra.mrb[0].mxu0 %v6161
      %v6410 = vpop.f32.mrb[0].mxu0
      %v6411 = vadd.f32 %v6210, %v6410
      %v6412 = vpop.f32.mrb[0].mxu0
      %v6413 = vpop.f32.mrb[0].mxu0
      %v6414 = vadd.f32 %v6210, %v6413
      %v6415 = vpop.f32.mrb[0].mxu0
      %6416 = vmatprep.mubr.bf16.mxu0 %v6165
      %6417 = vmatmul.mubr.bf16.gmra.mrb[0].mxu0 %v6164
      %v6418 = vpop.f32.mrb[0].mxu0
      %v6419 = vadd.f32 %v6210, %v6418
      %v6420 = vpop.f32.mrb[0].mxu0
      %v6421 = vpop.f32.mrb[0].mxu0
      %v6422 = vadd.f32 %v6210, %v6421
      %v6423 = vpop.f32.mrb[0].mxu0
      %6424 = vmatprep.mubr.bf16.mxu0 %v6168
      %6425 = vmatmul.mubr.bf16.gmra.mrb[0].mxu0 %v6167
      %v6426 = vpop.f32.mrb[0].mxu0
      %v6427 = vadd.f32 %v6210, %v6426
      %v6428 = vpop.f32.mrb[0].mxu0
      %v6429 = vpop.f32.mrb[0].mxu0
      %v6430 = vadd.f32 %v6210, %v6429
      %v6431 = vpop.f32.mrb[0].mxu0
      %6432 = vmatprep.mubr.bf16.mxu0 %v6171
      %6433 = vmatmul.mubr.bf16.gmra.mrb[0].mxu0 %v6170
      %v6434 = vpop.f32.mrb[0].mxu0
      %v6435 = vadd.f32 %v6210, %v6434
      %v6436 = vpop.f32.mrb[0].mxu0
      %v6437 = vpop.f32.mrb[0].mxu0
      %v6438 = vadd.f32 %v6210, %v6437
      %v6439 = vpop.f32.mrb[0].mxu0
      %6440 = vmatprep.mubr.bf16.mxu0 %v6174
      %6441 = vmatmul.mubr.bf16.gmra.mrb[0].mxu0 %v6173
      %v6442 = vpop.f32.mrb[0].mxu0
      %v6443 = vadd.f32 %v6210, %v6442
      %v6444 = vpop.f32.mrb[0].mxu0
      %v6445 = vpop.f32.mrb[0].mxu0
      %v6446 = vadd.f32 %v6210, %v6445
      %v6447 = vpop.f32.mrb[0].mxu0
      %6448 = vmatprep.mubr.bf16.mxu0 %v6177
      %6449 = vmatmul.mubr.bf16.gmra.mrb[0].mxu0 %v6176
      %v6450 = vpop.f32.mrb[0].mxu0
      %v6451 = vadd.f32 %v6210, %v6450
      %v6452 = vpop.f32.mrb[0].mxu0
      %v6453 = vpop.f32.mrb[0].mxu0
      %v6454 = vadd.f32 %v6210, %v6453
      %v6455 = vpop.f32.mrb[0].mxu0
      %6456 = vmatprep.mubr.bf16.mxu0 %v6180
      %6457 = vmatmul.mubr.bf16.gmra.mrb[0].mxu0 %v6179
      %v6458 = vpop.f32.mrb[0].mxu0
      %v6459 = vadd.f32 %v6210, %v6458
      %v6460 = vpop.f32.mrb[0].mxu0
      %v6461 = vpop.f32.mrb[0].mxu0
      %v6462 = vadd.f32 %v6210, %v6461
      %v6463 = vpop.f32.mrb[0].mxu0
      %6464 = vmatprep.mubr.bf16.mxu0 %v6183
      %6465 = vmatmul.mubr.bf16.gmra.mrb[0].mxu0 %v6182
      %v6466 = vpop.f32.mrb[0].mxu0
      %v6467 = vadd.f32 %v6210, %v6466
      %v6468 = vpop.f32.mrb[0].mxu0
      %v6469 = vpop.f32.mrb[0].mxu0
      %v6470 = vadd.f32 %v6210, %v6469
      %v6471 = vpop.f32.mrb[0].mxu0
      %6472 = vmatprep.mubr.bf16.mxu0 %v6186
      %6473 = vmatmul.mubr.bf16.gmra.mrb[0].mxu0 %v6185
      %v6474 = vpop.f32.mrb[0].mxu0
      %v6475 = vadd.f32 %v6210, %v6474
      %v6476 = vpop.f32.mrb[0].mxu0
      %v6477 = vpop.f32.mrb[0].mxu0
      %v6478 = vadd.f32 %v6210, %v6477
      %v6479 = vpop.f32.mrb[0].mxu0
      %6480 = vmatprep.mubr.bf16.mxu0 %v6189
      %6481 = vmatmul.mubr.bf16.gmra.mrb[0].mxu0 %v6188
      %v6482 = vpop.f32.mrb[0].mxu0
      %v6483 = vadd.f32 %v6210, %v6482
      %v6484 = vpop.f32.mrb[0].mxu0
      %v6485 = vpop.f32.mrb[0].mxu0
      %v6486 = vadd.f32 %v6210, %v6485
      %v6487 = vpop.f32.mrb[0].mxu0
      %6488 = vmatprep.mubr.bf16.mxu0 %v6192
      %6489 = vmatmul.mubr.bf16.gmra.mrb[0].mxu0 %v6191
      %v6490 = vpop.f32.mrb[0].mxu0
      %v6491 = vadd.f32 %v6210, %v6490
      %v6492 = vpop.f32.mrb[0].mxu0
      %v6493 = vpop.f32.mrb[0].mxu0
      %v6494 = vadd.f32 %v6210, %v6493
      %v6495 = vpop.f32.mrb[0].mxu0
      %6496 = vmatprep.mubr.bf16.mxu0 %v6195
      %6497 = vmatmul.mubr.bf16.gmra.mrb[0].mxu0 %v6194
      %v6498 = vpop.f32.mrb[0].mxu0
      %v6499 = vadd.f32 %v6210, %v6498
      %v6500 = vpop.f32.mrb[0].mxu0
      %v6501 = vpop.f32.mrb[0].mxu0
      %v6502 = vadd.f32 %v6210, %v6501
      %v6503 = vpop.f32.mrb[0].mxu0
      %6504 = vmatprep.mubr.bf16.mxu0 %v6198
      %6505 = vmatmul.mubr.bf16.gmra.mrb[0].mxu0 %v6197
      %v6506 = vpop.f32.mrb[0].mxu0
      %v6507 = vadd.f32 %v6210, %v6506
      %v6508 = vpop.f32.mrb[0].mxu0
      %v6509 = vpop.f32.mrb[0].mxu0
      %v6510 = vadd.f32 %v6210, %v6509
      %v6511 = vpop.f32.mrb[0].mxu0
      %6512 = vmatprep.mubr.bf16.mxu0 %v6201
      %6513 = vmatmul.mubr.bf16.gmra.mrb[0].mxu0 %v6200
      %v6514 = vpop.f32.mrb[0].mxu0
      %v6515 = vadd.f32 %v6210, %v6514
      %v6516 = vpop.f32.mrb[0].mxu0
      %v6517 = vpop.f32.mrb[0].mxu0
      %v6518 = vadd.f32 %v6210, %v6517
      %v6519 = vpop.f32.mrb[0].mxu0
      %6520 = vmatprep.mubr.bf16.mxu0 %v6204
      %6521 = vmatmul.mubr.bf16.gmra.mrb[0].mxu0 %v6203
      %v6522 = vpop.f32.mrb[0].mxu0
      %v6523 = vadd.f32 %v6210, %v6522
      %v6524 = vpop.f32.mrb[0].mxu0
      %v6525 = vpop.f32.mrb[0].mxu0
      %v6526 = vadd.f32 %v6210, %v6525
      %v6527 = vpop.f32.mrb[0].mxu0
      %6528 = vdwg.mxu0
      %6529 = vmatprep.subr.bf16.mxu0 0
      %6530 = vmatpush1.bf16.msra.mxu0 %v6300
      %6531 = vmatprep.subr.bf16.mxu0 0
      %6532 = vmatpush1.bf16.msra.mxu0 %v6301
      %6533 = vmatprep.subr.bf16.mxu0 0
      %6534 = vmatpush1.bf16.msra.mxu0 0
      %6535 = vmatprep.subr.bf16.mxu0 0
      %6536 = vmatpush1.bf16.msra.mxu0 0
      %6537 = vmatprep.subr.bf16.mxu0 0
      %6538 = vmatpush1.bf16.msra.mxu0 0
      %6539 = vmatprep.subr.bf16.mxu0 0
      %6540 = vmatpush1.bf16.msra.mxu0 0
      %6541 = vmatprep.subr.bf16.mxu0 0
      %6542 = vmatpush1.bf16.msra.mxu0 0
      %6543 = vmatprep.subr.bf16.mxu0 0
      %6544 = vmatpush1.bf16.msra.mxu0 0
      %6545 = vmatprep.subr.bf16.mxu0 0
      %6546 = vmatpush1.bf16.msra.mxu0 0
      %6547 = vmatprep.subr.bf16.mxu0 0
      %6548 = vmatpush1.bf16.msra.mxu0 0
      %6549 = vmatprep.subr.bf16.mxu0 0
      %6550 = vmatpush1.bf16.msra.mxu0 0
      %6551 = vmatprep.subr.bf16.mxu0 0
      %6552 = vmatpush1.bf16.msra.mxu0 0
      %6553 = vmatprep.subr.bf16.mxu0 0
      %6554 = vmatpush1.bf16.msra.mxu0 0
      %6555 = vmatprep.subr.bf16.mxu0 0
      %6556 = vmatpush1.bf16.msra.mxu0 0
      %6557 = vmatprep.subr.bf16.mxu0 0
      %6558 = vmatpush1.bf16.msra.mxu0 0
      %6559 = vmatprep.subr.bf16.mxu0 0
      %6560 = vmatpush1.bf16.msra.mxu0 0
      %6561 = vmatprep.mubr.bf16.mxu0 0
      %6562 = vmatmul.mubr.bf16.gmra.mrb[0].mxu0 %v6321
      %v6563 = vpop.f32.mrb[0].mxu0
      %v6564 = vadd.f32 %v6403, %v6563
      %v6565 = vpop.f32.mrb[0].mxu0
      %v6566 = vpop.f32.mrb[0].mxu0
      %v6567 = vadd.f32 %v6406, %v6566
      %v6568 = vpop.f32.mrb[0].mxu0
      %6569 = vmatprep.mubr.bf16.mxu0 0
      %6570 = vmatmul.mubr.bf16.gmra.mrb[0].mxu0 %v6324
      %v6571 = vpop.f32.mrb[0].mxu0
      %v6572 = vadd.f32 %v6411, %v6571
      %v6573 = vpop.f32.mrb[0].mxu0
      %v6574 = vpop.f32.mrb[0].mxu0
      %v6575 = vadd.f32 %v6414, %v6574
      %v6576 = vpop.f32.mrb[0].mxu0
      %6577 = vmatprep.mubr.bf16.mxu0 0
      %6578 = vmatmul.mubr.bf16.gmra.mrb[0].mxu0 %v6327
      %v6579 = vpop.f32.mrb[0].mxu0
      %v6580 = vadd.f32 %v6419, %v6579
      %v6581 = vpop.f32.mrb[0].mxu0
      %v6582 = vpop.f32.mrb[0].mxu0
      %v6583 = vadd.f32 %v6422, %v6582
      %v6584 = vpop.f32.mrb[0].mxu0
      %6585 = vmatprep.mubr.bf16.mxu0 0
      %6586 = vmatmul.mubr.bf16.gmra.mrb[0].mxu0 %v6330
      %v6587 = vpop.f32.mrb[0].mxu0
      %v6588 = vadd.f32 %v6427, %v6587
      %v6589 = vpop.f32.mrb[0].mxu0
      %v6590 = vpop.f32.mrb[0].mxu0
      %v6591 = vadd.f32 %v6430, %v6590
      %v6592 = vpop.f32.mrb[0].mxu0
      %6593 = vmatprep.mubr.bf16.mxu0 0
      %6594 = vmatmul.mubr.bf16.gmra.mrb[0].mxu0 %v6333
      %v6595 = vpop.f32.mrb[0].mxu0
      %v6596 = vadd.f32 %v6435, %v6595
      %v6597 = vpop.f32.mrb[0].mxu0
      %v6598 = vpop.f32.mrb[0].mxu0
      %v6599 = vadd.f32 %v6438, %v6598
      %v6600 = vpop.f32.mrb[0].mxu0
      %6601 = vmatprep.mubr.bf16.mxu0 0
      %6602 = vmatmul.mubr.bf16.gmra.mrb[0].mxu0 %v6336
      %v6603 = vpop.f32.mrb[0].mxu0
      %v6604 = vadd.f32 %v6443, %v6603
      %v6605 = vpop.f32.mrb[0].mxu0
      %v6606 = vpop.f32.mrb[0].mxu0
      %v6607 = vadd.f32 %v6446, %v6606
      %v6608 = vpop.f32.mrb[0].mxu0
      %6609 = vmatprep.mubr.bf16.mxu0 0
      %6610 = vmatmul.mubr.bf16.gmra.mrb[0].mxu0 %v6339
      %v6611 = vpop.f32.mrb[0].mxu0
      %v6612 = vadd.f32 %v6451, %v6611
      %v6613 = vpop.f32.mrb[0].mxu0
      %v6614 = vpop.f32.mrb[0].mxu0
      %v6615 = vadd.f32 %v6454, %v6614
      %v6616 = vpop.f32.mrb[0].mxu0
      %6617 = vmatprep.mubr.bf16.mxu0 0
      %6618 = vmatmul.mubr.bf16.gmra.mrb[0].mxu0 %v6342
      %v6619 = vpop.f32.mrb[0].mxu0
      %v6620 = vadd.f32 %v6459, %v6619
      %v6621 = vpop.f32.mrb[0].mxu0
      %v6622 = vpop.f32.mrb[0].mxu0
      %v6623 = vadd.f32 %v6462, %v6622
      %v6624 = vpop.f32.mrb[0].mxu0
      %6625 = vmatprep.mubr.bf16.mxu0 0
      %6626 = vmatmul.mubr.bf16.gmra.mrb[0].mxu0 %v6345
      %v6627 = vpop.f32.mrb[0].mxu0
      %v6628 = vadd.f32 %v6467, %v6627
      %v6629 = vpop.f32.mrb[0].mxu0
      %v6630 = vpop.f32.mrb[0].mxu0
      %v6631 = vadd.f32 %v6470, %v6630
      %v6632 = vpop.f32.mrb[0].mxu0
      %6633 = vmatprep.mubr.bf16.mxu0 0
      %6634 = vmatmul.mubr.bf16.gmra.mrb[0].mxu0 %v6348
      %v6635 = vpop.f32.mrb[0].mxu0
      %v6636 = vadd.f32 %v6475, %v6635
      %v6637 = vpop.f32.mrb[0].mxu0
      %v6638 = vpop.f32.mrb[0].mxu0
      %v6639 = vadd.f32 %v6478, %v6638
      %v6640 = vpop.f32.mrb[0].mxu0
      %6641 = vmatprep.mubr.bf16.mxu0 0
      %6642 = vmatmul.mubr.bf16.gmra.mrb[0].mxu0 %v6351
      %v6643 = vpop.f32.mrb[0].mxu0
      %v6644 = vadd.f32 %v6483, %v6643
      %v6645 = vpop.f32.mrb[0].mxu0
      %v6646 = vpop.f32.mrb[0].mxu0
      %v6647 = vadd.f32 %v6486, %v6646
      %v6648 = vpop.f32.mrb[0].mxu0
      %6649 = vmatprep.mubr.bf16.mxu0 0
      %6650 = vmatmul.mubr.bf16.gmra.mrb[0].mxu0 %v6354
      %v6651 = vpop.f32.mrb[0].mxu0
      %v6652 = vadd.f32 %v6491, %v6651
      %v6653 = vpop.f32.mrb[0].mxu0
      %v6654 = vpop.f32.mrb[0].mxu0
      %v6655 = vadd.f32 %v6494, %v6654
      %v6656 = vpop.f32.mrb[0].mxu0
      %6657 = vmatprep.mubr.bf16.mxu0 0
      %6658 = vmatmul.mubr.bf16.gmra.mrb[0].mxu0 %v6357
      %v6659 = vpop.f32.mrb[0].mxu0
      %v6660 = vadd.f32 %v6499, %v6659
      %v6661 = vpop.f32.mrb[0].mxu0
      %v6662 = vpop.f32.mrb[0].mxu0
      %v6663 = vadd.f32 %v6502, %v6662
      %v6664 = vpop.f32.mrb[0].mxu0
      %6665 = vmatprep.mubr.bf16.mxu0 0
      %6666 = vmatmul.mubr.bf16.gmra.mrb[0].mxu0 %v6360
      %v6667 = vpop.f32.mrb[0].mxu0
      %v6668 = vadd.f32 %v6507, %v6667
      %v6669 = vpop.f32.mrb[0].mxu0
      %v6670 = vpop.f32.mrb[0].mxu0
      %v6671 = vadd.f32 %v6510, %v6670
      %v6672 = vpop.f32.mrb[0].mxu0
      %6673 = vmatprep.mubr.bf16.mxu0 0
      %6674 = vmatmul.mubr.bf16.gmra.mrb[0].mxu0 %v6363
      %v6675 = vpop.f32.mrb[0].mxu0
      %v6676 = vadd.f32 %v6515, %v6675
      %v6677 = vpop.f32.mrb[0].mxu0
      %v6678 = vpop.f32.mrb[0].mxu0
      %v6679 = vadd.f32 %v6518, %v6678
      %v6680 = vpop.f32.mrb[0].mxu0
      %6681 = vmatprep.mubr.bf16.mxu0 0
      %6682 = vmatmul.mubr.bf16.gmra.mrb[0].mxu0 %v6366
      %v6683 = vpop.f32.mrb[0].mxu0
      %v6684 = vadd.f32 %v6523, %v6683
      %v6685 = vpop.f32.mrb[0].mxu0
      %v6686 = vpop.f32.mrb[0].mxu0
      %v6687 = vadd.f32 %v6526, %v6686
      %v6688 = vpop.f32.mrb[0].mxu0
      %6689 = vdwg.mxu0
      %vm6690 = vcmp.ge.f32.partialorder %v6564, 0.0
      %vm6691 = vcmp.ge.f32.partialorder %v6567, 0.0
      %vm6692 = vcmp.ge.f32.partialorder %v6572, 0.0
      %vm6693 = vcmp.ge.f32.partialorder %v6575, 0.0
      %vm6694 = vcmp.ge.f32.partialorder %v6580, 0.0
      %vm6695 = vcmp.ge.f32.partialorder %v6583, 0.0
      %vm6696 = vcmp.ge.f32.partialorder %v6588, 0.0
      %vm6697 = vcmp.ge.f32.partialorder %v6591, 0.0
      %vm6698 = vcmp.ge.f32.partialorder %v6596, 0.0
      %vm6699 = vcmp.ge.f32.partialorder %v6599, 0.0
      %vm6700 = vcmp.ge.f32.partialorder %v6604, 0.0
      %vm6701 = vcmp.ge.f32.partialorder %v6607, 0.0
      %vm6702 = vcmp.ge.f32.partialorder %v6612, 0.0
      %vm6703 = vcmp.ge.f32.partialorder %v6615, 0.0
      %vm6704 = vcmp.ge.f32.partialorder %v6620, 0.0
      %vm6705 = vcmp.ge.f32.partialorder %v6623, 0.0
      %vm6706 = vcmp.ge.f32.partialorder %v6628, 0.0
      %vm6707 = vcmp.ge.f32.partialorder %v6631, 0.0
      %vm6708 = vcmp.ge.f32.partialorder %v6636, 0.0
      %vm6709 = vcmp.ge.f32.partialorder %v6639, 0.0
      %vm6710 = vcmp.ge.f32.partialorder %v6644, 0.0
      %vm6711 = vcmp.ge.f32.partialorder %v6647, 0.0
      %vm6712 = vcmp.ge.f32.partialorder %v6652, 0.0
      %vm6713 = vcmp.ge.f32.partialorder %v6655, 0.0
      %vm6714 = vcmp.ge.f32.partialorder %v6660, 0.0
      %vm6715 = vcmp.ge.f32.partialorder %v6663, 0.0
      %vm6716 = vcmp.ge.f32.partialorder %v6668, 0.0
      %vm6717 = vcmp.ge.f32.partialorder %v6671, 0.0
      %vm6718 = vcmp.ge.f32.partialorder %v6676, 0.0
      %vm6719 = vcmp.ge.f32.partialorder %v6679, 0.0
      %vm6720 = vcmp.ge.f32.partialorder %v6684, 0.0
      %vm6721 = vcmp.ge.f32.partialorder %v6687, 0.0
      %v6722 = vmul.f32 %v6564, 0.2
      %v6723 = vmul.f32 %v6567, 0.2
      %v6724 = vmul.f32 %v6572, 0.2
      %v6725 = vmul.f32 %v6575, 0.2
      %v6726 = vmul.f32 %v6580, 0.2
      %v6727 = vmul.f32 %v6583, 0.2
      %v6728 = vmul.f32 %v6588, 0.2
      %v6729 = vmul.f32 %v6591, 0.2
      %v6730 = vmul.f32 %v6596, 0.2
      %v6731 = vmul.f32 %v6599, 0.2
      %v6732 = vmul.f32 %v6604, 0.2
      %v6733 = vmul.f32 %v6607, 0.2
      %v6734 = vmul.f32 %v6612, 0.2
      %v6735 = vmul.f32 %v6615, 0.2
      %v6736 = vmul.f32 %v6620, 0.2
      %v6737 = vmul.f32 %v6623, 0.2
      %v6738 = vmul.f32 %v6628, 0.2
      %v6739 = vmul.f32 %v6631, 0.2
      %v6740 = vmul.f32 %v6636, 0.2
      %v6741 = vmul.f32 %v6639, 0.2
      %v6742 = vmul.f32 %v6644, 0.2
      %v6743 = vmul.f32 %v6647, 0.2
      %v6744 = vmul.f32 %v6652, 0.2
      %v6745 = vmul.f32 %v6655, 0.2
      %v6746 = vmul.f32 %v6660, 0.2
      %v6747 = vmul.f32 %v6663, 0.2
      %v6748 = vmul.f32 %v6668, 0.2
      %v6749 = vmul.f32 %v6671, 0.2
      %v6750 = vmul.f32 %v6676, 0.2
      %v6751 = vmul.f32 %v6679, 0.2
      %v6752 = vmul.f32 %v6684, 0.2
      %v6753 = vmul.f32 %v6687, 0.2
      %v6754 = vsel %vm6690, %v6564, %v6722
      %v6755 = vsel %vm6691, %v6567, %v6723
      %v6756 = vsel %vm6692, %v6572, %v6724
      %v6757 = vsel %vm6693, %v6575, %v6725
      %v6758 = vsel %vm6694, %v6580, %v6726
      %v6759 = vsel %vm6695, %v6583, %v6727
      %v6760 = vsel %vm6696, %v6588, %v6728
      %v6761 = vsel %vm6697, %v6591, %v6729
      %v6762 = vsel %vm6698, %v6596, %v6730
      %v6763 = vsel %vm6699, %v6599, %v6731
      %v6764 = vsel %vm6700, %v6604, %v6732
      %v6765 = vsel %vm6701, %v6607, %v6733
      %v6766 = vsel %vm6702, %v6612, %v6734
      %v6767 = vsel %vm6703, %v6615, %v6735
      %v6768 = vsel %vm6704, %v6620, %v6736
      %v6769 = vsel %vm6705, %v6623, %v6737
      %v6770 = vsel %vm6706, %v6628, %v6738
      %v6771 = vsel %vm6707, %v6631, %v6739
      %v6772 = vsel %vm6708, %v6636, %v6740
      %v6773 = vsel %vm6709, %v6639, %v6741
      %v6774 = vsel %vm6710, %v6644, %v6742
      %v6775 = vsel %vm6711, %v6647, %v6743
      %v6776 = vsel %vm6712, %v6652, %v6744
      %v6777 = vsel %vm6713, %v6655, %v6745
      %v6778 = vsel %vm6714, %v6660, %v6746
      %v6779 = vsel %vm6715, %v6663, %v6747
      %v6780 = vsel %vm6716, %v6668, %v6748
      %v6781 = vsel %vm6717, %v6671, %v6749
      %v6782 = vsel %vm6718, %v6676, %v6750
      %v6783 = vsel %vm6719, %v6679, %v6751
      %v6784 = vsel %vm6720, %v6684, %v6752
      %v6785 = vsel %vm6721, %v6687, %v6753
      %v6786 = vpack.c.bf16 %v6755, %v6754
      %v6787 = vpack.c.bf16 %v6757, %v6756
      %v6788 = vpack.c.bf16 %v6759, %v6758
      %v6789 = vpack.c.bf16 %v6761, %v6760
      %v6790 = vpack.c.bf16 %v6763, %v6762
      %v6791 = vpack.c.bf16 %v6765, %v6764
      %v6792 = vpack.c.bf16 %v6767, %v6766
      %v6793 = vpack.c.bf16 %v6769, %v6768
      %v6794 = vpack.c.bf16 %v6771, %v6770
      %v6795 = vpack.c.bf16 %v6773, %v6772
      %v6796 = vpack.c.bf16 %v6775, %v6774
      %v6797 = vpack.c.bf16 %v6777, %v6776
      %v6798 = vpack.c.bf16 %v6779, %v6778
      %v6799 = vpack.c.bf16 %v6781, %v6780
      %v6800 = vpack.c.bf16 %v6783, %v6782
      %v6801 = vpack.c.bf16 %v6785, %v6784
      %v6802 = vld [vmem:[%s5] sm:$0xf]
      %v6803 = vld [vmem:[%s5 + $0x4] sm:$0xf]
      %v6804 = vld [vmem:[%s5 + $0x8] sm:$0xf]
      %v6805 = vld [vmem:[%s5 + $0xc] sm:$0xf]
      %v6806 = vld [vmem:[%s6] sm:$0x1]
      %v6808 = vlaneseq
      %v6809 = vshrl.u32 %v6808, 7
      %v6810 = vsub.s32 0, %v6809
      %v6811 = vrot.slane %v6806, %v6810
      %v6817 = vunpack.c.l.b16 %v6802
      %v6818 = vunpack.c.l.b16 %v6803
      %v6819 = vunpack.c.l.b16 %v6804
      %v6820 = vunpack.c.l.b16 %v6805
      %v6821 = vpack.c.b16 %v6818, %v6817
      %v6822 = vpack.c.b16 %v6820, %v6819
      %v6826 = vsel %vm2395, %v6786, 0
      %v6829 = vsel %vm2395, %v6787, 0
      %v6832 = vsel %vm2395, %v6788, 0
      %v6835 = vsel %vm2395, %v6789, 0
      %v6838 = vsel %vm2395, %v6790, 0
      %v6841 = vsel %vm2395, %v6791, 0
      %v6844 = vsel %vm2395, %v6792, 0
      %v6847 = vsel %vm2395, %v6793, 0
      %v6850 = vsel %vm2395, %v6794, 0
      %v6853 = vsel %vm2395, %v6795, 0
      %v6856 = vsel %vm2395, %v6796, 0
      %v6859 = vsel %vm2395, %v6797, 0
      %v6862 = vsel %vm2395, %v6798, 0
      %v6865 = vsel %vm2395, %v6799, 0
      %v6868 = vsel %vm2395, %v6800, 0
      %v6871 = vsel %vm2395, %v6801, 0
      %6873 = vmatprep.subr.bf16.mxu0 0
      %6874 = vmatpush1.bf16.msra.mxu0 %v6821
      %6875 = vmatprep.subr.bf16.mxu0 0
      %6876 = vmatpush1.bf16.msra.mxu0 %v6822
      %6877 = vmatprep.subr.bf16.mxu0 0
      %6878 = vmatpush1.bf16.msra.mxu0 0
      %6879 = vmatprep.subr.bf16.mxu0 0
      %6880 = vmatpush1.bf16.msra.mxu0 0
      %6881 = vmatprep.subr.bf16.mxu0 0
      %6882 = vmatpush1.bf16.msra.mxu0 0
      %6883 = vmatprep.subr.bf16.mxu0 0
      %6884 = vmatpush1.bf16.msra.mxu0 0
      %6885 = vmatprep.subr.bf16.mxu0 0
      %6886 = vmatpush1.bf16.msra.mxu0 0
      %6887 = vmatprep.subr.bf16.mxu0 0
      %6888 = vmatpush1.bf16.msra.mxu0 0
      %6889 = vmatprep.subr.bf16.mxu0 0
      %6890 = vmatpush1.bf16.msra.mxu0 0
      %6891 = vmatprep.subr.bf16.mxu0 0
      %6892 = vmatpush1.bf16.msra.mxu0 0
      %6893 = vmatprep.subr.bf16.mxu0 0
      %6894 = vmatpush1.bf16.msra.mxu0 0
      %6895 = vmatprep.subr.bf16.mxu0 0
      %6896 = vmatpush1.bf16.msra.mxu0 0
      %6897 = vmatprep.subr.bf16.mxu0 0
      %6898 = vmatpush1.bf16.msra.mxu0 0
      %6899 = vmatprep.subr.bf16.mxu0 0
      %6900 = vmatpush1.bf16.msra.mxu0 0
      %6901 = vmatprep.subr.bf16.mxu0 0
      %6902 = vmatpush1.bf16.msra.mxu0 0
      %6903 = vmatprep.subr.bf16.mxu0 0
      %6904 = vmatpush1.bf16.msra.mxu0 0
      %6905 = vmatprep.mubr.bf16.mxu0 0
      %6906 = vmatmul.mubr.bf16.gmra.mrb[0].mxu0 %v6826
      %v6907 = vpop.f32.mrb[0].mxu0
      %v6908 = vadd.f32 %v6811, %v6907
      %v6909 = vpop.f32.mrb[0].mxu0
      %v6910 = vpop.f32.mrb[0].mxu0
      %v6911 = vadd.f32 %v6811, %v6910
      %v6912 = vpop.f32.mrb[0].mxu0
      %6913 = vmatprep.mubr.bf16.mxu0 0
      %6914 = vmatmul.mubr.bf16.gmra.mrb[0].mxu0 %v6829
      %v6915 = vpop.f32.mrb[0].mxu0
      %v6916 = vadd.f32 %v6811, %v6915
      %v6917 = vpop.f32.mrb[0].mxu0
      %v6918 = vpop.f32.mrb[0].mxu0
      %v6919 = vadd.f32 %v6811, %v6918
      %v6920 = vpop.f32.mrb[0].mxu0
      %6921 = vmatprep.mubr.bf16.mxu0 0
      %6922 = vmatmul.mubr.bf16.gmra.mrb[0].mxu0 %v6832
      %v6923 = vpop.f32.mrb[0].mxu0
      %v6924 = vadd.f32 %v6811, %v6923
      %v6925 = vpop.f32.mrb[0].mxu0
      %v6926 = vpop.f32.mrb[0].mxu0
      %v6927 = vadd.f32 %v6811, %v6926
      %v6928 = vpop.f32.mrb[0].mxu0
      %6929 = vmatprep.mubr.bf16.mxu0 0
      %6930 = vmatmul.mubr.bf16.gmra.mrb[0].mxu0 %v6835
      %v6931 = vpop.f32.mrb[0].mxu0
      %v6932 = vadd.f32 %v6811, %v6931
      %v6933 = vpop.f32.mrb[0].mxu0
      %v6934 = vpop.f32.mrb[0].mxu0
      %v6935 = vadd.f32 %v6811, %v6934
      %v6936 = vpop.f32.mrb[0].mxu0
      %6937 = vmatprep.mubr.bf16.mxu0 0
      %6938 = vmatmul.mubr.bf16.gmra.mrb[0].mxu0 %v6838
      %v6939 = vpop.f32.mrb[0].mxu0
      %v6940 = vadd.f32 %v6811, %v6939
      %v6941 = vpop.f32.mrb[0].mxu0
      %v6942 = vpop.f32.mrb[0].mxu0
      %v6943 = vadd.f32 %v6811, %v6942
      %v6944 = vpop.f32.mrb[0].mxu0
      %6945 = vmatprep.mubr.bf16.mxu0 0
      %6946 = vmatmul.mubr.bf16.gmra.mrb[0].mxu0 %v6841
      %v6947 = vpop.f32.mrb[0].mxu0
      %v6948 = vadd.f32 %v6811, %v6947
      %v6949 = vpop.f32.mrb[0].mxu0
      %v6950 = vpop.f32.mrb[0].mxu0
      %v6951 = vadd.f32 %v6811, %v6950
      %v6952 = vpop.f32.mrb[0].mxu0
      %6953 = vmatprep.mubr.bf16.mxu0 0
      %6954 = vmatmul.mubr.bf16.gmra.mrb[0].mxu0 %v6844
      %v6955 = vpop.f32.mrb[0].mxu0
      %v6956 = vadd.f32 %v6811, %v6955
      %v6957 = vpop.f32.mrb[0].mxu0
      %v6958 = vpop.f32.mrb[0].mxu0
      %v6959 = vadd.f32 %v6811, %v6958
      %v6960 = vpop.f32.mrb[0].mxu0
      %6961 = vmatprep.mubr.bf16.mxu0 0
      %6962 = vmatmul.mubr.bf16.gmra.mrb[0].mxu0 %v6847
      %v6963 = vpop.f32.mrb[0].mxu0
      %v6964 = vadd.f32 %v6811, %v6963
      %v6965 = vpop.f32.mrb[0].mxu0
      %v6966 = vpop.f32.mrb[0].mxu0
      %v6967 = vadd.f32 %v6811, %v6966
      %v6968 = vpop.f32.mrb[0].mxu0
      %6969 = vmatprep.mubr.bf16.mxu0 0
      %6970 = vmatmul.mubr.bf16.gmra.mrb[0].mxu0 %v6850
      %v6971 = vpop.f32.mrb[0].mxu0
      %v6972 = vadd.f32 %v6811, %v6971
      %v6973 = vpop.f32.mrb[0].mxu0
      %v6974 = vpop.f32.mrb[0].mxu0
      %v6975 = vadd.f32 %v6811, %v6974
      %v6976 = vpop.f32.mrb[0].mxu0
      %6977 = vmatprep.mubr.bf16.mxu0 0
      %6978 = vmatmul.mubr.bf16.gmra.mrb[0].mxu0 %v6853
      %v6979 = vpop.f32.mrb[0].mxu0
      %v6980 = vadd.f32 %v6811, %v6979
      %v6981 = vpop.f32.mrb[0].mxu0
      %v6982 = vpop.f32.mrb[0].mxu0
      %v6983 = vadd.f32 %v6811, %v6982
      %v6984 = vpop.f32.mrb[0].mxu0
      %6985 = vmatprep.mubr.bf16.mxu0 0
      %6986 = vmatmul.mubr.bf16.gmra.mrb[0].mxu0 %v6856
      %v6987 = vpop.f32.mrb[0].mxu0
      %v6988 = vadd.f32 %v6811, %v6987
      %v6989 = vpop.f32.mrb[0].mxu0
      %v6990 = vpop.f32.mrb[0].mxu0
      %v6991 = vadd.f32 %v6811, %v6990
      %v6992 = vpop.f32.mrb[0].mxu0
      %6993 = vmatprep.mubr.bf16.mxu0 0
      %6994 = vmatmul.mubr.bf16.gmra.mrb[0].mxu0 %v6859
      %v6995 = vpop.f32.mrb[0].mxu0
      %v6996 = vadd.f32 %v6811, %v6995
      %v6997 = vpop.f32.mrb[0].mxu0
      %v6998 = vpop.f32.mrb[0].mxu0
      %v6999 = vadd.f32 %v6811, %v6998
      %v7000 = vpop.f32.mrb[0].mxu0
      %7001 = vmatprep.mubr.bf16.mxu0 0
      %7002 = vmatmul.mubr.bf16.gmra.mrb[0].mxu0 %v6862
      %v7003 = vpop.f32.mrb[0].mxu0
      %v7004 = vadd.f32 %v6811, %v7003
      %v7005 = vpop.f32.mrb[0].mxu0
      %v7006 = vpop.f32.mrb[0].mxu0
      %v7007 = vadd.f32 %v6811, %v7006
      %v7008 = vpop.f32.mrb[0].mxu0
      %7009 = vmatprep.mubr.bf16.mxu0 0
      %7010 = vmatmul.mubr.bf16.gmra.mrb[0].mxu0 %v6865
      %v7011 = vpop.f32.mrb[0].mxu0
      %v7012 = vadd.f32 %v6811, %v7011
      %v7013 = vpop.f32.mrb[0].mxu0
      %v7014 = vpop.f32.mrb[0].mxu0
      %v7015 = vadd.f32 %v6811, %v7014
      %v7016 = vpop.f32.mrb[0].mxu0
      %7017 = vmatprep.mubr.bf16.mxu0 0
      %7018 = vmatmul.mubr.bf16.gmra.mrb[0].mxu0 %v6868
      %v7019 = vpop.f32.mrb[0].mxu0
      %v7020 = vadd.f32 %v6811, %v7019
      %v7021 = vpop.f32.mrb[0].mxu0
      %v7022 = vpop.f32.mrb[0].mxu0
      %v7023 = vadd.f32 %v6811, %v7022
      %v7024 = vpop.f32.mrb[0].mxu0
      %7025 = vmatprep.mubr.bf16.mxu0 0
      %7026 = vmatmul.mubr.bf16.gmra.mrb[0].mxu0 %v6871
      %v7027 = vpop.f32.mrb[0].mxu0
      %v7028 = vadd.f32 %v6811, %v7027
      %v7029 = vpop.f32.mrb[0].mxu0
      %v7030 = vpop.f32.mrb[0].mxu0
      %v7031 = vadd.f32 %v6811, %v7030
      %v7032 = vpop.f32.mrb[0].mxu0
      %7033 = vdwg.mxu0
      %7034 = vst.msk [vmem:[%s278] sm:$0xff] %vm280, %v6908
      %7035 = vst.msk [vmem:[%s278 + $0x8] sm:$0xff] %vm280, %v6911
      %7036 = vst.msk [vmem:[%s278 + $0x10] sm:$0xff] %vm280, %v6916
      %7037 = vst.msk [vmem:[%s278 + $0x18] sm:$0xff] %vm280, %v6919
      %7038 = vst.msk [vmem:[%s278 + $0x20] sm:$0xff] %vm280, %v6924
      %7039 = vst.msk [vmem:[%s278 + $0x28] sm:$0xff] %vm280, %v6927
      %7040 = vst.msk [vmem:[%s278 + $0x30] sm:$0xff] %vm280, %v6932
      %7041 = vst.msk [vmem:[%s278 + $0x38] sm:$0xff] %vm280, %v6935
      %7042 = vst.msk [vmem:[%s278 + $0x40] sm:$0xff] %vm280, %v6940
      %7043 = vst.msk [vmem:[%s278 + $0x48] sm:$0xff] %vm280, %v6943
      %7044 = vst.msk [vmem:[%s278 + $0x50] sm:$0xff] %vm280, %v6948
      %7045 = vst.msk [vmem:[%s278 + $0x58] sm:$0xff] %vm280, %v6951
      %7046 = vst.msk [vmem:[%s278 + $0x60] sm:$0xff] %vm280, %v6956
      %7047 = vst.msk [vmem:[%s278 + $0x68] sm:$0xff] %vm280, %v6959
      %7048 = vst.msk [vmem:[%s278 + $0x70] sm:$0xff] %vm280, %v6964
      %7049 = vst.msk [vmem:[%s278 + $0x78] sm:$0xff] %vm280, %v6967
      %7050 = vst.msk [vmem:[%s278 + $0x80] sm:$0xff] %vm280, %v6972
      %7051 = vst.msk [vmem:[%s278 + $0x88] sm:$0xff] %vm280, %v6975
      %7052 = vst.msk [vmem:[%s278 + $0x90] sm:$0xff] %vm280, %v6980
      %7053 = vst.msk [vmem:[%s278 + $0x98] sm:$0xff] %vm280, %v6983
      %7054 = vst.msk [vmem:[%s278 + $0xa0] sm:$0xff] %vm280, %v6988
      %7055 = vst.msk [vmem:[%s278 + $0xa8] sm:$0xff] %vm280, %v6991
      %7056 = vst.msk [vmem:[%s278 + $0xb0] sm:$0xff] %vm280, %v6996
      %7057 = vst.msk [vmem:[%s278 + $0xb8] sm:$0xff] %vm280, %v6999
      %7058 = vst.msk [vmem:[%s278 + $0xc0] sm:$0xff] %vm280, %v7004
      %7059 = vst.msk [vmem:[%s278 + $0xc8] sm:$0xff] %vm280, %v7007
      %7060 = vst.msk [vmem:[%s278 + $0xd0] sm:$0xff] %vm280, %v7012
      %7061 = vst.msk [vmem:[%s278 + $0xd8] sm:$0xff] %vm280, %v7015
      %7062 = vst.msk [vmem:[%s278 + $0xe0] sm:$0xff] %vm280, %v7020
      %7063 = vst.msk [vmem:[%s278 + $0xe8] sm:$0xff] %vm280, %v7023
      %7064 = vst.msk [vmem:[%s278 + $0xf0] sm:$0xff] %vm280, %v7028
      %7065 = vst.msk [vmem:[%s278 + $0xf8] sm:$0xff] %vm280, %v7031
      %p7066 = scmp.lt.s32.totalorder %s18, 1
      %s7067 = scalar_select %p7066, %s18, 1
      %s7068 = smul.addr %s7067, 32
      %s7069 = smul.addr %s7068, 8
      %s7070 = scalar_lea.vmem %s7, %s7069
      // Predicated region
      $region49: #{tpu_custom_call.1} parent=47 // pred_check
        %p7071 = pneg %p188
      $region50: #{tpu_custom_call.1} parent=47 // pred_check_branch
        %7073 = sbr.rel (%p7071) target = $region52
      $region51: #{tpu_custom_call.1} parent=47 // pred_region
        _
      $region52: #{tpu_custom_call.1} parent=47 // pred_fallthru
        _
    $region48: #{tpu_custom_call.1} parent=5 // pred_fallthru
      _
    %p7074 = scmp.le.s32.totalorder 2, %s13
    // Predicated region
    $region53: #{tpu_custom_call.1} parent=5 // pred_check
      %p7075 = pneg %p7074
    $region54: #{tpu_custom_call.1} parent=5 // pred_check_branch
      %7077 = sbr.rel (%p7075) target = $region56
    $region55: #{tpu_custom_call.1} parent=5 // pred_region
      %s7078 = ssub.s32 %s13, 2
      // Predicated region
      $region57: #{tpu_custom_call.1} parent=55 // pred_check
        %p7079 = pneg %p194
      $region58: #{tpu_custom_call.1} parent=55 // pred_check_branch
        %7081 = sbr.rel (%p7079) target = $region60
      $region59: #{tpu_custom_call.1} parent=55 // pred_region
        %p7082 = scmp.lt.s32.totalorder %s19, 1
        %s7083 = scalar_select %p7082, %s19, 1
        %s7084 = smul.addr %s7083, 32
        %s7085 = smul.addr %s7084, 8
        %s7086 = scalar_lea.vmem %s7, %s7085
      $region60: #{tpu_custom_call.1} parent=55 // pred_fallthru
        _
    $region56: #{tpu_custom_call.1} parent=5 // pred_fallthru
      _
  $region6: #{tpu_custom_call.1} parent=0 // loop_footer
    %s17 = sadd.s32 1, %s13
  $region7: #{tpu_custom_call.1} parent=0 // loop_footer_branch
    %12 = sbr.rel target = $region3
  $region8: #{tpu_custom_call.1} parent=0 // loop_exit
    _

</llo_original>
